<compile_context>
chip_gen: v7x
topology: tpu7x:2x2x1
jax: 0.10.0
libtpu: 0.0.40
codegen_flags: <defaults>
</compile_context>

<pallas_src>
import jax
import jax.numpy as jnp
from jax.experimental import pallas as pl
from jax.experimental.pallas import tpu as pltpu

EPS = 1e-5
LANES = 128


def _round_up(x, m):
    return (x + m - 1) // m * m


def block_kernel(x_ref, w1_ref, w2_ref, g2_ref, b2_ref, out_ref,
                 xp_ref, col_ref, h_ref):
    N, H, W, Cp = x_ref.shape
    Wp = xp_ref.shape[2]
    M = N * H * W
    gamma2 = g2_ref[...]   # (1, Cp) f32
    beta2 = b2_ref[...]    # (1, Cp) f32

    # ---- Zero ONLY the 1-px halo of the padded activation scratch. ----
    # Interior is overwritten below; the extra sublane-pad columns (>= W+2)
    # are never read by any tap, so they need no initialization.
    xp_ref[:, 0:1, :, :] = jnp.zeros((N, 1, Wp, Cp), jnp.float32)
    xp_ref[:, H + 1:H + 2, :, :] = jnp.zeros((N, 1, Wp, Cp), jnp.float32)
    xp_ref[:, :, 0:1, :] = jnp.zeros((N, H + 2, 1, Cp), jnp.float32)
    xp_ref[:, :, W + 1:W + 2, :] = jnp.zeros((N, H + 2, 1, Cp), jnp.float32)

    def im2col():
        # (N,H+2,Wp,Cp) padded activation -> (M, 9*Cp) bf16 im2col buffer.
        for dy in range(3):
            for dx in range(3):
                k = dy * 3 + dx
                patch = xp_ref[:, dy:dy + H, dx:dx + W, :]          # (N,H,W,Cp)
                col_ref[:, k * Cp:(k + 1) * Cp] = (
                    patch.reshape(M, Cp).astype(col_ref.dtype))

    def bn_coeffs():
        # One stats pass over h_ref -> folded scale/bias (training-mode BN,
        # biased variance over the N*H*W axis).  Variance clamped to >= 0.
        hv = h_ref[...]
        inv_m = 1.0 / M
        s1 = jnp.sum(hv, axis=0, keepdims=True)
        s2 = jnp.sum(hv * hv, axis=0, keepdims=True)
        mean = s1 * inv_m
        var = jnp.maximum(s2 * inv_m - mean * mean, 0.0)
        scale = gamma2 * jax.lax.rsqrt(var + EPS)   # (1, Cp)
        bias = beta2 - mean * scale                 # (1, Cp)
        return scale, bias

    # ---- x = relu(batch_norm2(conv1(x)))   (batch_norm2: module quirk) ----
    xp_ref[:, 1:H + 1, 1:W + 1, :] = x_ref[...]
    im2col()
    h_ref[...] = jnp.dot(col_ref[...], w1_ref[...],
                         preferred_element_type=jnp.float32)
    scale, bias = bn_coeffs()
    # Fused BN-apply + relu + store (becomes conv2's padded input).
    xp_ref[:, 1:H + 1, 1:W + 1, :] = jnp.maximum(
        h_ref[...] * scale + bias, 0.0).reshape(N, H, W, Cp)

    # ---- x = batch_norm2(conv2(x)) ; x += identity ; relu ----
    im2col()
    h_ref[...] = jnp.dot(col_ref[...], w2_ref[...],
                         preferred_element_type=jnp.float32)
    scale, bias = bn_coeffs()
    out_ref[...] = jnp.maximum(
        (h_ref[...] * scale + bias).reshape(N, H, W, Cp) + x_ref[...], 0.0)


def _prep_conv_weight(w_oihw, Cp):
    """(Cout, Cin, 3, 3) -> (9*Cp, Cp) bf16 im2col weight, zero channel pad."""
    Cout, Cin = w_oihw.shape[0], w_oihw.shape[1]
    wt = jnp.transpose(w_oihw.astype(jnp.float32), (2, 3, 1, 0))  # (3,3,Cin,Cout)
    wt = jnp.pad(wt, ((0, 0), (0, 0), (0, Cp - Cin), (0, Cp - Cout)))
    return wt.reshape(9 * Cp, Cp).astype(jnp.bfloat16)


def _vmem_limit_bytes(needed_bytes):
    try:
        cap = pltpu.get_tpu_info().vmem_capacity_bytes
    except Exception:
        cap = 64 * 1024 * 1024
    return int(min(max(needed_bytes + (4 << 20), 16 << 20), cap))


def block_forward_nhwc(x_nhwc, w1_oihw, w2_oihw, gamma2, beta2):
    """NHWC in / NHWC out Block forward (keep a backbone NHWC end-to-end)."""
    N, H, W, C = x_nhwc.shape
    # shortcut=None requires in_ch == out_ch; padded-lane invariant relies on
    # zero-padding BOTH conv weights and gamma/beta below.
    assert w1_oihw.shape == (C, C, 3, 3) and w2_oihw.shape == (C, C, 3, 3)
    assert gamma2.shape == (C,) and beta2.shape == (C,)

    Cp = _round_up(C, LANES)      # lane-dense working channel count
    Wp = _round_up(W + 2, 8)      # sublane-aligned padded row stride
    M = N * H * W

    x_p = jnp.pad(x_nhwc.astype(jnp.float32),
                  ((0, 0), (0, 0), (0, 0), (0, Cp - C)))
    w1c = _prep_conv_weight(w1_oihw, Cp)
    w2c = _prep_conv_weight(w2_oihw, Cp)
    g2 = jnp.pad(gamma2.astype(jnp.float32), (0, Cp - C)).reshape(1, Cp)
    b2 = jnp.pad(beta2.astype(jnp.float32), (0, Cp - C)).reshape(1, Cp)

    # Cost estimate from *real* channel count (padded lanes are zeros);
    # bytes = actual HBM traffic of the call's operands/results.
    flops = 2 * (2 * M * 9 * C * C)
    bytes_accessed = (4 * 2 * M * Cp            # x in + out (f32)
                      + 2 * 2 * 9 * Cp * Cp     # bf16 weights
                      + 4 * 2 * Cp)             # gamma/beta

    in_out_bytes = 4 * 2 * M * Cp + 2 * 2 * 9 * Cp * Cp + 4 * 2 * Cp
    scratch_bytes = (4 * N * (H + 2) * Wp * Cp  # padded activation (f32)
                     + 2 * M * 9 * Cp           # im2col buffer (bf16)
                     + 4 * M * Cp)              # staged matmul result (f32)
    vmem_limit = _vmem_limit_bytes(2 * in_out_bytes + scratch_bytes)

    out_p = pl.pallas_call(
        block_kernel,
        out_shape=jax.ShapeDtypeStruct((N, H, W, Cp), jnp.float32),
        grid=(1,),
        in_specs=[
            pl.BlockSpec((N, H, W, Cp), lambda i: (0, 0, 0, 0)),
            pl.BlockSpec((9 * Cp, Cp), lambda i: (0, 0)),
            pl.BlockSpec((9 * Cp, Cp), lambda i: (0, 0)),
            pl.BlockSpec((1, Cp), lambda i: (0, 0)),
            pl.BlockSpec((1, Cp), lambda i: (0, 0)),
        ],
        out_specs=pl.BlockSpec((N, H, W, Cp), lambda i: (0, 0, 0, 0)),
        scratch_shapes=[
            pltpu.VMEM((N, H + 2, Wp, Cp), jnp.float32),   # padded activation
            pltpu.VMEM((M, 9 * Cp), jnp.bfloat16),         # im2col buffer
            pltpu.VMEM((M, Cp), jnp.float32),              # staged conv result
        ],
        compiler_params=pltpu.CompilerParams(
            dimension_semantics=("arbitrary",),
            vmem_limit_bytes=vmem_limit,
        ),
        cost_estimate=pl.CostEstimate(
            flops=flops, transcendentals=2 * C, bytes_accessed=bytes_accessed),
    )(x_p, w1c, w2c, g2, b2)

    return out_p[..., :C]


def block_forward(x_nchw, w1_oihw, w2_oihw, gamma2, beta2):
    """PyTorch-layout convenience wrapper (NCHW in / NCHW out).

    In a real backbone, hoist these transposes and stay NHWC end-to-end
    (call block_forward_nhwc directly).
    """
    x_nhwc = jnp.transpose(x_nchw, (0, 2, 3, 1))
    out_nhwc = block_forward_nhwc(x_nhwc, w1_oihw, w2_oihw, gamma2, beta2)
    return jnp.transpose(out_nhwc, (0, 3, 1, 2))


# ---------------------------------------------------------------------------
# Pure-JAX references (mirror the PyTorch forward).  `mxu_bf16=True` rounds
# the conv operands to bf16 (matching the kernel's MXU operand precision)
# while keeping BN / residual math in f32.
# ---------------------------------------------------------------------------
def block_reference(x_nchw, w1_oihw, w2_oihw, gamma2, beta2, mxu_bf16=False):
    op_dt = jnp.bfloat16 if mxu_bf16 else jnp.float32

    def conv(x, w):
        return jax.lax.conv_general_dilated(
            x.astype(op_dt), w.astype(op_dt),
            window_strides=(1, 1), padding=((1, 1), (1, 1)),
            dimension_numbers=("NCHW", "OIHW", "NCHW"),
            preferred_element_type=jnp.float32)

    def bn_train(x, g, b):
        mean = jnp.mean(x, axis=(0, 2, 3), keepdims=True)
        var = jnp.mean((x - mean) ** 2, axis=(0, 2, 3), keepdims=True)
        return (g.reshape(1, -1, 1, 1) * (x - mean) * jax.lax.rsqrt(var + EPS)
                + b.reshape(1, -1, 1, 1))

    identity = x_nchw.astype(jnp.float32)
    h = jax.nn.relu(bn_train(conv(x_nchw, w1_oihw), gamma2, beta2))
    h = bn_train(conv(h, w2_oihw), gamma2, beta2)
    return jax.nn.relu(h + identity)


if __name__ == "__main__":
    N, C, H, W = 2, 8, 16, 16

    key = jax.random.PRNGKey(0)
    kx, k1, k2, kg, kb, kg1, kb1 = jax.random.split(key, 7)

    x = jax.random.normal(kx, (N, C, H, W), jnp.float32)
    # Parameters per nn.Conv2d / nn.BatchNorm2d layouts.
    w1 = 0.1 * jax.random.normal(k1, (C, C, 3, 3), jnp.float32)    # conv1.weight
    w2 = 0.1 * jax.random.normal(k2, (C, C, 3, 3), jnp.float32)    # conv2.weight
    gamma2 = 1.0 + 0.1 * jax.random.normal(kg, (C,), jnp.float32)  # batch_norm2.weight
    beta2 = 0.1 * jax.random.normal(kb, (C,), jnp.float32)         # batch_norm2.bias
    # batch_norm1 parameters exist in the module but are never used in forward.
    _gamma1_unused = 1.0 + 0.1 * jax.random.normal(kg1, (C,), jnp.float32)
    _beta1_unused = 0.1 * jax.random.normal(kb1, (C,), jnp.float32)

    out = jax.block_until_ready(block_forward(x, w1, w2, gamma2, beta2))
    ref_mxu = jax.block_until_ready(
        block_reference(x, w1, w2, gamma2, beta2, mxu_bf16=True))
    ref_f32 = jax.block_until_ready(
        block_reference(x, w1, w2, gamma2, beta2, mxu_bf16=False))

    assert out.shape == (N, C, H, W)
    err_mxu = float(jnp.max(jnp.abs(out - ref_mxu)))
    err_f32 = float(jnp.max(jnp.abs(out - ref_f32)))
    # Tight check against the bf16-operand reference (same math as the kernel).
    assert jnp.allclose(out, ref_mxu, atol=1e-3, rtol=1e-3), \
        f"bf16-ref max abs err {err_mxu}"
    # Loose sanity check against the exact f32 reference (bf16 MXU operands).
    assert jnp.allclose(out, ref_f32, atol=1e-1, rtol=1e-1), \
        f"f32-ref max abs err {err_f32}"

    print("KERNEL_OK")
</pallas_src>

<mosaic_0001>
module attributes {stable_mosaic.version = 11 : i64} {
  func.func @block_kernel(%arg0: i32, %arg1: memref<2x16x16x128xf32, #tpu.memory_space<vmem>>, %arg2: memref<1152x128xbf16, #tpu.memory_space<vmem>>, %arg3: memref<1152x128xbf16, #tpu.memory_space<vmem>>, %arg4: memref<1x128xf32, #tpu.memory_space<vmem>>, %arg5: memref<1x128xf32, #tpu.memory_space<vmem>>, %arg6: memref<2x16x16x128xf32, #tpu.memory_space<vmem>>, %arg7: memref<2x18x24x128xf32, #tpu.memory_space<vmem>>, %arg8: memref<512x1152xbf16, #tpu.memory_space<vmem>>, %arg9: memref<512x128xf32, #tpu.memory_space<vmem>>) attributes {dimension_semantics = [#tpu.dimension_semantics<arbitrary>], iteration_bounds = array<i64: 1>, scalar_prefetch = 0 : i64, scratch_operands = 3 : i64, tpu.core_type = #tpu.core_type<tc>, window_params = [{pipeline_mode = #tpu.pipeline_mode<synchronous>, transform_indices = @transform_0, window_bounds = array<i64: 2, 16, 16, 128>}, {pipeline_mode = #tpu.pipeline_mode<synchronous>, transform_indices = @transform_1, window_bounds = array<i64: 1152, 128>}, {pipeline_mode = #tpu.pipeline_mode<synchronous>, transform_indices = @transform_2, window_bounds = array<i64: 1152, 128>}, {pipeline_mode = #tpu.pipeline_mode<synchronous>, transform_indices = @transform_3, window_bounds = array<i64: 1, 128>}, {pipeline_mode = #tpu.pipeline_mode<synchronous>, transform_indices = @transform_4, window_bounds = array<i64: 1, 128>}, {pipeline_mode = #tpu.pipeline_mode<synchronous>, transform_indices = @transform_5, window_bounds = array<i64: 2, 16, 16, 128>}]} {
    %c0 = arith.constant 0 : index
    %c0_0 = arith.constant 0 : index
    %0 = vector.load %arg4[%c0, %c0_0] : memref<1x128xf32, #tpu.memory_space<vmem>>, vector<1x128xf32>
    %c0_1 = arith.constant 0 : index
    %c0_2 = arith.constant 0 : index
    %1 = vector.load %arg5[%c0_1, %c0_2] : memref<1x128xf32, #tpu.memory_space<vmem>>, vector<1x128xf32>
    %cst = arith.constant 0.000000e+00 : f32
    %2 = vector.broadcast %cst : f32 to vector<2x1x24x128xf32>
    %c0_3 = arith.constant 0 : index
    %c0_4 = arith.constant 0 : index
    %c0_5 = arith.constant 0 : index
    %c0_6 = arith.constant 0 : index
    %3 = vector.load %arg7[%c0_3, %c0_4, %c0_5, %c0_6] : memref<2x18x24x128xf32, #tpu.memory_space<vmem>>, vector<2x1x24x128xf32>
    tpu.vector_store %arg7[%c0_3, %c0_4, %c0_5, %c0_6], %2 {strides = array<i32>} : memref<2x18x24x128xf32, #tpu.memory_space<vmem>>, vector<2x1x24x128xf32>,
    %cst_7 = arith.constant 0.000000e+00 : f32
    %4 = vector.broadcast %cst_7 : f32 to vector<2x1x24x128xf32>
    %c0_8 = arith.constant 0 : index
    %c17 = arith.constant 17 : index
    %c0_9 = arith.constant 0 : index
    %c0_10 = arith.constant 0 : index
    %5 = vector.load %arg7[%c0_8, %c17, %c0_9, %c0_10] : memref<2x18x24x128xf32, #tpu.memory_space<vmem>>, vector<2x1x24x128xf32>
    tpu.vector_store %arg7[%c0_8, %c17, %c0_9, %c0_10], %4 {strides = array<i32>} : memref<2x18x24x128xf32, #tpu.memory_space<vmem>>, vector<2x1x24x128xf32>,
    %cst_11 = arith.constant 0.000000e+00 : f32
    %6 = vector.broadcast %cst_11 : f32 to vector<2x18x1x128xf32>
    %c0_12 = arith.constant 0 : index
    %c0_13 = arith.constant 0 : index
    %c0_14 = arith.constant 0 : index
    %c0_15 = arith.constant 0 : index
    %7 = vector.load %arg7[%c0_12, %c0_13, %c0_14, %c0_15] : memref<2x18x24x128xf32, #tpu.memory_space<vmem>>, vector<2x18x1x128xf32>
    tpu.vector_store %arg7[%c0_12, %c0_13, %c0_14, %c0_15], %6 {strides = array<i32>} : memref<2x18x24x128xf32, #tpu.memory_space<vmem>>, vector<2x18x1x128xf32>,
    %cst_16 = arith.constant 0.000000e+00 : f32
    %8 = vector.broadcast %cst_16 : f32 to vector<2x18x1x128xf32>
    %c0_17 = arith.constant 0 : index
    %c0_18 = arith.constant 0 : index
    %c17_19 = arith.constant 17 : index
    %c0_20 = arith.constant 0 : index
    %9 = vector.load %arg7[%c0_17, %c0_18, %c17_19, %c0_20] : memref<2x18x24x128xf32, #tpu.memory_space<vmem>>, vector<2x18x1x128xf32>
    tpu.vector_store %arg7[%c0_17, %c0_18, %c17_19, %c0_20], %8 {strides = array<i32>} : memref<2x18x24x128xf32, #tpu.memory_space<vmem>>, vector<2x18x1x128xf32>,
    %c0_21 = arith.constant 0 : index
    %c0_22 = arith.constant 0 : index
    %c0_23 = arith.constant 0 : index
    %c0_24 = arith.constant 0 : index
    %10 = vector.load %arg1[%c0_21, %c0_22, %c0_23, %c0_24] : memref<2x16x16x128xf32, #tpu.memory_space<vmem>>, vector<2x16x16x128xf32>
    %c0_25 = arith.constant 0 : index
    %c1 = arith.constant 1 : index
    %c1_26 = arith.constant 1 : index
    %c0_27 = arith.constant 0 : index
    %11 = vector.load %arg7[%c0_25, %c1, %c1_26, %c0_27] : memref<2x18x24x128xf32, #tpu.memory_space<vmem>>, vector<2x16x16x128xf32>
    tpu.vector_store %arg7[%c0_25, %c1, %c1_26, %c0_27], %10 {strides = array<i32>} : memref<2x18x24x128xf32, #tpu.memory_space<vmem>>, vector<2x16x16x128xf32>,
    %c0_28 = arith.constant 0 : index
    %c0_29 = arith.constant 0 : index
    %c0_30 = arith.constant 0 : index
    %c0_31 = arith.constant 0 : index
    %12 = vector.load %arg7[%c0_28, %c0_29, %c0_30, %c0_31] : memref<2x18x24x128xf32, #tpu.memory_space<vmem>>, vector<2x16x16x128xf32>
    %13 = vector.shape_cast %12 : vector<2x16x16x128xf32> to vector<512x128xf32>
    %14 = arith.truncf %13 : vector<512x128xf32> to vector<512x128xbf16>
    %c0_32 = arith.constant 0 : index
    %c0_33 = arith.constant 0 : index
    %15 = vector.load %arg8[%c0_32, %c0_33] : memref<512x1152xbf16, #tpu.memory_space<vmem>>, vector<512x128xbf16>
    tpu.vector_store %arg8[%c0_32, %c0_33], %14 {strides = array<i32>} : memref<512x1152xbf16, #tpu.memory_space<vmem>>, vector<512x128xbf16>,
    %c0_34 = arith.constant 0 : index
    %c0_35 = arith.constant 0 : index
    %c1_36 = arith.constant 1 : index
    %c0_37 = arith.constant 0 : index
    %16 = vector.load %arg7[%c0_34, %c0_35, %c1_36, %c0_37] : memref<2x18x24x128xf32, #tpu.memory_space<vmem>>, vector<2x16x16x128xf32>
    %17 = vector.shape_cast %16 : vector<2x16x16x128xf32> to vector<512x128xf32>
    %18 = arith.truncf %17 : vector<512x128xf32> to vector<512x128xbf16>
    %c0_38 = arith.constant 0 : index
    %c128 = arith.constant 128 : index
    %19 = vector.load %arg8[%c0_38, %c128] : memref<512x1152xbf16, #tpu.memory_space<vmem>>, vector<512x128xbf16>
    tpu.vector_store %arg8[%c0_38, %c128], %18 {strides = array<i32>} : memref<512x1152xbf16, #tpu.memory_space<vmem>>, vector<512x128xbf16>,
    %c0_39 = arith.constant 0 : index
    %c0_40 = arith.constant 0 : index
    %c2 = arith.constant 2 : index
    %c0_41 = arith.constant 0 : index
    %20 = vector.load %arg7[%c0_39, %c0_40, %c2, %c0_41] : memref<2x18x24x128xf32, #tpu.memory_space<vmem>>, vector<2x16x16x128xf32>
    %21 = vector.shape_cast %20 : vector<2x16x16x128xf32> to vector<512x128xf32>
    %22 = arith.truncf %21 : vector<512x128xf32> to vector<512x128xbf16>
    %c0_42 = arith.constant 0 : index
    %c256 = arith.constant 256 : index
    %23 = vector.load %arg8[%c0_42, %c256] : memref<512x1152xbf16, #tpu.memory_space<vmem>>, vector<512x128xbf16>
    tpu.vector_store %arg8[%c0_42, %c256], %22 {strides = array<i32>} : memref<512x1152xbf16, #tpu.memory_space<vmem>>, vector<512x128xbf16>,
    %c0_43 = arith.constant 0 : index
    %c1_44 = arith.constant 1 : index
    %c0_45 = arith.constant 0 : index
    %c0_46 = arith.constant 0 : index
    %24 = vector.load %arg7[%c0_43, %c1_44, %c0_45, %c0_46] : memref<2x18x24x128xf32, #tpu.memory_space<vmem>>, vector<2x16x16x128xf32>
    %25 = vector.shape_cast %24 : vector<2x16x16x128xf32> to vector<512x128xf32>
    %26 = arith.truncf %25 : vector<512x128xf32> to vector<512x128xbf16>
    %c0_47 = arith.constant 0 : index
    %c384 = arith.constant 384 : index
    %27 = vector.load %arg8[%c0_47, %c384] : memref<512x1152xbf16, #tpu.memory_space<vmem>>, vector<512x128xbf16>
    tpu.vector_store %arg8[%c0_47, %c384], %26 {strides = array<i32>} : memref<512x1152xbf16, #tpu.memory_space<vmem>>, vector<512x128xbf16>,
    %c0_48 = arith.constant 0 : index
    %c1_49 = arith.constant 1 : index
    %c1_50 = arith.constant 1 : index
    %c0_51 = arith.constant 0 : index
    %28 = vector.load %arg7[%c0_48, %c1_49, %c1_50, %c0_51] : memref<2x18x24x128xf32, #tpu.memory_space<vmem>>, vector<2x16x16x128xf32>
    %29 = vector.shape_cast %28 : vector<2x16x16x128xf32> to vector<512x128xf32>
    %30 = arith.truncf %29 : vector<512x128xf32> to vector<512x128xbf16>
    %c0_52 = arith.constant 0 : index
    %c512 = arith.constant 512 : index
    %31 = vector.load %arg8[%c0_52, %c512] : memref<512x1152xbf16, #tpu.memory_space<vmem>>, vector<512x128xbf16>
    tpu.vector_store %arg8[%c0_52, %c512], %30 {strides = array<i32>} : memref<512x1152xbf16, #tpu.memory_space<vmem>>, vector<512x128xbf16>,
    %c0_53 = arith.constant 0 : index
    %c1_54 = arith.constant 1 : index
    %c2_55 = arith.constant 2 : index
    %c0_56 = arith.constant 0 : index
    %32 = vector.load %arg7[%c0_53, %c1_54, %c2_55, %c0_56] : memref<2x18x24x128xf32, #tpu.memory_space<vmem>>, vector<2x16x16x128xf32>
    %33 = vector.shape_cast %32 : vector<2x16x16x128xf32> to vector<512x128xf32>
    %34 = arith.truncf %33 : vector<512x128xf32> to vector<512x128xbf16>
    %c0_57 = arith.constant 0 : index
    %c640 = arith.constant 640 : index
    %35 = vector.load %arg8[%c0_57, %c640] : memref<512x1152xbf16, #tpu.memory_space<vmem>>, vector<512x128xbf16>
    tpu.vector_store %arg8[%c0_57, %c640], %34 {strides = array<i32>} : memref<512x1152xbf16, #tpu.memory_space<vmem>>, vector<512x128xbf16>,
    %c0_58 = arith.constant 0 : index
    %c2_59 = arith.constant 2 : index
    %c0_60 = arith.constant 0 : index
    %c0_61 = arith.constant 0 : index
    %36 = vector.load %arg7[%c0_58, %c2_59, %c0_60, %c0_61] : memref<2x18x24x128xf32, #tpu.memory_space<vmem>>, vector<2x16x16x128xf32>
    %37 = vector.shape_cast %36 : vector<2x16x16x128xf32> to vector<512x128xf32>
    %38 = arith.truncf %37 : vector<512x128xf32> to vector<512x128xbf16>
    %c0_62 = arith.constant 0 : index
    %c768 = arith.constant 768 : index
    %39 = vector.load %arg8[%c0_62, %c768] : memref<512x1152xbf16, #tpu.memory_space<vmem>>, vector<512x128xbf16>
    tpu.vector_store %arg8[%c0_62, %c768], %38 {strides = array<i32>} : memref<512x1152xbf16, #tpu.memory_space<vmem>>, vector<512x128xbf16>,
    %c0_63 = arith.constant 0 : index
    %c2_64 = arith.constant 2 : index
    %c1_65 = arith.constant 1 : index
    %c0_66 = arith.constant 0 : index
    %40 = vector.load %arg7[%c0_63, %c2_64, %c1_65, %c0_66] : memref<2x18x24x128xf32, #tpu.memory_space<vmem>>, vector<2x16x16x128xf32>
    %41 = vector.shape_cast %40 : vector<2x16x16x128xf32> to vector<512x128xf32>
    %42 = arith.truncf %41 : vector<512x128xf32> to vector<512x128xbf16>
    %c0_67 = arith.constant 0 : index
    %c896 = arith.constant 896 : index
    %43 = vector.load %arg8[%c0_67, %c896] : memref<512x1152xbf16, #tpu.memory_space<vmem>>, vector<512x128xbf16>
    tpu.vector_store %arg8[%c0_67, %c896], %42 {strides = array<i32>} : memref<512x1152xbf16, #tpu.memory_space<vmem>>, vector<512x128xbf16>,
    %c0_68 = arith.constant 0 : index
    %c2_69 = arith.constant 2 : index
    %c2_70 = arith.constant 2 : index
    %c0_71 = arith.constant 0 : index
    %44 = vector.load %arg7[%c0_68, %c2_69, %c2_70, %c0_71] : memref<2x18x24x128xf32, #tpu.memory_space<vmem>>, vector<2x16x16x128xf32>
    %45 = vector.shape_cast %44 : vector<2x16x16x128xf32> to vector<512x128xf32>
    %46 = arith.truncf %45 : vector<512x128xf32> to vector<512x128xbf16>
    %c0_72 = arith.constant 0 : index
    %c1024 = arith.constant 1024 : index
    %47 = vector.load %arg8[%c0_72, %c1024] : memref<512x1152xbf16, #tpu.memory_space<vmem>>, vector<512x128xbf16>
    tpu.vector_store %arg8[%c0_72, %c1024], %46 {strides = array<i32>} : memref<512x1152xbf16, #tpu.memory_space<vmem>>, vector<512x128xbf16>,
    %c0_73 = arith.constant 0 : index
    %c0_74 = arith.constant 0 : index
    %48 = vector.load %arg8[%c0_73, %c0_74] : memref<512x1152xbf16, #tpu.memory_space<vmem>>, vector<512x1152xbf16>
    %c0_75 = arith.constant 0 : index
    %c0_76 = arith.constant 0 : index
    %49 = vector.load %arg2[%c0_75, %c0_76] : memref<1152x128xbf16, #tpu.memory_space<vmem>>, vector<1152x128xbf16>
    %cst_77 = arith.constant dense<0.000000e+00> : vector<512x128xf32>
    %50 = tpu.matmul %48, %49, %cst_77 {dimension_numbers = #tpu.dot_dimension_numbers<[1], [0], [0], [1], [0, 0, 1, 1], [], []>} : vector<512x1152xbf16>, vector<1152x128xbf16>, vector<512x128xf32> -> vector<512x128xf32>
    %c0_78 = arith.constant 0 : index
    %c0_79 = arith.constant 0 : index
    %51 = vector.load %arg9[%c0_78, %c0_79] : memref<512x128xf32, #tpu.memory_space<vmem>>, vector<512x128xf32>
    tpu.vector_store %arg9[%c0_78, %c0_79], %50 {strides = array<i32>} : memref<512x128xf32, #tpu.memory_space<vmem>>, vector<512x128xf32>,
    %c0_80 = arith.constant 0 : index
    %c0_81 = arith.constant 0 : index
    %52 = vector.load %arg9[%c0_80, %c0_81] : memref<512x128xf32, #tpu.memory_space<vmem>>, vector<512x128xf32>
    %cst_82 = arith.constant dense<0.000000e+00> : vector<128xf32>
    %53 = vector.multi_reduction <add>, %52, %cst_82 [0] : vector<512x128xf32> to vector<128xf32>
    %54 = vector.shape_cast %53 : vector<128xf32> to vector<1x128xf32>
    %55 = arith.mulf %52, %52 : vector<512x128xf32>
    %cst_83 = arith.constant dense<0.000000e+00> : vector<128xf32>
    %56 = vector.multi_reduction <add>, %55, %cst_83 [0] : vector<512x128xf32> to vector<128xf32>
    %57 = vector.shape_cast %56 : vector<128xf32> to vector<1x128xf32>
    %cst_84 = arith.constant 0.001953125 : f32
    %58 = vector.broadcast %cst_84 : f32 to vector<1x128xf32>
    %59 = arith.mulf %54, %58 : vector<1x128xf32>
    %cst_85 = arith.constant 0.001953125 : f32
    %60 = vector.broadcast %cst_85 : f32 to vector<1x128xf32>
    %61 = arith.mulf %57, %60 : vector<1x128xf32>
    %62 = arith.mulf %59, %59 : vector<1x128xf32>
    %63 = arith.subf %61, %62 : vector<1x128xf32>
    %cst_86 = arith.constant 0.000000e+00 : f32
    %64 = vector.broadcast %cst_86 : f32 to vector<1x128xf32>
    %65 = arith.maximumf %63, %64 : vector<1x128xf32>
    %cst_87 = arith.constant 9.99999974E-6 : f32
    %66 = vector.broadcast %cst_87 : f32 to vector<1x128xf32>
    %67 = arith.addf %65, %66 : vector<1x128xf32>
    %68 = math.rsqrt %67 : vector<1x128xf32>
    %69 = arith.mulf %0, %68 : vector<1x128xf32>
    %70 = arith.mulf %59, %69 : vector<1x128xf32>
    %71 = arith.subf %1, %70 : vector<1x128xf32>
    %c0_88 = arith.constant 0 : index
    %c0_89 = arith.constant 0 : index
    %72 = vector.load %arg9[%c0_88, %c0_89] : memref<512x128xf32, #tpu.memory_space<vmem>>, vector<512x128xf32>
    %73 = vector.broadcast %69 : vector<1x128xf32> to vector<512x128xf32>
    %74 = arith.mulf %72, %73 : vector<512x128xf32>
    %75 = vector.broadcast %71 : vector<1x128xf32> to vector<512x128xf32>
    %76 = arith.addf %74, %75 : vector<512x128xf32>
    %cst_90 = arith.constant 0.000000e+00 : f32
    %77 = vector.broadcast %cst_90 : f32 to vector<512x128xf32>
    %78 = arith.maximumf %76, %77 : vector<512x128xf32>
    %79 = vector.shape_cast %78 : vector<512x128xf32> to vector<2x16x16x128xf32>
    %c0_91 = arith.constant 0 : index
    %c1_92 = arith.constant 1 : index
    %c1_93 = arith.constant 1 : index
    %c0_94 = arith.constant 0 : index
    %80 = vector.load %arg7[%c0_91, %c1_92, %c1_93, %c0_94] : memref<2x18x24x128xf32, #tpu.memory_space<vmem>>, vector<2x16x16x128xf32>
    tpu.vector_store %arg7[%c0_91, %c1_92, %c1_93, %c0_94], %79 {strides = array<i32>} : memref<2x18x24x128xf32, #tpu.memory_space<vmem>>, vector<2x16x16x128xf32>,
    %c0_95 = arith.constant 0 : index
    %c0_96 = arith.constant 0 : index
    %c0_97 = arith.constant 0 : index
    %c0_98 = arith.constant 0 : index
    %81 = vector.load %arg7[%c0_95, %c0_96, %c0_97, %c0_98] : memref<2x18x24x128xf32, #tpu.memory_space<vmem>>, vector<2x16x16x128xf32>
    %82 = vector.shape_cast %81 : vector<2x16x16x128xf32> to vector<512x128xf32>
    %83 = arith.truncf %82 : vector<512x128xf32> to vector<512x128xbf16>
    %c0_99 = arith.constant 0 : index
    %c0_100 = arith.constant 0 : index
    %84 = vector.load %arg8[%c0_99, %c0_100] : memref<512x1152xbf16, #tpu.memory_space<vmem>>, vector<512x128xbf16>
    tpu.vector_store %arg8[%c0_99, %c0_100], %83 {strides = array<i32>} : memref<512x1152xbf16, #tpu.memory_space<vmem>>, vector<512x128xbf16>,
    %c0_101 = arith.constant 0 : index
    %c0_102 = arith.constant 0 : index
    %c1_103 = arith.constant 1 : index
    %c0_104 = arith.constant 0 : index
    %85 = vector.load %arg7[%c0_101, %c0_102, %c1_103, %c0_104] : memref<2x18x24x128xf32, #tpu.memory_space<vmem>>, vector<2x16x16x128xf32>
    %86 = vector.shape_cast %85 : vector<2x16x16x128xf32> to vector<512x128xf32>
    %87 = arith.truncf %86 : vector<512x128xf32> to vector<512x128xbf16>
    %c0_105 = arith.constant 0 : index
    %c128_106 = arith.constant 128 : index
    %88 = vector.load %arg8[%c0_105, %c128_106] : memref<512x1152xbf16, #tpu.memory_space<vmem>>, vector<512x128xbf16>
    tpu.vector_store %arg8[%c0_105, %c128_106], %87 {strides = array<i32>} : memref<512x1152xbf16, #tpu.memory_space<vmem>>, vector<512x128xbf16>,
    %c0_107 = arith.constant 0 : index
    %c0_108 = arith.constant 0 : index
    %c2_109 = arith.constant 2 : index
    %c0_110 = arith.constant 0 : index
    %89 = vector.load %arg7[%c0_107, %c0_108, %c2_109, %c0_110] : memref<2x18x24x128xf32, #tpu.memory_space<vmem>>, vector<2x16x16x128xf32>
    %90 = vector.shape_cast %89 : vector<2x16x16x128xf32> to vector<512x128xf32>
    %91 = arith.truncf %90 : vector<512x128xf32> to vector<512x128xbf16>
    %c0_111 = arith.constant 0 : index
    %c256_112 = arith.constant 256 : index
    %92 = vector.load %arg8[%c0_111, %c256_112] : memref<512x1152xbf16, #tpu.memory_space<vmem>>, vector<512x128xbf16>
    tpu.vector_store %arg8[%c0_111, %c256_112], %91 {strides = array<i32>} : memref<512x1152xbf16, #tpu.memory_space<vmem>>, vector<512x128xbf16>,
    %c0_113 = arith.constant 0 : index
    %c1_114 = arith.constant 1 : index
    %c0_115 = arith.constant 0 : index
    %c0_116 = arith.constant 0 : index
    %93 = vector.load %arg7[%c0_113, %c1_114, %c0_115, %c0_116] : memref<2x18x24x128xf32, #tpu.memory_space<vmem>>, vector<2x16x16x128xf32>
    %94 = vector.shape_cast %93 : vector<2x16x16x128xf32> to vector<512x128xf32>
    %95 = arith.truncf %94 : vector<512x128xf32> to vector<512x128xbf16>
    %c0_117 = arith.constant 0 : index
    %c384_118 = arith.constant 384 : index
    %96 = vector.load %arg8[%c0_117, %c384_118] : memref<512x1152xbf16, #tpu.memory_space<vmem>>, vector<512x128xbf16>
    tpu.vector_store %arg8[%c0_117, %c384_118], %95 {strides = array<i32>} : memref<512x1152xbf16, #tpu.memory_space<vmem>>, vector<512x128xbf16>,
    %c0_119 = arith.constant 0 : index
    %c1_120 = arith.constant 1 : index
    %c1_121 = arith.constant 1 : index
    %c0_122 = arith.constant 0 : index
    %97 = vector.load %arg7[%c0_119, %c1_120, %c1_121, %c0_122] : memref<2x18x24x128xf32, #tpu.memory_space<vmem>>, vector<2x16x16x128xf32>
    %98 = vector.shape_cast %97 : vector<2x16x16x128xf32> to vector<512x128xf32>
    %99 = arith.truncf %98 : vector<512x128xf32> to vector<512x128xbf16>
    %c0_123 = arith.constant 0 : index
    %c512_124 = arith.constant 512 : index
    %100 = vector.load %arg8[%c0_123, %c512_124] : memref<512x1152xbf16, #tpu.memory_space<vmem>>, vector<512x128xbf16>
    tpu.vector_store %arg8[%c0_123, %c512_124], %99 {strides = array<i32>} : memref<512x1152xbf16, #tpu.memory_space<vmem>>, vector<512x128xbf16>,
    %c0_125 = arith.constant 0 : index
    %c1_126 = arith.constant 1 : index
    %c2_127 = arith.constant 2 : index
    %c0_128 = arith.constant 0 : index
    %101 = vector.load %arg7[%c0_125, %c1_126, %c2_127, %c0_128] : memref<2x18x24x128xf32, #tpu.memory_space<vmem>>, vector<2x16x16x128xf32>
    %102 = vector.shape_cast %101 : vector<2x16x16x128xf32> to vector<512x128xf32>
    %103 = arith.truncf %102 : vector<512x128xf32> to vector<512x128xbf16>
    %c0_129 = arith.constant 0 : index
    %c640_130 = arith.constant 640 : index
    %104 = vector.load %arg8[%c0_129, %c640_130] : memref<512x1152xbf16, #tpu.memory_space<vmem>>, vector<512x128xbf16>
    tpu.vector_store %arg8[%c0_129, %c640_130], %103 {strides = array<i32>} : memref<512x1152xbf16, #tpu.memory_space<vmem>>, vector<512x128xbf16>,
    %c0_131 = arith.constant 0 : index
    %c2_132 = arith.constant 2 : index
    %c0_133 = arith.constant 0 : index
    %c0_134 = arith.constant 0 : index
    %105 = vector.load %arg7[%c0_131, %c2_132, %c0_133, %c0_134] : memref<2x18x24x128xf32, #tpu.memory_space<vmem>>, vector<2x16x16x128xf32>
    %106 = vector.shape_cast %105 : vector<2x16x16x128xf32> to vector<512x128xf32>
    %107 = arith.truncf %106 : vector<512x128xf32> to vector<512x128xbf16>
    %c0_135 = arith.constant 0 : index
    %c768_136 = arith.constant 768 : index
    %108 = vector.load %arg8[%c0_135, %c768_136] : memref<512x1152xbf16, #tpu.memory_space<vmem>>, vector<512x128xbf16>
    tpu.vector_store %arg8[%c0_135, %c768_136], %107 {strides = array<i32>} : memref<512x1152xbf16, #tpu.memory_space<vmem>>, vector<512x128xbf16>,
    %c0_137 = arith.constant 0 : index
    %c2_138 = arith.constant 2 : index
    %c1_139 = arith.constant 1 : index
    %c0_140 = arith.constant 0 : index
    %109 = vector.load %arg7[%c0_137, %c2_138, %c1_139, %c0_140] : memref<2x18x24x128xf32, #tpu.memory_space<vmem>>, vector<2x16x16x128xf32>
    %110 = vector.shape_cast %109 : vector<2x16x16x128xf32> to vector<512x128xf32>
    %111 = arith.truncf %110 : vector<512x128xf32> to vector<512x128xbf16>
    %c0_141 = arith.constant 0 : index
    %c896_142 = arith.constant 896 : index
    %112 = vector.load %arg8[%c0_141, %c896_142] : memref<512x1152xbf16, #tpu.memory_space<vmem>>, vector<512x128xbf16>
    tpu.vector_store %arg8[%c0_141, %c896_142], %111 {strides = array<i32>} : memref<512x1152xbf16, #tpu.memory_space<vmem>>, vector<512x128xbf16>,
    %c0_143 = arith.constant 0 : index
    %c2_144 = arith.constant 2 : index
    %c2_145 = arith.constant 2 : index
    %c0_146 = arith.constant 0 : index
    %113 = vector.load %arg7[%c0_143, %c2_144, %c2_145, %c0_146] : memref<2x18x24x128xf32, #tpu.memory_space<vmem>>, vector<2x16x16x128xf32>
    %114 = vector.shape_cast %113 : vector<2x16x16x128xf32> to vector<512x128xf32>
    %115 = arith.truncf %114 : vector<512x128xf32> to vector<512x128xbf16>
    %c0_147 = arith.constant 0 : index
    %c1024_148 = arith.constant 1024 : index
    %116 = vector.load %arg8[%c0_147, %c1024_148] : memref<512x1152xbf16, #tpu.memory_space<vmem>>, vector<512x128xbf16>
    tpu.vector_store %arg8[%c0_147, %c1024_148], %115 {strides = array<i32>} : memref<512x1152xbf16, #tpu.memory_space<vmem>>, vector<512x128xbf16>,
    %c0_149 = arith.constant 0 : index
    %c0_150 = arith.constant 0 : index
    %117 = vector.load %arg8[%c0_149, %c0_150] : memref<512x1152xbf16, #tpu.memory_space<vmem>>, vector<512x1152xbf16>
    %c0_151 = arith.constant 0 : index
    %c0_152 = arith.constant 0 : index
    %118 = vector.load %arg3[%c0_151, %c0_152] : memref<1152x128xbf16, #tpu.memory_space<vmem>>, vector<1152x128xbf16>
    %cst_153 = arith.constant dense<0.000000e+00> : vector<512x128xf32>
    %119 = tpu.matmul %117, %118, %cst_153 {dimension_numbers = #tpu.dot_dimension_numbers<[1], [0], [0], [1], [0, 0, 1, 1], [], []>} : vector<512x1152xbf16>, vector<1152x128xbf16>, vector<512x128xf32> -> vector<512x128xf32>
    %c0_154 = arith.constant 0 : index
    %c0_155 = arith.constant 0 : index
    %120 = vector.load %arg9[%c0_154, %c0_155] : memref<512x128xf32, #tpu.memory_space<vmem>>, vector<512x128xf32>
    tpu.vector_store %arg9[%c0_154, %c0_155], %119 {strides = array<i32>} : memref<512x128xf32, #tpu.memory_space<vmem>>, vector<512x128xf32>,
    %c0_156 = arith.constant 0 : index
    %c0_157 = arith.constant 0 : index
    %121 = vector.load %arg9[%c0_156, %c0_157] : memref<512x128xf32, #tpu.memory_space<vmem>>, vector<512x128xf32>
    %cst_158 = arith.constant dense<0.000000e+00> : vector<128xf32>
    %122 = vector.multi_reduction <add>, %121, %cst_158 [0] : vector<512x128xf32> to vector<128xf32>
    %123 = vector.shape_cast %122 : vector<128xf32> to vector<1x128xf32>
    %124 = arith.mulf %121, %121 : vector<512x128xf32>
    %cst_159 = arith.constant dense<0.000000e+00> : vector<128xf32>
    %125 = vector.multi_reduction <add>, %124, %cst_159 [0] : vector<512x128xf32> to vector<128xf32>
    %126 = vector.shape_cast %125 : vector<128xf32> to vector<1x128xf32>
    %cst_160 = arith.constant 0.001953125 : f32
    %127 = vector.broadcast %cst_160 : f32 to vector<1x128xf32>
    %128 = arith.mulf %123, %127 : vector<1x128xf32>
    %cst_161 = arith.constant 0.001953125 : f32
    %129 = vector.broadcast %cst_161 : f32 to vector<1x128xf32>
    %130 = arith.mulf %126, %129 : vector<1x128xf32>
    %131 = arith.mulf %128, %128 : vector<1x128xf32>
    %132 = arith.subf %130, %131 : vector<1x128xf32>
    %cst_162 = arith.constant 0.000000e+00 : f32
    %133 = vector.broadcast %cst_162 : f32 to vector<1x128xf32>
    %134 = arith.maximumf %132, %133 : vector<1x128xf32>
    %cst_163 = arith.constant 9.99999974E-6 : f32
    %135 = vector.broadcast %cst_163 : f32 to vector<1x128xf32>
    %136 = arith.addf %134, %135 : vector<1x128xf32>
    %137 = math.rsqrt %136 : vector<1x128xf32>
    %138 = arith.mulf %0, %137 : vector<1x128xf32>
    %139 = arith.mulf %128, %138 : vector<1x128xf32>
    %140 = arith.subf %1, %139 : vector<1x128xf32>
    %c0_164 = arith.constant 0 : index
    %c0_165 = arith.constant 0 : index
    %141 = vector.load %arg9[%c0_164, %c0_165] : memref<512x128xf32, #tpu.memory_space<vmem>>, vector<512x128xf32>
    %142 = vector.broadcast %138 : vector<1x128xf32> to vector<512x128xf32>
    %143 = arith.mulf %141, %142 : vector<512x128xf32>
    %144 = vector.broadcast %140 : vector<1x128xf32> to vector<512x128xf32>
    %145 = arith.addf %143, %144 : vector<512x128xf32>
    %146 = vector.shape_cast %145 : vector<512x128xf32> to vector<2x16x16x128xf32>
    %c0_166 = arith.constant 0 : index
    %c0_167 = arith.constant 0 : index
    %c0_168 = arith.constant 0 : index
    %c0_169 = arith.constant 0 : index
    %147 = vector.load %arg1[%c0_166, %c0_167, %c0_168, %c0_169] : memref<2x16x16x128xf32, #tpu.memory_space<vmem>>, vector<2x16x16x128xf32>
    %148 = arith.addf %146, %147 : vector<2x16x16x128xf32>
    %cst_170 = arith.constant 0.000000e+00 : f32
    %149 = vector.broadcast %cst_170 : f32 to vector<2x16x16x128xf32>
    %150 = arith.maximumf %148, %149 : vector<2x16x16x128xf32>
    %c0_171 = arith.constant 0 : index
    %c0_172 = arith.constant 0 : index
    %c0_173 = arith.constant 0 : index
    %c0_174 = arith.constant 0 : index
    %151 = vector.load %arg6[%c0_171, %c0_172, %c0_173, %c0_174] : memref<2x16x16x128xf32, #tpu.memory_space<vmem>>, vector<2x16x16x128xf32>
    tpu.vector_store %arg6[%c0_171, %c0_172, %c0_173, %c0_174], %150 {strides = array<i32>} : memref<2x16x16x128xf32, #tpu.memory_space<vmem>>, vector<2x16x16x128xf32>,
    return
  }
  func.func @transform_0(%arg0: i32) -> (i32, i32, i32, i32) {
    %c0_i32 = arith.constant 0 : i32
    %c0_i32_0 = arith.constant 0 : i32
    %c0_i32_1 = arith.constant 0 : i32
    %c0_i32_2 = arith.constant 0 : i32
    %c0_i32_3 = arith.constant 0 : i32
    return %c0_i32, %c0_i32_0, %c0_i32_1, %c0_i32_2 : i32, i32, i32, i32
  }
  func.func @transform_1(%arg0: i32) -> (i32, i32) {
    %c0_i32 = arith.constant 0 : i32
    %c0_i32_0 = arith.constant 0 : i32
    %c0_i32_1 = arith.constant 0 : i32
    return %c0_i32, %c0_i32_0 : i32, i32
  }
  func.func @transform_2(%arg0: i32) -> (i32, i32) {
    %c0_i32 = arith.constant 0 : i32
    %c0_i32_0 = arith.constant 0 : i32
    %c0_i32_1 = arith.constant 0 : i32
    return %c0_i32, %c0_i32_0 : i32, i32
  }
  func.func @transform_3(%arg0: i32) -> (i32, i32) {
    %c0_i32 = arith.constant 0 : i32
    %c0_i32_0 = arith.constant 0 : i32
    %c0_i32_1 = arith.constant 0 : i32
    return %c0_i32, %c0_i32_0 : i32, i32
  }
  func.func @transform_4(%arg0: i32) -> (i32, i32) {
    %c0_i32 = arith.constant 0 : i32
    %c0_i32_0 = arith.constant 0 : i32
    %c0_i32_1 = arith.constant 0 : i32
    return %c0_i32, %c0_i32_0 : i32, i32
  }
  func.func @transform_5(%arg0: i32) -> (i32, i32, i32, i32) {
    %c0_i32 = arith.constant 0 : i32
    %c0_i32_0 = arith.constant 0 : i32
    %c0_i32_1 = arith.constant 0 : i32
    %c0_i32_2 = arith.constant 0 : i32
    %c0_i32_3 = arith.constant 0 : i32
    return %c0_i32, %c0_i32_0, %c0_i32_1, %c0_i32_2 : i32, i32, i32, i32
  }
}

</mosaic_0001>

<llo_original>
// kernel: tpu_custom_call.1
$region0: #{tpu_custom_call.1}
  #allocation0 [shape = 'u32[]', space=smem, size = 0x4, offset = 0x4, fixed_abs, tag = 'smem constant byte address 0x4 - core index']
  #allocation1 [shape = 'u32[144,128]{1,0:T(1,128)}', space=vmem, size = 0x12000, scoped, tag = 'internal scratch']
  #allocation2 [shape = 'f32[2,18,24,128]{3,2,1,0:T(8,128)}', space=vmem, size = 0x6c000, scoped, tag = 'scratch operand']
  #allocation3 [shape = 'bf16[512,1152]{1,0:T(16,128)(2,1)}', space=vmem, size = 0x120000, scoped, tag = 'scratch operand']
  #allocation4 [shape = 'f32[512,128]{1,0:T(8,128)}', space=vmem, size = 0x40000, scoped, tag = 'scratch operand']
  %s0 = inlined_call_operand.hbm [shape: f32[2,16,16,128], index: 0, kind: input, shape index: {}]
  %s1 = inlined_call_operand.hbm [shape: bf16[1152,128], index: 1, kind: input, shape index: {}]
  %s2 = inlined_call_operand.hbm [shape: bf16[1152,128], index: 2, kind: input, shape index: {}]
  %s3 = inlined_call_operand.vmem [shape: f32[1,128], index: 3, kind: input, shape index: {}]
  %s4 = inlined_call_operand.vmem [shape: f32[1,128], index: 4, kind: input, shape index: {}]
  %s5 = inlined_call_operand.hbm [shape: f32[2,16,16,128], index: 5, kind: output, shape index: {}]
  %s6 = sld [smem:[#allocation0]]
  $region42: #{tpu_custom_call.1} parent=0
    _
  %s8 = ssub.s32 1, %s6
  %s9 = scalar_select 0, %s8, %s6
  $region1: #{tpu_custom_call.1} parent=0
    #allocation5 [shape = 'u8[262144]{0}', space=vmem, size = 0x40000, scoped, tag = 'input window, operand 0, single buffered']
    #allocation6 [shape = 's32[1]{0}', space=sflag, size = 0x4, scoped, tag = 'scoped memory for tpu_custom_call.1']
    #allocation7 [shape = 's32[1]{0}', space=sflag, size = 0x4, scoped, tag = 'scoped memory for tpu_custom_call.1']
    #allocation8 [shape = 'u8[294912]{0}', space=vmem, size = 0x48000, scoped, tag = 'input window, operand 1, single buffered']
    #allocation9 [shape = 's32[1]{0}', space=sflag, size = 0x4, scoped, tag = 'scoped memory for tpu_custom_call.1']
    #allocation10 [shape = 'u8[294912]{0}', space=vmem, size = 0x48000, scoped, tag = 'input window, operand 2, single buffered']
    #allocation11 [shape = 'u8[262144]{0}', space=vmem, size = 0x40000, scoped, tag = 'output window, operand 0, single buffered']
    %10 = vsyncpa [#allocation6], 0
    %11 = vsyncpa [#allocation9], 0
    %12 = vsyncpa [#allocation7], 0
    // Predicated region
    $region2: #{tpu_custom_call.1} parent=1 // pred_check
      _
    $region3: #{tpu_custom_call.1} parent=1 // pred_check_branch
      %14 = sbr.rel (0) target = $region5
    $region4: #{tpu_custom_call.1} parent=1 // pred_region
      %s16 = ssub.s32 8192, 8192
      %17 = vsyncadd [#allocation6], %s16
      %s18 = sshll.u32 [#allocation5], 4
      %s19 = int_to_ptr.vmem [resolvable:$true] %s18
      %24 = dma.hbm_to_vmem [thread:$0]  %s0, 8192, %s19, [#allocation6], 128, 128, 8
    $region5: #{tpu_custom_call.1} parent=1 // pred_fallthru
      _
    // Predicated region
    $region6: #{tpu_custom_call.1} parent=1 // pred_check
      _
    $region7: #{tpu_custom_call.1} parent=1 // pred_check_branch
      %26 = sbr.rel (0) target = $region9
    $region8: #{tpu_custom_call.1} parent=1 // pred_region
      %s28 = ssub.s32 9216, 9216
      %29 = vsyncadd [#allocation9], %s28
      %s30 = sshll.u32 [#allocation8], 4
      %s31 = int_to_ptr.vmem [resolvable:$true] %s30
      %36 = dma.hbm_to_vmem [thread:$0]  %s1, 9216, %s31, [#allocation9], 64, 64, 4
    $region9: #{tpu_custom_call.1} parent=1 // pred_fallthru
      _
    // Predicated region
    $region10: #{tpu_custom_call.1} parent=1 // pred_check
      _
    $region11: #{tpu_custom_call.1} parent=1 // pred_check_branch
      %38 = sbr.rel (0) target = $region13
    $region12: #{tpu_custom_call.1} parent=1 // pred_region
      %s40 = ssub.s32 9216, 9216
      %41 = vsyncadd [#allocation9], %s40
      %s42 = sshll.u32 [#allocation10], 4
      %s43 = int_to_ptr.vmem [resolvable:$true] %s42
      %48 = dma.hbm_to_vmem [thread:$0]  %s2, 9216, %s43, [#allocation9], 64, 64, 4
    $region13: #{tpu_custom_call.1} parent=1 // pred_fallthru
      _
    // Predicated region
    $region14: #{tpu_custom_call.1} parent=1 // pred_check
      _
    $region15: #{tpu_custom_call.1} parent=1 // pred_check_branch
      %50 = sbr.rel (0) target = $region17
    $region16: #{tpu_custom_call.1} parent=1 // pred_region
      _
    $region17: #{tpu_custom_call.1} parent=1 // pred_fallthru
      _
    // Predicated region
    $region18: #{tpu_custom_call.1} parent=1 // pred_check
      _
    $region19: #{tpu_custom_call.1} parent=1 // pred_check_branch
      %52 = sbr.rel (0) target = $region21
    $region20: #{tpu_custom_call.1} parent=1 // pred_region
      _
    $region21: #{tpu_custom_call.1} parent=1 // pred_fallthru
      _
    // Predicated region
    $region22: #{tpu_custom_call.1} parent=1 // pred_check
      _
    $region23: #{tpu_custom_call.1} parent=1 // pred_check_branch
      %54 = sbr.rel (0) target = $region25
    $region24: #{tpu_custom_call.1} parent=1 // pred_region
      %55 = dma.done [#allocation6], 8192
    $region25: #{tpu_custom_call.1} parent=1 // pred_fallthru
      _
    // Predicated region
    $region26: #{tpu_custom_call.1} parent=1 // pred_check
      _
    $region27: #{tpu_custom_call.1} parent=1 // pred_check_branch
      %57 = sbr.rel (0) target = $region29
    $region28: #{tpu_custom_call.1} parent=1 // pred_region
      %58 = dma.done [#allocation9], 9216
    $region29: #{tpu_custom_call.1} parent=1 // pred_fallthru
      _
    // Predicated region
    $region30: #{tpu_custom_call.1} parent=1 // pred_check
      _
    $region31: #{tpu_custom_call.1} parent=1 // pred_check_branch
      %60 = sbr.rel (0) target = $region33
    $region32: #{tpu_custom_call.1} parent=1 // pred_region
      %61 = dma.done [#allocation9], 9216
    $region33: #{tpu_custom_call.1} parent=1 // pred_fallthru
      _
    %v63 = vld [vmem:[%s3] sm:$0x1]
    %v64 = vld [vmem:[%s4] sm:$0x1]
    %65 = vst [vmem:[#allocation2] sm:$0xff] 0.0
    %66 = vst [vmem:[#allocation2 + $0x8] sm:$0xff] 0.0
    %67 = vst [vmem:[#allocation2 + $0x10] sm:$0xff] 0.0
    %68 = vst [vmem:[#allocation2 + $0x1b0] sm:$0xff] 0.0
    %69 = vst [vmem:[#allocation2 + $0x1b8] sm:$0xff] 0.0
    %70 = vst [vmem:[#allocation2 + $0x1c0] sm:$0xff] 0.0
    %s71 = scalar_lea.vmem [#allocation2], 408
    %72 = vst [vmem:[%s71] sm:$0xff] 0.0
    %73 = vst [vmem:[%s71 + $0x8] sm:$0xff] 0.0
    %74 = vst [vmem:[%s71 + $0x10] sm:$0xff] 0.0
    %75 = vst [vmem:[%s71 + $0x1b0] sm:$0xff] 0.0
    %76 = vst [vmem:[%s71 + $0x1b8] sm:$0xff] 0.0
    %77 = vst [vmem:[%s71 + $0x1c0] sm:$0xff] 0.0
    %78 = vst [vmem:[#allocation2] sm:$0x1] 0.0
    %79 = vst [vmem:[#allocation2 + $0x18] sm:$0x1] 0.0
    %80 = vst [vmem:[#allocation2 + $0x30] sm:$0x1] 0.0
    %81 = vst [vmem:[#allocation2 + $0x48] sm:$0x1] 0.0
    %82 = vst [vmem:[#allocation2 + $0x60] sm:$0x1] 0.0
    %83 = vst [vmem:[#allocation2 + $0x78] sm:$0x1] 0.0
    %84 = vst [vmem:[#allocation2 + $0x90] sm:$0x1] 0.0
    %85 = vst [vmem:[#allocation2 + $0xa8] sm:$0x1] 0.0
    %86 = vst [vmem:[#allocation2 + $0xc0] sm:$0x1] 0.0
    %87 = vst [vmem:[#allocation2 + $0xd8] sm:$0x1] 0.0
    %88 = vst [vmem:[#allocation2 + $0xf0] sm:$0x1] 0.0
    %89 = vst [vmem:[#allocation2 + $0x108] sm:$0x1] 0.0
    %90 = vst [vmem:[#allocation2 + $0x120] sm:$0x1] 0.0
    %91 = vst [vmem:[#allocation2 + $0x138] sm:$0x1] 0.0
    %92 = vst [vmem:[#allocation2 + $0x150] sm:$0x1] 0.0
    %93 = vst [vmem:[#allocation2 + $0x168] sm:$0x1] 0.0
    %94 = vst [vmem:[#allocation2 + $0x180] sm:$0x1] 0.0
    %95 = vst [vmem:[#allocation2 + $0x198] sm:$0x1] 0.0
    %96 = vst [vmem:[#allocation2 + $0x1b0] sm:$0x1] 0.0
    %97 = vst [vmem:[#allocation2 + $0x1c8] sm:$0x1] 0.0
    %98 = vst [vmem:[#allocation2 + $0x1e0] sm:$0x1] 0.0
    %99 = vst [vmem:[#allocation2 + $0x1f8] sm:$0x1] 0.0
    %100 = vst [vmem:[#allocation2 + $0x210] sm:$0x1] 0.0
    %101 = vst [vmem:[#allocation2 + $0x228] sm:$0x1] 0.0
    %102 = vst [vmem:[#allocation2 + $0x240] sm:$0x1] 0.0
    %103 = vst [vmem:[#allocation2 + $0x258] sm:$0x1] 0.0
    %104 = vst [vmem:[#allocation2 + $0x270] sm:$0x1] 0.0
    %105 = vst [vmem:[#allocation2 + $0x288] sm:$0x1] 0.0
    %106 = vst [vmem:[#allocation2 + $0x2a0] sm:$0x1] 0.0
    %107 = vst [vmem:[#allocation2 + $0x2b8] sm:$0x1] 0.0
    %108 = vst [vmem:[#allocation2 + $0x2d0] sm:$0x1] 0.0
    %109 = vst [vmem:[#allocation2 + $0x2e8] sm:$0x1] 0.0
    %110 = vst [vmem:[#allocation2 + $0x300] sm:$0x1] 0.0
    %111 = vst [vmem:[#allocation2 + $0x318] sm:$0x1] 0.0
    %112 = vst [vmem:[#allocation2 + $0x330] sm:$0x1] 0.0
    %113 = vst [vmem:[#allocation2 + $0x348] sm:$0x1] 0.0
    %114 = vst [vmem:[#allocation2 + $0x11] sm:$0x1] 0.0
    %115 = vst [vmem:[#allocation2 + $0x29] sm:$0x1] 0.0
    %116 = vst [vmem:[#allocation2 + $0x41] sm:$0x1] 0.0
    %117 = vst [vmem:[#allocation2 + $0x59] sm:$0x1] 0.0
    %118 = vst [vmem:[#allocation2 + $0x71] sm:$0x1] 0.0
    %119 = vst [vmem:[#allocation2 + $0x89] sm:$0x1] 0.0
    %120 = vst [vmem:[#allocation2 + $0xa1] sm:$0x1] 0.0
    %121 = vst [vmem:[#allocation2 + $0xb9] sm:$0x1] 0.0
    %122 = vst [vmem:[#allocation2 + $0xd1] sm:$0x1] 0.0
    %123 = vst [vmem:[#allocation2 + $0xe9] sm:$0x1] 0.0
    %124 = vst [vmem:[#allocation2 + $0x101] sm:$0x1] 0.0
    %125 = vst [vmem:[#allocation2 + $0x119] sm:$0x1] 0.0
    %126 = vst [vmem:[#allocation2 + $0x131] sm:$0x1] 0.0
    %127 = vst [vmem:[#allocation2 + $0x149] sm:$0x1] 0.0
    %128 = vst [vmem:[#allocation2 + $0x161] sm:$0x1] 0.0
    %129 = vst [vmem:[#allocation2 + $0x179] sm:$0x1] 0.0
    %130 = vst [vmem:[#allocation2 + $0x191] sm:$0x1] 0.0
    %131 = vst [vmem:[#allocation2 + $0x1a9] sm:$0x1] 0.0
    %132 = vst [vmem:[#allocation2 + $0x1c1] sm:$0x1] 0.0
    %133 = vst [vmem:[#allocation2 + $0x1d9] sm:$0x1] 0.0
    %134 = vst [vmem:[#allocation2 + $0x1f1] sm:$0x1] 0.0
    %135 = vst [vmem:[#allocation2 + $0x209] sm:$0x1] 0.0
    %136 = vst [vmem:[#allocation2 + $0x221] sm:$0x1] 0.0
    %137 = vst [vmem:[#allocation2 + $0x239] sm:$0x1] 0.0
    %138 = vst [vmem:[#allocation2 + $0x251] sm:$0x1] 0.0
    %139 = vst [vmem:[#allocation2 + $0x269] sm:$0x1] 0.0
    %140 = vst [vmem:[#allocation2 + $0x281] sm:$0x1] 0.0
    %141 = vst [vmem:[#allocation2 + $0x299] sm:$0x1] 0.0
    %142 = vst [vmem:[#allocation2 + $0x2b1] sm:$0x1] 0.0
    %143 = vst [vmem:[#allocation2 + $0x2c9] sm:$0x1] 0.0
    %144 = vst [vmem:[#allocation2 + $0x2e1] sm:$0x1] 0.0
    %145 = vst [vmem:[#allocation2 + $0x2f9] sm:$0x1] 0.0
    %146 = vst [vmem:[#allocation2 + $0x311] sm:$0x1] 0.0
    %147 = vst [vmem:[#allocation2 + $0x329] sm:$0x1] 0.0
    %148 = vst [vmem:[#allocation2 + $0x341] sm:$0x1] 0.0
    %149 = vst [vmem:[#allocation2 + $0x359] sm:$0x1] 0.0
    %v150 = vld [vmem:[#allocation5] sm:$0xff]
    %v151 = vld [vmem:[#allocation5 + $0x8] sm:$0xff]
    %v152 = vld [vmem:[#allocation5 + $0x10] sm:$0xff]
    %v153 = vld [vmem:[#allocation5 + $0x18] sm:$0xff]
    %v154 = vld [vmem:[#allocation5 + $0x20] sm:$0xff]
    %v155 = vld [vmem:[#allocation5 + $0x28] sm:$0xff]
    %v156 = vld [vmem:[#allocation5 + $0x30] sm:$0xff]
    %v157 = vld [vmem:[#allocation5 + $0x38] sm:$0xff]
    %v158 = vld [vmem:[#allocation5 + $0x40] sm:$0xff]
    %v159 = vld [vmem:[#allocation5 + $0x48] sm:$0xff]
    %v160 = vld [vmem:[#allocation5 + $0x50] sm:$0xff]
    %v161 = vld [vmem:[#allocation5 + $0x58] sm:$0xff]
    %v162 = vld [vmem:[#allocation5 + $0x60] sm:$0xff]
    %v163 = vld [vmem:[#allocation5 + $0x68] sm:$0xff]
    %v164 = vld [vmem:[#allocation5 + $0x70] sm:$0xff]
    %v165 = vld [vmem:[#allocation5 + $0x78] sm:$0xff]
    %v166 = vld [vmem:[#allocation5 + $0x80] sm:$0xff]
    %v167 = vld [vmem:[#allocation5 + $0x88] sm:$0xff]
    %v168 = vld [vmem:[#allocation5 + $0x90] sm:$0xff]
    %v169 = vld [vmem:[#allocation5 + $0x98] sm:$0xff]
    %v170 = vld [vmem:[#allocation5 + $0xa0] sm:$0xff]
    %v171 = vld [vmem:[#allocation5 + $0xa8] sm:$0xff]
    %v172 = vld [vmem:[#allocation5 + $0xb0] sm:$0xff]
    %v173 = vld [vmem:[#allocation5 + $0xb8] sm:$0xff]
    %v174 = vld [vmem:[#allocation5 + $0xc0] sm:$0xff]
    %v175 = vld [vmem:[#allocation5 + $0xc8] sm:$0xff]
    %v176 = vld [vmem:[#allocation5 + $0xd0] sm:$0xff]
    %v177 = vld [vmem:[#allocation5 + $0xd8] sm:$0xff]
    %v178 = vld [vmem:[#allocation5 + $0xe0] sm:$0xff]
    %v179 = vld [vmem:[#allocation5 + $0xe8] sm:$0xff]
    %v180 = vld [vmem:[#allocation5 + $0xf0] sm:$0xff]
    %v181 = vld [vmem:[#allocation5 + $0xf8] sm:$0xff]
    %v182 = vld [vmem:[#allocation5 + $0x100] sm:$0xff]
    %v183 = vld [vmem:[#allocation5 + $0x108] sm:$0xff]
    %v184 = vld [vmem:[#allocation5 + $0x110] sm:$0xff]
    %v185 = vld [vmem:[#allocation5 + $0x118] sm:$0xff]
    %v186 = vld [vmem:[#allocation5 + $0x120] sm:$0xff]
    %v187 = vld [vmem:[#allocation5 + $0x128] sm:$0xff]
    %v188 = vld [vmem:[#allocation5 + $0x130] sm:$0xff]
    %v189 = vld [vmem:[#allocation5 + $0x138] sm:$0xff]
    %v190 = vld [vmem:[#allocation5 + $0x140] sm:$0xff]
    %v191 = vld [vmem:[#allocation5 + $0x148] sm:$0xff]
    %v192 = vld [vmem:[#allocation5 + $0x150] sm:$0xff]
    %v193 = vld [vmem:[#allocation5 + $0x158] sm:$0xff]
    %v194 = vld [vmem:[#allocation5 + $0x160] sm:$0xff]
    %v195 = vld [vmem:[#allocation5 + $0x168] sm:$0xff]
    %v196 = vld [vmem:[#allocation5 + $0x170] sm:$0xff]
    %v197 = vld [vmem:[#allocation5 + $0x178] sm:$0xff]
    %v198 = vld [vmem:[#allocation5 + $0x180] sm:$0xff]
    %v199 = vld [vmem:[#allocation5 + $0x188] sm:$0xff]
    %v200 = vld [vmem:[#allocation5 + $0x190] sm:$0xff]
    %v201 = vld [vmem:[#allocation5 + $0x198] sm:$0xff]
    %v202 = vld [vmem:[#allocation5 + $0x1a0] sm:$0xff]
    %v203 = vld [vmem:[#allocation5 + $0x1a8] sm:$0xff]
    %v204 = vld [vmem:[#allocation5 + $0x1b0] sm:$0xff]
    %v205 = vld [vmem:[#allocation5 + $0x1b8] sm:$0xff]
    %v206 = vld [vmem:[#allocation5 + $0x1c0] sm:$0xff]
    %v207 = vld [vmem:[#allocation5 + $0x1c8] sm:$0xff]
    %v208 = vld [vmem:[#allocation5 + $0x1d0] sm:$0xff]
    %v209 = vld [vmem:[#allocation5 + $0x1d8] sm:$0xff]
    %v210 = vld [vmem:[#allocation5 + $0x1e0] sm:$0xff]
    %v211 = vld [vmem:[#allocation5 + $0x1e8] sm:$0xff]
    %v212 = vld [vmem:[#allocation5 + $0x1f0] sm:$0xff]
    %v213 = vld [vmem:[#allocation5 + $0x1f8] sm:$0xff]
    %s214 = scalar_lea.vmem [#allocation2], 24
    %215 = vst [vmem:[%s214 + $0x1] sm:$0xff] %v150
    %216 = vst [vmem:[%s214 + $0x9] sm:$0xff] %v151
    %217 = vst [vmem:[%s214 + $0x19] sm:$0xff] %v152
    %218 = vst [vmem:[%s214 + $0x21] sm:$0xff] %v153
    %219 = vst [vmem:[%s214 + $0x31] sm:$0xff] %v154
    %220 = vst [vmem:[%s214 + $0x39] sm:$0xff] %v155
    %221 = vst [vmem:[%s214 + $0x49] sm:$0xff] %v156
    %222 = vst [vmem:[%s214 + $0x51] sm:$0xff] %v157
    %223 = vst [vmem:[%s214 + $0x61] sm:$0xff] %v158
    %224 = vst [vmem:[%s214 + $0x69] sm:$0xff] %v159
    %225 = vst [vmem:[%s214 + $0x79] sm:$0xff] %v160
    %226 = vst [vmem:[%s214 + $0x81] sm:$0xff] %v161
    %227 = vst [vmem:[%s214 + $0x91] sm:$0xff] %v162
    %228 = vst [vmem:[%s214 + $0x99] sm:$0xff] %v163
    %229 = vst [vmem:[%s214 + $0xa9] sm:$0xff] %v164
    %230 = vst [vmem:[%s214 + $0xb1] sm:$0xff] %v165
    %231 = vst [vmem:[%s214 + $0xc1] sm:$0xff] %v166
    %232 = vst [vmem:[%s214 + $0xc9] sm:$0xff] %v167
    %233 = vst [vmem:[%s214 + $0xd9] sm:$0xff] %v168
    %234 = vst [vmem:[%s214 + $0xe1] sm:$0xff] %v169
    %235 = vst [vmem:[%s214 + $0xf1] sm:$0xff] %v170
    %236 = vst [vmem:[%s214 + $0xf9] sm:$0xff] %v171
    %237 = vst [vmem:[%s214 + $0x109] sm:$0xff] %v172
    %238 = vst [vmem:[%s214 + $0x111] sm:$0xff] %v173
    %239 = vst [vmem:[%s214 + $0x121] sm:$0xff] %v174
    %240 = vst [vmem:[%s214 + $0x129] sm:$0xff] %v175
    %241 = vst [vmem:[%s214 + $0x139] sm:$0xff] %v176
    %242 = vst [vmem:[%s214 + $0x141] sm:$0xff] %v177
    %243 = vst [vmem:[%s214 + $0x151] sm:$0xff] %v178
    %244 = vst [vmem:[%s214 + $0x159] sm:$0xff] %v179
    %245 = vst [vmem:[%s214 + $0x169] sm:$0xff] %v180
    %246 = vst [vmem:[%s214 + $0x171] sm:$0xff] %v181
    %247 = vst [vmem:[%s214 + $0x1b1] sm:$0xff] %v182
    %248 = vst [vmem:[%s214 + $0x1b9] sm:$0xff] %v183
    %249 = vst [vmem:[%s214 + $0x1c9] sm:$0xff] %v184
    %250 = vst [vmem:[%s214 + $0x1d1] sm:$0xff] %v185
    %251 = vst [vmem:[%s214 + $0x1e1] sm:$0xff] %v186
    %252 = vst [vmem:[%s214 + $0x1e9] sm:$0xff] %v187
    %253 = vst [vmem:[%s214 + $0x1f9] sm:$0xff] %v188
    %254 = vst [vmem:[%s214 + $0x201] sm:$0xff] %v189
    %255 = vst [vmem:[%s214 + $0x211] sm:$0xff] %v190
    %256 = vst [vmem:[%s214 + $0x219] sm:$0xff] %v191
    %257 = vst [vmem:[%s214 + $0x229] sm:$0xff] %v192
    %258 = vst [vmem:[%s214 + $0x231] sm:$0xff] %v193
    %259 = vst [vmem:[%s214 + $0x241] sm:$0xff] %v194
    %260 = vst [vmem:[%s214 + $0x249] sm:$0xff] %v195
    %261 = vst [vmem:[%s214 + $0x259] sm:$0xff] %v196
    %262 = vst [vmem:[%s214 + $0x261] sm:$0xff] %v197
    %263 = vst [vmem:[%s214 + $0x271] sm:$0xff] %v198
    %264 = vst [vmem:[%s214 + $0x279] sm:$0xff] %v199
    %265 = vst [vmem:[%s214 + $0x289] sm:$0xff] %v200
    %266 = vst [vmem:[%s214 + $0x291] sm:$0xff] %v201
    %267 = vst [vmem:[%s214 + $0x2a1] sm:$0xff] %v202
    %268 = vst [vmem:[%s214 + $0x2a9] sm:$0xff] %v203
    %269 = vst [vmem:[%s214 + $0x2b9] sm:$0xff] %v204
    %270 = vst [vmem:[%s214 + $0x2c1] sm:$0xff] %v205
    %271 = vst [vmem:[%s214 + $0x2d1] sm:$0xff] %v206
    %272 = vst [vmem:[%s214 + $0x2d9] sm:$0xff] %v207
    %273 = vst [vmem:[%s214 + $0x2e9] sm:$0xff] %v208
    %274 = vst [vmem:[%s214 + $0x2f1] sm:$0xff] %v209
    %275 = vst [vmem:[%s214 + $0x301] sm:$0xff] %v210
    %276 = vst [vmem:[%s214 + $0x309] sm:$0xff] %v211
    %277 = vst [vmem:[%s214 + $0x319] sm:$0xff] %v212
    %278 = vst [vmem:[%s214 + $0x321] sm:$0xff] %v213
    %v279 = vld [vmem:[#allocation2] sm:$0xff]
    %v280 = vld [vmem:[#allocation2 + $0x8] sm:$0xff]
    %v281 = vld [vmem:[#allocation2 + $0x18] sm:$0xff]
    %v282 = vld [vmem:[#allocation2 + $0x20] sm:$0xff]
    %v283 = vld [vmem:[#allocation2 + $0x30] sm:$0xff]
    %v284 = vld [vmem:[#allocation2 + $0x38] sm:$0xff]
    %v285 = vld [vmem:[#allocation2 + $0x48] sm:$0xff]
    %v286 = vld [vmem:[#allocation2 + $0x50] sm:$0xff]
    %v287 = vld [vmem:[#allocation2 + $0x60] sm:$0xff]
    %v288 = vld [vmem:[#allocation2 + $0x68] sm:$0xff]
    %v289 = vld [vmem:[#allocation2 + $0x78] sm:$0xff]
    %v290 = vld [vmem:[#allocation2 + $0x80] sm:$0xff]
    %v291 = vld [vmem:[#allocation2 + $0x90] sm:$0xff]
    %v292 = vld [vmem:[#allocation2 + $0x98] sm:$0xff]
    %v293 = vld [vmem:[#allocation2 + $0xa8] sm:$0xff]
    %v294 = vld [vmem:[#allocation2 + $0xb0] sm:$0xff]
    %v295 = vld [vmem:[#allocation2 + $0xc0] sm:$0xff]
    %v296 = vld [vmem:[#allocation2 + $0xc8] sm:$0xff]
    %v297 = vld [vmem:[#allocation2 + $0xd8] sm:$0xff]
    %v298 = vld [vmem:[#allocation2 + $0xe0] sm:$0xff]
    %v299 = vld [vmem:[#allocation2 + $0xf0] sm:$0xff]
    %v300 = vld [vmem:[#allocation2 + $0xf8] sm:$0xff]
    %v301 = vld [vmem:[#allocation2 + $0x108] sm:$0xff]
    %v302 = vld [vmem:[#allocation2 + $0x110] sm:$0xff]
    %v303 = vld [vmem:[#allocation2 + $0x120] sm:$0xff]
    %v304 = vld [vmem:[#allocation2 + $0x128] sm:$0xff]
    %v305 = vld [vmem:[#allocation2 + $0x138] sm:$0xff]
    %v306 = vld [vmem:[#allocation2 + $0x140] sm:$0xff]
    %v307 = vld [vmem:[#allocation2 + $0x150] sm:$0xff]
    %v308 = vld [vmem:[#allocation2 + $0x158] sm:$0xff]
    %v309 = vld [vmem:[#allocation2 + $0x168] sm:$0xff]
    %v310 = vld [vmem:[#allocation2 + $0x170] sm:$0xff]
    %v311 = vld [vmem:[#allocation2 + $0x1b0] sm:$0xff]
    %v312 = vld [vmem:[#allocation2 + $0x1b8] sm:$0xff]
    %v313 = vld [vmem:[#allocation2 + $0x1c8] sm:$0xff]
    %v314 = vld [vmem:[#allocation2 + $0x1d0] sm:$0xff]
    %v315 = vld [vmem:[#allocation2 + $0x1e0] sm:$0xff]
    %v316 = vld [vmem:[#allocation2 + $0x1e8] sm:$0xff]
    %v317 = vld [vmem:[#allocation2 + $0x1f8] sm:$0xff]
    %v318 = vld [vmem:[#allocation2 + $0x200] sm:$0xff]
    %v319 = vld [vmem:[#allocation2 + $0x210] sm:$0xff]
    %v320 = vld [vmem:[#allocation2 + $0x218] sm:$0xff]
    %v321 = vld [vmem:[#allocation2 + $0x228] sm:$0xff]
    %v322 = vld [vmem:[#allocation2 + $0x230] sm:$0xff]
    %v323 = vld [vmem:[#allocation2 + $0x240] sm:$0xff]
    %v324 = vld [vmem:[#allocation2 + $0x248] sm:$0xff]
    %v325 = vld [vmem:[#allocation2 + $0x258] sm:$0xff]
    %v326 = vld [vmem:[#allocation2 + $0x260] sm:$0xff]
    %v327 = vld [vmem:[#allocation2 + $0x270] sm:$0xff]
    %v328 = vld [vmem:[#allocation2 + $0x278] sm:$0xff]
    %v329 = vld [vmem:[#allocation2 + $0x288] sm:$0xff]
    %v330 = vld [vmem:[#allocation2 + $0x290] sm:$0xff]
    %v331 = vld [vmem:[#allocation2 + $0x2a0] sm:$0xff]
    %v332 = vld [vmem:[#allocation2 + $0x2a8] sm:$0xff]
    %v333 = vld [vmem:[#allocation2 + $0x2b8] sm:$0xff]
    %v334 = vld [vmem:[#allocation2 + $0x2c0] sm:$0xff]
    %v335 = vld [vmem:[#allocation2 + $0x2d0] sm:$0xff]
    %v336 = vld [vmem:[#allocation2 + $0x2d8] sm:$0xff]
    %v337 = vld [vmem:[#allocation2 + $0x2e8] sm:$0xff]
    %v338 = vld [vmem:[#allocation2 + $0x2f0] sm:$0xff]
    %v339 = vld [vmem:[#allocation2 + $0x300] sm:$0xff]
    %v340 = vld [vmem:[#allocation2 + $0x308] sm:$0xff]
    %v341 = vld [vmem:[#allocation2 + $0x318] sm:$0xff]
    %v342 = vld [vmem:[#allocation2 + $0x320] sm:$0xff]
    %v343 = vpack.c.bf16 %v280, %v279
    %v344 = vpack.c.bf16 %v282, %v281
    %v345 = vpack.c.bf16 %v284, %v283
    %v346 = vpack.c.bf16 %v286, %v285
    %v347 = vpack.c.bf16 %v288, %v287
    %v348 = vpack.c.bf16 %v290, %v289
    %v349 = vpack.c.bf16 %v292, %v291
    %v350 = vpack.c.bf16 %v294, %v293
    %v351 = vpack.c.bf16 %v296, %v295
    %v352 = vpack.c.bf16 %v298, %v297
    %v353 = vpack.c.bf16 %v300, %v299
    %v354 = vpack.c.bf16 %v302, %v301
    %v355 = vpack.c.bf16 %v304, %v303
    %v356 = vpack.c.bf16 %v306, %v305
    %v357 = vpack.c.bf16 %v308, %v307
    %v358 = vpack.c.bf16 %v310, %v309
    %v359 = vpack.c.bf16 %v312, %v311
    %v360 = vpack.c.bf16 %v314, %v313
    %v361 = vpack.c.bf16 %v316, %v315
    %v362 = vpack.c.bf16 %v318, %v317
    %v363 = vpack.c.bf16 %v320, %v319
    %v364 = vpack.c.bf16 %v322, %v321
    %v365 = vpack.c.bf16 %v324, %v323
    %v366 = vpack.c.bf16 %v326, %v325
    %v367 = vpack.c.bf16 %v328, %v327
    %v368 = vpack.c.bf16 %v330, %v329
    %v369 = vpack.c.bf16 %v332, %v331
    %v370 = vpack.c.bf16 %v334, %v333
    %v371 = vpack.c.bf16 %v336, %v335
    %v372 = vpack.c.bf16 %v338, %v337
    %v373 = vpack.c.bf16 %v340, %v339
    %v374 = vpack.c.bf16 %v342, %v341
    %375 = vst [vmem:[#allocation3] sm:$0xff] %v343
    %376 = vst [vmem:[#allocation3 + $0x48] sm:$0xff] %v344
    %377 = vst [vmem:[#allocation3 + $0x90] sm:$0xff] %v345
    %378 = vst [vmem:[#allocation3 + $0xd8] sm:$0xff] %v346
    %379 = vst [vmem:[#allocation3 + $0x120] sm:$0xff] %v347
    %380 = vst [vmem:[#allocation3 + $0x168] sm:$0xff] %v348
    %381 = vst [vmem:[#allocation3 + $0x1b0] sm:$0xff] %v349
    %382 = vst [vmem:[#allocation3 + $0x1f8] sm:$0xff] %v350
    %383 = vst [vmem:[#allocation3 + $0x240] sm:$0xff] %v351
    %384 = vst [vmem:[#allocation3 + $0x288] sm:$0xff] %v352
    %385 = vst [vmem:[#allocation3 + $0x2d0] sm:$0xff] %v353
    %386 = vst [vmem:[#allocation3 + $0x318] sm:$0xff] %v354
    %387 = vst [vmem:[#allocation3 + $0x360] sm:$0xff] %v355
    %388 = vst [vmem:[#allocation3 + $0x3a8] sm:$0xff] %v356
    %389 = vst [vmem:[#allocation3 + $0x3f0] sm:$0xff] %v357
    %390 = vst [vmem:[#allocation3 + $0x438] sm:$0xff] %v358
    %391 = vst [vmem:[#allocation3 + $0x480] sm:$0xff] %v359
    %392 = vst [vmem:[#allocation3 + $0x4c8] sm:$0xff] %v360
    %393 = vst [vmem:[#allocation3 + $0x510] sm:$0xff] %v361
    %394 = vst [vmem:[#allocation3 + $0x558] sm:$0xff] %v362
    %395 = vst [vmem:[#allocation3 + $0x5a0] sm:$0xff] %v363
    %396 = vst [vmem:[#allocation3 + $0x5e8] sm:$0xff] %v364
    %397 = vst [vmem:[#allocation3 + $0x630] sm:$0xff] %v365
    %398 = vst [vmem:[#allocation3 + $0x678] sm:$0xff] %v366
    %399 = vst [vmem:[#allocation3 + $0x6c0] sm:$0xff] %v367
    %400 = vst [vmem:[#allocation3 + $0x708] sm:$0xff] %v368
    %401 = vst [vmem:[#allocation3 + $0x750] sm:$0xff] %v369
    %402 = vst [vmem:[#allocation3 + $0x798] sm:$0xff] %v370
    %403 = vst [vmem:[#allocation3 + $0x7e0] sm:$0xff] %v371
    %404 = vst [vmem:[#allocation3 + $0x828] sm:$0xff] %v372
    %405 = vst [vmem:[#allocation3 + $0x870] sm:$0xff] %v373
    %406 = vst [vmem:[#allocation3 + $0x8b8] sm:$0xff] %v374
    %v407 = vld [vmem:[#allocation2 + $0x1] sm:$0xff]
    %v408 = vld [vmem:[#allocation2 + $0x9] sm:$0xff]
    %v409 = vld [vmem:[#allocation2 + $0x19] sm:$0xff]
    %v410 = vld [vmem:[#allocation2 + $0x21] sm:$0xff]
    %v411 = vld [vmem:[#allocation2 + $0x31] sm:$0xff]
    %v412 = vld [vmem:[#allocation2 + $0x39] sm:$0xff]
    %v413 = vld [vmem:[#allocation2 + $0x49] sm:$0xff]
    %v414 = vld [vmem:[#allocation2 + $0x51] sm:$0xff]
    %v415 = vld [vmem:[#allocation2 + $0x61] sm:$0xff]
    %v416 = vld [vmem:[#allocation2 + $0x69] sm:$0xff]
    %v417 = vld [vmem:[#allocation2 + $0x79] sm:$0xff]
    %v418 = vld [vmem:[#allocation2 + $0x81] sm:$0xff]
    %v419 = vld [vmem:[#allocation2 + $0x91] sm:$0xff]
    %v420 = vld [vmem:[#allocation2 + $0x99] sm:$0xff]
    %v421 = vld [vmem:[#allocation2 + $0xa9] sm:$0xff]
    %v422 = vld [vmem:[#allocation2 + $0xb1] sm:$0xff]
    %v423 = vld [vmem:[#allocation2 + $0xc1] sm:$0xff]
    %v424 = vld [vmem:[#allocation2 + $0xc9] sm:$0xff]
    %v425 = vld [vmem:[#allocation2 + $0xd9] sm:$0xff]
    %v426 = vld [vmem:[#allocation2 + $0xe1] sm:$0xff]
    %v427 = vld [vmem:[#allocation2 + $0xf1] sm:$0xff]
    %v428 = vld [vmem:[#allocation2 + $0xf9] sm:$0xff]
    %v429 = vld [vmem:[#allocation2 + $0x109] sm:$0xff]
    %v430 = vld [vmem:[#allocation2 + $0x111] sm:$0xff]
    %v431 = vld [vmem:[#allocation2 + $0x121] sm:$0xff]
    %v432 = vld [vmem:[#allocation2 + $0x129] sm:$0xff]
    %v433 = vld [vmem:[#allocation2 + $0x139] sm:$0xff]
    %v434 = vld [vmem:[#allocation2 + $0x141] sm:$0xff]
    %v435 = vld [vmem:[#allocation2 + $0x151] sm:$0xff]
    %v436 = vld [vmem:[#allocation2 + $0x159] sm:$0xff]
    %v437 = vld [vmem:[#allocation2 + $0x169] sm:$0xff]
    %v438 = vld [vmem:[#allocation2 + $0x171] sm:$0xff]
    %v439 = vld [vmem:[#allocation2 + $0x1b1] sm:$0xff]
    %v440 = vld [vmem:[#allocation2 + $0x1b9] sm:$0xff]
    %v441 = vld [vmem:[#allocation2 + $0x1c9] sm:$0xff]
    %v442 = vld [vmem:[#allocation2 + $0x1d1] sm:$0xff]
    %v443 = vld [vmem:[#allocation2 + $0x1e1] sm:$0xff]
    %v444 = vld [vmem:[#allocation2 + $0x1e9] sm:$0xff]
    %v445 = vld [vmem:[#allocation2 + $0x1f9] sm:$0xff]
    %v446 = vld [vmem:[#allocation2 + $0x201] sm:$0xff]
    %v447 = vld [vmem:[#allocation2 + $0x211] sm:$0xff]
    %v448 = vld [vmem:[#allocation2 + $0x219] sm:$0xff]
    %v449 = vld [vmem:[#allocation2 + $0x229] sm:$0xff]
    %v450 = vld [vmem:[#allocation2 + $0x231] sm:$0xff]
    %v451 = vld [vmem:[#allocation2 + $0x241] sm:$0xff]
    %v452 = vld [vmem:[#allocation2 + $0x249] sm:$0xff]
    %v453 = vld [vmem:[#allocation2 + $0x259] sm:$0xff]
    %v454 = vld [vmem:[#allocation2 + $0x261] sm:$0xff]
    %v455 = vld [vmem:[#allocation2 + $0x271] sm:$0xff]
    %v456 = vld [vmem:[#allocation2 + $0x279] sm:$0xff]
    %v457 = vld [vmem:[#allocation2 + $0x289] sm:$0xff]
    %v458 = vld [vmem:[#allocation2 + $0x291] sm:$0xff]
    %v459 = vld [vmem:[#allocation2 + $0x2a1] sm:$0xff]
    %v460 = vld [vmem:[#allocation2 + $0x2a9] sm:$0xff]
    %v461 = vld [vmem:[#allocation2 + $0x2b9] sm:$0xff]
    %v462 = vld [vmem:[#allocation2 + $0x2c1] sm:$0xff]
    %v463 = vld [vmem:[#allocation2 + $0x2d1] sm:$0xff]
    %v464 = vld [vmem:[#allocation2 + $0x2d9] sm:$0xff]
    %v465 = vld [vmem:[#allocation2 + $0x2e9] sm:$0xff]
    %v466 = vld [vmem:[#allocation2 + $0x2f1] sm:$0xff]
    %v467 = vld [vmem:[#allocation2 + $0x301] sm:$0xff]
    %v468 = vld [vmem:[#allocation2 + $0x309] sm:$0xff]
    %v469 = vld [vmem:[#allocation2 + $0x319] sm:$0xff]
    %v470 = vld [vmem:[#allocation2 + $0x321] sm:$0xff]
    %v471 = vpack.c.bf16 %v408, %v407
    %v472 = vpack.c.bf16 %v410, %v409
    %v473 = vpack.c.bf16 %v412, %v411
    %v474 = vpack.c.bf16 %v414, %v413
    %v475 = vpack.c.bf16 %v416, %v415
    %v476 = vpack.c.bf16 %v418, %v417
    %v477 = vpack.c.bf16 %v420, %v419
    %v478 = vpack.c.bf16 %v422, %v421
    %v479 = vpack.c.bf16 %v424, %v423
    %v480 = vpack.c.bf16 %v426, %v425
    %v481 = vpack.c.bf16 %v428, %v427
    %v482 = vpack.c.bf16 %v430, %v429
    %v483 = vpack.c.bf16 %v432, %v431
    %v484 = vpack.c.bf16 %v434, %v433
    %v485 = vpack.c.bf16 %v436, %v435
    %v486 = vpack.c.bf16 %v438, %v437
    %v487 = vpack.c.bf16 %v440, %v439
    %v488 = vpack.c.bf16 %v442, %v441
    %v489 = vpack.c.bf16 %v444, %v443
    %v490 = vpack.c.bf16 %v446, %v445
    %v491 = vpack.c.bf16 %v448, %v447
    %v492 = vpack.c.bf16 %v450, %v449
    %v493 = vpack.c.bf16 %v452, %v451
    %v494 = vpack.c.bf16 %v454, %v453
    %v495 = vpack.c.bf16 %v456, %v455
    %v496 = vpack.c.bf16 %v458, %v457
    %v497 = vpack.c.bf16 %v460, %v459
    %v498 = vpack.c.bf16 %v462, %v461
    %v499 = vpack.c.bf16 %v464, %v463
    %v500 = vpack.c.bf16 %v466, %v465
    %v501 = vpack.c.bf16 %v468, %v467
    %v502 = vpack.c.bf16 %v470, %v469
    %503 = vst [vmem:[#allocation3 + $0x8] sm:$0xff] %v471
    %504 = vst [vmem:[#allocation3 + $0x50] sm:$0xff] %v472
    %505 = vst [vmem:[#allocation3 + $0x98] sm:$0xff] %v473
    %506 = vst [vmem:[#allocation3 + $0xe0] sm:$0xff] %v474
    %507 = vst [vmem:[#allocation3 + $0x128] sm:$0xff] %v475
    %508 = vst [vmem:[#allocation3 + $0x170] sm:$0xff] %v476
    %509 = vst [vmem:[#allocation3 + $0x1b8] sm:$0xff] %v477
    %510 = vst [vmem:[#allocation3 + $0x200] sm:$0xff] %v478
    %511 = vst [vmem:[#allocation3 + $0x248] sm:$0xff] %v479
    %512 = vst [vmem:[#allocation3 + $0x290] sm:$0xff] %v480
    %513 = vst [vmem:[#allocation3 + $0x2d8] sm:$0xff] %v481
    %514 = vst [vmem:[#allocation3 + $0x320] sm:$0xff] %v482
    %515 = vst [vmem:[#allocation3 + $0x368] sm:$0xff] %v483
    %516 = vst [vmem:[#allocation3 + $0x3b0] sm:$0xff] %v484
    %517 = vst [vmem:[#allocation3 + $0x3f8] sm:$0xff] %v485
    %518 = vst [vmem:[#allocation3 + $0x440] sm:$0xff] %v486
    %519 = vst [vmem:[#allocation3 + $0x488] sm:$0xff] %v487
    %520 = vst [vmem:[#allocation3 + $0x4d0] sm:$0xff] %v488
    %521 = vst [vmem:[#allocation3 + $0x518] sm:$0xff] %v489
    %522 = vst [vmem:[#allocation3 + $0x560] sm:$0xff] %v490
    %523 = vst [vmem:[#allocation3 + $0x5a8] sm:$0xff] %v491
    %524 = vst [vmem:[#allocation3 + $0x5f0] sm:$0xff] %v492
    %525 = vst [vmem:[#allocation3 + $0x638] sm:$0xff] %v493
    %526 = vst [vmem:[#allocation3 + $0x680] sm:$0xff] %v494
    %527 = vst [vmem:[#allocation3 + $0x6c8] sm:$0xff] %v495
    %528 = vst [vmem:[#allocation3 + $0x710] sm:$0xff] %v496
    %529 = vst [vmem:[#allocation3 + $0x758] sm:$0xff] %v497
    %530 = vst [vmem:[#allocation3 + $0x7a0] sm:$0xff] %v498
    %531 = vst [vmem:[#allocation3 + $0x7e8] sm:$0xff] %v499
    %532 = vst [vmem:[#allocation3 + $0x830] sm:$0xff] %v500
    %533 = vst [vmem:[#allocation3 + $0x878] sm:$0xff] %v501
    %534 = vst [vmem:[#allocation3 + $0x8c0] sm:$0xff] %v502
    %v535 = vld [vmem:[#allocation2 + $0x2] sm:$0xff]
    %v536 = vld [vmem:[#allocation2 + $0xa] sm:$0xff]
    %v537 = vld [vmem:[#allocation2 + $0x1a] sm:$0xff]
    %v538 = vld [vmem:[#allocation2 + $0x22] sm:$0xff]
    %v539 = vld [vmem:[#allocation2 + $0x32] sm:$0xff]
    %v540 = vld [vmem:[#allocation2 + $0x3a] sm:$0xff]
    %v541 = vld [vmem:[#allocation2 + $0x4a] sm:$0xff]
    %v542 = vld [vmem:[#allocation2 + $0x52] sm:$0xff]
    %v543 = vld [vmem:[#allocation2 + $0x62] sm:$0xff]
    %v544 = vld [vmem:[#allocation2 + $0x6a] sm:$0xff]
    %v545 = vld [vmem:[#allocation2 + $0x7a] sm:$0xff]
    %v546 = vld [vmem:[#allocation2 + $0x82] sm:$0xff]
    %v547 = vld [vmem:[#allocation2 + $0x92] sm:$0xff]
    %v548 = vld [vmem:[#allocation2 + $0x9a] sm:$0xff]
    %v549 = vld [vmem:[#allocation2 + $0xaa] sm:$0xff]
    %v550 = vld [vmem:[#allocation2 + $0xb2] sm:$0xff]
    %v551 = vld [vmem:[#allocation2 + $0xc2] sm:$0xff]
    %v552 = vld [vmem:[#allocation2 + $0xca] sm:$0xff]
    %v553 = vld [vmem:[#allocation2 + $0xda] sm:$0xff]
    %v554 = vld [vmem:[#allocation2 + $0xe2] sm:$0xff]
    %v555 = vld [vmem:[#allocation2 + $0xf2] sm:$0xff]
    %v556 = vld [vmem:[#allocation2 + $0xfa] sm:$0xff]
    %v557 = vld [vmem:[#allocation2 + $0x10a] sm:$0xff]
    %v558 = vld [vmem:[#allocation2 + $0x112] sm:$0xff]
    %v559 = vld [vmem:[#allocation2 + $0x122] sm:$0xff]
    %v560 = vld [vmem:[#allocation2 + $0x12a] sm:$0xff]
    %v561 = vld [vmem:[#allocation2 + $0x13a] sm:$0xff]
    %v562 = vld [vmem:[#allocation2 + $0x142] sm:$0xff]
    %v563 = vld [vmem:[#allocation2 + $0x152] sm:$0xff]
    %v564 = vld [vmem:[#allocation2 + $0x15a] sm:$0xff]
    %v565 = vld [vmem:[#allocation2 + $0x16a] sm:$0xff]
    %v566 = vld [vmem:[#allocation2 + $0x172] sm:$0xff]
    %v567 = vld [vmem:[#allocation2 + $0x1b2] sm:$0xff]
    %v568 = vld [vmem:[#allocation2 + $0x1ba] sm:$0xff]
    %v569 = vld [vmem:[#allocation2 + $0x1ca] sm:$0xff]
    %v570 = vld [vmem:[#allocation2 + $0x1d2] sm:$0xff]
    %v571 = vld [vmem:[#allocation2 + $0x1e2] sm:$0xff]
    %v572 = vld [vmem:[#allocation2 + $0x1ea] sm:$0xff]
    %v573 = vld [vmem:[#allocation2 + $0x1fa] sm:$0xff]
    %v574 = vld [vmem:[#allocation2 + $0x202] sm:$0xff]
    %v575 = vld [vmem:[#allocation2 + $0x212] sm:$0xff]
    %v576 = vld [vmem:[#allocation2 + $0x21a] sm:$0xff]
    %v577 = vld [vmem:[#allocation2 + $0x22a] sm:$0xff]
    %v578 = vld [vmem:[#allocation2 + $0x232] sm:$0xff]
    %v579 = vld [vmem:[#allocation2 + $0x242] sm:$0xff]
    %v580 = vld [vmem:[#allocation2 + $0x24a] sm:$0xff]
    %v581 = vld [vmem:[#allocation2 + $0x25a] sm:$0xff]
    %v582 = vld [vmem:[#allocation2 + $0x262] sm:$0xff]
    %v583 = vld [vmem:[#allocation2 + $0x272] sm:$0xff]
    %v584 = vld [vmem:[#allocation2 + $0x27a] sm:$0xff]
    %v585 = vld [vmem:[#allocation2 + $0x28a] sm:$0xff]
    %v586 = vld [vmem:[#allocation2 + $0x292] sm:$0xff]
    %v587 = vld [vmem:[#allocation2 + $0x2a2] sm:$0xff]
    %v588 = vld [vmem:[#allocation2 + $0x2aa] sm:$0xff]
    %v589 = vld [vmem:[#allocation2 + $0x2ba] sm:$0xff]
    %v590 = vld [vmem:[#allocation2 + $0x2c2] sm:$0xff]
    %v591 = vld [vmem:[#allocation2 + $0x2d2] sm:$0xff]
    %v592 = vld [vmem:[#allocation2 + $0x2da] sm:$0xff]
    %v593 = vld [vmem:[#allocation2 + $0x2ea] sm:$0xff]
    %v594 = vld [vmem:[#allocation2 + $0x2f2] sm:$0xff]
    %v595 = vld [vmem:[#allocation2 + $0x302] sm:$0xff]
    %v596 = vld [vmem:[#allocation2 + $0x30a] sm:$0xff]
    %v597 = vld [vmem:[#allocation2 + $0x31a] sm:$0xff]
    %v598 = vld [vmem:[#allocation2 + $0x322] sm:$0xff]
    %v599 = vpack.c.bf16 %v536, %v535
    %v600 = vpack.c.bf16 %v538, %v537
    %v601 = vpack.c.bf16 %v540, %v539
    %v602 = vpack.c.bf16 %v542, %v541
    %v603 = vpack.c.bf16 %v544, %v543
    %v604 = vpack.c.bf16 %v546, %v545
    %v605 = vpack.c.bf16 %v548, %v547
    %v606 = vpack.c.bf16 %v550, %v549
    %v607 = vpack.c.bf16 %v552, %v551
    %v608 = vpack.c.bf16 %v554, %v553
    %v609 = vpack.c.bf16 %v556, %v555
    %v610 = vpack.c.bf16 %v558, %v557
    %v611 = vpack.c.bf16 %v560, %v559
    %v612 = vpack.c.bf16 %v562, %v561
    %v613 = vpack.c.bf16 %v564, %v563
    %v614 = vpack.c.bf16 %v566, %v565
    %v615 = vpack.c.bf16 %v568, %v567
    %v616 = vpack.c.bf16 %v570, %v569
    %v617 = vpack.c.bf16 %v572, %v571
    %v618 = vpack.c.bf16 %v574, %v573
    %v619 = vpack.c.bf16 %v576, %v575
    %v620 = vpack.c.bf16 %v578, %v577
    %v621 = vpack.c.bf16 %v580, %v579
    %v622 = vpack.c.bf16 %v582, %v581
    %v623 = vpack.c.bf16 %v584, %v583
    %v624 = vpack.c.bf16 %v586, %v585
    %v625 = vpack.c.bf16 %v588, %v587
    %v626 = vpack.c.bf16 %v590, %v589
    %v627 = vpack.c.bf16 %v592, %v591
    %v628 = vpack.c.bf16 %v594, %v593
    %v629 = vpack.c.bf16 %v596, %v595
    %v630 = vpack.c.bf16 %v598, %v597
    %631 = vst [vmem:[#allocation3 + $0x10] sm:$0xff] %v599
    %632 = vst [vmem:[#allocation3 + $0x58] sm:$0xff] %v600
    %633 = vst [vmem:[#allocation3 + $0xa0] sm:$0xff] %v601
    %634 = vst [vmem:[#allocation3 + $0xe8] sm:$0xff] %v602
    %635 = vst [vmem:[#allocation3 + $0x130] sm:$0xff] %v603
    %636 = vst [vmem:[#allocation3 + $0x178] sm:$0xff] %v604
    %637 = vst [vmem:[#allocation3 + $0x1c0] sm:$0xff] %v605
    %638 = vst [vmem:[#allocation3 + $0x208] sm:$0xff] %v606
    %639 = vst [vmem:[#allocation3 + $0x250] sm:$0xff] %v607
    %640 = vst [vmem:[#allocation3 + $0x298] sm:$0xff] %v608
    %641 = vst [vmem:[#allocation3 + $0x2e0] sm:$0xff] %v609
    %642 = vst [vmem:[#allocation3 + $0x328] sm:$0xff] %v610
    %643 = vst [vmem:[#allocation3 + $0x370] sm:$0xff] %v611
    %644 = vst [vmem:[#allocation3 + $0x3b8] sm:$0xff] %v612
    %645 = vst [vmem:[#allocation3 + $0x400] sm:$0xff] %v613
    %646 = vst [vmem:[#allocation3 + $0x448] sm:$0xff] %v614
    %647 = vst [vmem:[#allocation3 + $0x490] sm:$0xff] %v615
    %648 = vst [vmem:[#allocation3 + $0x4d8] sm:$0xff] %v616
    %649 = vst [vmem:[#allocation3 + $0x520] sm:$0xff] %v617
    %650 = vst [vmem:[#allocation3 + $0x568] sm:$0xff] %v618
    %651 = vst [vmem:[#allocation3 + $0x5b0] sm:$0xff] %v619
    %652 = vst [vmem:[#allocation3 + $0x5f8] sm:$0xff] %v620
    %653 = vst [vmem:[#allocation3 + $0x640] sm:$0xff] %v621
    %654 = vst [vmem:[#allocation3 + $0x688] sm:$0xff] %v622
    %655 = vst [vmem:[#allocation3 + $0x6d0] sm:$0xff] %v623
    %656 = vst [vmem:[#allocation3 + $0x718] sm:$0xff] %v624
    %657 = vst [vmem:[#allocation3 + $0x760] sm:$0xff] %v625
    %658 = vst [vmem:[#allocation3 + $0x7a8] sm:$0xff] %v626
    %659 = vst [vmem:[#allocation3 + $0x7f0] sm:$0xff] %v627
    %660 = vst [vmem:[#allocation3 + $0x838] sm:$0xff] %v628
    %661 = vst [vmem:[#allocation3 + $0x880] sm:$0xff] %v629
    %662 = vst [vmem:[#allocation3 + $0x8c8] sm:$0xff] %v630
    %v663 = vld [vmem:[%s214] sm:$0xff]
    %v664 = vld [vmem:[%s214 + $0x8] sm:$0xff]
    %v665 = vld [vmem:[%s214 + $0x18] sm:$0xff]
    %v666 = vld [vmem:[%s214 + $0x20] sm:$0xff]
    %v667 = vld [vmem:[%s214 + $0x30] sm:$0xff]
    %v668 = vld [vmem:[%s214 + $0x38] sm:$0xff]
    %v669 = vld [vmem:[%s214 + $0x48] sm:$0xff]
    %v670 = vld [vmem:[%s214 + $0x50] sm:$0xff]
    %v671 = vld [vmem:[%s214 + $0x60] sm:$0xff]
    %v672 = vld [vmem:[%s214 + $0x68] sm:$0xff]
    %v673 = vld [vmem:[%s214 + $0x78] sm:$0xff]
    %v674 = vld [vmem:[%s214 + $0x80] sm:$0xff]
    %v675 = vld [vmem:[%s214 + $0x90] sm:$0xff]
    %v676 = vld [vmem:[%s214 + $0x98] sm:$0xff]
    %v677 = vld [vmem:[%s214 + $0xa8] sm:$0xff]
    %v678 = vld [vmem:[%s214 + $0xb0] sm:$0xff]
    %v679 = vld [vmem:[%s214 + $0xc0] sm:$0xff]
    %v680 = vld [vmem:[%s214 + $0xc8] sm:$0xff]
    %v681 = vld [vmem:[%s214 + $0xd8] sm:$0xff]
    %v682 = vld [vmem:[%s214 + $0xe0] sm:$0xff]
    %v683 = vld [vmem:[%s214 + $0xf0] sm:$0xff]
    %v684 = vld [vmem:[%s214 + $0xf8] sm:$0xff]
    %v685 = vld [vmem:[%s214 + $0x108] sm:$0xff]
    %v686 = vld [vmem:[%s214 + $0x110] sm:$0xff]
    %v687 = vld [vmem:[%s214 + $0x120] sm:$0xff]
    %v688 = vld [vmem:[%s214 + $0x128] sm:$0xff]
    %v689 = vld [vmem:[%s214 + $0x138] sm:$0xff]
    %v690 = vld [vmem:[%s214 + $0x140] sm:$0xff]
    %v691 = vld [vmem:[%s214 + $0x150] sm:$0xff]
    %v692 = vld [vmem:[%s214 + $0x158] sm:$0xff]
    %v693 = vld [vmem:[%s214 + $0x168] sm:$0xff]
    %v694 = vld [vmem:[%s214 + $0x170] sm:$0xff]
    %v695 = vld [vmem:[%s214 + $0x1b0] sm:$0xff]
    %v696 = vld [vmem:[%s214 + $0x1b8] sm:$0xff]
    %v697 = vld [vmem:[%s214 + $0x1c8] sm:$0xff]
    %v698 = vld [vmem:[%s214 + $0x1d0] sm:$0xff]
    %v699 = vld [vmem:[%s214 + $0x1e0] sm:$0xff]
    %v700 = vld [vmem:[%s214 + $0x1e8] sm:$0xff]
    %v701 = vld [vmem:[%s214 + $0x1f8] sm:$0xff]
    %v702 = vld [vmem:[%s214 + $0x200] sm:$0xff]
    %v703 = vld [vmem:[%s214 + $0x210] sm:$0xff]
    %v704 = vld [vmem:[%s214 + $0x218] sm:$0xff]
    %v705 = vld [vmem:[%s214 + $0x228] sm:$0xff]
    %v706 = vld [vmem:[%s214 + $0x230] sm:$0xff]
    %v707 = vld [vmem:[%s214 + $0x240] sm:$0xff]
    %v708 = vld [vmem:[%s214 + $0x248] sm:$0xff]
    %v709 = vld [vmem:[%s214 + $0x258] sm:$0xff]
    %v710 = vld [vmem:[%s214 + $0x260] sm:$0xff]
    %v711 = vld [vmem:[%s214 + $0x270] sm:$0xff]
    %v712 = vld [vmem:[%s214 + $0x278] sm:$0xff]
    %v713 = vld [vmem:[%s214 + $0x288] sm:$0xff]
    %v714 = vld [vmem:[%s214 + $0x290] sm:$0xff]
    %v715 = vld [vmem:[%s214 + $0x2a0] sm:$0xff]
    %v716 = vld [vmem:[%s214 + $0x2a8] sm:$0xff]
    %v717 = vld [vmem:[%s214 + $0x2b8] sm:$0xff]
    %v718 = vld [vmem:[%s214 + $0x2c0] sm:$0xff]
    %v719 = vld [vmem:[%s214 + $0x2d0] sm:$0xff]
    %v720 = vld [vmem:[%s214 + $0x2d8] sm:$0xff]
    %v721 = vld [vmem:[%s214 + $0x2e8] sm:$0xff]
    %v722 = vld [vmem:[%s214 + $0x2f0] sm:$0xff]
    %v723 = vld [vmem:[%s214 + $0x300] sm:$0xff]
    %v724 = vld [vmem:[%s214 + $0x308] sm:$0xff]
    %v725 = vld [vmem:[%s214 + $0x318] sm:$0xff]
    %v726 = vld [vmem:[%s214 + $0x320] sm:$0xff]
    %v727 = vpack.c.bf16 %v664, %v663
    %v728 = vpack.c.bf16 %v666, %v665
    %v729 = vpack.c.bf16 %v668, %v667
    %v730 = vpack.c.bf16 %v670, %v669
    %v731 = vpack.c.bf16 %v672, %v671
    %v732 = vpack.c.bf16 %v674, %v673
    %v733 = vpack.c.bf16 %v676, %v675
    %v734 = vpack.c.bf16 %v678, %v677
    %v735 = vpack.c.bf16 %v680, %v679
    %v736 = vpack.c.bf16 %v682, %v681
    %v737 = vpack.c.bf16 %v684, %v683
    %v738 = vpack.c.bf16 %v686, %v685
    %v739 = vpack.c.bf16 %v688, %v687
    %v740 = vpack.c.bf16 %v690, %v689
    %v741 = vpack.c.bf16 %v692, %v691
    %v742 = vpack.c.bf16 %v694, %v693
    %v743 = vpack.c.bf16 %v696, %v695
    %v744 = vpack.c.bf16 %v698, %v697
    %v745 = vpack.c.bf16 %v700, %v699
    %v746 = vpack.c.bf16 %v702, %v701
    %v747 = vpack.c.bf16 %v704, %v703
    %v748 = vpack.c.bf16 %v706, %v705
    %v749 = vpack.c.bf16 %v708, %v707
    %v750 = vpack.c.bf16 %v710, %v709
    %v751 = vpack.c.bf16 %v712, %v711
    %v752 = vpack.c.bf16 %v714, %v713
    %v753 = vpack.c.bf16 %v716, %v715
    %v754 = vpack.c.bf16 %v718, %v717
    %v755 = vpack.c.bf16 %v720, %v719
    %v756 = vpack.c.bf16 %v722, %v721
    %v757 = vpack.c.bf16 %v724, %v723
    %v758 = vpack.c.bf16 %v726, %v725
    %759 = vst [vmem:[#allocation3 + $0x18] sm:$0xff] %v727
    %760 = vst [vmem:[#allocation3 + $0x60] sm:$0xff] %v728
    %761 = vst [vmem:[#allocation3 + $0xa8] sm:$0xff] %v729
    %762 = vst [vmem:[#allocation3 + $0xf0] sm:$0xff] %v730
    %763 = vst [vmem:[#allocation3 + $0x138] sm:$0xff] %v731
    %764 = vst [vmem:[#allocation3 + $0x180] sm:$0xff] %v732
    %765 = vst [vmem:[#allocation3 + $0x1c8] sm:$0xff] %v733
    %766 = vst [vmem:[#allocation3 + $0x210] sm:$0xff] %v734
    %767 = vst [vmem:[#allocation3 + $0x258] sm:$0xff] %v735
    %768 = vst [vmem:[#allocation3 + $0x2a0] sm:$0xff] %v736
    %769 = vst [vmem:[#allocation3 + $0x2e8] sm:$0xff] %v737
    %770 = vst [vmem:[#allocation3 + $0x330] sm:$0xff] %v738
    %771 = vst [vmem:[#allocation3 + $0x378] sm:$0xff] %v739
    %772 = vst [vmem:[#allocation3 + $0x3c0] sm:$0xff] %v740
    %773 = vst [vmem:[#allocation3 + $0x408] sm:$0xff] %v741
    %774 = vst [vmem:[#allocation3 + $0x450] sm:$0xff] %v742
    %775 = vst [vmem:[#allocation3 + $0x498] sm:$0xff] %v743
    %776 = vst [vmem:[#allocation3 + $0x4e0] sm:$0xff] %v744
    %777 = vst [vmem:[#allocation3 + $0x528] sm:$0xff] %v745
    %778 = vst [vmem:[#allocation3 + $0x570] sm:$0xff] %v746
    %779 = vst [vmem:[#allocation3 + $0x5b8] sm:$0xff] %v747
    %780 = vst [vmem:[#allocation3 + $0x600] sm:$0xff] %v748
    %781 = vst [vmem:[#allocation3 + $0x648] sm:$0xff] %v749
    %782 = vst [vmem:[#allocation3 + $0x690] sm:$0xff] %v750
    %783 = vst [vmem:[#allocation3 + $0x6d8] sm:$0xff] %v751
    %784 = vst [vmem:[#allocation3 + $0x720] sm:$0xff] %v752
    %785 = vst [vmem:[#allocation3 + $0x768] sm:$0xff] %v753
    %786 = vst [vmem:[#allocation3 + $0x7b0] sm:$0xff] %v754
    %787 = vst [vmem:[#allocation3 + $0x7f8] sm:$0xff] %v755
    %788 = vst [vmem:[#allocation3 + $0x840] sm:$0xff] %v756
    %789 = vst [vmem:[#allocation3 + $0x888] sm:$0xff] %v757
    %790 = vst [vmem:[#allocation3 + $0x8d0] sm:$0xff] %v758
    %v791 = vld [vmem:[%s214 + $0x1] sm:$0xff]
    %v792 = vld [vmem:[%s214 + $0x9] sm:$0xff]
    %v793 = vld [vmem:[%s214 + $0x19] sm:$0xff]
    %v794 = vld [vmem:[%s214 + $0x21] sm:$0xff]
    %v795 = vld [vmem:[%s214 + $0x31] sm:$0xff]
    %v796 = vld [vmem:[%s214 + $0x39] sm:$0xff]
    %v797 = vld [vmem:[%s214 + $0x49] sm:$0xff]
    %v798 = vld [vmem:[%s214 + $0x51] sm:$0xff]
    %v799 = vld [vmem:[%s214 + $0x61] sm:$0xff]
    %v800 = vld [vmem:[%s214 + $0x69] sm:$0xff]
    %v801 = vld [vmem:[%s214 + $0x79] sm:$0xff]
    %v802 = vld [vmem:[%s214 + $0x81] sm:$0xff]
    %v803 = vld [vmem:[%s214 + $0x91] sm:$0xff]
    %v804 = vld [vmem:[%s214 + $0x99] sm:$0xff]
    %v805 = vld [vmem:[%s214 + $0xa9] sm:$0xff]
    %v806 = vld [vmem:[%s214 + $0xb1] sm:$0xff]
    %v807 = vld [vmem:[%s214 + $0xc1] sm:$0xff]
    %v808 = vld [vmem:[%s214 + $0xc9] sm:$0xff]
    %v809 = vld [vmem:[%s214 + $0xd9] sm:$0xff]
    %v810 = vld [vmem:[%s214 + $0xe1] sm:$0xff]
    %v811 = vld [vmem:[%s214 + $0xf1] sm:$0xff]
    %v812 = vld [vmem:[%s214 + $0xf9] sm:$0xff]
    %v813 = vld [vmem:[%s214 + $0x109] sm:$0xff]
    %v814 = vld [vmem:[%s214 + $0x111] sm:$0xff]
    %v815 = vld [vmem:[%s214 + $0x121] sm:$0xff]
    %v816 = vld [vmem:[%s214 + $0x129] sm:$0xff]
    %v817 = vld [vmem:[%s214 + $0x139] sm:$0xff]
    %v818 = vld [vmem:[%s214 + $0x141] sm:$0xff]
    %v819 = vld [vmem:[%s214 + $0x151] sm:$0xff]
    %v820 = vld [vmem:[%s214 + $0x159] sm:$0xff]
    %v821 = vld [vmem:[%s214 + $0x169] sm:$0xff]
    %v822 = vld [vmem:[%s214 + $0x171] sm:$0xff]
    %v823 = vld [vmem:[%s214 + $0x1b1] sm:$0xff]
    %v824 = vld [vmem:[%s214 + $0x1b9] sm:$0xff]
    %v825 = vld [vmem:[%s214 + $0x1c9] sm:$0xff]
    %v826 = vld [vmem:[%s214 + $0x1d1] sm:$0xff]
    %v827 = vld [vmem:[%s214 + $0x1e1] sm:$0xff]
    %v828 = vld [vmem:[%s214 + $0x1e9] sm:$0xff]
    %v829 = vld [vmem:[%s214 + $0x1f9] sm:$0xff]
    %v830 = vld [vmem:[%s214 + $0x201] sm:$0xff]
    %v831 = vld [vmem:[%s214 + $0x211] sm:$0xff]
    %v832 = vld [vmem:[%s214 + $0x219] sm:$0xff]
    %v833 = vld [vmem:[%s214 + $0x229] sm:$0xff]
    %v834 = vld [vmem:[%s214 + $0x231] sm:$0xff]
    %v835 = vld [vmem:[%s214 + $0x241] sm:$0xff]
    %v836 = vld [vmem:[%s214 + $0x249] sm:$0xff]
    %v837 = vld [vmem:[%s214 + $0x259] sm:$0xff]
    %v838 = vld [vmem:[%s214 + $0x261] sm:$0xff]
    %v839 = vld [vmem:[%s214 + $0x271] sm:$0xff]
    %v840 = vld [vmem:[%s214 + $0x279] sm:$0xff]
    %v841 = vld [vmem:[%s214 + $0x289] sm:$0xff]
    %v842 = vld [vmem:[%s214 + $0x291] sm:$0xff]
    %v843 = vld [vmem:[%s214 + $0x2a1] sm:$0xff]
    %v844 = vld [vmem:[%s214 + $0x2a9] sm:$0xff]
    %v845 = vld [vmem:[%s214 + $0x2b9] sm:$0xff]
    %v846 = vld [vmem:[%s214 + $0x2c1] sm:$0xff]
    %v847 = vld [vmem:[%s214 + $0x2d1] sm:$0xff]
    %v848 = vld [vmem:[%s214 + $0x2d9] sm:$0xff]
    %v849 = vld [vmem:[%s214 + $0x2e9] sm:$0xff]
    %v850 = vld [vmem:[%s214 + $0x2f1] sm:$0xff]
    %v851 = vld [vmem:[%s214 + $0x301] sm:$0xff]
    %v852 = vld [vmem:[%s214 + $0x309] sm:$0xff]
    %v853 = vld [vmem:[%s214 + $0x319] sm:$0xff]
    %v854 = vld [vmem:[%s214 + $0x321] sm:$0xff]
    %v855 = vpack.c.bf16 %v792, %v791
    %v856 = vpack.c.bf16 %v794, %v793
    %v857 = vpack.c.bf16 %v796, %v795
    %v858 = vpack.c.bf16 %v798, %v797
    %v859 = vpack.c.bf16 %v800, %v799
    %v860 = vpack.c.bf16 %v802, %v801
    %v861 = vpack.c.bf16 %v804, %v803
    %v862 = vpack.c.bf16 %v806, %v805
    %v863 = vpack.c.bf16 %v808, %v807
    %v864 = vpack.c.bf16 %v810, %v809
    %v865 = vpack.c.bf16 %v812, %v811
    %v866 = vpack.c.bf16 %v814, %v813
    %v867 = vpack.c.bf16 %v816, %v815
    %v868 = vpack.c.bf16 %v818, %v817
    %v869 = vpack.c.bf16 %v820, %v819
    %v870 = vpack.c.bf16 %v822, %v821
    %v871 = vpack.c.bf16 %v824, %v823
    %v872 = vpack.c.bf16 %v826, %v825
    %v873 = vpack.c.bf16 %v828, %v827
    %v874 = vpack.c.bf16 %v830, %v829
    %v875 = vpack.c.bf16 %v832, %v831
    %v876 = vpack.c.bf16 %v834, %v833
    %v877 = vpack.c.bf16 %v836, %v835
    %v878 = vpack.c.bf16 %v838, %v837
    %v879 = vpack.c.bf16 %v840, %v839
    %v880 = vpack.c.bf16 %v842, %v841
    %v881 = vpack.c.bf16 %v844, %v843
    %v882 = vpack.c.bf16 %v846, %v845
    %v883 = vpack.c.bf16 %v848, %v847
    %v884 = vpack.c.bf16 %v850, %v849
    %v885 = vpack.c.bf16 %v852, %v851
    %v886 = vpack.c.bf16 %v854, %v853
    %887 = vst [vmem:[#allocation3 + $0x20] sm:$0xff] %v855
    %888 = vst [vmem:[#allocation3 + $0x68] sm:$0xff] %v856
    %889 = vst [vmem:[#allocation3 + $0xb0] sm:$0xff] %v857
    %890 = vst [vmem:[#allocation3 + $0xf8] sm:$0xff] %v858
    %891 = vst [vmem:[#allocation3 + $0x140] sm:$0xff] %v859
    %892 = vst [vmem:[#allocation3 + $0x188] sm:$0xff] %v860
    %893 = vst [vmem:[#allocation3 + $0x1d0] sm:$0xff] %v861
    %894 = vst [vmem:[#allocation3 + $0x218] sm:$0xff] %v862
    %895 = vst [vmem:[#allocation3 + $0x260] sm:$0xff] %v863
    %896 = vst [vmem:[#allocation3 + $0x2a8] sm:$0xff] %v864
    %897 = vst [vmem:[#allocation3 + $0x2f0] sm:$0xff] %v865
    %898 = vst [vmem:[#allocation3 + $0x338] sm:$0xff] %v866
    %899 = vst [vmem:[#allocation3 + $0x380] sm:$0xff] %v867
    %900 = vst [vmem:[#allocation3 + $0x3c8] sm:$0xff] %v868
    %901 = vst [vmem:[#allocation3 + $0x410] sm:$0xff] %v869
    %902 = vst [vmem:[#allocation3 + $0x458] sm:$0xff] %v870
    %903 = vst [vmem:[#allocation3 + $0x4a0] sm:$0xff] %v871
    %904 = vst [vmem:[#allocation3 + $0x4e8] sm:$0xff] %v872
    %905 = vst [vmem:[#allocation3 + $0x530] sm:$0xff] %v873
    %906 = vst [vmem:[#allocation3 + $0x578] sm:$0xff] %v874
    %907 = vst [vmem:[#allocation3 + $0x5c0] sm:$0xff] %v875
    %908 = vst [vmem:[#allocation3 + $0x608] sm:$0xff] %v876
    %909 = vst [vmem:[#allocation3 + $0x650] sm:$0xff] %v877
    %910 = vst [vmem:[#allocation3 + $0x698] sm:$0xff] %v878
    %911 = vst [vmem:[#allocation3 + $0x6e0] sm:$0xff] %v879
    %912 = vst [vmem:[#allocation3 + $0x728] sm:$0xff] %v880
    %913 = vst [vmem:[#allocation3 + $0x770] sm:$0xff] %v881
    %914 = vst [vmem:[#allocation3 + $0x7b8] sm:$0xff] %v882
    %915 = vst [vmem:[#allocation3 + $0x800] sm:$0xff] %v883
    %916 = vst [vmem:[#allocation3 + $0x848] sm:$0xff] %v884
    %917 = vst [vmem:[#allocation3 + $0x890] sm:$0xff] %v885
    %918 = vst [vmem:[#allocation3 + $0x8d8] sm:$0xff] %v886
    %v919 = vld [vmem:[%s214 + $0x2] sm:$0xff]
    %v920 = vld [vmem:[%s214 + $0xa] sm:$0xff]
    %v921 = vld [vmem:[%s214 + $0x1a] sm:$0xff]
    %v922 = vld [vmem:[%s214 + $0x22] sm:$0xff]
    %v923 = vld [vmem:[%s214 + $0x32] sm:$0xff]
    %v924 = vld [vmem:[%s214 + $0x3a] sm:$0xff]
    %v925 = vld [vmem:[%s214 + $0x4a] sm:$0xff]
    %v926 = vld [vmem:[%s214 + $0x52] sm:$0xff]
    %v927 = vld [vmem:[%s214 + $0x62] sm:$0xff]
    %v928 = vld [vmem:[%s214 + $0x6a] sm:$0xff]
    %v929 = vld [vmem:[%s214 + $0x7a] sm:$0xff]
    %v930 = vld [vmem:[%s214 + $0x82] sm:$0xff]
    %v931 = vld [vmem:[%s214 + $0x92] sm:$0xff]
    %v932 = vld [vmem:[%s214 + $0x9a] sm:$0xff]
    %v933 = vld [vmem:[%s214 + $0xaa] sm:$0xff]
    %v934 = vld [vmem:[%s214 + $0xb2] sm:$0xff]
    %v935 = vld [vmem:[%s214 + $0xc2] sm:$0xff]
    %v936 = vld [vmem:[%s214 + $0xca] sm:$0xff]
    %v937 = vld [vmem:[%s214 + $0xda] sm:$0xff]
    %v938 = vld [vmem:[%s214 + $0xe2] sm:$0xff]
    %v939 = vld [vmem:[%s214 + $0xf2] sm:$0xff]
    %v940 = vld [vmem:[%s214 + $0xfa] sm:$0xff]
    %v941 = vld [vmem:[%s214 + $0x10a] sm:$0xff]
    %v942 = vld [vmem:[%s214 + $0x112] sm:$0xff]
    %v943 = vld [vmem:[%s214 + $0x122] sm:$0xff]
    %v944 = vld [vmem:[%s214 + $0x12a] sm:$0xff]
    %v945 = vld [vmem:[%s214 + $0x13a] sm:$0xff]
    %v946 = vld [vmem:[%s214 + $0x142] sm:$0xff]
    %v947 = vld [vmem:[%s214 + $0x152] sm:$0xff]
    %v948 = vld [vmem:[%s214 + $0x15a] sm:$0xff]
    %v949 = vld [vmem:[%s214 + $0x16a] sm:$0xff]
    %v950 = vld [vmem:[%s214 + $0x172] sm:$0xff]
    %v951 = vld [vmem:[%s214 + $0x1b2] sm:$0xff]
    %v952 = vld [vmem:[%s214 + $0x1ba] sm:$0xff]
    %v953 = vld [vmem:[%s214 + $0x1ca] sm:$0xff]
    %v954 = vld [vmem:[%s214 + $0x1d2] sm:$0xff]
    %v955 = vld [vmem:[%s214 + $0x1e2] sm:$0xff]
    %v956 = vld [vmem:[%s214 + $0x1ea] sm:$0xff]
    %v957 = vld [vmem:[%s214 + $0x1fa] sm:$0xff]
    %v958 = vld [vmem:[%s214 + $0x202] sm:$0xff]
    %v959 = vld [vmem:[%s214 + $0x212] sm:$0xff]
    %v960 = vld [vmem:[%s214 + $0x21a] sm:$0xff]
    %v961 = vld [vmem:[%s214 + $0x22a] sm:$0xff]
    %v962 = vld [vmem:[%s214 + $0x232] sm:$0xff]
    %v963 = vld [vmem:[%s214 + $0x242] sm:$0xff]
    %v964 = vld [vmem:[%s214 + $0x24a] sm:$0xff]
    %v965 = vld [vmem:[%s214 + $0x25a] sm:$0xff]
    %v966 = vld [vmem:[%s214 + $0x262] sm:$0xff]
    %v967 = vld [vmem:[%s214 + $0x272] sm:$0xff]
    %v968 = vld [vmem:[%s214 + $0x27a] sm:$0xff]
    %v969 = vld [vmem:[%s214 + $0x28a] sm:$0xff]
    %v970 = vld [vmem:[%s214 + $0x292] sm:$0xff]
    %v971 = vld [vmem:[%s214 + $0x2a2] sm:$0xff]
    %v972 = vld [vmem:[%s214 + $0x2aa] sm:$0xff]
    %v973 = vld [vmem:[%s214 + $0x2ba] sm:$0xff]
    %v974 = vld [vmem:[%s214 + $0x2c2] sm:$0xff]
    %v975 = vld [vmem:[%s214 + $0x2d2] sm:$0xff]
    %v976 = vld [vmem:[%s214 + $0x2da] sm:$0xff]
    %v977 = vld [vmem:[%s214 + $0x2ea] sm:$0xff]
    %v978 = vld [vmem:[%s214 + $0x2f2] sm:$0xff]
    %v979 = vld [vmem:[%s214 + $0x302] sm:$0xff]
    %v980 = vld [vmem:[%s214 + $0x30a] sm:$0xff]
    %v981 = vld [vmem:[%s214 + $0x31a] sm:$0xff]
    %v982 = vld [vmem:[%s214 + $0x322] sm:$0xff]
    %v983 = vpack.c.bf16 %v920, %v919
    %v984 = vpack.c.bf16 %v922, %v921
    %v985 = vpack.c.bf16 %v924, %v923
    %v986 = vpack.c.bf16 %v926, %v925
    %v987 = vpack.c.bf16 %v928, %v927
    %v988 = vpack.c.bf16 %v930, %v929
    %v989 = vpack.c.bf16 %v932, %v931
    %v990 = vpack.c.bf16 %v934, %v933
    %v991 = vpack.c.bf16 %v936, %v935
    %v992 = vpack.c.bf16 %v938, %v937
    %v993 = vpack.c.bf16 %v940, %v939
    %v994 = vpack.c.bf16 %v942, %v941
    %v995 = vpack.c.bf16 %v944, %v943
    %v996 = vpack.c.bf16 %v946, %v945
    %v997 = vpack.c.bf16 %v948, %v947
    %v998 = vpack.c.bf16 %v950, %v949
    %v999 = vpack.c.bf16 %v952, %v951
    %v1000 = vpack.c.bf16 %v954, %v953
    %v1001 = vpack.c.bf16 %v956, %v955
    %v1002 = vpack.c.bf16 %v958, %v957
    %v1003 = vpack.c.bf16 %v960, %v959
    %v1004 = vpack.c.bf16 %v962, %v961
    %v1005 = vpack.c.bf16 %v964, %v963
    %v1006 = vpack.c.bf16 %v966, %v965
    %v1007 = vpack.c.bf16 %v968, %v967
    %v1008 = vpack.c.bf16 %v970, %v969
    %v1009 = vpack.c.bf16 %v972, %v971
    %v1010 = vpack.c.bf16 %v974, %v973
    %v1011 = vpack.c.bf16 %v976, %v975
    %v1012 = vpack.c.bf16 %v978, %v977
    %v1013 = vpack.c.bf16 %v980, %v979
    %v1014 = vpack.c.bf16 %v982, %v981
    %1015 = vst [vmem:[#allocation3 + $0x28] sm:$0xff] %v983
    %1016 = vst [vmem:[#allocation3 + $0x70] sm:$0xff] %v984
    %1017 = vst [vmem:[#allocation3 + $0xb8] sm:$0xff] %v985
    %1018 = vst [vmem:[#allocation3 + $0x100] sm:$0xff] %v986
    %1019 = vst [vmem:[#allocation3 + $0x148] sm:$0xff] %v987
    %1020 = vst [vmem:[#allocation3 + $0x190] sm:$0xff] %v988
    %1021 = vst [vmem:[#allocation3 + $0x1d8] sm:$0xff] %v989
    %1022 = vst [vmem:[#allocation3 + $0x220] sm:$0xff] %v990
    %1023 = vst [vmem:[#allocation3 + $0x268] sm:$0xff] %v991
    %1024 = vst [vmem:[#allocation3 + $0x2b0] sm:$0xff] %v992
    %1025 = vst [vmem:[#allocation3 + $0x2f8] sm:$0xff] %v993
    %1026 = vst [vmem:[#allocation3 + $0x340] sm:$0xff] %v994
    %1027 = vst [vmem:[#allocation3 + $0x388] sm:$0xff] %v995
    %1028 = vst [vmem:[#allocation3 + $0x3d0] sm:$0xff] %v996
    %1029 = vst [vmem:[#allocation3 + $0x418] sm:$0xff] %v997
    %1030 = vst [vmem:[#allocation3 + $0x460] sm:$0xff] %v998
    %1031 = vst [vmem:[#allocation3 + $0x4a8] sm:$0xff] %v999
    %1032 = vst [vmem:[#allocation3 + $0x4f0] sm:$0xff] %v1000
    %1033 = vst [vmem:[#allocation3 + $0x538] sm:$0xff] %v1001
    %1034 = vst [vmem:[#allocation3 + $0x580] sm:$0xff] %v1002
    %1035 = vst [vmem:[#allocation3 + $0x5c8] sm:$0xff] %v1003
    %1036 = vst [vmem:[#allocation3 + $0x610] sm:$0xff] %v1004
    %1037 = vst [vmem:[#allocation3 + $0x658] sm:$0xff] %v1005
    %1038 = vst [vmem:[#allocation3 + $0x6a0] sm:$0xff] %v1006
    %1039 = vst [vmem:[#allocation3 + $0x6e8] sm:$0xff] %v1007
    %1040 = vst [vmem:[#allocation3 + $0x730] sm:$0xff] %v1008
    %1041 = vst [vmem:[#allocation3 + $0x778] sm:$0xff] %v1009
    %1042 = vst [vmem:[#allocation3 + $0x7c0] sm:$0xff] %v1010
    %1043 = vst [vmem:[#allocation3 + $0x808] sm:$0xff] %v1011
    %1044 = vst [vmem:[#allocation3 + $0x850] sm:$0xff] %v1012
    %1045 = vst [vmem:[#allocation3 + $0x898] sm:$0xff] %v1013
    %1046 = vst [vmem:[#allocation3 + $0x8e0] sm:$0xff] %v1014
    %s1047 = scalar_lea.vmem [#allocation2], 48
    %v1048 = vld [vmem:[%s1047] sm:$0xff]
    %v1049 = vld [vmem:[%s1047 + $0x8] sm:$0xff]
    %v1050 = vld [vmem:[%s1047 + $0x18] sm:$0xff]
    %v1051 = vld [vmem:[%s1047 + $0x20] sm:$0xff]
    %v1052 = vld [vmem:[%s1047 + $0x30] sm:$0xff]
    %v1053 = vld [vmem:[%s1047 + $0x38] sm:$0xff]
    %v1054 = vld [vmem:[%s1047 + $0x48] sm:$0xff]
    %v1055 = vld [vmem:[%s1047 + $0x50] sm:$0xff]
    %v1056 = vld [vmem:[%s1047 + $0x60] sm:$0xff]
    %v1057 = vld [vmem:[%s1047 + $0x68] sm:$0xff]
    %v1058 = vld [vmem:[%s1047 + $0x78] sm:$0xff]
    %v1059 = vld [vmem:[%s1047 + $0x80] sm:$0xff]
    %v1060 = vld [vmem:[%s1047 + $0x90] sm:$0xff]
    %v1061 = vld [vmem:[%s1047 + $0x98] sm:$0xff]
    %v1062 = vld [vmem:[%s1047 + $0xa8] sm:$0xff]
    %v1063 = vld [vmem:[%s1047 + $0xb0] sm:$0xff]
    %v1064 = vld [vmem:[%s1047 + $0xc0] sm:$0xff]
    %v1065 = vld [vmem:[%s1047 + $0xc8] sm:$0xff]
    %v1066 = vld [vmem:[%s1047 + $0xd8] sm:$0xff]
    %v1067 = vld [vmem:[%s1047 + $0xe0] sm:$0xff]
    %v1068 = vld [vmem:[%s1047 + $0xf0] sm:$0xff]
    %v1069 = vld [vmem:[%s1047 + $0xf8] sm:$0xff]
    %v1070 = vld [vmem:[%s1047 + $0x108] sm:$0xff]
    %v1071 = vld [vmem:[%s1047 + $0x110] sm:$0xff]
    %v1072 = vld [vmem:[%s1047 + $0x120] sm:$0xff]
    %v1073 = vld [vmem:[%s1047 + $0x128] sm:$0xff]
    %v1074 = vld [vmem:[%s1047 + $0x138] sm:$0xff]
    %v1075 = vld [vmem:[%s1047 + $0x140] sm:$0xff]
    %v1076 = vld [vmem:[%s1047 + $0x150] sm:$0xff]
    %v1077 = vld [vmem:[%s1047 + $0x158] sm:$0xff]
    %v1078 = vld [vmem:[%s1047 + $0x168] sm:$0xff]
    %v1079 = vld [vmem:[%s1047 + $0x170] sm:$0xff]
    %v1080 = vld [vmem:[%s1047 + $0x1b0] sm:$0xff]
    %v1081 = vld [vmem:[%s1047 + $0x1b8] sm:$0xff]
    %v1082 = vld [vmem:[%s1047 + $0x1c8] sm:$0xff]
    %v1083 = vld [vmem:[%s1047 + $0x1d0] sm:$0xff]
    %v1084 = vld [vmem:[%s1047 + $0x1e0] sm:$0xff]
    %v1085 = vld [vmem:[%s1047 + $0x1e8] sm:$0xff]
    %v1086 = vld [vmem:[%s1047 + $0x1f8] sm:$0xff]
    %v1087 = vld [vmem:[%s1047 + $0x200] sm:$0xff]
    %v1088 = vld [vmem:[%s1047 + $0x210] sm:$0xff]
    %v1089 = vld [vmem:[%s1047 + $0x218] sm:$0xff]
    %v1090 = vld [vmem:[%s1047 + $0x228] sm:$0xff]
    %v1091 = vld [vmem:[%s1047 + $0x230] sm:$0xff]
    %v1092 = vld [vmem:[%s1047 + $0x240] sm:$0xff]
    %v1093 = vld [vmem:[%s1047 + $0x248] sm:$0xff]
    %v1094 = vld [vmem:[%s1047 + $0x258] sm:$0xff]
    %v1095 = vld [vmem:[%s1047 + $0x260] sm:$0xff]
    %v1096 = vld [vmem:[%s1047 + $0x270] sm:$0xff]
    %v1097 = vld [vmem:[%s1047 + $0x278] sm:$0xff]
    %v1098 = vld [vmem:[%s1047 + $0x288] sm:$0xff]
    %v1099 = vld [vmem:[%s1047 + $0x290] sm:$0xff]
    %v1100 = vld [vmem:[%s1047 + $0x2a0] sm:$0xff]
    %v1101 = vld [vmem:[%s1047 + $0x2a8] sm:$0xff]
    %v1102 = vld [vmem:[%s1047 + $0x2b8] sm:$0xff]
    %v1103 = vld [vmem:[%s1047 + $0x2c0] sm:$0xff]
    %v1104 = vld [vmem:[%s1047 + $0x2d0] sm:$0xff]
    %v1105 = vld [vmem:[%s1047 + $0x2d8] sm:$0xff]
    %v1106 = vld [vmem:[%s1047 + $0x2e8] sm:$0xff]
    %v1107 = vld [vmem:[%s1047 + $0x2f0] sm:$0xff]
    %v1108 = vld [vmem:[%s1047 + $0x300] sm:$0xff]
    %v1109 = vld [vmem:[%s1047 + $0x308] sm:$0xff]
    %v1110 = vld [vmem:[%s1047 + $0x318] sm:$0xff]
    %v1111 = vld [vmem:[%s1047 + $0x320] sm:$0xff]
    %v1112 = vpack.c.bf16 %v1049, %v1048
    %v1113 = vpack.c.bf16 %v1051, %v1050
    %v1114 = vpack.c.bf16 %v1053, %v1052
    %v1115 = vpack.c.bf16 %v1055, %v1054
    %v1116 = vpack.c.bf16 %v1057, %v1056
    %v1117 = vpack.c.bf16 %v1059, %v1058
    %v1118 = vpack.c.bf16 %v1061, %v1060
    %v1119 = vpack.c.bf16 %v1063, %v1062
    %v1120 = vpack.c.bf16 %v1065, %v1064
    %v1121 = vpack.c.bf16 %v1067, %v1066
    %v1122 = vpack.c.bf16 %v1069, %v1068
    %v1123 = vpack.c.bf16 %v1071, %v1070
    %v1124 = vpack.c.bf16 %v1073, %v1072
    %v1125 = vpack.c.bf16 %v1075, %v1074
    %v1126 = vpack.c.bf16 %v1077, %v1076
    %v1127 = vpack.c.bf16 %v1079, %v1078
    %v1128 = vpack.c.bf16 %v1081, %v1080
    %v1129 = vpack.c.bf16 %v1083, %v1082
    %v1130 = vpack.c.bf16 %v1085, %v1084
    %v1131 = vpack.c.bf16 %v1087, %v1086
    %v1132 = vpack.c.bf16 %v1089, %v1088
    %v1133 = vpack.c.bf16 %v1091, %v1090
    %v1134 = vpack.c.bf16 %v1093, %v1092
    %v1135 = vpack.c.bf16 %v1095, %v1094
    %v1136 = vpack.c.bf16 %v1097, %v1096
    %v1137 = vpack.c.bf16 %v1099, %v1098
    %v1138 = vpack.c.bf16 %v1101, %v1100
    %v1139 = vpack.c.bf16 %v1103, %v1102
    %v1140 = vpack.c.bf16 %v1105, %v1104
    %v1141 = vpack.c.bf16 %v1107, %v1106
    %v1142 = vpack.c.bf16 %v1109, %v1108
    %v1143 = vpack.c.bf16 %v1111, %v1110
    %1144 = vst [vmem:[#allocation3 + $0x30] sm:$0xff] %v1112
    %1145 = vst [vmem:[#allocation3 + $0x78] sm:$0xff] %v1113
    %1146 = vst [vmem:[#allocation3 + $0xc0] sm:$0xff] %v1114
    %1147 = vst [vmem:[#allocation3 + $0x108] sm:$0xff] %v1115
    %1148 = vst [vmem:[#allocation3 + $0x150] sm:$0xff] %v1116
    %1149 = vst [vmem:[#allocation3 + $0x198] sm:$0xff] %v1117
    %1150 = vst [vmem:[#allocation3 + $0x1e0] sm:$0xff] %v1118
    %1151 = vst [vmem:[#allocation3 + $0x228] sm:$0xff] %v1119
    %1152 = vst [vmem:[#allocation3 + $0x270] sm:$0xff] %v1120
    %1153 = vst [vmem:[#allocation3 + $0x2b8] sm:$0xff] %v1121
    %1154 = vst [vmem:[#allocation3 + $0x300] sm:$0xff] %v1122
    %1155 = vst [vmem:[#allocation3 + $0x348] sm:$0xff] %v1123
    %1156 = vst [vmem:[#allocation3 + $0x390] sm:$0xff] %v1124
    %1157 = vst [vmem:[#allocation3 + $0x3d8] sm:$0xff] %v1125
    %1158 = vst [vmem:[#allocation3 + $0x420] sm:$0xff] %v1126
    %1159 = vst [vmem:[#allocation3 + $0x468] sm:$0xff] %v1127
    %1160 = vst [vmem:[#allocation3 + $0x4b0] sm:$0xff] %v1128
    %1161 = vst [vmem:[#allocation3 + $0x4f8] sm:$0xff] %v1129
    %1162 = vst [vmem:[#allocation3 + $0x540] sm:$0xff] %v1130
    %1163 = vst [vmem:[#allocation3 + $0x588] sm:$0xff] %v1131
    %1164 = vst [vmem:[#allocation3 + $0x5d0] sm:$0xff] %v1132
    %1165 = vst [vmem:[#allocation3 + $0x618] sm:$0xff] %v1133
    %1166 = vst [vmem:[#allocation3 + $0x660] sm:$0xff] %v1134
    %1167 = vst [vmem:[#allocation3 + $0x6a8] sm:$0xff] %v1135
    %1168 = vst [vmem:[#allocation3 + $0x6f0] sm:$0xff] %v1136
    %1169 = vst [vmem:[#allocation3 + $0x738] sm:$0xff] %v1137
    %1170 = vst [vmem:[#allocation3 + $0x780] sm:$0xff] %v1138
    %1171 = vst [vmem:[#allocation3 + $0x7c8] sm:$0xff] %v1139
    %1172 = vst [vmem:[#allocation3 + $0x810] sm:$0xff] %v1140
    %1173 = vst [vmem:[#allocation3 + $0x858] sm:$0xff] %v1141
    %1174 = vst [vmem:[#allocation3 + $0x8a0] sm:$0xff] %v1142
    %1175 = vst [vmem:[#allocation3 + $0x8e8] sm:$0xff] %v1143
    %v1176 = vld [vmem:[%s1047 + $0x1] sm:$0xff]
    %v1177 = vld [vmem:[%s1047 + $0x9] sm:$0xff]
    %v1178 = vld [vmem:[%s1047 + $0x19] sm:$0xff]
    %v1179 = vld [vmem:[%s1047 + $0x21] sm:$0xff]
    %v1180 = vld [vmem:[%s1047 + $0x31] sm:$0xff]
    %v1181 = vld [vmem:[%s1047 + $0x39] sm:$0xff]
    %v1182 = vld [vmem:[%s1047 + $0x49] sm:$0xff]
    %v1183 = vld [vmem:[%s1047 + $0x51] sm:$0xff]
    %v1184 = vld [vmem:[%s1047 + $0x61] sm:$0xff]
    %v1185 = vld [vmem:[%s1047 + $0x69] sm:$0xff]
    %v1186 = vld [vmem:[%s1047 + $0x79] sm:$0xff]
    %v1187 = vld [vmem:[%s1047 + $0x81] sm:$0xff]
    %v1188 = vld [vmem:[%s1047 + $0x91] sm:$0xff]
    %v1189 = vld [vmem:[%s1047 + $0x99] sm:$0xff]
    %v1190 = vld [vmem:[%s1047 + $0xa9] sm:$0xff]
    %v1191 = vld [vmem:[%s1047 + $0xb1] sm:$0xff]
    %v1192 = vld [vmem:[%s1047 + $0xc1] sm:$0xff]
    %v1193 = vld [vmem:[%s1047 + $0xc9] sm:$0xff]
    %v1194 = vld [vmem:[%s1047 + $0xd9] sm:$0xff]
    %v1195 = vld [vmem:[%s1047 + $0xe1] sm:$0xff]
    %v1196 = vld [vmem:[%s1047 + $0xf1] sm:$0xff]
    %v1197 = vld [vmem:[%s1047 + $0xf9] sm:$0xff]
    %v1198 = vld [vmem:[%s1047 + $0x109] sm:$0xff]
    %v1199 = vld [vmem:[%s1047 + $0x111] sm:$0xff]
    %v1200 = vld [vmem:[%s1047 + $0x121] sm:$0xff]
    %v1201 = vld [vmem:[%s1047 + $0x129] sm:$0xff]
    %v1202 = vld [vmem:[%s1047 + $0x139] sm:$0xff]
    %v1203 = vld [vmem:[%s1047 + $0x141] sm:$0xff]
    %v1204 = vld [vmem:[%s1047 + $0x151] sm:$0xff]
    %v1205 = vld [vmem:[%s1047 + $0x159] sm:$0xff]
    %v1206 = vld [vmem:[%s1047 + $0x169] sm:$0xff]
    %v1207 = vld [vmem:[%s1047 + $0x171] sm:$0xff]
    %v1208 = vld [vmem:[%s1047 + $0x1b1] sm:$0xff]
    %v1209 = vld [vmem:[%s1047 + $0x1b9] sm:$0xff]
    %v1210 = vld [vmem:[%s1047 + $0x1c9] sm:$0xff]
    %v1211 = vld [vmem:[%s1047 + $0x1d1] sm:$0xff]
    %v1212 = vld [vmem:[%s1047 + $0x1e1] sm:$0xff]
    %v1213 = vld [vmem:[%s1047 + $0x1e9] sm:$0xff]
    %v1214 = vld [vmem:[%s1047 + $0x1f9] sm:$0xff]
    %v1215 = vld [vmem:[%s1047 + $0x201] sm:$0xff]
    %v1216 = vld [vmem:[%s1047 + $0x211] sm:$0xff]
    %v1217 = vld [vmem:[%s1047 + $0x219] sm:$0xff]
    %v1218 = vld [vmem:[%s1047 + $0x229] sm:$0xff]
    %v1219 = vld [vmem:[%s1047 + $0x231] sm:$0xff]
    %v1220 = vld [vmem:[%s1047 + $0x241] sm:$0xff]
    %v1221 = vld [vmem:[%s1047 + $0x249] sm:$0xff]
    %v1222 = vld [vmem:[%s1047 + $0x259] sm:$0xff]
    %v1223 = vld [vmem:[%s1047 + $0x261] sm:$0xff]
    %v1224 = vld [vmem:[%s1047 + $0x271] sm:$0xff]
    %v1225 = vld [vmem:[%s1047 + $0x279] sm:$0xff]
    %v1226 = vld [vmem:[%s1047 + $0x289] sm:$0xff]
    %v1227 = vld [vmem:[%s1047 + $0x291] sm:$0xff]
    %v1228 = vld [vmem:[%s1047 + $0x2a1] sm:$0xff]
    %v1229 = vld [vmem:[%s1047 + $0x2a9] sm:$0xff]
    %v1230 = vld [vmem:[%s1047 + $0x2b9] sm:$0xff]
    %v1231 = vld [vmem:[%s1047 + $0x2c1] sm:$0xff]
    %v1232 = vld [vmem:[%s1047 + $0x2d1] sm:$0xff]
    %v1233 = vld [vmem:[%s1047 + $0x2d9] sm:$0xff]
    %v1234 = vld [vmem:[%s1047 + $0x2e9] sm:$0xff]
    %v1235 = vld [vmem:[%s1047 + $0x2f1] sm:$0xff]
    %v1236 = vld [vmem:[%s1047 + $0x301] sm:$0xff]
    %v1237 = vld [vmem:[%s1047 + $0x309] sm:$0xff]
    %v1238 = vld [vmem:[%s1047 + $0x319] sm:$0xff]
    %v1239 = vld [vmem:[%s1047 + $0x321] sm:$0xff]
    %v1240 = vpack.c.bf16 %v1177, %v1176
    %v1241 = vpack.c.bf16 %v1179, %v1178
    %v1242 = vpack.c.bf16 %v1181, %v1180
    %v1243 = vpack.c.bf16 %v1183, %v1182
    %v1244 = vpack.c.bf16 %v1185, %v1184
    %v1245 = vpack.c.bf16 %v1187, %v1186
    %v1246 = vpack.c.bf16 %v1189, %v1188
    %v1247 = vpack.c.bf16 %v1191, %v1190
    %v1248 = vpack.c.bf16 %v1193, %v1192
    %v1249 = vpack.c.bf16 %v1195, %v1194
    %v1250 = vpack.c.bf16 %v1197, %v1196
    %v1251 = vpack.c.bf16 %v1199, %v1198
    %v1252 = vpack.c.bf16 %v1201, %v1200
    %v1253 = vpack.c.bf16 %v1203, %v1202
    %v1254 = vpack.c.bf16 %v1205, %v1204
    %v1255 = vpack.c.bf16 %v1207, %v1206
    %v1256 = vpack.c.bf16 %v1209, %v1208
    %v1257 = vpack.c.bf16 %v1211, %v1210
    %v1258 = vpack.c.bf16 %v1213, %v1212
    %v1259 = vpack.c.bf16 %v1215, %v1214
    %v1260 = vpack.c.bf16 %v1217, %v1216
    %v1261 = vpack.c.bf16 %v1219, %v1218
    %v1262 = vpack.c.bf16 %v1221, %v1220
    %v1263 = vpack.c.bf16 %v1223, %v1222
    %v1264 = vpack.c.bf16 %v1225, %v1224
    %v1265 = vpack.c.bf16 %v1227, %v1226
    %v1266 = vpack.c.bf16 %v1229, %v1228
    %v1267 = vpack.c.bf16 %v1231, %v1230
    %v1268 = vpack.c.bf16 %v1233, %v1232
    %v1269 = vpack.c.bf16 %v1235, %v1234
    %v1270 = vpack.c.bf16 %v1237, %v1236
    %v1271 = vpack.c.bf16 %v1239, %v1238
    %1272 = vst [vmem:[#allocation3 + $0x38] sm:$0xff] %v1240
    %1273 = vst [vmem:[#allocation3 + $0x80] sm:$0xff] %v1241
    %1274 = vst [vmem:[#allocation3 + $0xc8] sm:$0xff] %v1242
    %1275 = vst [vmem:[#allocation3 + $0x110] sm:$0xff] %v1243
    %1276 = vst [vmem:[#allocation3 + $0x158] sm:$0xff] %v1244
    %1277 = vst [vmem:[#allocation3 + $0x1a0] sm:$0xff] %v1245
    %1278 = vst [vmem:[#allocation3 + $0x1e8] sm:$0xff] %v1246
    %1279 = vst [vmem:[#allocation3 + $0x230] sm:$0xff] %v1247
    %1280 = vst [vmem:[#allocation3 + $0x278] sm:$0xff] %v1248
    %1281 = vst [vmem:[#allocation3 + $0x2c0] sm:$0xff] %v1249
    %1282 = vst [vmem:[#allocation3 + $0x308] sm:$0xff] %v1250
    %1283 = vst [vmem:[#allocation3 + $0x350] sm:$0xff] %v1251
    %1284 = vst [vmem:[#allocation3 + $0x398] sm:$0xff] %v1252
    %1285 = vst [vmem:[#allocation3 + $0x3e0] sm:$0xff] %v1253
    %1286 = vst [vmem:[#allocation3 + $0x428] sm:$0xff] %v1254
    %1287 = vst [vmem:[#allocation3 + $0x470] sm:$0xff] %v1255
    %1288 = vst [vmem:[#allocation3 + $0x4b8] sm:$0xff] %v1256
    %1289 = vst [vmem:[#allocation3 + $0x500] sm:$0xff] %v1257
    %1290 = vst [vmem:[#allocation3 + $0x548] sm:$0xff] %v1258
    %1291 = vst [vmem:[#allocation3 + $0x590] sm:$0xff] %v1259
    %1292 = vst [vmem:[#allocation3 + $0x5d8] sm:$0xff] %v1260
    %1293 = vst [vmem:[#allocation3 + $0x620] sm:$0xff] %v1261
    %1294 = vst [vmem:[#allocation3 + $0x668] sm:$0xff] %v1262
    %1295 = vst [vmem:[#allocation3 + $0x6b0] sm:$0xff] %v1263
    %1296 = vst [vmem:[#allocation3 + $0x6f8] sm:$0xff] %v1264
    %1297 = vst [vmem:[#allocation3 + $0x740] sm:$0xff] %v1265
    %1298 = vst [vmem:[#allocation3 + $0x788] sm:$0xff] %v1266
    %1299 = vst [vmem:[#allocation3 + $0x7d0] sm:$0xff] %v1267
    %1300 = vst [vmem:[#allocation3 + $0x818] sm:$0xff] %v1268
    %1301 = vst [vmem:[#allocation3 + $0x860] sm:$0xff] %v1269
    %1302 = vst [vmem:[#allocation3 + $0x8a8] sm:$0xff] %v1270
    %1303 = vst [vmem:[#allocation3 + $0x8f0] sm:$0xff] %v1271
    %v1304 = vld [vmem:[%s1047 + $0x2] sm:$0xff]
    %v1305 = vld [vmem:[%s1047 + $0xa] sm:$0xff]
    %v1306 = vld [vmem:[%s1047 + $0x1a] sm:$0xff]
    %v1307 = vld [vmem:[%s1047 + $0x22] sm:$0xff]
    %v1308 = vld [vmem:[%s1047 + $0x32] sm:$0xff]
    %v1309 = vld [vmem:[%s1047 + $0x3a] sm:$0xff]
    %v1310 = vld [vmem:[%s1047 + $0x4a] sm:$0xff]
    %v1311 = vld [vmem:[%s1047 + $0x52] sm:$0xff]
    %v1312 = vld [vmem:[%s1047 + $0x62] sm:$0xff]
    %v1313 = vld [vmem:[%s1047 + $0x6a] sm:$0xff]
    %v1314 = vld [vmem:[%s1047 + $0x7a] sm:$0xff]
    %v1315 = vld [vmem:[%s1047 + $0x82] sm:$0xff]
    %v1316 = vld [vmem:[%s1047 + $0x92] sm:$0xff]
    %v1317 = vld [vmem:[%s1047 + $0x9a] sm:$0xff]
    %v1318 = vld [vmem:[%s1047 + $0xaa] sm:$0xff]
    %v1319 = vld [vmem:[%s1047 + $0xb2] sm:$0xff]
    %v1320 = vld [vmem:[%s1047 + $0xc2] sm:$0xff]
    %v1321 = vld [vmem:[%s1047 + $0xca] sm:$0xff]
    %v1322 = vld [vmem:[%s1047 + $0xda] sm:$0xff]
    %v1323 = vld [vmem:[%s1047 + $0xe2] sm:$0xff]
    %v1324 = vld [vmem:[%s1047 + $0xf2] sm:$0xff]
    %v1325 = vld [vmem:[%s1047 + $0xfa] sm:$0xff]
    %v1326 = vld [vmem:[%s1047 + $0x10a] sm:$0xff]
    %v1327 = vld [vmem:[%s1047 + $0x112] sm:$0xff]
    %v1328 = vld [vmem:[%s1047 + $0x122] sm:$0xff]
    %v1329 = vld [vmem:[%s1047 + $0x12a] sm:$0xff]
    %v1330 = vld [vmem:[%s1047 + $0x13a] sm:$0xff]
    %v1331 = vld [vmem:[%s1047 + $0x142] sm:$0xff]
    %v1332 = vld [vmem:[%s1047 + $0x152] sm:$0xff]
    %v1333 = vld [vmem:[%s1047 + $0x15a] sm:$0xff]
    %v1334 = vld [vmem:[%s1047 + $0x16a] sm:$0xff]
    %v1335 = vld [vmem:[%s1047 + $0x172] sm:$0xff]
    %v1336 = vld [vmem:[%s1047 + $0x1b2] sm:$0xff]
    %v1337 = vld [vmem:[%s1047 + $0x1ba] sm:$0xff]
    %v1338 = vld [vmem:[%s1047 + $0x1ca] sm:$0xff]
    %v1339 = vld [vmem:[%s1047 + $0x1d2] sm:$0xff]
    %v1340 = vld [vmem:[%s1047 + $0x1e2] sm:$0xff]
    %v1341 = vld [vmem:[%s1047 + $0x1ea] sm:$0xff]
    %v1342 = vld [vmem:[%s1047 + $0x1fa] sm:$0xff]
    %v1343 = vld [vmem:[%s1047 + $0x202] sm:$0xff]
    %v1344 = vld [vmem:[%s1047 + $0x212] sm:$0xff]
    %v1345 = vld [vmem:[%s1047 + $0x21a] sm:$0xff]
    %v1346 = vld [vmem:[%s1047 + $0x22a] sm:$0xff]
    %v1347 = vld [vmem:[%s1047 + $0x232] sm:$0xff]
    %v1348 = vld [vmem:[%s1047 + $0x242] sm:$0xff]
    %v1349 = vld [vmem:[%s1047 + $0x24a] sm:$0xff]
    %v1350 = vld [vmem:[%s1047 + $0x25a] sm:$0xff]
    %v1351 = vld [vmem:[%s1047 + $0x262] sm:$0xff]
    %v1352 = vld [vmem:[%s1047 + $0x272] sm:$0xff]
    %v1353 = vld [vmem:[%s1047 + $0x27a] sm:$0xff]
    %v1354 = vld [vmem:[%s1047 + $0x28a] sm:$0xff]
    %v1355 = vld [vmem:[%s1047 + $0x292] sm:$0xff]
    %v1356 = vld [vmem:[%s1047 + $0x2a2] sm:$0xff]
    %v1357 = vld [vmem:[%s1047 + $0x2aa] sm:$0xff]
    %v1358 = vld [vmem:[%s1047 + $0x2ba] sm:$0xff]
    %v1359 = vld [vmem:[%s1047 + $0x2c2] sm:$0xff]
    %v1360 = vld [vmem:[%s1047 + $0x2d2] sm:$0xff]
    %v1361 = vld [vmem:[%s1047 + $0x2da] sm:$0xff]
    %v1362 = vld [vmem:[%s1047 + $0x2ea] sm:$0xff]
    %v1363 = vld [vmem:[%s1047 + $0x2f2] sm:$0xff]
    %v1364 = vld [vmem:[%s1047 + $0x302] sm:$0xff]
    %v1365 = vld [vmem:[%s1047 + $0x30a] sm:$0xff]
    %v1366 = vld [vmem:[%s1047 + $0x31a] sm:$0xff]
    %v1367 = vld [vmem:[%s1047 + $0x322] sm:$0xff]
    %v1368 = vpack.c.bf16 %v1305, %v1304
    %v1369 = vpack.c.bf16 %v1307, %v1306
    %v1370 = vpack.c.bf16 %v1309, %v1308
    %v1371 = vpack.c.bf16 %v1311, %v1310
    %v1372 = vpack.c.bf16 %v1313, %v1312
    %v1373 = vpack.c.bf16 %v1315, %v1314
    %v1374 = vpack.c.bf16 %v1317, %v1316
    %v1375 = vpack.c.bf16 %v1319, %v1318
    %v1376 = vpack.c.bf16 %v1321, %v1320
    %v1377 = vpack.c.bf16 %v1323, %v1322
    %v1378 = vpack.c.bf16 %v1325, %v1324
    %v1379 = vpack.c.bf16 %v1327, %v1326
    %v1380 = vpack.c.bf16 %v1329, %v1328
    %v1381 = vpack.c.bf16 %v1331, %v1330
    %v1382 = vpack.c.bf16 %v1333, %v1332
    %v1383 = vpack.c.bf16 %v1335, %v1334
    %v1384 = vpack.c.bf16 %v1337, %v1336
    %v1385 = vpack.c.bf16 %v1339, %v1338
    %v1386 = vpack.c.bf16 %v1341, %v1340
    %v1387 = vpack.c.bf16 %v1343, %v1342
    %v1388 = vpack.c.bf16 %v1345, %v1344
    %v1389 = vpack.c.bf16 %v1347, %v1346
    %v1390 = vpack.c.bf16 %v1349, %v1348
    %v1391 = vpack.c.bf16 %v1351, %v1350
    %v1392 = vpack.c.bf16 %v1353, %v1352
    %v1393 = vpack.c.bf16 %v1355, %v1354
    %v1394 = vpack.c.bf16 %v1357, %v1356
    %v1395 = vpack.c.bf16 %v1359, %v1358
    %v1396 = vpack.c.bf16 %v1361, %v1360
    %v1397 = vpack.c.bf16 %v1363, %v1362
    %v1398 = vpack.c.bf16 %v1365, %v1364
    %v1399 = vpack.c.bf16 %v1367, %v1366
    %1400 = vst [vmem:[#allocation3 + $0x40] sm:$0xff] %v1368
    %1401 = vst [vmem:[#allocation3 + $0x88] sm:$0xff] %v1369
    %1402 = vst [vmem:[#allocation3 + $0xd0] sm:$0xff] %v1370
    %1403 = vst [vmem:[#allocation3 + $0x118] sm:$0xff] %v1371
    %1404 = vst [vmem:[#allocation3 + $0x160] sm:$0xff] %v1372
    %1405 = vst [vmem:[#allocation3 + $0x1a8] sm:$0xff] %v1373
    %1406 = vst [vmem:[#allocation3 + $0x1f0] sm:$0xff] %v1374
    %1407 = vst [vmem:[#allocation3 + $0x238] sm:$0xff] %v1375
    %1408 = vst [vmem:[#allocation3 + $0x280] sm:$0xff] %v1376
    %1409 = vst [vmem:[#allocation3 + $0x2c8] sm:$0xff] %v1377
    %1410 = vst [vmem:[#allocation3 + $0x310] sm:$0xff] %v1378
    %1411 = vst [vmem:[#allocation3 + $0x358] sm:$0xff] %v1379
    %1412 = vst [vmem:[#allocation3 + $0x3a0] sm:$0xff] %v1380
    %1413 = vst [vmem:[#allocation3 + $0x3e8] sm:$0xff] %v1381
    %1414 = vst [vmem:[#allocation3 + $0x430] sm:$0xff] %v1382
    %1415 = vst [vmem:[#allocation3 + $0x478] sm:$0xff] %v1383
    %1416 = vst [vmem:[#allocation3 + $0x4c0] sm:$0xff] %v1384
    %1417 = vst [vmem:[#allocation3 + $0x508] sm:$0xff] %v1385
    %1418 = vst [vmem:[#allocation3 + $0x550] sm:$0xff] %v1386
    %1419 = vst [vmem:[#allocation3 + $0x598] sm:$0xff] %v1387
    %1420 = vst [vmem:[#allocation3 + $0x5e0] sm:$0xff] %v1388
    %1421 = vst [vmem:[#allocation3 + $0x628] sm:$0xff] %v1389
    %1422 = vst [vmem:[#allocation3 + $0x670] sm:$0xff] %v1390
    %1423 = vst [vmem:[#allocation3 + $0x6b8] sm:$0xff] %v1391
    %1424 = vst [vmem:[#allocation3 + $0x700] sm:$0xff] %v1392
    %1425 = vst [vmem:[#allocation3 + $0x748] sm:$0xff] %v1393
    %1426 = vst [vmem:[#allocation3 + $0x790] sm:$0xff] %v1394
    %1427 = vst [vmem:[#allocation3 + $0x7d8] sm:$0xff] %v1395
    %1428 = vst [vmem:[#allocation3 + $0x820] sm:$0xff] %v1396
    %1429 = vst [vmem:[#allocation3 + $0x868] sm:$0xff] %v1397
    %1430 = vst [vmem:[#allocation3 + $0x8b0] sm:$0xff] %v1398
    %1431 = vst [vmem:[#allocation3 + $0x8f8] sm:$0xff] %v1399
    %v1432 = vld [vmem:[#allocation3] sm:$0xff]
    %v1433 = vld [vmem:[#allocation3 + $0x8] sm:$0xff]
    %v1434 = vld [vmem:[#allocation3 + $0x10] sm:$0xff]
    %v1435 = vld [vmem:[#allocation3 + $0x18] sm:$0xff]
    %v1436 = vld [vmem:[#allocation3 + $0x20] sm:$0xff]
    %v1437 = vld [vmem:[#allocation3 + $0x28] sm:$0xff]
    %v1438 = vld [vmem:[#allocation3 + $0x30] sm:$0xff]
    %v1439 = vld [vmem:[#allocation3 + $0x38] sm:$0xff]
    %v1440 = vld [vmem:[#allocation3 + $0x40] sm:$0xff]
    %v1441 = vld [vmem:[#allocation3 + $0x48] sm:$0xff]
    %v1442 = vld [vmem:[#allocation3 + $0x50] sm:$0xff]
    %v1443 = vld [vmem:[#allocation3 + $0x58] sm:$0xff]
    %v1444 = vld [vmem:[#allocation3 + $0x60] sm:$0xff]
    %v1445 = vld [vmem:[#allocation3 + $0x68] sm:$0xff]
    %v1446 = vld [vmem:[#allocation3 + $0x70] sm:$0xff]
    %v1447 = vld [vmem:[#allocation3 + $0x78] sm:$0xff]
    %v1448 = vld [vmem:[#allocation3 + $0x80] sm:$0xff]
    %v1449 = vld [vmem:[#allocation3 + $0x88] sm:$0xff]
    %v1450 = vld [vmem:[#allocation3 + $0x90] sm:$0xff]
    %v1451 = vld [vmem:[#allocation3 + $0x98] sm:$0xff]
    %v1452 = vld [vmem:[#allocation3 + $0xa0] sm:$0xff]
    %v1453 = vld [vmem:[#allocation3 + $0xa8] sm:$0xff]
    %v1454 = vld [vmem:[#allocation3 + $0xb0] sm:$0xff]
    %v1455 = vld [vmem:[#allocation3 + $0xb8] sm:$0xff]
    %v1456 = vld [vmem:[#allocation3 + $0xc0] sm:$0xff]
    %v1457 = vld [vmem:[#allocation3 + $0xc8] sm:$0xff]
    %v1458 = vld [vmem:[#allocation3 + $0xd0] sm:$0xff]
    %v1459 = vld [vmem:[#allocation3 + $0xd8] sm:$0xff]
    %v1460 = vld [vmem:[#allocation3 + $0xe0] sm:$0xff]
    %v1461 = vld [vmem:[#allocation3 + $0xe8] sm:$0xff]
    %v1462 = vld [vmem:[#allocation3 + $0xf0] sm:$0xff]
    %v1463 = vld [vmem:[#allocation3 + $0xf8] sm:$0xff]
    %v1464 = vld [vmem:[#allocation3 + $0x100] sm:$0xff]
    %v1465 = vld [vmem:[#allocation3 + $0x108] sm:$0xff]
    %v1466 = vld [vmem:[#allocation3 + $0x110] sm:$0xff]
    %v1467 = vld [vmem:[#allocation3 + $0x118] sm:$0xff]
    %v1468 = vld [vmem:[#allocation3 + $0x120] sm:$0xff]
    %v1469 = vld [vmem:[#allocation3 + $0x128] sm:$0xff]
    %v1470 = vld [vmem:[#allocation3 + $0x130] sm:$0xff]
    %v1471 = vld [vmem:[#allocation3 + $0x138] sm:$0xff]
    %v1472 = vld [vmem:[#allocation3 + $0x140] sm:$0xff]
    %v1473 = vld [vmem:[#allocation3 + $0x148] sm:$0xff]
    %v1474 = vld [vmem:[#allocation3 + $0x150] sm:$0xff]
    %v1475 = vld [vmem:[#allocation3 + $0x158] sm:$0xff]
    %v1476 = vld [vmem:[#allocation3 + $0x160] sm:$0xff]
    %v1477 = vld [vmem:[#allocation3 + $0x168] sm:$0xff]
    %v1478 = vld [vmem:[#allocation3 + $0x170] sm:$0xff]
    %v1479 = vld [vmem:[#allocation3 + $0x178] sm:$0xff]
    %v1480 = vld [vmem:[#allocation3 + $0x180] sm:$0xff]
    %v1481 = vld [vmem:[#allocation3 + $0x188] sm:$0xff]
    %v1482 = vld [vmem:[#allocation3 + $0x190] sm:$0xff]
    %v1483 = vld [vmem:[#allocation3 + $0x198] sm:$0xff]
    %v1484 = vld [vmem:[#allocation3 + $0x1a0] sm:$0xff]
    %v1485 = vld [vmem:[#allocation3 + $0x1a8] sm:$0xff]
    %v1486 = vld [vmem:[#allocation3 + $0x1b0] sm:$0xff]
    %v1487 = vld [vmem:[#allocation3 + $0x1b8] sm:$0xff]
    %v1488 = vld [vmem:[#allocation3 + $0x1c0] sm:$0xff]
    %v1489 = vld [vmem:[#allocation3 + $0x1c8] sm:$0xff]
    %v1490 = vld [vmem:[#allocation3 + $0x1d0] sm:$0xff]
    %v1491 = vld [vmem:[#allocation3 + $0x1d8] sm:$0xff]
    %v1492 = vld [vmem:[#allocation3 + $0x1e0] sm:$0xff]
    %v1493 = vld [vmem:[#allocation3 + $0x1e8] sm:$0xff]
    %v1494 = vld [vmem:[#allocation3 + $0x1f0] sm:$0xff]
    %v1495 = vld [vmem:[#allocation3 + $0x1f8] sm:$0xff]
    %v1496 = vld [vmem:[#allocation3 + $0x200] sm:$0xff]
    %v1497 = vld [vmem:[#allocation3 + $0x208] sm:$0xff]
    %v1498 = vld [vmem:[#allocation3 + $0x210] sm:$0xff]
    %v1499 = vld [vmem:[#allocation3 + $0x218] sm:$0xff]
    %v1500 = vld [vmem:[#allocation3 + $0x220] sm:$0xff]
    %v1501 = vld [vmem:[#allocation3 + $0x228] sm:$0xff]
    %v1502 = vld [vmem:[#allocation3 + $0x230] sm:$0xff]
    %v1503 = vld [vmem:[#allocation3 + $0x238] sm:$0xff]
    %v1504 = vld [vmem:[#allocation3 + $0x240] sm:$0xff]
    %v1505 = vld [vmem:[#allocation3 + $0x248] sm:$0xff]
    %v1506 = vld [vmem:[#allocation3 + $0x250] sm:$0xff]
    %v1507 = vld [vmem:[#allocation3 + $0x258] sm:$0xff]
    %v1508 = vld [vmem:[#allocation3 + $0x260] sm:$0xff]
    %v1509 = vld [vmem:[#allocation3 + $0x268] sm:$0xff]
    %v1510 = vld [vmem:[#allocation3 + $0x270] sm:$0xff]
    %v1511 = vld [vmem:[#allocation3 + $0x278] sm:$0xff]
    %v1512 = vld [vmem:[#allocation3 + $0x280] sm:$0xff]
    %v1513 = vld [vmem:[#allocation3 + $0x288] sm:$0xff]
    %v1514 = vld [vmem:[#allocation3 + $0x290] sm:$0xff]
    %v1515 = vld [vmem:[#allocation3 + $0x298] sm:$0xff]
    %v1516 = vld [vmem:[#allocation3 + $0x2a0] sm:$0xff]
    %v1517 = vld [vmem:[#allocation3 + $0x2a8] sm:$0xff]
    %v1518 = vld [vmem:[#allocation3 + $0x2b0] sm:$0xff]
    %v1519 = vld [vmem:[#allocation3 + $0x2b8] sm:$0xff]
    %v1520 = vld [vmem:[#allocation3 + $0x2c0] sm:$0xff]
    %v1521 = vld [vmem:[#allocation3 + $0x2c8] sm:$0xff]
    %v1522 = vld [vmem:[#allocation3 + $0x2d0] sm:$0xff]
    %v1523 = vld [vmem:[#allocation3 + $0x2d8] sm:$0xff]
    %v1524 = vld [vmem:[#allocation3 + $0x2e0] sm:$0xff]
    %v1525 = vld [vmem:[#allocation3 + $0x2e8] sm:$0xff]
    %v1526 = vld [vmem:[#allocation3 + $0x2f0] sm:$0xff]
    %v1527 = vld [vmem:[#allocation3 + $0x2f8] sm:$0xff]
    %v1528 = vld [vmem:[#allocation3 + $0x300] sm:$0xff]
    %v1529 = vld [vmem:[#allocation3 + $0x308] sm:$0xff]
    %v1530 = vld [vmem:[#allocation3 + $0x310] sm:$0xff]
    %v1531 = vld [vmem:[#allocation3 + $0x318] sm:$0xff]
    %v1532 = vld [vmem:[#allocation3 + $0x320] sm:$0xff]
    %v1533 = vld [vmem:[#allocation3 + $0x328] sm:$0xff]
    %v1534 = vld [vmem:[#allocation3 + $0x330] sm:$0xff]
    %v1535 = vld [vmem:[#allocation3 + $0x338] sm:$0xff]
    %v1536 = vld [vmem:[#allocation3 + $0x340] sm:$0xff]
    %v1537 = vld [vmem:[#allocation3 + $0x348] sm:$0xff]
    %v1538 = vld [vmem:[#allocation3 + $0x350] sm:$0xff]
    %v1539 = vld [vmem:[#allocation3 + $0x358] sm:$0xff]
    %v1540 = vld [vmem:[#allocation3 + $0x360] sm:$0xff]
    %v1541 = vld [vmem:[#allocation3 + $0x368] sm:$0xff]
    %v1542 = vld [vmem:[#allocation3 + $0x370] sm:$0xff]
    %v1543 = vld [vmem:[#allocation3 + $0x378] sm:$0xff]
    %v1544 = vld [vmem:[#allocation3 + $0x380] sm:$0xff]
    %v1545 = vld [vmem:[#allocation3 + $0x388] sm:$0xff]
    %v1546 = vld [vmem:[#allocation3 + $0x390] sm:$0xff]
    %v1547 = vld [vmem:[#allocation3 + $0x398] sm:$0xff]
    %v1548 = vld [vmem:[#allocation3 + $0x3a0] sm:$0xff]
    %v1549 = vld [vmem:[#allocation3 + $0x3a8] sm:$0xff]
    %v1550 = vld [vmem:[#allocation3 + $0x3b0] sm:$0xff]
    %v1551 = vld [vmem:[#allocation3 + $0x3b8] sm:$0xff]
    %v1552 = vld [vmem:[#allocation3 + $0x3c0] sm:$0xff]
    %v1553 = vld [vmem:[#allocation3 + $0x3c8] sm:$0xff]
    %v1554 = vld [vmem:[#allocation3 + $0x3d0] sm:$0xff]
    %v1555 = vld [vmem:[#allocation3 + $0x3d8] sm:$0xff]
    %v1556 = vld [vmem:[#allocation3 + $0x3e0] sm:$0xff]
    %v1557 = vld [vmem:[#allocation3 + $0x3e8] sm:$0xff]
    %v1558 = vld [vmem:[#allocation3 + $0x3f0] sm:$0xff]
    %v1559 = vld [vmem:[#allocation3 + $0x3f8] sm:$0xff]
    %v1560 = vld [vmem:[#allocation3 + $0x400] sm:$0xff]
    %v1561 = vld [vmem:[#allocation3 + $0x408] sm:$0xff]
    %v1562 = vld [vmem:[#allocation3 + $0x410] sm:$0xff]
    %v1563 = vld [vmem:[#allocation3 + $0x418] sm:$0xff]
    %v1564 = vld [vmem:[#allocation3 + $0x420] sm:$0xff]
    %v1565 = vld [vmem:[#allocation3 + $0x428] sm:$0xff]
    %v1566 = vld [vmem:[#allocation3 + $0x430] sm:$0xff]
    %v1567 = vld [vmem:[#allocation3 + $0x438] sm:$0xff]
    %v1568 = vld [vmem:[#allocation3 + $0x440] sm:$0xff]
    %v1569 = vld [vmem:[#allocation3 + $0x448] sm:$0xff]
    %v1570 = vld [vmem:[#allocation3 + $0x450] sm:$0xff]
    %v1571 = vld [vmem:[#allocation3 + $0x458] sm:$0xff]
    %v1572 = vld [vmem:[#allocation3 + $0x460] sm:$0xff]
    %v1573 = vld [vmem:[#allocation3 + $0x468] sm:$0xff]
    %v1574 = vld [vmem:[#allocation3 + $0x470] sm:$0xff]
    %v1575 = vld [vmem:[#allocation3 + $0x478] sm:$0xff]
    %v1576 = vld [vmem:[#allocation3 + $0x480] sm:$0xff]
    %v1577 = vld [vmem:[#allocation3 + $0x488] sm:$0xff]
    %v1578 = vld [vmem:[#allocation3 + $0x490] sm:$0xff]
    %v1579 = vld [vmem:[#allocation3 + $0x498] sm:$0xff]
    %v1580 = vld [vmem:[#allocation3 + $0x4a0] sm:$0xff]
    %v1581 = vld [vmem:[#allocation3 + $0x4a8] sm:$0xff]
    %v1582 = vld [vmem:[#allocation3 + $0x4b0] sm:$0xff]
    %v1583 = vld [vmem:[#allocation3 + $0x4b8] sm:$0xff]
    %v1584 = vld [vmem:[#allocation3 + $0x4c0] sm:$0xff]
    %v1585 = vld [vmem:[#allocation3 + $0x4c8] sm:$0xff]
    %v1586 = vld [vmem:[#allocation3 + $0x4d0] sm:$0xff]
    %v1587 = vld [vmem:[#allocation3 + $0x4d8] sm:$0xff]
    %v1588 = vld [vmem:[#allocation3 + $0x4e0] sm:$0xff]
    %v1589 = vld [vmem:[#allocation3 + $0x4e8] sm:$0xff]
    %v1590 = vld [vmem:[#allocation3 + $0x4f0] sm:$0xff]
    %v1591 = vld [vmem:[#allocation3 + $0x4f8] sm:$0xff]
    %v1592 = vld [vmem:[#allocation3 + $0x500] sm:$0xff]
    %v1593 = vld [vmem:[#allocation3 + $0x508] sm:$0xff]
    %v1594 = vld [vmem:[#allocation3 + $0x510] sm:$0xff]
    %v1595 = vld [vmem:[#allocation3 + $0x518] sm:$0xff]
    %v1596 = vld [vmem:[#allocation3 + $0x520] sm:$0xff]
    %v1597 = vld [vmem:[#allocation3 + $0x528] sm:$0xff]
    %v1598 = vld [vmem:[#allocation3 + $0x530] sm:$0xff]
    %v1599 = vld [vmem:[#allocation3 + $0x538] sm:$0xff]
    %v1600 = vld [vmem:[#allocation3 + $0x540] sm:$0xff]
    %v1601 = vld [vmem:[#allocation3 + $0x548] sm:$0xff]
    %v1602 = vld [vmem:[#allocation3 + $0x550] sm:$0xff]
    %v1603 = vld [vmem:[#allocation3 + $0x558] sm:$0xff]
    %v1604 = vld [vmem:[#allocation3 + $0x560] sm:$0xff]
    %v1605 = vld [vmem:[#allocation3 + $0x568] sm:$0xff]
    %v1606 = vld [vmem:[#allocation3 + $0x570] sm:$0xff]
    %v1607 = vld [vmem:[#allocation3 + $0x578] sm:$0xff]
    %v1608 = vld [vmem:[#allocation3 + $0x580] sm:$0xff]
    %v1609 = vld [vmem:[#allocation3 + $0x588] sm:$0xff]
    %v1610 = vld [vmem:[#allocation3 + $0x590] sm:$0xff]
    %v1611 = vld [vmem:[#allocation3 + $0x598] sm:$0xff]
    %v1612 = vld [vmem:[#allocation3 + $0x5a0] sm:$0xff]
    %v1613 = vld [vmem:[#allocation3 + $0x5a8] sm:$0xff]
    %v1614 = vld [vmem:[#allocation3 + $0x5b0] sm:$0xff]
    %v1615 = vld [vmem:[#allocation3 + $0x5b8] sm:$0xff]
    %v1616 = vld [vmem:[#allocation3 + $0x5c0] sm:$0xff]
    %v1617 = vld [vmem:[#allocation3 + $0x5c8] sm:$0xff]
    %v1618 = vld [vmem:[#allocation3 + $0x5d0] sm:$0xff]
    %v1619 = vld [vmem:[#allocation3 + $0x5d8] sm:$0xff]
    %v1620 = vld [vmem:[#allocation3 + $0x5e0] sm:$0xff]
    %v1621 = vld [vmem:[#allocation3 + $0x5e8] sm:$0xff]
    %v1622 = vld [vmem:[#allocation3 + $0x5f0] sm:$0xff]
    %v1623 = vld [vmem:[#allocation3 + $0x5f8] sm:$0xff]
    %v1624 = vld [vmem:[#allocation3 + $0x600] sm:$0xff]
    %v1625 = vld [vmem:[#allocation3 + $0x608] sm:$0xff]
    %v1626 = vld [vmem:[#allocation3 + $0x610] sm:$0xff]
    %v1627 = vld [vmem:[#allocation3 + $0x618] sm:$0xff]
    %v1628 = vld [vmem:[#allocation3 + $0x620] sm:$0xff]
    %v1629 = vld [vmem:[#allocation3 + $0x628] sm:$0xff]
    %v1630 = vld [vmem:[#allocation3 + $0x630] sm:$0xff]
    %v1631 = vld [vmem:[#allocation3 + $0x638] sm:$0xff]
    %v1632 = vld [vmem:[#allocation3 + $0x640] sm:$0xff]
    %v1633 = vld [vmem:[#allocation3 + $0x648] sm:$0xff]
    %v1634 = vld [vmem:[#allocation3 + $0x650] sm:$0xff]
    %v1635 = vld [vmem:[#allocation3 + $0x658] sm:$0xff]
    %v1636 = vld [vmem:[#allocation3 + $0x660] sm:$0xff]
    %v1637 = vld [vmem:[#allocation3 + $0x668] sm:$0xff]
    %v1638 = vld [vmem:[#allocation3 + $0x670] sm:$0xff]
    %v1639 = vld [vmem:[#allocation3 + $0x678] sm:$0xff]
    %v1640 = vld [vmem:[#allocation3 + $0x680] sm:$0xff]
    %v1641 = vld [vmem:[#allocation3 + $0x688] sm:$0xff]
    %v1642 = vld [vmem:[#allocation3 + $0x690] sm:$0xff]
    %v1643 = vld [vmem:[#allocation3 + $0x698] sm:$0xff]
    %v1644 = vld [vmem:[#allocation3 + $0x6a0] sm:$0xff]
    %v1645 = vld [vmem:[#allocation3 + $0x6a8] sm:$0xff]
    %v1646 = vld [vmem:[#allocation3 + $0x6b0] sm:$0xff]
    %v1647 = vld [vmem:[#allocation3 + $0x6b8] sm:$0xff]
    %v1648 = vld [vmem:[#allocation3 + $0x6c0] sm:$0xff]
    %v1649 = vld [vmem:[#allocation3 + $0x6c8] sm:$0xff]
    %v1650 = vld [vmem:[#allocation3 + $0x6d0] sm:$0xff]
    %v1651 = vld [vmem:[#allocation3 + $0x6d8] sm:$0xff]
    %v1652 = vld [vmem:[#allocation3 + $0x6e0] sm:$0xff]
    %v1653 = vld [vmem:[#allocation3 + $0x6e8] sm:$0xff]
    %v1654 = vld [vmem:[#allocation3 + $0x6f0] sm:$0xff]
    %v1655 = vld [vmem:[#allocation3 + $0x6f8] sm:$0xff]
    %v1656 = vld [vmem:[#allocation3 + $0x700] sm:$0xff]
    %v1657 = vld [vmem:[#allocation3 + $0x708] sm:$0xff]
    %v1658 = vld [vmem:[#allocation3 + $0x710] sm:$0xff]
    %v1659 = vld [vmem:[#allocation3 + $0x718] sm:$0xff]
    %v1660 = vld [vmem:[#allocation3 + $0x720] sm:$0xff]
    %v1661 = vld [vmem:[#allocation3 + $0x728] sm:$0xff]
    %v1662 = vld [vmem:[#allocation3 + $0x730] sm:$0xff]
    %v1663 = vld [vmem:[#allocation3 + $0x738] sm:$0xff]
    %v1664 = vld [vmem:[#allocation3 + $0x740] sm:$0xff]
    %v1665 = vld [vmem:[#allocation3 + $0x748] sm:$0xff]
    %v1666 = vld [vmem:[#allocation3 + $0x750] sm:$0xff]
    %v1667 = vld [vmem:[#allocation3 + $0x758] sm:$0xff]
    %v1668 = vld [vmem:[#allocation3 + $0x760] sm:$0xff]
    %v1669 = vld [vmem:[#allocation3 + $0x768] sm:$0xff]
    %v1670 = vld [vmem:[#allocation3 + $0x770] sm:$0xff]
    %v1671 = vld [vmem:[#allocation3 + $0x778] sm:$0xff]
    %v1672 = vld [vmem:[#allocation3 + $0x780] sm:$0xff]
    %v1673 = vld [vmem:[#allocation3 + $0x788] sm:$0xff]
    %v1674 = vld [vmem:[#allocation3 + $0x790] sm:$0xff]
    %v1675 = vld [vmem:[#allocation3 + $0x798] sm:$0xff]
    %v1676 = vld [vmem:[#allocation3 + $0x7a0] sm:$0xff]
    %v1677 = vld [vmem:[#allocation3 + $0x7a8] sm:$0xff]
    %v1678 = vld [vmem:[#allocation3 + $0x7b0] sm:$0xff]
    %v1679 = vld [vmem:[#allocation3 + $0x7b8] sm:$0xff]
    %v1680 = vld [vmem:[#allocation3 + $0x7c0] sm:$0xff]
    %v1681 = vld [vmem:[#allocation3 + $0x7c8] sm:$0xff]
    %v1682 = vld [vmem:[#allocation3 + $0x7d0] sm:$0xff]
    %v1683 = vld [vmem:[#allocation3 + $0x7d8] sm:$0xff]
    %v1684 = vld [vmem:[#allocation3 + $0x7e0] sm:$0xff]
    %v1685 = vld [vmem:[#allocation3 + $0x7e8] sm:$0xff]
    %v1686 = vld [vmem:[#allocation3 + $0x7f0] sm:$0xff]
    %v1687 = vld [vmem:[#allocation3 + $0x7f8] sm:$0xff]
    %v1688 = vld [vmem:[#allocation3 + $0x800] sm:$0xff]
    %v1689 = vld [vmem:[#allocation3 + $0x808] sm:$0xff]
    %v1690 = vld [vmem:[#allocation3 + $0x810] sm:$0xff]
    %v1691 = vld [vmem:[#allocation3 + $0x818] sm:$0xff]
    %v1692 = vld [vmem:[#allocation3 + $0x820] sm:$0xff]
    %v1693 = vld [vmem:[#allocation3 + $0x828] sm:$0xff]
    %v1694 = vld [vmem:[#allocation3 + $0x830] sm:$0xff]
    %v1695 = vld [vmem:[#allocation3 + $0x838] sm:$0xff]
    %v1696 = vld [vmem:[#allocation3 + $0x840] sm:$0xff]
    %v1697 = vld [vmem:[#allocation3 + $0x848] sm:$0xff]
    %v1698 = vld [vmem:[#allocation3 + $0x850] sm:$0xff]
    %v1699 = vld [vmem:[#allocation3 + $0x858] sm:$0xff]
    %v1700 = vld [vmem:[#allocation3 + $0x860] sm:$0xff]
    %v1701 = vld [vmem:[#allocation3 + $0x868] sm:$0xff]
    %v1702 = vld [vmem:[#allocation3 + $0x870] sm:$0xff]
    %v1703 = vld [vmem:[#allocation3 + $0x878] sm:$0xff]
    %v1704 = vld [vmem:[#allocation3 + $0x880] sm:$0xff]
    %v1705 = vld [vmem:[#allocation3 + $0x888] sm:$0xff]
    %v1706 = vld [vmem:[#allocation3 + $0x890] sm:$0xff]
    %v1707 = vld [vmem:[#allocation3 + $0x898] sm:$0xff]
    %v1708 = vld [vmem:[#allocation3 + $0x8a0] sm:$0xff]
    %v1709 = vld [vmem:[#allocation3 + $0x8a8] sm:$0xff]
    %v1710 = vld [vmem:[#allocation3 + $0x8b0] sm:$0xff]
    %v1711 = vld [vmem:[#allocation3 + $0x8b8] sm:$0xff]
    %v1712 = vld [vmem:[#allocation3 + $0x8c0] sm:$0xff]
    %v1713 = vld [vmem:[#allocation3 + $0x8c8] sm:$0xff]
    %v1714 = vld [vmem:[#allocation3 + $0x8d0] sm:$0xff]
    %v1715 = vld [vmem:[#allocation3 + $0x8d8] sm:$0xff]
    %v1716 = vld [vmem:[#allocation3 + $0x8e0] sm:$0xff]
    %v1717 = vld [vmem:[#allocation3 + $0x8e8] sm:$0xff]
    %v1718 = vld [vmem:[#allocation3 + $0x8f0] sm:$0xff]
    %v1719 = vld [vmem:[#allocation3 + $0x8f8] sm:$0xff]
    %v1720 = vld [vmem:[#allocation8] sm:$0xf]
    %v1721 = vld [vmem:[#allocation8 + $0x4] sm:$0xf]
    %v1722 = vld [vmem:[#allocation8 + $0x8] sm:$0xf]
    %v1723 = vld [vmem:[#allocation8 + $0xc] sm:$0xf]
    %v1724 = vld [vmem:[#allocation8 + $0x10] sm:$0xf]
    %v1725 = vld [vmem:[#allocation8 + $0x14] sm:$0xf]
    %v1726 = vld [vmem:[#allocation8 + $0x18] sm:$0xf]
    %v1727 = vld [vmem:[#allocation8 + $0x1c] sm:$0xf]
    %v1728 = vld [vmem:[#allocation8 + $0x20] sm:$0xf]
    %v1729 = vld [vmem:[#allocation8 + $0x24] sm:$0xf]
    %v1730 = vld [vmem:[#allocation8 + $0x28] sm:$0xf]
    %v1731 = vld [vmem:[#allocation8 + $0x2c] sm:$0xf]
    %v1732 = vld [vmem:[#allocation8 + $0x30] sm:$0xf]
    %v1733 = vld [vmem:[#allocation8 + $0x34] sm:$0xf]
    %v1734 = vld [vmem:[#allocation8 + $0x38] sm:$0xf]
    %v1735 = vld [vmem:[#allocation8 + $0x3c] sm:$0xf]
    %v1736 = vld [vmem:[#allocation8 + $0x40] sm:$0xf]
    %v1737 = vld [vmem:[#allocation8 + $0x44] sm:$0xf]
    %v1738 = vld [vmem:[#allocation8 + $0x48] sm:$0xf]
    %v1739 = vld [vmem:[#allocation8 + $0x4c] sm:$0xf]
    %v1740 = vld [vmem:[#allocation8 + $0x50] sm:$0xf]
    %v1741 = vld [vmem:[#allocation8 + $0x54] sm:$0xf]
    %v1742 = vld [vmem:[#allocation8 + $0x58] sm:$0xf]
    %v1743 = vld [vmem:[#allocation8 + $0x5c] sm:$0xf]
    %v1744 = vld [vmem:[#allocation8 + $0x60] sm:$0xf]
    %v1745 = vld [vmem:[#allocation8 + $0x64] sm:$0xf]
    %v1746 = vld [vmem:[#allocation8 + $0x68] sm:$0xf]
    %v1747 = vld [vmem:[#allocation8 + $0x6c] sm:$0xf]
    %v1748 = vld [vmem:[#allocation8 + $0x70] sm:$0xf]
    %v1749 = vld [vmem:[#allocation8 + $0x74] sm:$0xf]
    %v1750 = vld [vmem:[#allocation8 + $0x78] sm:$0xf]
    %v1751 = vld [vmem:[#allocation8 + $0x7c] sm:$0xf]
    %v1752 = vld [vmem:[#allocation8 + $0x80] sm:$0xf]
    %v1753 = vld [vmem:[#allocation8 + $0x84] sm:$0xf]
    %v1754 = vld [vmem:[#allocation8 + $0x88] sm:$0xf]
    %v1755 = vld [vmem:[#allocation8 + $0x8c] sm:$0xf]
    %v1756 = vld [vmem:[#allocation8 + $0x90] sm:$0xf]
    %v1757 = vld [vmem:[#allocation8 + $0x94] sm:$0xf]
    %v1758 = vld [vmem:[#allocation8 + $0x98] sm:$0xf]
    %v1759 = vld [vmem:[#allocation8 + $0x9c] sm:$0xf]
    %v1760 = vld [vmem:[#allocation8 + $0xa0] sm:$0xf]
    %v1761 = vld [vmem:[#allocation8 + $0xa4] sm:$0xf]
    %v1762 = vld [vmem:[#allocation8 + $0xa8] sm:$0xf]
    %v1763 = vld [vmem:[#allocation8 + $0xac] sm:$0xf]
    %v1764 = vld [vmem:[#allocation8 + $0xb0] sm:$0xf]
    %v1765 = vld [vmem:[#allocation8 + $0xb4] sm:$0xf]
    %v1766 = vld [vmem:[#allocation8 + $0xb8] sm:$0xf]
    %v1767 = vld [vmem:[#allocation8 + $0xbc] sm:$0xf]
    %v1768 = vld [vmem:[#allocation8 + $0xc0] sm:$0xf]
    %v1769 = vld [vmem:[#allocation8 + $0xc4] sm:$0xf]
    %v1770 = vld [vmem:[#allocation8 + $0xc8] sm:$0xf]
    %v1771 = vld [vmem:[#allocation8 + $0xcc] sm:$0xf]
    %v1772 = vld [vmem:[#allocation8 + $0xd0] sm:$0xf]
    %v1773 = vld [vmem:[#allocation8 + $0xd4] sm:$0xf]
    %v1774 = vld [vmem:[#allocation8 + $0xd8] sm:$0xf]
    %v1775 = vld [vmem:[#allocation8 + $0xdc] sm:$0xf]
    %v1776 = vld [vmem:[#allocation8 + $0xe0] sm:$0xf]
    %v1777 = vld [vmem:[#allocation8 + $0xe4] sm:$0xf]
    %v1778 = vld [vmem:[#allocation8 + $0xe8] sm:$0xf]
    %v1779 = vld [vmem:[#allocation8 + $0xec] sm:$0xf]
    %v1780 = vld [vmem:[#allocation8 + $0xf0] sm:$0xf]
    %v1781 = vld [vmem:[#allocation8 + $0xf4] sm:$0xf]
    %v1782 = vld [vmem:[#allocation8 + $0xf8] sm:$0xf]
    %v1783 = vld [vmem:[#allocation8 + $0xfc] sm:$0xf]
    %v1784 = vld [vmem:[#allocation8 + $0x100] sm:$0xf]
    %v1785 = vld [vmem:[#allocation8 + $0x104] sm:$0xf]
    %v1786 = vld [vmem:[#allocation8 + $0x108] sm:$0xf]
    %v1787 = vld [vmem:[#allocation8 + $0x10c] sm:$0xf]
    %v1788 = vld [vmem:[#allocation8 + $0x110] sm:$0xf]
    %v1789 = vld [vmem:[#allocation8 + $0x114] sm:$0xf]
    %v1790 = vld [vmem:[#allocation8 + $0x118] sm:$0xf]
    %v1791 = vld [vmem:[#allocation8 + $0x11c] sm:$0xf]
    %v1792 = vld [vmem:[#allocation8 + $0x120] sm:$0xf]
    %v1793 = vld [vmem:[#allocation8 + $0x124] sm:$0xf]
    %v1794 = vld [vmem:[#allocation8 + $0x128] sm:$0xf]
    %v1795 = vld [vmem:[#allocation8 + $0x12c] sm:$0xf]
    %v1796 = vld [vmem:[#allocation8 + $0x130] sm:$0xf]
    %v1797 = vld [vmem:[#allocation8 + $0x134] sm:$0xf]
    %v1798 = vld [vmem:[#allocation8 + $0x138] sm:$0xf]
    %v1799 = vld [vmem:[#allocation8 + $0x13c] sm:$0xf]
    %v1800 = vld [vmem:[#allocation8 + $0x140] sm:$0xf]
    %v1801 = vld [vmem:[#allocation8 + $0x144] sm:$0xf]
    %v1802 = vld [vmem:[#allocation8 + $0x148] sm:$0xf]
    %v1803 = vld [vmem:[#allocation8 + $0x14c] sm:$0xf]
    %v1804 = vld [vmem:[#allocation8 + $0x150] sm:$0xf]
    %v1805 = vld [vmem:[#allocation8 + $0x154] sm:$0xf]
    %v1806 = vld [vmem:[#allocation8 + $0x158] sm:$0xf]
    %v1807 = vld [vmem:[#allocation8 + $0x15c] sm:$0xf]
    %v1808 = vld [vmem:[#allocation8 + $0x160] sm:$0xf]
    %v1809 = vld [vmem:[#allocation8 + $0x164] sm:$0xf]
    %v1810 = vld [vmem:[#allocation8 + $0x168] sm:$0xf]
    %v1811 = vld [vmem:[#allocation8 + $0x16c] sm:$0xf]
    %v1812 = vld [vmem:[#allocation8 + $0x170] sm:$0xf]
    %v1813 = vld [vmem:[#allocation8 + $0x174] sm:$0xf]
    %v1814 = vld [vmem:[#allocation8 + $0x178] sm:$0xf]
    %v1815 = vld [vmem:[#allocation8 + $0x17c] sm:$0xf]
    %v1816 = vld [vmem:[#allocation8 + $0x180] sm:$0xf]
    %v1817 = vld [vmem:[#allocation8 + $0x184] sm:$0xf]
    %v1818 = vld [vmem:[#allocation8 + $0x188] sm:$0xf]
    %v1819 = vld [vmem:[#allocation8 + $0x18c] sm:$0xf]
    %v1820 = vld [vmem:[#allocation8 + $0x190] sm:$0xf]
    %v1821 = vld [vmem:[#allocation8 + $0x194] sm:$0xf]
    %v1822 = vld [vmem:[#allocation8 + $0x198] sm:$0xf]
    %v1823 = vld [vmem:[#allocation8 + $0x19c] sm:$0xf]
    %v1824 = vld [vmem:[#allocation8 + $0x1a0] sm:$0xf]
    %v1825 = vld [vmem:[#allocation8 + $0x1a4] sm:$0xf]
    %v1826 = vld [vmem:[#allocation8 + $0x1a8] sm:$0xf]
    %v1827 = vld [vmem:[#allocation8 + $0x1ac] sm:$0xf]
    %v1828 = vld [vmem:[#allocation8 + $0x1b0] sm:$0xf]
    %v1829 = vld [vmem:[#allocation8 + $0x1b4] sm:$0xf]
    %v1830 = vld [vmem:[#allocation8 + $0x1b8] sm:$0xf]
    %v1831 = vld [vmem:[#allocation8 + $0x1bc] sm:$0xf]
    %v1832 = vld [vmem:[#allocation8 + $0x1c0] sm:$0xf]
    %v1833 = vld [vmem:[#allocation8 + $0x1c4] sm:$0xf]
    %v1834 = vld [vmem:[#allocation8 + $0x1c8] sm:$0xf]
    %v1835 = vld [vmem:[#allocation8 + $0x1cc] sm:$0xf]
    %v1836 = vld [vmem:[#allocation8 + $0x1d0] sm:$0xf]
    %v1837 = vld [vmem:[#allocation8 + $0x1d4] sm:$0xf]
    %v1838 = vld [vmem:[#allocation8 + $0x1d8] sm:$0xf]
    %v1839 = vld [vmem:[#allocation8 + $0x1dc] sm:$0xf]
    %v1840 = vld [vmem:[#allocation8 + $0x1e0] sm:$0xf]
    %v1841 = vld [vmem:[#allocation8 + $0x1e4] sm:$0xf]
    %v1842 = vld [vmem:[#allocation8 + $0x1e8] sm:$0xf]
    %v1843 = vld [vmem:[#allocation8 + $0x1ec] sm:$0xf]
    %v1844 = vld [vmem:[#allocation8 + $0x1f0] sm:$0xf]
    %v1845 = vld [vmem:[#allocation8 + $0x1f4] sm:$0xf]
    %v1846 = vld [vmem:[#allocation8 + $0x1f8] sm:$0xf]
    %v1847 = vld [vmem:[#allocation8 + $0x1fc] sm:$0xf]
    %v1848 = vld [vmem:[#allocation8 + $0x200] sm:$0xf]
    %v1849 = vld [vmem:[#allocation8 + $0x204] sm:$0xf]
    %v1850 = vld [vmem:[#allocation8 + $0x208] sm:$0xf]
    %v1851 = vld [vmem:[#allocation8 + $0x20c] sm:$0xf]
    %v1852 = vld [vmem:[#allocation8 + $0x210] sm:$0xf]
    %v1853 = vld [vmem:[#allocation8 + $0x214] sm:$0xf]
    %v1854 = vld [vmem:[#allocation8 + $0x218] sm:$0xf]
    %v1855 = vld [vmem:[#allocation8 + $0x21c] sm:$0xf]
    %v1856 = vld [vmem:[#allocation8 + $0x220] sm:$0xf]
    %v1857 = vld [vmem:[#allocation8 + $0x224] sm:$0xf]
    %v1858 = vld [vmem:[#allocation8 + $0x228] sm:$0xf]
    %v1859 = vld [vmem:[#allocation8 + $0x22c] sm:$0xf]
    %v1860 = vld [vmem:[#allocation8 + $0x230] sm:$0xf]
    %v1861 = vld [vmem:[#allocation8 + $0x234] sm:$0xf]
    %v1862 = vld [vmem:[#allocation8 + $0x238] sm:$0xf]
    %v1863 = vld [vmem:[#allocation8 + $0x23c] sm:$0xf]
    %v2008 = vunpack.c.l.b16 %v1720
    %v2009 = vunpack.c.l.b16 %v1721
    %v2010 = vunpack.c.l.b16 %v1722
    %v2011 = vunpack.c.l.b16 %v1723
    %v2012 = vunpack.c.l.b16 %v1724
    %v2013 = vunpack.c.l.b16 %v1725
    %v2014 = vunpack.c.l.b16 %v1726
    %v2015 = vunpack.c.l.b16 %v1727
    %v2016 = vunpack.c.l.b16 %v1728
    %v2017 = vunpack.c.l.b16 %v1729
    %v2018 = vunpack.c.l.b16 %v1730
    %v2019 = vunpack.c.l.b16 %v1731
    %v2020 = vunpack.c.l.b16 %v1732
    %v2021 = vunpack.c.l.b16 %v1733
    %v2022 = vunpack.c.l.b16 %v1734
    %v2023 = vunpack.c.l.b16 %v1735
    %v2024 = vunpack.c.l.b16 %v1736
    %v2025 = vunpack.c.l.b16 %v1737
    %v2026 = vunpack.c.l.b16 %v1738
    %v2027 = vunpack.c.l.b16 %v1739
    %v2028 = vunpack.c.l.b16 %v1740
    %v2029 = vunpack.c.l.b16 %v1741
    %v2030 = vunpack.c.l.b16 %v1742
    %v2031 = vunpack.c.l.b16 %v1743
    %v2032 = vunpack.c.l.b16 %v1744
    %v2033 = vunpack.c.l.b16 %v1745
    %v2034 = vunpack.c.l.b16 %v1746
    %v2035 = vunpack.c.l.b16 %v1747
    %v2036 = vunpack.c.l.b16 %v1748
    %v2037 = vunpack.c.l.b16 %v1749
    %v2038 = vunpack.c.l.b16 %v1750
    %v2039 = vunpack.c.l.b16 %v1751
    %v2040 = vunpack.c.l.b16 %v1752
    %v2041 = vunpack.c.l.b16 %v1753
    %v2042 = vunpack.c.l.b16 %v1754
    %v2043 = vunpack.c.l.b16 %v1755
    %v2044 = vunpack.c.l.b16 %v1756
    %v2045 = vunpack.c.l.b16 %v1757
    %v2046 = vunpack.c.l.b16 %v1758
    %v2047 = vunpack.c.l.b16 %v1759
    %v2048 = vunpack.c.l.b16 %v1760
    %v2049 = vunpack.c.l.b16 %v1761
    %v2050 = vunpack.c.l.b16 %v1762
    %v2051 = vunpack.c.l.b16 %v1763
    %v2052 = vunpack.c.l.b16 %v1764
    %v2053 = vunpack.c.l.b16 %v1765
    %v2054 = vunpack.c.l.b16 %v1766
    %v2055 = vunpack.c.l.b16 %v1767
    %v2056 = vunpack.c.l.b16 %v1768
    %v2057 = vunpack.c.l.b16 %v1769
    %v2058 = vunpack.c.l.b16 %v1770
    %v2059 = vunpack.c.l.b16 %v1771
    %v2060 = vunpack.c.l.b16 %v1772
    %v2061 = vunpack.c.l.b16 %v1773
    %v2062 = vunpack.c.l.b16 %v1774
    %v2063 = vunpack.c.l.b16 %v1775
    %v2064 = vunpack.c.l.b16 %v1776
    %v2065 = vunpack.c.l.b16 %v1777
    %v2066 = vunpack.c.l.b16 %v1778
    %v2067 = vunpack.c.l.b16 %v1779
    %v2068 = vunpack.c.l.b16 %v1780
    %v2069 = vunpack.c.l.b16 %v1781
    %v2070 = vunpack.c.l.b16 %v1782
    %v2071 = vunpack.c.l.b16 %v1783
    %v2072 = vunpack.c.l.b16 %v1784
    %v2073 = vunpack.c.l.b16 %v1785
    %v2074 = vunpack.c.l.b16 %v1786
    %v2075 = vunpack.c.l.b16 %v1787
    %v2076 = vunpack.c.l.b16 %v1788
    %v2077 = vunpack.c.l.b16 %v1789
    %v2078 = vunpack.c.l.b16 %v1790
    %v2079 = vunpack.c.l.b16 %v1791
    %v2080 = vunpack.c.l.b16 %v1792
    %v2081 = vunpack.c.l.b16 %v1793
    %v2082 = vunpack.c.l.b16 %v1794
    %v2083 = vunpack.c.l.b16 %v1795
    %v2084 = vunpack.c.l.b16 %v1796
    %v2085 = vunpack.c.l.b16 %v1797
    %v2086 = vunpack.c.l.b16 %v1798
    %v2087 = vunpack.c.l.b16 %v1799
    %v2088 = vunpack.c.l.b16 %v1800
    %v2089 = vunpack.c.l.b16 %v1801
    %v2090 = vunpack.c.l.b16 %v1802
    %v2091 = vunpack.c.l.b16 %v1803
    %v2092 = vunpack.c.l.b16 %v1804
    %v2093 = vunpack.c.l.b16 %v1805
    %v2094 = vunpack.c.l.b16 %v1806
    %v2095 = vunpack.c.l.b16 %v1807
    %v2096 = vunpack.c.l.b16 %v1808
    %v2097 = vunpack.c.l.b16 %v1809
    %v2098 = vunpack.c.l.b16 %v1810
    %v2099 = vunpack.c.l.b16 %v1811
    %v2100 = vunpack.c.l.b16 %v1812
    %v2101 = vunpack.c.l.b16 %v1813
    %v2102 = vunpack.c.l.b16 %v1814
    %v2103 = vunpack.c.l.b16 %v1815
    %v2104 = vunpack.c.l.b16 %v1816
    %v2105 = vunpack.c.l.b16 %v1817
    %v2106 = vunpack.c.l.b16 %v1818
    %v2107 = vunpack.c.l.b16 %v1819
    %v2108 = vunpack.c.l.b16 %v1820
    %v2109 = vunpack.c.l.b16 %v1821
    %v2110 = vunpack.c.l.b16 %v1822
    %v2111 = vunpack.c.l.b16 %v1823
    %v2112 = vunpack.c.l.b16 %v1824
    %v2113 = vunpack.c.l.b16 %v1825
    %v2114 = vunpack.c.l.b16 %v1826
    %v2115 = vunpack.c.l.b16 %v1827
    %v2116 = vunpack.c.l.b16 %v1828
    %v2117 = vunpack.c.l.b16 %v1829
    %v2118 = vunpack.c.l.b16 %v1830
    %v2119 = vunpack.c.l.b16 %v1831
    %v2120 = vunpack.c.l.b16 %v1832
    %v2121 = vunpack.c.l.b16 %v1833
    %v2122 = vunpack.c.l.b16 %v1834
    %v2123 = vunpack.c.l.b16 %v1835
    %v2124 = vunpack.c.l.b16 %v1836
    %v2125 = vunpack.c.l.b16 %v1837
    %v2126 = vunpack.c.l.b16 %v1838
    %v2127 = vunpack.c.l.b16 %v1839
    %v2128 = vunpack.c.l.b16 %v1840
    %v2129 = vunpack.c.l.b16 %v1841
    %v2130 = vunpack.c.l.b16 %v1842
    %v2131 = vunpack.c.l.b16 %v1843
    %v2132 = vunpack.c.l.b16 %v1844
    %v2133 = vunpack.c.l.b16 %v1845
    %v2134 = vunpack.c.l.b16 %v1846
    %v2135 = vunpack.c.l.b16 %v1847
    %v2136 = vunpack.c.l.b16 %v1848
    %v2137 = vunpack.c.l.b16 %v1849
    %v2138 = vunpack.c.l.b16 %v1850
    %v2139 = vunpack.c.l.b16 %v1851
    %v2140 = vunpack.c.l.b16 %v1852
    %v2141 = vunpack.c.l.b16 %v1853
    %v2142 = vunpack.c.l.b16 %v1854
    %v2143 = vunpack.c.l.b16 %v1855
    %v2144 = vunpack.c.l.b16 %v1856
    %v2145 = vunpack.c.l.b16 %v1857
    %v2146 = vunpack.c.l.b16 %v1858
    %v2147 = vunpack.c.l.b16 %v1859
    %v2148 = vunpack.c.l.b16 %v1860
    %v2149 = vunpack.c.l.b16 %v1861
    %v2150 = vunpack.c.l.b16 %v1862
    %v2151 = vunpack.c.l.b16 %v1863
    %v2152 = vpack.c.b16 %v2009, %v2008
    %v2153 = vpack.c.b16 %v2011, %v2010
    %v2154 = vpack.c.b16 %v2013, %v2012
    %v2155 = vpack.c.b16 %v2015, %v2014
    %v2156 = vpack.c.b16 %v2017, %v2016
    %v2157 = vpack.c.b16 %v2019, %v2018
    %v2158 = vpack.c.b16 %v2021, %v2020
    %v2159 = vpack.c.b16 %v2023, %v2022
    %v2160 = vpack.c.b16 %v2025, %v2024
    %v2161 = vpack.c.b16 %v2027, %v2026
    %v2162 = vpack.c.b16 %v2029, %v2028
    %v2163 = vpack.c.b16 %v2031, %v2030
    %v2164 = vpack.c.b16 %v2033, %v2032
    %v2165 = vpack.c.b16 %v2035, %v2034
    %v2166 = vpack.c.b16 %v2037, %v2036
    %v2167 = vpack.c.b16 %v2039, %v2038
    %v2168 = vpack.c.b16 %v2041, %v2040
    %v2169 = vpack.c.b16 %v2043, %v2042
    %v2170 = vpack.c.b16 %v2045, %v2044
    %v2171 = vpack.c.b16 %v2047, %v2046
    %v2172 = vpack.c.b16 %v2049, %v2048
    %v2173 = vpack.c.b16 %v2051, %v2050
    %v2174 = vpack.c.b16 %v2053, %v2052
    %v2175 = vpack.c.b16 %v2055, %v2054
    %v2176 = vpack.c.b16 %v2057, %v2056
    %v2177 = vpack.c.b16 %v2059, %v2058
    %v2178 = vpack.c.b16 %v2061, %v2060
    %v2179 = vpack.c.b16 %v2063, %v2062
    %v2180 = vpack.c.b16 %v2065, %v2064
    %v2181 = vpack.c.b16 %v2067, %v2066
    %v2182 = vpack.c.b16 %v2069, %v2068
    %v2183 = vpack.c.b16 %v2071, %v2070
    %v2184 = vpack.c.b16 %v2073, %v2072
    %v2185 = vpack.c.b16 %v2075, %v2074
    %v2186 = vpack.c.b16 %v2077, %v2076
    %v2187 = vpack.c.b16 %v2079, %v2078
    %v2188 = vpack.c.b16 %v2081, %v2080
    %v2189 = vpack.c.b16 %v2083, %v2082
    %v2190 = vpack.c.b16 %v2085, %v2084
    %v2191 = vpack.c.b16 %v2087, %v2086
    %v2192 = vpack.c.b16 %v2089, %v2088
    %v2193 = vpack.c.b16 %v2091, %v2090
    %v2194 = vpack.c.b16 %v2093, %v2092
    %v2195 = vpack.c.b16 %v2095, %v2094
    %v2196 = vpack.c.b16 %v2097, %v2096
    %v2197 = vpack.c.b16 %v2099, %v2098
    %v2198 = vpack.c.b16 %v2101, %v2100
    %v2199 = vpack.c.b16 %v2103, %v2102
    %v2200 = vpack.c.b16 %v2105, %v2104
    %v2201 = vpack.c.b16 %v2107, %v2106
    %v2202 = vpack.c.b16 %v2109, %v2108
    %v2203 = vpack.c.b16 %v2111, %v2110
    %v2204 = vpack.c.b16 %v2113, %v2112
    %v2205 = vpack.c.b16 %v2115, %v2114
    %v2206 = vpack.c.b16 %v2117, %v2116
    %v2207 = vpack.c.b16 %v2119, %v2118
    %v2208 = vpack.c.b16 %v2121, %v2120
    %v2209 = vpack.c.b16 %v2123, %v2122
    %v2210 = vpack.c.b16 %v2125, %v2124
    %v2211 = vpack.c.b16 %v2127, %v2126
    %v2212 = vpack.c.b16 %v2129, %v2128
    %v2213 = vpack.c.b16 %v2131, %v2130
    %v2214 = vpack.c.b16 %v2133, %v2132
    %v2215 = vpack.c.b16 %v2135, %v2134
    %v2216 = vpack.c.b16 %v2137, %v2136
    %v2217 = vpack.c.b16 %v2139, %v2138
    %v2218 = vpack.c.b16 %v2141, %v2140
    %v2219 = vpack.c.b16 %v2143, %v2142
    %v2220 = vpack.c.b16 %v2145, %v2144
    %v2221 = vpack.c.b16 %v2147, %v2146
    %v2222 = vpack.c.b16 %v2149, %v2148
    %v2223 = vpack.c.b16 %v2151, %v2150
    %2296 = vmatprep.subr.bf16.mxu0 0
    %2297 = vmatpush1.bf16.msra.mxu0 %v2152
    %2298 = vmatprep.subr.bf16.mxu0 0
    %2299 = vmatpush1.bf16.msra.mxu0 %v2153
    %2300 = vmatprep.subr.bf16.mxu0 0
    %2301 = vmatpush1.bf16.msra.mxu0 %v2154
    %2302 = vmatprep.subr.bf16.mxu0 0
    %2303 = vmatpush1.bf16.msra.mxu0 %v2155
    %2304 = vmatprep.subr.bf16.mxu0 0
    %2305 = vmatpush1.bf16.msra.mxu0 %v2156
    %2306 = vmatprep.subr.bf16.mxu0 0
    %2307 = vmatpush1.bf16.msra.mxu0 %v2157
    %2308 = vmatprep.subr.bf16.mxu0 0
    %2309 = vmatpush1.bf16.msra.mxu0 %v2158
    %2310 = vmatprep.subr.bf16.mxu0 0
    %2311 = vmatpush1.bf16.msra.mxu0 %v2159
    %2312 = vmatprep.subr.bf16.mxu0 0
    %2313 = vmatpush1.bf16.msra.mxu0 %v2160
    %2314 = vmatprep.subr.bf16.mxu0 0
    %2315 = vmatpush1.bf16.msra.mxu0 %v2161
    %2316 = vmatprep.subr.bf16.mxu0 0
    %2317 = vmatpush1.bf16.msra.mxu0 %v2162
    %2318 = vmatprep.subr.bf16.mxu0 0
    %2319 = vmatpush1.bf16.msra.mxu0 %v2163
    %2320 = vmatprep.subr.bf16.mxu0 0
    %2321 = vmatpush1.bf16.msra.mxu0 %v2164
    %2322 = vmatprep.subr.bf16.mxu0 0
    %2323 = vmatpush1.bf16.msra.mxu0 %v2165
    %2324 = vmatprep.subr.bf16.mxu0 0
    %2325 = vmatpush1.bf16.msra.mxu0 %v2166
    %2326 = vmatprep.subr.bf16.mxu0 0
    %2327 = vmatpush1.bf16.msra.mxu0 %v2167
    %2328 = vmatprep.mubr.bf16.mxu0 %v1433
    %2329 = vmatmul.mubr.bf16.gmra.mrb[0].mxu0 %v1432
    %v2330 = vpop.f32.mrb[0].mxu0
    %v2331 = vadd.f32 0.0, %v2330
    %v2332 = vpop.f32.mrb[0].mxu0
    %v2333 = vpop.f32.mrb[0].mxu0
    %v2334 = vadd.f32 0.0, %v2333
    %v2335 = vpop.f32.mrb[0].mxu0
    %2336 = vmatprep.mubr.bf16.mxu0 %v1442
    %2337 = vmatmul.mubr.bf16.gmra.mrb[0].mxu0 %v1441
    %v2338 = vpop.f32.mrb[0].mxu0
    %v2339 = vadd.f32 0.0, %v2338
    %v2340 = vpop.f32.mrb[0].mxu0
    %v2341 = vpop.f32.mrb[0].mxu0
    %v2342 = vadd.f32 0.0, %v2341
    %v2343 = vpop.f32.mrb[0].mxu0
    %2344 = vmatprep.mubr.bf16.mxu0 %v1451
    %2345 = vmatmul.mubr.bf16.gmra.mrb[0].mxu0 %v1450
    %v2346 = vpop.f32.mrb[0].mxu0
    %v2347 = vadd.f32 0.0, %v2346
    %v2348 = vpop.f32.mrb[0].mxu0
    %v2349 = vpop.f32.mrb[0].mxu0
    %v2350 = vadd.f32 0.0, %v2349
    %v2351 = vpop.f32.mrb[0].mxu0
    %2352 = vmatprep.mubr.bf16.mxu0 %v1460
    %2353 = vmatmul.mubr.bf16.gmra.mrb[0].mxu0 %v1459
    %v2354 = vpop.f32.mrb[0].mxu0
    %v2355 = vadd.f32 0.0, %v2354
    %v2356 = vpop.f32.mrb[0].mxu0
    %v2357 = vpop.f32.mrb[0].mxu0
    %v2358 = vadd.f32 0.0, %v2357
    %v2359 = vpop.f32.mrb[0].mxu0
    %2360 = vmatprep.mubr.bf16.mxu0 %v1469
    %2361 = vmatmul.mubr.bf16.gmra.mrb[0].mxu0 %v1468
    %v2362 = vpop.f32.mrb[0].mxu0
    %v2363 = vadd.f32 0.0, %v2362
    %v2364 = vpop.f32.mrb[0].mxu0
    %v2365 = vpop.f32.mrb[0].mxu0
    %v2366 = vadd.f32 0.0, %v2365
    %v2367 = vpop.f32.mrb[0].mxu0
    %2368 = vmatprep.mubr.bf16.mxu0 %v1478
    %2369 = vmatmul.mubr.bf16.gmra.mrb[0].mxu0 %v1477
    %v2370 = vpop.f32.mrb[0].mxu0
    %v2371 = vadd.f32 0.0, %v2370
    %v2372 = vpop.f32.mrb[0].mxu0
    %v2373 = vpop.f32.mrb[0].mxu0
    %v2374 = vadd.f32 0.0, %v2373
    %v2375 = vpop.f32.mrb[0].mxu0
    %2376 = vmatprep.mubr.bf16.mxu0 %v1487
    %2377 = vmatmul.mubr.bf16.gmra.mrb[0].mxu0 %v1486
    %v2378 = vpop.f32.mrb[0].mxu0
    %v2379 = vadd.f32 0.0, %v2378
    %v2380 = vpop.f32.mrb[0].mxu0
    %v2381 = vpop.f32.mrb[0].mxu0
    %v2382 = vadd.f32 0.0, %v2381
    %v2383 = vpop.f32.mrb[0].mxu0
    %2384 = vmatprep.mubr.bf16.mxu0 %v1496
    %2385 = vmatmul.mubr.bf16.gmra.mrb[0].mxu0 %v1495
    %v2386 = vpop.f32.mrb[0].mxu0
    %v2387 = vadd.f32 0.0, %v2386
    %v2388 = vpop.f32.mrb[0].mxu0
    %v2389 = vpop.f32.mrb[0].mxu0
    %v2390 = vadd.f32 0.0, %v2389
    %v2391 = vpop.f32.mrb[0].mxu0
    %2392 = vmatprep.mubr.bf16.mxu0 %v1505
    %2393 = vmatmul.mubr.bf16.gmra.mrb[0].mxu0 %v1504
    %v2394 = vpop.f32.mrb[0].mxu0
    %v2395 = vadd.f32 0.0, %v2394
    %v2396 = vpop.f32.mrb[0].mxu0
    %v2397 = vpop.f32.mrb[0].mxu0
    %v2398 = vadd.f32 0.0, %v2397
    %v2399 = vpop.f32.mrb[0].mxu0
    %2400 = vmatprep.mubr.bf16.mxu0 %v1514
    %2401 = vmatmul.mubr.bf16.gmra.mrb[0].mxu0 %v1513
    %v2402 = vpop.f32.mrb[0].mxu0
    %v2403 = vadd.f32 0.0, %v2402
    %v2404 = vpop.f32.mrb[0].mxu0
    %v2405 = vpop.f32.mrb[0].mxu0
    %v2406 = vadd.f32 0.0, %v2405
    %v2407 = vpop.f32.mrb[0].mxu0
    %2408 = vmatprep.mubr.bf16.mxu0 %v1523
    %2409 = vmatmul.mubr.bf16.gmra.mrb[0].mxu0 %v1522
    %v2410 = vpop.f32.mrb[0].mxu0
    %v2411 = vadd.f32 0.0, %v2410
    %v2412 = vpop.f32.mrb[0].mxu0
    %v2413 = vpop.f32.mrb[0].mxu0
    %v2414 = vadd.f32 0.0, %v2413
    %v2415 = vpop.f32.mrb[0].mxu0
    %2416 = vmatprep.mubr.bf16.mxu0 %v1532
    %2417 = vmatmul.mubr.bf16.gmra.mrb[0].mxu0 %v1531
    %v2418 = vpop.f32.mrb[0].mxu0
    %v2419 = vadd.f32 0.0, %v2418
    %v2420 = vpop.f32.mrb[0].mxu0
    %v2421 = vpop.f32.mrb[0].mxu0
    %v2422 = vadd.f32 0.0, %v2421
    %v2423 = vpop.f32.mrb[0].mxu0
    %2424 = vmatprep.mubr.bf16.mxu0 %v1541
    %2425 = vmatmul.mubr.bf16.gmra.mrb[0].mxu0 %v1540
    %v2426 = vpop.f32.mrb[0].mxu0
    %v2427 = vadd.f32 0.0, %v2426
    %v2428 = vpop.f32.mrb[0].mxu0
    %v2429 = vpop.f32.mrb[0].mxu0
    %v2430 = vadd.f32 0.0, %v2429
    %v2431 = vpop.f32.mrb[0].mxu0
    %2432 = vmatprep.mubr.bf16.mxu0 %v1550
    %2433 = vmatmul.mubr.bf16.gmra.mrb[0].mxu0 %v1549
    %v2434 = vpop.f32.mrb[0].mxu0
    %v2435 = vadd.f32 0.0, %v2434
    %v2436 = vpop.f32.mrb[0].mxu0
    %v2437 = vpop.f32.mrb[0].mxu0
    %v2438 = vadd.f32 0.0, %v2437
    %v2439 = vpop.f32.mrb[0].mxu0
    %2440 = vmatprep.mubr.bf16.mxu0 %v1559
    %2441 = vmatmul.mubr.bf16.gmra.mrb[0].mxu0 %v1558
    %v2442 = vpop.f32.mrb[0].mxu0
    %v2443 = vadd.f32 0.0, %v2442
    %v2444 = vpop.f32.mrb[0].mxu0
    %v2445 = vpop.f32.mrb[0].mxu0
    %v2446 = vadd.f32 0.0, %v2445
    %v2447 = vpop.f32.mrb[0].mxu0
    %2448 = vmatprep.mubr.bf16.mxu0 %v1568
    %2449 = vmatmul.mubr.bf16.gmra.mrb[0].mxu0 %v1567
    %v2450 = vpop.f32.mrb[0].mxu0
    %v2451 = vadd.f32 0.0, %v2450
    %v2452 = vpop.f32.mrb[0].mxu0
    %v2453 = vpop.f32.mrb[0].mxu0
    %v2454 = vadd.f32 0.0, %v2453
    %v2455 = vpop.f32.mrb[0].mxu0
    %2456 = vmatprep.mubr.bf16.mxu0 %v1577
    %2457 = vmatmul.mubr.bf16.gmra.mrb[0].mxu0 %v1576
    %v2458 = vpop.f32.mrb[0].mxu0
    %v2459 = vadd.f32 0.0, %v2458
    %v2460 = vpop.f32.mrb[0].mxu0
    %v2461 = vpop.f32.mrb[0].mxu0
    %v2462 = vadd.f32 0.0, %v2461
    %v2463 = vpop.f32.mrb[0].mxu0
    %2464 = vmatprep.mubr.bf16.mxu0 %v1586
    %2465 = vmatmul.mubr.bf16.gmra.mrb[0].mxu0 %v1585
    %v2466 = vpop.f32.mrb[0].mxu0
    %v2467 = vadd.f32 0.0, %v2466
    %v2468 = vpop.f32.mrb[0].mxu0
    %v2469 = vpop.f32.mrb[0].mxu0
    %v2470 = vadd.f32 0.0, %v2469
    %v2471 = vpop.f32.mrb[0].mxu0
    %2472 = vmatprep.mubr.bf16.mxu0 %v1595
    %2473 = vmatmul.mubr.bf16.gmra.mrb[0].mxu0 %v1594
    %v2474 = vpop.f32.mrb[0].mxu0
    %v2475 = vadd.f32 0.0, %v2474
    %v2476 = vpop.f32.mrb[0].mxu0
    %v2477 = vpop.f32.mrb[0].mxu0
    %v2478 = vadd.f32 0.0, %v2477
    %v2479 = vpop.f32.mrb[0].mxu0
    %2480 = vmatprep.mubr.bf16.mxu0 %v1604
    %2481 = vmatmul.mubr.bf16.gmra.mrb[0].mxu0 %v1603
    %v2482 = vpop.f32.mrb[0].mxu0
    %v2483 = vadd.f32 0.0, %v2482
    %v2484 = vpop.f32.mrb[0].mxu0
    %v2485 = vpop.f32.mrb[0].mxu0
    %v2486 = vadd.f32 0.0, %v2485
    %v2487 = vpop.f32.mrb[0].mxu0
    %2488 = vmatprep.mubr.bf16.mxu0 %v1613
    %2489 = vmatmul.mubr.bf16.gmra.mrb[0].mxu0 %v1612
    %v2490 = vpop.f32.mrb[0].mxu0
    %v2491 = vadd.f32 0.0, %v2490
    %v2492 = vpop.f32.mrb[0].mxu0
    %v2493 = vpop.f32.mrb[0].mxu0
    %v2494 = vadd.f32 0.0, %v2493
    %v2495 = vpop.f32.mrb[0].mxu0
    %2496 = vmatprep.mubr.bf16.mxu0 %v1622
    %2497 = vmatmul.mubr.bf16.gmra.mrb[0].mxu0 %v1621
    %v2498 = vpop.f32.mrb[0].mxu0
    %v2499 = vadd.f32 0.0, %v2498
    %v2500 = vpop.f32.mrb[0].mxu0
    %v2501 = vpop.f32.mrb[0].mxu0
    %v2502 = vadd.f32 0.0, %v2501
    %v2503 = vpop.f32.mrb[0].mxu0
    %2504 = vmatprep.mubr.bf16.mxu0 %v1631
    %2505 = vmatmul.mubr.bf16.gmra.mrb[0].mxu0 %v1630
    %v2506 = vpop.f32.mrb[0].mxu0
    %v2507 = vadd.f32 0.0, %v2506
    %v2508 = vpop.f32.mrb[0].mxu0
    %v2509 = vpop.f32.mrb[0].mxu0
    %v2510 = vadd.f32 0.0, %v2509
    %v2511 = vpop.f32.mrb[0].mxu0
    %2512 = vmatprep.mubr.bf16.mxu0 %v1640
    %2513 = vmatmul.mubr.bf16.gmra.mrb[0].mxu0 %v1639
    %v2514 = vpop.f32.mrb[0].mxu0
    %v2515 = vadd.f32 0.0, %v2514
    %v2516 = vpop.f32.mrb[0].mxu0
    %v2517 = vpop.f32.mrb[0].mxu0
    %v2518 = vadd.f32 0.0, %v2517
    %v2519 = vpop.f32.mrb[0].mxu0
    %2520 = vmatprep.mubr.bf16.mxu0 %v1649
    %2521 = vmatmul.mubr.bf16.gmra.mrb[0].mxu0 %v1648
    %v2522 = vpop.f32.mrb[0].mxu0
    %v2523 = vadd.f32 0.0, %v2522
    %v2524 = vpop.f32.mrb[0].mxu0
    %v2525 = vpop.f32.mrb[0].mxu0
    %v2526 = vadd.f32 0.0, %v2525
    %v2527 = vpop.f32.mrb[0].mxu0
    %2528 = vmatprep.mubr.bf16.mxu0 %v1658
    %2529 = vmatmul.mubr.bf16.gmra.mrb[0].mxu0 %v1657
    %v2530 = vpop.f32.mrb[0].mxu0
    %v2531 = vadd.f32 0.0, %v2530
    %v2532 = vpop.f32.mrb[0].mxu0
    %v2533 = vpop.f32.mrb[0].mxu0
    %v2534 = vadd.f32 0.0, %v2533
    %v2535 = vpop.f32.mrb[0].mxu0
    %2536 = vmatprep.mubr.bf16.mxu0 %v1667
    %2537 = vmatmul.mubr.bf16.gmra.mrb[0].mxu0 %v1666
    %v2538 = vpop.f32.mrb[0].mxu0
    %v2539 = vadd.f32 0.0, %v2538
    %v2540 = vpop.f32.mrb[0].mxu0
    %v2541 = vpop.f32.mrb[0].mxu0
    %v2542 = vadd.f32 0.0, %v2541
    %v2543 = vpop.f32.mrb[0].mxu0
    %2544 = vmatprep.mubr.bf16.mxu0 %v1676
    %2545 = vmatmul.mubr.bf16.gmra.mrb[0].mxu0 %v1675
    %v2546 = vpop.f32.mrb[0].mxu0
    %v2547 = vadd.f32 0.0, %v2546
    %v2548 = vpop.f32.mrb[0].mxu0
    %v2549 = vpop.f32.mrb[0].mxu0
    %v2550 = vadd.f32 0.0, %v2549
    %v2551 = vpop.f32.mrb[0].mxu0
    %2552 = vmatprep.mubr.bf16.mxu0 %v1685
    %2553 = vmatmul.mubr.bf16.gmra.mrb[0].mxu0 %v1684
    %v2554 = vpop.f32.mrb[0].mxu0
    %v2555 = vadd.f32 0.0, %v2554
    %v2556 = vpop.f32.mrb[0].mxu0
    %v2557 = vpop.f32.mrb[0].mxu0
    %v2558 = vadd.f32 0.0, %v2557
    %v2559 = vpop.f32.mrb[0].mxu0
    %2560 = vmatprep.mubr.bf16.mxu0 %v1694
    %2561 = vmatmul.mubr.bf16.gmra.mrb[0].mxu0 %v1693
    %v2562 = vpop.f32.mrb[0].mxu0
    %v2563 = vadd.f32 0.0, %v2562
    %v2564 = vpop.f32.mrb[0].mxu0
    %v2565 = vpop.f32.mrb[0].mxu0
    %v2566 = vadd.f32 0.0, %v2565
    %v2567 = vpop.f32.mrb[0].mxu0
    %2568 = vmatprep.mubr.bf16.mxu0 %v1703
    %2569 = vmatmul.mubr.bf16.gmra.mrb[0].mxu0 %v1702
    %v2570 = vpop.f32.mrb[0].mxu0
    %v2571 = vadd.f32 0.0, %v2570
    %v2572 = vpop.f32.mrb[0].mxu0
    %v2573 = vpop.f32.mrb[0].mxu0
    %v2574 = vadd.f32 0.0, %v2573
    %v2575 = vpop.f32.mrb[0].mxu0
    %2576 = vmatprep.mubr.bf16.mxu0 %v1712
    %2577 = vmatmul.mubr.bf16.gmra.mrb[0].mxu0 %v1711
    %v2578 = vpop.f32.mrb[0].mxu0
    %v2579 = vadd.f32 0.0, %v2578
    %v2580 = vpop.f32.mrb[0].mxu0
    %v2581 = vpop.f32.mrb[0].mxu0
    %v2582 = vadd.f32 0.0, %v2581
    %v2583 = vpop.f32.mrb[0].mxu0
    %2584 = vdwg.mxu0
    %2585 = vmatprep.subr.bf16.mxu0 0
    %2586 = vmatpush1.bf16.msra.mxu0 %v2168
    %2587 = vmatprep.subr.bf16.mxu0 0
    %2588 = vmatpush1.bf16.msra.mxu0 %v2169
    %2589 = vmatprep.subr.bf16.mxu0 0
    %2590 = vmatpush1.bf16.msra.mxu0 %v2170
    %2591 = vmatprep.subr.bf16.mxu0 0
    %2592 = vmatpush1.bf16.msra.mxu0 %v2171
    %2593 = vmatprep.subr.bf16.mxu0 0
    %2594 = vmatpush1.bf16.msra.mxu0 %v2172
    %2595 = vmatprep.subr.bf16.mxu0 0
    %2596 = vmatpush1.bf16.msra.mxu0 %v2173
    %2597 = vmatprep.subr.bf16.mxu0 0
    %2598 = vmatpush1.bf16.msra.mxu0 %v2174
    %2599 = vmatprep.subr.bf16.mxu0 0
    %2600 = vmatpush1.bf16.msra.mxu0 %v2175
    %2601 = vmatprep.subr.bf16.mxu0 0
    %2602 = vmatpush1.bf16.msra.mxu0 %v2176
    %2603 = vmatprep.subr.bf16.mxu0 0
    %2604 = vmatpush1.bf16.msra.mxu0 %v2177
    %2605 = vmatprep.subr.bf16.mxu0 0
    %2606 = vmatpush1.bf16.msra.mxu0 %v2178
    %2607 = vmatprep.subr.bf16.mxu0 0
    %2608 = vmatpush1.bf16.msra.mxu0 %v2179
    %2609 = vmatprep.subr.bf16.mxu0 0
    %2610 = vmatpush1.bf16.msra.mxu0 %v2180
    %2611 = vmatprep.subr.bf16.mxu0 0
    %2612 = vmatpush1.bf16.msra.mxu0 %v2181
    %2613 = vmatprep.subr.bf16.mxu0 0
    %2614 = vmatpush1.bf16.msra.mxu0 %v2182
    %2615 = vmatprep.subr.bf16.mxu0 0
    %2616 = vmatpush1.bf16.msra.mxu0 %v2183
    %2617 = vmatprep.mubr.bf16.mxu0 %v1435
    %2618 = vmatmul.mubr.bf16.gmra.mrb[0].mxu0 %v1434
    %v2619 = vpop.f32.mrb[0].mxu0
    %v2620 = vadd.f32 %v2331, %v2619
    %v2621 = vpop.f32.mrb[0].mxu0
    %v2622 = vpop.f32.mrb[0].mxu0
    %v2623 = vadd.f32 %v2334, %v2622
    %v2624 = vpop.f32.mrb[0].mxu0
    %2625 = vmatprep.mubr.bf16.mxu0 %v1444
    %2626 = vmatmul.mubr.bf16.gmra.mrb[0].mxu0 %v1443
    %v2627 = vpop.f32.mrb[0].mxu0
    %v2628 = vadd.f32 %v2339, %v2627
    %v2629 = vpop.f32.mrb[0].mxu0
    %v2630 = vpop.f32.mrb[0].mxu0
    %v2631 = vadd.f32 %v2342, %v2630
    %v2632 = vpop.f32.mrb[0].mxu0
    %2633 = vmatprep.mubr.bf16.mxu0 %v1453
    %2634 = vmatmul.mubr.bf16.gmra.mrb[0].mxu0 %v1452
    %v2635 = vpop.f32.mrb[0].mxu0
    %v2636 = vadd.f32 %v2347, %v2635
    %v2637 = vpop.f32.mrb[0].mxu0
    %v2638 = vpop.f32.mrb[0].mxu0
    %v2639 = vadd.f32 %v2350, %v2638
    %v2640 = vpop.f32.mrb[0].mxu0
    %2641 = vmatprep.mubr.bf16.mxu0 %v1462
    %2642 = vmatmul.mubr.bf16.gmra.mrb[0].mxu0 %v1461
    %v2643 = vpop.f32.mrb[0].mxu0
    %v2644 = vadd.f32 %v2355, %v2643
    %v2645 = vpop.f32.mrb[0].mxu0
    %v2646 = vpop.f32.mrb[0].mxu0
    %v2647 = vadd.f32 %v2358, %v2646
    %v2648 = vpop.f32.mrb[0].mxu0
    %2649 = vmatprep.mubr.bf16.mxu0 %v1471
    %2650 = vmatmul.mubr.bf16.gmra.mrb[0].mxu0 %v1470
    %v2651 = vpop.f32.mrb[0].mxu0
    %v2652 = vadd.f32 %v2363, %v2651
    %v2653 = vpop.f32.mrb[0].mxu0
    %v2654 = vpop.f32.mrb[0].mxu0
    %v2655 = vadd.f32 %v2366, %v2654
    %v2656 = vpop.f32.mrb[0].mxu0
    %2657 = vmatprep.mubr.bf16.mxu0 %v1480
    %2658 = vmatmul.mubr.bf16.gmra.mrb[0].mxu0 %v1479
    %v2659 = vpop.f32.mrb[0].mxu0
    %v2660 = vadd.f32 %v2371, %v2659
    %v2661 = vpop.f32.mrb[0].mxu0
    %v2662 = vpop.f32.mrb[0].mxu0
    %v2663 = vadd.f32 %v2374, %v2662
    %v2664 = vpop.f32.mrb[0].mxu0
    %2665 = vmatprep.mubr.bf16.mxu0 %v1489
    %2666 = vmatmul.mubr.bf16.gmra.mrb[0].mxu0 %v1488
    %v2667 = vpop.f32.mrb[0].mxu0
    %v2668 = vadd.f32 %v2379, %v2667
    %v2669 = vpop.f32.mrb[0].mxu0
    %v2670 = vpop.f32.mrb[0].mxu0
    %v2671 = vadd.f32 %v2382, %v2670
    %v2672 = vpop.f32.mrb[0].mxu0
    %2673 = vmatprep.mubr.bf16.mxu0 %v1498
    %2674 = vmatmul.mubr.bf16.gmra.mrb[0].mxu0 %v1497
    %v2675 = vpop.f32.mrb[0].mxu0
    %v2676 = vadd.f32 %v2387, %v2675
    %v2677 = vpop.f32.mrb[0].mxu0
    %v2678 = vpop.f32.mrb[0].mxu0
    %v2679 = vadd.f32 %v2390, %v2678
    %v2680 = vpop.f32.mrb[0].mxu0
    %2681 = vmatprep.mubr.bf16.mxu0 %v1507
    %2682 = vmatmul.mubr.bf16.gmra.mrb[0].mxu0 %v1506
    %v2683 = vpop.f32.mrb[0].mxu0
    %v2684 = vadd.f32 %v2395, %v2683
    %v2685 = vpop.f32.mrb[0].mxu0
    %v2686 = vpop.f32.mrb[0].mxu0
    %v2687 = vadd.f32 %v2398, %v2686
    %v2688 = vpop.f32.mrb[0].mxu0
    %2689 = vmatprep.mubr.bf16.mxu0 %v1516
    %2690 = vmatmul.mubr.bf16.gmra.mrb[0].mxu0 %v1515
    %v2691 = vpop.f32.mrb[0].mxu0
    %v2692 = vadd.f32 %v2403, %v2691
    %v2693 = vpop.f32.mrb[0].mxu0
    %v2694 = vpop.f32.mrb[0].mxu0
    %v2695 = vadd.f32 %v2406, %v2694
    %v2696 = vpop.f32.mrb[0].mxu0
    %2697 = vmatprep.mubr.bf16.mxu0 %v1525
    %2698 = vmatmul.mubr.bf16.gmra.mrb[0].mxu0 %v1524
    %v2699 = vpop.f32.mrb[0].mxu0
    %v2700 = vadd.f32 %v2411, %v2699
    %v2701 = vpop.f32.mrb[0].mxu0
    %v2702 = vpop.f32.mrb[0].mxu0
    %v2703 = vadd.f32 %v2414, %v2702
    %v2704 = vpop.f32.mrb[0].mxu0
    %2705 = vmatprep.mubr.bf16.mxu0 %v1534
    %2706 = vmatmul.mubr.bf16.gmra.mrb[0].mxu0 %v1533
    %v2707 = vpop.f32.mrb[0].mxu0
    %v2708 = vadd.f32 %v2419, %v2707
    %v2709 = vpop.f32.mrb[0].mxu0
    %v2710 = vpop.f32.mrb[0].mxu0
    %v2711 = vadd.f32 %v2422, %v2710
    %v2712 = vpop.f32.mrb[0].mxu0
    %2713 = vmatprep.mubr.bf16.mxu0 %v1543
    %2714 = vmatmul.mubr.bf16.gmra.mrb[0].mxu0 %v1542
    %v2715 = vpop.f32.mrb[0].mxu0
    %v2716 = vadd.f32 %v2427, %v2715
    %v2717 = vpop.f32.mrb[0].mxu0
    %v2718 = vpop.f32.mrb[0].mxu0
    %v2719 = vadd.f32 %v2430, %v2718
    %v2720 = vpop.f32.mrb[0].mxu0
    %2721 = vmatprep.mubr.bf16.mxu0 %v1552
    %2722 = vmatmul.mubr.bf16.gmra.mrb[0].mxu0 %v1551
    %v2723 = vpop.f32.mrb[0].mxu0
    %v2724 = vadd.f32 %v2435, %v2723
    %v2725 = vpop.f32.mrb[0].mxu0
    %v2726 = vpop.f32.mrb[0].mxu0
    %v2727 = vadd.f32 %v2438, %v2726
    %v2728 = vpop.f32.mrb[0].mxu0
    %2729 = vmatprep.mubr.bf16.mxu0 %v1561
    %2730 = vmatmul.mubr.bf16.gmra.mrb[0].mxu0 %v1560
    %v2731 = vpop.f32.mrb[0].mxu0
    %v2732 = vadd.f32 %v2443, %v2731
    %v2733 = vpop.f32.mrb[0].mxu0
    %v2734 = vpop.f32.mrb[0].mxu0
    %v2735 = vadd.f32 %v2446, %v2734
    %v2736 = vpop.f32.mrb[0].mxu0
    %2737 = vmatprep.mubr.bf16.mxu0 %v1570
    %2738 = vmatmul.mubr.bf16.gmra.mrb[0].mxu0 %v1569
    %v2739 = vpop.f32.mrb[0].mxu0
    %v2740 = vadd.f32 %v2451, %v2739
    %v2741 = vpop.f32.mrb[0].mxu0
    %v2742 = vpop.f32.mrb[0].mxu0
    %v2743 = vadd.f32 %v2454, %v2742
    %v2744 = vpop.f32.mrb[0].mxu0
    %2745 = vmatprep.mubr.bf16.mxu0 %v1579
    %2746 = vmatmul.mubr.bf16.gmra.mrb[0].mxu0 %v1578
    %v2747 = vpop.f32.mrb[0].mxu0
    %v2748 = vadd.f32 %v2459, %v2747
    %v2749 = vpop.f32.mrb[0].mxu0
    %v2750 = vpop.f32.mrb[0].mxu0
    %v2751 = vadd.f32 %v2462, %v2750
    %v2752 = vpop.f32.mrb[0].mxu0
    %2753 = vmatprep.mubr.bf16.mxu0 %v1588
    %2754 = vmatmul.mubr.bf16.gmra.mrb[0].mxu0 %v1587
    %v2755 = vpop.f32.mrb[0].mxu0
    %v2756 = vadd.f32 %v2467, %v2755
    %v2757 = vpop.f32.mrb[0].mxu0
    %v2758 = vpop.f32.mrb[0].mxu0
    %v2759 = vadd.f32 %v2470, %v2758
    %v2760 = vpop.f32.mrb[0].mxu0
    %2761 = vmatprep.mubr.bf16.mxu0 %v1597
    %2762 = vmatmul.mubr.bf16.gmra.mrb[0].mxu0 %v1596
    %v2763 = vpop.f32.mrb[0].mxu0
    %v2764 = vadd.f32 %v2475, %v2763
    %v2765 = vpop.f32.mrb[0].mxu0
    %v2766 = vpop.f32.mrb[0].mxu0
    %v2767 = vadd.f32 %v2478, %v2766
    %v2768 = vpop.f32.mrb[0].mxu0
    %2769 = vmatprep.mubr.bf16.mxu0 %v1606
    %2770 = vmatmul.mubr.bf16.gmra.mrb[0].mxu0 %v1605
    %v2771 = vpop.f32.mrb[0].mxu0
    %v2772 = vadd.f32 %v2483, %v2771
    %v2773 = vpop.f32.mrb[0].mxu0
    %v2774 = vpop.f32.mrb[0].mxu0
    %v2775 = vadd.f32 %v2486, %v2774
    %v2776 = vpop.f32.mrb[0].mxu0
    %2777 = vmatprep.mubr.bf16.mxu0 %v1615
    %2778 = vmatmul.mubr.bf16.gmra.mrb[0].mxu0 %v1614
    %v2779 = vpop.f32.mrb[0].mxu0
    %v2780 = vadd.f32 %v2491, %v2779
    %v2781 = vpop.f32.mrb[0].mxu0
    %v2782 = vpop.f32.mrb[0].mxu0
    %v2783 = vadd.f32 %v2494, %v2782
    %v2784 = vpop.f32.mrb[0].mxu0
    %2785 = vmatprep.mubr.bf16.mxu0 %v1624
    %2786 = vmatmul.mubr.bf16.gmra.mrb[0].mxu0 %v1623
    %v2787 = vpop.f32.mrb[0].mxu0
    %v2788 = vadd.f32 %v2499, %v2787
    %v2789 = vpop.f32.mrb[0].mxu0
    %v2790 = vpop.f32.mrb[0].mxu0
    %v2791 = vadd.f32 %v2502, %v2790
    %v2792 = vpop.f32.mrb[0].mxu0
    %2793 = vmatprep.mubr.bf16.mxu0 %v1633
    %2794 = vmatmul.mubr.bf16.gmra.mrb[0].mxu0 %v1632
    %v2795 = vpop.f32.mrb[0].mxu0
    %v2796 = vadd.f32 %v2507, %v2795
    %v2797 = vpop.f32.mrb[0].mxu0
    %v2798 = vpop.f32.mrb[0].mxu0
    %v2799 = vadd.f32 %v2510, %v2798
    %v2800 = vpop.f32.mrb[0].mxu0
    %2801 = vmatprep.mubr.bf16.mxu0 %v1642
    %2802 = vmatmul.mubr.bf16.gmra.mrb[0].mxu0 %v1641
    %v2803 = vpop.f32.mrb[0].mxu0
    %v2804 = vadd.f32 %v2515, %v2803
    %v2805 = vpop.f32.mrb[0].mxu0
    %v2806 = vpop.f32.mrb[0].mxu0
    %v2807 = vadd.f32 %v2518, %v2806
    %v2808 = vpop.f32.mrb[0].mxu0
    %2809 = vmatprep.mubr.bf16.mxu0 %v1651
    %2810 = vmatmul.mubr.bf16.gmra.mrb[0].mxu0 %v1650
    %v2811 = vpop.f32.mrb[0].mxu0
    %v2812 = vadd.f32 %v2523, %v2811
    %v2813 = vpop.f32.mrb[0].mxu0
    %v2814 = vpop.f32.mrb[0].mxu0
    %v2815 = vadd.f32 %v2526, %v2814
    %v2816 = vpop.f32.mrb[0].mxu0
    %2817 = vmatprep.mubr.bf16.mxu0 %v1660
    %2818 = vmatmul.mubr.bf16.gmra.mrb[0].mxu0 %v1659
    %v2819 = vpop.f32.mrb[0].mxu0
    %v2820 = vadd.f32 %v2531, %v2819
    %v2821 = vpop.f32.mrb[0].mxu0
    %v2822 = vpop.f32.mrb[0].mxu0
    %v2823 = vadd.f32 %v2534, %v2822
    %v2824 = vpop.f32.mrb[0].mxu0
    %2825 = vmatprep.mubr.bf16.mxu0 %v1669
    %2826 = vmatmul.mubr.bf16.gmra.mrb[0].mxu0 %v1668
    %v2827 = vpop.f32.mrb[0].mxu0
    %v2828 = vadd.f32 %v2539, %v2827
    %v2829 = vpop.f32.mrb[0].mxu0
    %v2830 = vpop.f32.mrb[0].mxu0
    %v2831 = vadd.f32 %v2542, %v2830
    %v2832 = vpop.f32.mrb[0].mxu0
    %2833 = vmatprep.mubr.bf16.mxu0 %v1678
    %2834 = vmatmul.mubr.bf16.gmra.mrb[0].mxu0 %v1677
    %v2835 = vpop.f32.mrb[0].mxu0
    %v2836 = vadd.f32 %v2547, %v2835
    %v2837 = vpop.f32.mrb[0].mxu0
    %v2838 = vpop.f32.mrb[0].mxu0
    %v2839 = vadd.f32 %v2550, %v2838
    %v2840 = vpop.f32.mrb[0].mxu0
    %2841 = vmatprep.mubr.bf16.mxu0 %v1687
    %2842 = vmatmul.mubr.bf16.gmra.mrb[0].mxu0 %v1686
    %v2843 = vpop.f32.mrb[0].mxu0
    %v2844 = vadd.f32 %v2555, %v2843
    %v2845 = vpop.f32.mrb[0].mxu0
    %v2846 = vpop.f32.mrb[0].mxu0
    %v2847 = vadd.f32 %v2558, %v2846
    %v2848 = vpop.f32.mrb[0].mxu0
    %2849 = vmatprep.mubr.bf16.mxu0 %v1696
    %2850 = vmatmul.mubr.bf16.gmra.mrb[0].mxu0 %v1695
    %v2851 = vpop.f32.mrb[0].mxu0
    %v2852 = vadd.f32 %v2563, %v2851
    %v2853 = vpop.f32.mrb[0].mxu0
    %v2854 = vpop.f32.mrb[0].mxu0
    %v2855 = vadd.f32 %v2566, %v2854
    %v2856 = vpop.f32.mrb[0].mxu0
    %2857 = vmatprep.mubr.bf16.mxu0 %v1705
    %2858 = vmatmul.mubr.bf16.gmra.mrb[0].mxu0 %v1704
    %v2859 = vpop.f32.mrb[0].mxu0
    %v2860 = vadd.f32 %v2571, %v2859
    %v2861 = vpop.f32.mrb[0].mxu0
    %v2862 = vpop.f32.mrb[0].mxu0
    %v2863 = vadd.f32 %v2574, %v2862
    %v2864 = vpop.f32.mrb[0].mxu0
    %2865 = vmatprep.mubr.bf16.mxu0 %v1714
    %2866 = vmatmul.mubr.bf16.gmra.mrb[0].mxu0 %v1713
    %v2867 = vpop.f32.mrb[0].mxu0
    %v2868 = vadd.f32 %v2579, %v2867
    %v2869 = vpop.f32.mrb[0].mxu0
    %v2870 = vpop.f32.mrb[0].mxu0
    %v2871 = vadd.f32 %v2582, %v2870
    %v2872 = vpop.f32.mrb[0].mxu0
    %2873 = vdwg.mxu0
    %2874 = vmatprep.subr.bf16.mxu0 0
    %2875 = vmatpush1.bf16.msra.mxu0 %v2184
    %2876 = vmatprep.subr.bf16.mxu0 0
    %2877 = vmatpush1.bf16.msra.mxu0 %v2185
    %2878 = vmatprep.subr.bf16.mxu0 0
    %2879 = vmatpush1.bf16.msra.mxu0 %v2186
    %2880 = vmatprep.subr.bf16.mxu0 0
    %2881 = vmatpush1.bf16.msra.mxu0 %v2187
    %2882 = vmatprep.subr.bf16.mxu0 0
    %2883 = vmatpush1.bf16.msra.mxu0 %v2188
    %2884 = vmatprep.subr.bf16.mxu0 0
    %2885 = vmatpush1.bf16.msra.mxu0 %v2189
    %2886 = vmatprep.subr.bf16.mxu0 0
    %2887 = vmatpush1.bf16.msra.mxu0 %v2190
    %2888 = vmatprep.subr.bf16.mxu0 0
    %2889 = vmatpush1.bf16.msra.mxu0 %v2191
    %2890 = vmatprep.subr.bf16.mxu0 0
    %2891 = vmatpush1.bf16.msra.mxu0 %v2192
    %2892 = vmatprep.subr.bf16.mxu0 0
    %2893 = vmatpush1.bf16.msra.mxu0 %v2193
    %2894 = vmatprep.subr.bf16.mxu0 0
    %2895 = vmatpush1.bf16.msra.mxu0 %v2194
    %2896 = vmatprep.subr.bf16.mxu0 0
    %2897 = vmatpush1.bf16.msra.mxu0 %v2195
    %2898 = vmatprep.subr.bf16.mxu0 0
    %2899 = vmatpush1.bf16.msra.mxu0 %v2196
    %2900 = vmatprep.subr.bf16.mxu0 0
    %2901 = vmatpush1.bf16.msra.mxu0 %v2197
    %2902 = vmatprep.subr.bf16.mxu0 0
    %2903 = vmatpush1.bf16.msra.mxu0 %v2198
    %2904 = vmatprep.subr.bf16.mxu0 0
    %2905 = vmatpush1.bf16.msra.mxu0 %v2199
    %2906 = vmatprep.mubr.bf16.mxu0 %v1437
    %2907 = vmatmul.mubr.bf16.gmra.mrb[0].mxu0 %v1436
    %v2908 = vpop.f32.mrb[0].mxu0
    %v2909 = vadd.f32 %v2620, %v2908
    %v2910 = vpop.f32.mrb[0].mxu0
    %v2911 = vpop.f32.mrb[0].mxu0
    %v2912 = vadd.f32 %v2623, %v2911
    %v2913 = vpop.f32.mrb[0].mxu0
    %2914 = vmatprep.mubr.bf16.mxu0 %v1446
    %2915 = vmatmul.mubr.bf16.gmra.mrb[0].mxu0 %v1445
    %v2916 = vpop.f32.mrb[0].mxu0
    %v2917 = vadd.f32 %v2628, %v2916
    %v2918 = vpop.f32.mrb[0].mxu0
    %v2919 = vpop.f32.mrb[0].mxu0
    %v2920 = vadd.f32 %v2631, %v2919
    %v2921 = vpop.f32.mrb[0].mxu0
    %2922 = vmatprep.mubr.bf16.mxu0 %v1455
    %2923 = vmatmul.mubr.bf16.gmra.mrb[0].mxu0 %v1454
    %v2924 = vpop.f32.mrb[0].mxu0
    %v2925 = vadd.f32 %v2636, %v2924
    %v2926 = vpop.f32.mrb[0].mxu0
    %v2927 = vpop.f32.mrb[0].mxu0
    %v2928 = vadd.f32 %v2639, %v2927
    %v2929 = vpop.f32.mrb[0].mxu0
    %2930 = vmatprep.mubr.bf16.mxu0 %v1464
    %2931 = vmatmul.mubr.bf16.gmra.mrb[0].mxu0 %v1463
    %v2932 = vpop.f32.mrb[0].mxu0
    %v2933 = vadd.f32 %v2644, %v2932
    %v2934 = vpop.f32.mrb[0].mxu0
    %v2935 = vpop.f32.mrb[0].mxu0
    %v2936 = vadd.f32 %v2647, %v2935
    %v2937 = vpop.f32.mrb[0].mxu0
    %2938 = vmatprep.mubr.bf16.mxu0 %v1473
    %2939 = vmatmul.mubr.bf16.gmra.mrb[0].mxu0 %v1472
    %v2940 = vpop.f32.mrb[0].mxu0
    %v2941 = vadd.f32 %v2652, %v2940
    %v2942 = vpop.f32.mrb[0].mxu0
    %v2943 = vpop.f32.mrb[0].mxu0
    %v2944 = vadd.f32 %v2655, %v2943
    %v2945 = vpop.f32.mrb[0].mxu0
    %2946 = vmatprep.mubr.bf16.mxu0 %v1482
    %2947 = vmatmul.mubr.bf16.gmra.mrb[0].mxu0 %v1481
    %v2948 = vpop.f32.mrb[0].mxu0
    %v2949 = vadd.f32 %v2660, %v2948
    %v2950 = vpop.f32.mrb[0].mxu0
    %v2951 = vpop.f32.mrb[0].mxu0
    %v2952 = vadd.f32 %v2663, %v2951
    %v2953 = vpop.f32.mrb[0].mxu0
    %2954 = vmatprep.mubr.bf16.mxu0 %v1491
    %2955 = vmatmul.mubr.bf16.gmra.mrb[0].mxu0 %v1490
    %v2956 = vpop.f32.mrb[0].mxu0
    %v2957 = vadd.f32 %v2668, %v2956
    %v2958 = vpop.f32.mrb[0].mxu0
    %v2959 = vpop.f32.mrb[0].mxu0
    %v2960 = vadd.f32 %v2671, %v2959
    %v2961 = vpop.f32.mrb[0].mxu0
    %2962 = vmatprep.mubr.bf16.mxu0 %v1500
    %2963 = vmatmul.mubr.bf16.gmra.mrb[0].mxu0 %v1499
    %v2964 = vpop.f32.mrb[0].mxu0
    %v2965 = vadd.f32 %v2676, %v2964
    %v2966 = vpop.f32.mrb[0].mxu0
    %v2967 = vpop.f32.mrb[0].mxu0
    %v2968 = vadd.f32 %v2679, %v2967
    %v2969 = vpop.f32.mrb[0].mxu0
    %2970 = vmatprep.mubr.bf16.mxu0 %v1509
    %2971 = vmatmul.mubr.bf16.gmra.mrb[0].mxu0 %v1508
    %v2972 = vpop.f32.mrb[0].mxu0
    %v2973 = vadd.f32 %v2684, %v2972
    %v2974 = vpop.f32.mrb[0].mxu0
    %v2975 = vpop.f32.mrb[0].mxu0
    %v2976 = vadd.f32 %v2687, %v2975
    %v2977 = vpop.f32.mrb[0].mxu0
    %2978 = vmatprep.mubr.bf16.mxu0 %v1518
    %2979 = vmatmul.mubr.bf16.gmra.mrb[0].mxu0 %v1517
    %v2980 = vpop.f32.mrb[0].mxu0
    %v2981 = vadd.f32 %v2692, %v2980
    %v2982 = vpop.f32.mrb[0].mxu0
    %v2983 = vpop.f32.mrb[0].mxu0
    %v2984 = vadd.f32 %v2695, %v2983
    %v2985 = vpop.f32.mrb[0].mxu0
    %2986 = vmatprep.mubr.bf16.mxu0 %v1527
    %2987 = vmatmul.mubr.bf16.gmra.mrb[0].mxu0 %v1526
    %v2988 = vpop.f32.mrb[0].mxu0
    %v2989 = vadd.f32 %v2700, %v2988
    %v2990 = vpop.f32.mrb[0].mxu0
    %v2991 = vpop.f32.mrb[0].mxu0
    %v2992 = vadd.f32 %v2703, %v2991
    %v2993 = vpop.f32.mrb[0].mxu0
    %2994 = vmatprep.mubr.bf16.mxu0 %v1536
    %2995 = vmatmul.mubr.bf16.gmra.mrb[0].mxu0 %v1535
    %v2996 = vpop.f32.mrb[0].mxu0
    %v2997 = vadd.f32 %v2708, %v2996
    %v2998 = vpop.f32.mrb[0].mxu0
    %v2999 = vpop.f32.mrb[0].mxu0
    %v3000 = vadd.f32 %v2711, %v2999
    %v3001 = vpop.f32.mrb[0].mxu0
    %3002 = vmatprep.mubr.bf16.mxu0 %v1545
    %3003 = vmatmul.mubr.bf16.gmra.mrb[0].mxu0 %v1544
    %v3004 = vpop.f32.mrb[0].mxu0
    %v3005 = vadd.f32 %v2716, %v3004
    %v3006 = vpop.f32.mrb[0].mxu0
    %v3007 = vpop.f32.mrb[0].mxu0
    %v3008 = vadd.f32 %v2719, %v3007
    %v3009 = vpop.f32.mrb[0].mxu0
    %3010 = vmatprep.mubr.bf16.mxu0 %v1554
    %3011 = vmatmul.mubr.bf16.gmra.mrb[0].mxu0 %v1553
    %v3012 = vpop.f32.mrb[0].mxu0
    %v3013 = vadd.f32 %v2724, %v3012
    %v3014 = vpop.f32.mrb[0].mxu0
    %v3015 = vpop.f32.mrb[0].mxu0
    %v3016 = vadd.f32 %v2727, %v3015
    %v3017 = vpop.f32.mrb[0].mxu0
    %3018 = vmatprep.mubr.bf16.mxu0 %v1563
    %3019 = vmatmul.mubr.bf16.gmra.mrb[0].mxu0 %v1562
    %v3020 = vpop.f32.mrb[0].mxu0
    %v3021 = vadd.f32 %v2732, %v3020
    %v3022 = vpop.f32.mrb[0].mxu0
    %v3023 = vpop.f32.mrb[0].mxu0
    %v3024 = vadd.f32 %v2735, %v3023
    %v3025 = vpop.f32.mrb[0].mxu0
    %3026 = vmatprep.mubr.bf16.mxu0 %v1572
    %3027 = vmatmul.mubr.bf16.gmra.mrb[0].mxu0 %v1571
    %v3028 = vpop.f32.mrb[0].mxu0
    %v3029 = vadd.f32 %v2740, %v3028
    %v3030 = vpop.f32.mrb[0].mxu0
    %v3031 = vpop.f32.mrb[0].mxu0
    %v3032 = vadd.f32 %v2743, %v3031
    %v3033 = vpop.f32.mrb[0].mxu0
    %3034 = vmatprep.mubr.bf16.mxu0 %v1581
    %3035 = vmatmul.mubr.bf16.gmra.mrb[0].mxu0 %v1580
    %v3036 = vpop.f32.mrb[0].mxu0
    %v3037 = vadd.f32 %v2748, %v3036
    %v3038 = vpop.f32.mrb[0].mxu0
    %v3039 = vpop.f32.mrb[0].mxu0
    %v3040 = vadd.f32 %v2751, %v3039
    %v3041 = vpop.f32.mrb[0].mxu0
    %3042 = vmatprep.mubr.bf16.mxu0 %v1590
    %3043 = vmatmul.mubr.bf16.gmra.mrb[0].mxu0 %v1589
    %v3044 = vpop.f32.mrb[0].mxu0
    %v3045 = vadd.f32 %v2756, %v3044
    %v3046 = vpop.f32.mrb[0].mxu0
    %v3047 = vpop.f32.mrb[0].mxu0
    %v3048 = vadd.f32 %v2759, %v3047
    %v3049 = vpop.f32.mrb[0].mxu0
    %3050 = vmatprep.mubr.bf16.mxu0 %v1599
    %3051 = vmatmul.mubr.bf16.gmra.mrb[0].mxu0 %v1598
    %v3052 = vpop.f32.mrb[0].mxu0
    %v3053 = vadd.f32 %v2764, %v3052
    %v3054 = vpop.f32.mrb[0].mxu0
    %v3055 = vpop.f32.mrb[0].mxu0
    %v3056 = vadd.f32 %v2767, %v3055
    %v3057 = vpop.f32.mrb[0].mxu0
    %3058 = vmatprep.mubr.bf16.mxu0 %v1608
    %3059 = vmatmul.mubr.bf16.gmra.mrb[0].mxu0 %v1607
    %v3060 = vpop.f32.mrb[0].mxu0
    %v3061 = vadd.f32 %v2772, %v3060
    %v3062 = vpop.f32.mrb[0].mxu0
    %v3063 = vpop.f32.mrb[0].mxu0
    %v3064 = vadd.f32 %v2775, %v3063
    %v3065 = vpop.f32.mrb[0].mxu0
    %3066 = vmatprep.mubr.bf16.mxu0 %v1617
    %3067 = vmatmul.mubr.bf16.gmra.mrb[0].mxu0 %v1616
    %v3068 = vpop.f32.mrb[0].mxu0
    %v3069 = vadd.f32 %v2780, %v3068
    %v3070 = vpop.f32.mrb[0].mxu0
    %v3071 = vpop.f32.mrb[0].mxu0
    %v3072 = vadd.f32 %v2783, %v3071
    %v3073 = vpop.f32.mrb[0].mxu0
    %3074 = vmatprep.mubr.bf16.mxu0 %v1626
    %3075 = vmatmul.mubr.bf16.gmra.mrb[0].mxu0 %v1625
    %v3076 = vpop.f32.mrb[0].mxu0
    %v3077 = vadd.f32 %v2788, %v3076
    %v3078 = vpop.f32.mrb[0].mxu0
    %v3079 = vpop.f32.mrb[0].mxu0
    %v3080 = vadd.f32 %v2791, %v3079
    %v3081 = vpop.f32.mrb[0].mxu0
    %3082 = vmatprep.mubr.bf16.mxu0 %v1635
    %3083 = vmatmul.mubr.bf16.gmra.mrb[0].mxu0 %v1634
    %v3084 = vpop.f32.mrb[0].mxu0
    %v3085 = vadd.f32 %v2796, %v3084
    %v3086 = vpop.f32.mrb[0].mxu0
    %v3087 = vpop.f32.mrb[0].mxu0
    %v3088 = vadd.f32 %v2799, %v3087
    %v3089 = vpop.f32.mrb[0].mxu0
    %3090 = vmatprep.mubr.bf16.mxu0 %v1644
    %3091 = vmatmul.mubr.bf16.gmra.mrb[0].mxu0 %v1643
    %v3092 = vpop.f32.mrb[0].mxu0
    %v3093 = vadd.f32 %v2804, %v3092
    %v3094 = vpop.f32.mrb[0].mxu0
    %v3095 = vpop.f32.mrb[0].mxu0
    %v3096 = vadd.f32 %v2807, %v3095
    %v3097 = vpop.f32.mrb[0].mxu0
    %3098 = vmatprep.mubr.bf16.mxu0 %v1653
    %3099 = vmatmul.mubr.bf16.gmra.mrb[0].mxu0 %v1652
    %v3100 = vpop.f32.mrb[0].mxu0
    %v3101 = vadd.f32 %v2812, %v3100
    %v3102 = vpop.f32.mrb[0].mxu0
    %v3103 = vpop.f32.mrb[0].mxu0
    %v3104 = vadd.f32 %v2815, %v3103
    %v3105 = vpop.f32.mrb[0].mxu0
    %3106 = vmatprep.mubr.bf16.mxu0 %v1662
    %3107 = vmatmul.mubr.bf16.gmra.mrb[0].mxu0 %v1661
    %v3108 = vpop.f32.mrb[0].mxu0
    %v3109 = vadd.f32 %v2820, %v3108
    %v3110 = vpop.f32.mrb[0].mxu0
    %v3111 = vpop.f32.mrb[0].mxu0
    %v3112 = vadd.f32 %v2823, %v3111
    %v3113 = vpop.f32.mrb[0].mxu0
    %3114 = vmatprep.mubr.bf16.mxu0 %v1671
    %3115 = vmatmul.mubr.bf16.gmra.mrb[0].mxu0 %v1670
    %v3116 = vpop.f32.mrb[0].mxu0
    %v3117 = vadd.f32 %v2828, %v3116
    %v3118 = vpop.f32.mrb[0].mxu0
    %v3119 = vpop.f32.mrb[0].mxu0
    %v3120 = vadd.f32 %v2831, %v3119
    %v3121 = vpop.f32.mrb[0].mxu0
    %3122 = vmatprep.mubr.bf16.mxu0 %v1680
    %3123 = vmatmul.mubr.bf16.gmra.mrb[0].mxu0 %v1679
    %v3124 = vpop.f32.mrb[0].mxu0
    %v3125 = vadd.f32 %v2836, %v3124
    %v3126 = vpop.f32.mrb[0].mxu0
    %v3127 = vpop.f32.mrb[0].mxu0
    %v3128 = vadd.f32 %v2839, %v3127
    %v3129 = vpop.f32.mrb[0].mxu0
    %3130 = vmatprep.mubr.bf16.mxu0 %v1689
    %3131 = vmatmul.mubr.bf16.gmra.mrb[0].mxu0 %v1688
    %v3132 = vpop.f32.mrb[0].mxu0
    %v3133 = vadd.f32 %v2844, %v3132
    %v3134 = vpop.f32.mrb[0].mxu0
    %v3135 = vpop.f32.mrb[0].mxu0
    %v3136 = vadd.f32 %v2847, %v3135
    %v3137 = vpop.f32.mrb[0].mxu0
    %3138 = vmatprep.mubr.bf16.mxu0 %v1698
    %3139 = vmatmul.mubr.bf16.gmra.mrb[0].mxu0 %v1697
    %v3140 = vpop.f32.mrb[0].mxu0
    %v3141 = vadd.f32 %v2852, %v3140
    %v3142 = vpop.f32.mrb[0].mxu0
    %v3143 = vpop.f32.mrb[0].mxu0
    %v3144 = vadd.f32 %v2855, %v3143
    %v3145 = vpop.f32.mrb[0].mxu0
    %3146 = vmatprep.mubr.bf16.mxu0 %v1707
    %3147 = vmatmul.mubr.bf16.gmra.mrb[0].mxu0 %v1706
    %v3148 = vpop.f32.mrb[0].mxu0
    %v3149 = vadd.f32 %v2860, %v3148
    %v3150 = vpop.f32.mrb[0].mxu0
    %v3151 = vpop.f32.mrb[0].mxu0
    %v3152 = vadd.f32 %v2863, %v3151
    %v3153 = vpop.f32.mrb[0].mxu0
    %3154 = vmatprep.mubr.bf16.mxu0 %v1716
    %3155 = vmatmul.mubr.bf16.gmra.mrb[0].mxu0 %v1715
    %v3156 = vpop.f32.mrb[0].mxu0
    %v3157 = vadd.f32 %v2868, %v3156
    %v3158 = vpop.f32.mrb[0].mxu0
    %v3159 = vpop.f32.mrb[0].mxu0
    %v3160 = vadd.f32 %v2871, %v3159
    %v3161 = vpop.f32.mrb[0].mxu0
    %3162 = vdwg.mxu0
    %3163 = vmatprep.subr.bf16.mxu0 0
    %3164 = vmatpush1.bf16.msra.mxu0 %v2200
    %3165 = vmatprep.subr.bf16.mxu0 0
    %3166 = vmatpush1.bf16.msra.mxu0 %v2201
    %3167 = vmatprep.subr.bf16.mxu0 0
    %3168 = vmatpush1.bf16.msra.mxu0 %v2202
    %3169 = vmatprep.subr.bf16.mxu0 0
    %3170 = vmatpush1.bf16.msra.mxu0 %v2203
    %3171 = vmatprep.subr.bf16.mxu0 0
    %3172 = vmatpush1.bf16.msra.mxu0 %v2204
    %3173 = vmatprep.subr.bf16.mxu0 0
    %3174 = vmatpush1.bf16.msra.mxu0 %v2205
    %3175 = vmatprep.subr.bf16.mxu0 0
    %3176 = vmatpush1.bf16.msra.mxu0 %v2206
    %3177 = vmatprep.subr.bf16.mxu0 0
    %3178 = vmatpush1.bf16.msra.mxu0 %v2207
    %3179 = vmatprep.subr.bf16.mxu0 0
    %3180 = vmatpush1.bf16.msra.mxu0 %v2208
    %3181 = vmatprep.subr.bf16.mxu0 0
    %3182 = vmatpush1.bf16.msra.mxu0 %v2209
    %3183 = vmatprep.subr.bf16.mxu0 0
    %3184 = vmatpush1.bf16.msra.mxu0 %v2210
    %3185 = vmatprep.subr.bf16.mxu0 0
    %3186 = vmatpush1.bf16.msra.mxu0 %v2211
    %3187 = vmatprep.subr.bf16.mxu0 0
    %3188 = vmatpush1.bf16.msra.mxu0 %v2212
    %3189 = vmatprep.subr.bf16.mxu0 0
    %3190 = vmatpush1.bf16.msra.mxu0 %v2213
    %3191 = vmatprep.subr.bf16.mxu0 0
    %3192 = vmatpush1.bf16.msra.mxu0 %v2214
    %3193 = vmatprep.subr.bf16.mxu0 0
    %3194 = vmatpush1.bf16.msra.mxu0 %v2215
    %3195 = vmatprep.mubr.bf16.mxu0 %v1439
    %3196 = vmatmul.mubr.bf16.gmra.mrb[0].mxu0 %v1438
    %v3197 = vpop.f32.mrb[0].mxu0
    %v3198 = vadd.f32 %v2909, %v3197
    %v3199 = vpop.f32.mrb[0].mxu0
    %v3200 = vpop.f32.mrb[0].mxu0
    %v3201 = vadd.f32 %v2912, %v3200
    %v3202 = vpop.f32.mrb[0].mxu0
    %3203 = vmatprep.mubr.bf16.mxu0 %v1448
    %3204 = vmatmul.mubr.bf16.gmra.mrb[0].mxu0 %v1447
    %v3205 = vpop.f32.mrb[0].mxu0
    %v3206 = vadd.f32 %v2917, %v3205
    %v3207 = vpop.f32.mrb[0].mxu0
    %v3208 = vpop.f32.mrb[0].mxu0
    %v3209 = vadd.f32 %v2920, %v3208
    %v3210 = vpop.f32.mrb[0].mxu0
    %3211 = vmatprep.mubr.bf16.mxu0 %v1457
    %3212 = vmatmul.mubr.bf16.gmra.mrb[0].mxu0 %v1456
    %v3213 = vpop.f32.mrb[0].mxu0
    %v3214 = vadd.f32 %v2925, %v3213
    %v3215 = vpop.f32.mrb[0].mxu0
    %v3216 = vpop.f32.mrb[0].mxu0
    %v3217 = vadd.f32 %v2928, %v3216
    %v3218 = vpop.f32.mrb[0].mxu0
    %3219 = vmatprep.mubr.bf16.mxu0 %v1466
    %3220 = vmatmul.mubr.bf16.gmra.mrb[0].mxu0 %v1465
    %v3221 = vpop.f32.mrb[0].mxu0
    %v3222 = vadd.f32 %v2933, %v3221
    %v3223 = vpop.f32.mrb[0].mxu0
    %v3224 = vpop.f32.mrb[0].mxu0
    %v3225 = vadd.f32 %v2936, %v3224
    %v3226 = vpop.f32.mrb[0].mxu0
    %3227 = vmatprep.mubr.bf16.mxu0 %v1475
    %3228 = vmatmul.mubr.bf16.gmra.mrb[0].mxu0 %v1474
    %v3229 = vpop.f32.mrb[0].mxu0
    %v3230 = vadd.f32 %v2941, %v3229
    %v3231 = vpop.f32.mrb[0].mxu0
    %v3232 = vpop.f32.mrb[0].mxu0
    %v3233 = vadd.f32 %v2944, %v3232
    %v3234 = vpop.f32.mrb[0].mxu0
    %3235 = vmatprep.mubr.bf16.mxu0 %v1484
    %3236 = vmatmul.mubr.bf16.gmra.mrb[0].mxu0 %v1483
    %v3237 = vpop.f32.mrb[0].mxu0
    %v3238 = vadd.f32 %v2949, %v3237
    %v3239 = vpop.f32.mrb[0].mxu0
    %v3240 = vpop.f32.mrb[0].mxu0
    %v3241 = vadd.f32 %v2952, %v3240
    %v3242 = vpop.f32.mrb[0].mxu0
    %3243 = vmatprep.mubr.bf16.mxu0 %v1493
    %3244 = vmatmul.mubr.bf16.gmra.mrb[0].mxu0 %v1492
    %v3245 = vpop.f32.mrb[0].mxu0
    %v3246 = vadd.f32 %v2957, %v3245
    %v3247 = vpop.f32.mrb[0].mxu0
    %v3248 = vpop.f32.mrb[0].mxu0
    %v3249 = vadd.f32 %v2960, %v3248
    %v3250 = vpop.f32.mrb[0].mxu0
    %3251 = vmatprep.mubr.bf16.mxu0 %v1502
    %3252 = vmatmul.mubr.bf16.gmra.mrb[0].mxu0 %v1501
    %v3253 = vpop.f32.mrb[0].mxu0
    %v3254 = vadd.f32 %v2965, %v3253
    %v3255 = vpop.f32.mrb[0].mxu0
    %v3256 = vpop.f32.mrb[0].mxu0
    %v3257 = vadd.f32 %v2968, %v3256
    %v3258 = vpop.f32.mrb[0].mxu0
    %3259 = vmatprep.mubr.bf16.mxu0 %v1511
    %3260 = vmatmul.mubr.bf16.gmra.mrb[0].mxu0 %v1510
    %v3261 = vpop.f32.mrb[0].mxu0
    %v3262 = vadd.f32 %v2973, %v3261
    %v3263 = vpop.f32.mrb[0].mxu0
    %v3264 = vpop.f32.mrb[0].mxu0
    %v3265 = vadd.f32 %v2976, %v3264
    %v3266 = vpop.f32.mrb[0].mxu0
    %3267 = vmatprep.mubr.bf16.mxu0 %v1520
    %3268 = vmatmul.mubr.bf16.gmra.mrb[0].mxu0 %v1519
    %v3269 = vpop.f32.mrb[0].mxu0
    %v3270 = vadd.f32 %v2981, %v3269
    %v3271 = vpop.f32.mrb[0].mxu0
    %v3272 = vpop.f32.mrb[0].mxu0
    %v3273 = vadd.f32 %v2984, %v3272
    %v3274 = vpop.f32.mrb[0].mxu0
    %3275 = vmatprep.mubr.bf16.mxu0 %v1529
    %3276 = vmatmul.mubr.bf16.gmra.mrb[0].mxu0 %v1528
    %v3277 = vpop.f32.mrb[0].mxu0
    %v3278 = vadd.f32 %v2989, %v3277
    %v3279 = vpop.f32.mrb[0].mxu0
    %v3280 = vpop.f32.mrb[0].mxu0
    %v3281 = vadd.f32 %v2992, %v3280
    %v3282 = vpop.f32.mrb[0].mxu0
    %3283 = vmatprep.mubr.bf16.mxu0 %v1538
    %3284 = vmatmul.mubr.bf16.gmra.mrb[0].mxu0 %v1537
    %v3285 = vpop.f32.mrb[0].mxu0
    %v3286 = vadd.f32 %v2997, %v3285
    %v3287 = vpop.f32.mrb[0].mxu0
    %v3288 = vpop.f32.mrb[0].mxu0
    %v3289 = vadd.f32 %v3000, %v3288
    %v3290 = vpop.f32.mrb[0].mxu0
    %3291 = vmatprep.mubr.bf16.mxu0 %v1547
    %3292 = vmatmul.mubr.bf16.gmra.mrb[0].mxu0 %v1546
    %v3293 = vpop.f32.mrb[0].mxu0
    %v3294 = vadd.f32 %v3005, %v3293
    %v3295 = vpop.f32.mrb[0].mxu0
    %v3296 = vpop.f32.mrb[0].mxu0
    %v3297 = vadd.f32 %v3008, %v3296
    %v3298 = vpop.f32.mrb[0].mxu0
    %3299 = vmatprep.mubr.bf16.mxu0 %v1556
    %3300 = vmatmul.mubr.bf16.gmra.mrb[0].mxu0 %v1555
    %v3301 = vpop.f32.mrb[0].mxu0
    %v3302 = vadd.f32 %v3013, %v3301
    %v3303 = vpop.f32.mrb[0].mxu0
    %v3304 = vpop.f32.mrb[0].mxu0
    %v3305 = vadd.f32 %v3016, %v3304
    %v3306 = vpop.f32.mrb[0].mxu0
    %3307 = vmatprep.mubr.bf16.mxu0 %v1565
    %3308 = vmatmul.mubr.bf16.gmra.mrb[0].mxu0 %v1564
    %v3309 = vpop.f32.mrb[0].mxu0
    %v3310 = vadd.f32 %v3021, %v3309
    %v3311 = vpop.f32.mrb[0].mxu0
    %v3312 = vpop.f32.mrb[0].mxu0
    %v3313 = vadd.f32 %v3024, %v3312
    %v3314 = vpop.f32.mrb[0].mxu0
    %3315 = vmatprep.mubr.bf16.mxu0 %v1574
    %3316 = vmatmul.mubr.bf16.gmra.mrb[0].mxu0 %v1573
    %v3317 = vpop.f32.mrb[0].mxu0
    %v3318 = vadd.f32 %v3029, %v3317
    %v3319 = vpop.f32.mrb[0].mxu0
    %v3320 = vpop.f32.mrb[0].mxu0
    %v3321 = vadd.f32 %v3032, %v3320
    %v3322 = vpop.f32.mrb[0].mxu0
    %3323 = vmatprep.mubr.bf16.mxu0 %v1583
    %3324 = vmatmul.mubr.bf16.gmra.mrb[0].mxu0 %v1582
    %v3325 = vpop.f32.mrb[0].mxu0
    %v3326 = vadd.f32 %v3037, %v3325
    %v3327 = vpop.f32.mrb[0].mxu0
    %v3328 = vpop.f32.mrb[0].mxu0
    %v3329 = vadd.f32 %v3040, %v3328
    %v3330 = vpop.f32.mrb[0].mxu0
    %3331 = vmatprep.mubr.bf16.mxu0 %v1592
    %3332 = vmatmul.mubr.bf16.gmra.mrb[0].mxu0 %v1591
    %v3333 = vpop.f32.mrb[0].mxu0
    %v3334 = vadd.f32 %v3045, %v3333
    %v3335 = vpop.f32.mrb[0].mxu0
    %v3336 = vpop.f32.mrb[0].mxu0
    %v3337 = vadd.f32 %v3048, %v3336
    %v3338 = vpop.f32.mrb[0].mxu0
    %3339 = vmatprep.mubr.bf16.mxu0 %v1601
    %3340 = vmatmul.mubr.bf16.gmra.mrb[0].mxu0 %v1600
    %v3341 = vpop.f32.mrb[0].mxu0
    %v3342 = vadd.f32 %v3053, %v3341
    %v3343 = vpop.f32.mrb[0].mxu0
    %v3344 = vpop.f32.mrb[0].mxu0
    %v3345 = vadd.f32 %v3056, %v3344
    %v3346 = vpop.f32.mrb[0].mxu0
    %3347 = vmatprep.mubr.bf16.mxu0 %v1610
    %3348 = vmatmul.mubr.bf16.gmra.mrb[0].mxu0 %v1609
    %v3349 = vpop.f32.mrb[0].mxu0
    %v3350 = vadd.f32 %v3061, %v3349
    %v3351 = vpop.f32.mrb[0].mxu0
    %v3352 = vpop.f32.mrb[0].mxu0
    %v3353 = vadd.f32 %v3064, %v3352
    %v3354 = vpop.f32.mrb[0].mxu0
    %3355 = vmatprep.mubr.bf16.mxu0 %v1619
    %3356 = vmatmul.mubr.bf16.gmra.mrb[0].mxu0 %v1618
    %v3357 = vpop.f32.mrb[0].mxu0
    %v3358 = vadd.f32 %v3069, %v3357
    %v3359 = vpop.f32.mrb[0].mxu0
    %v3360 = vpop.f32.mrb[0].mxu0
    %v3361 = vadd.f32 %v3072, %v3360
    %v3362 = vpop.f32.mrb[0].mxu0
    %3363 = vmatprep.mubr.bf16.mxu0 %v1628
    %3364 = vmatmul.mubr.bf16.gmra.mrb[0].mxu0 %v1627
    %v3365 = vpop.f32.mrb[0].mxu0
    %v3366 = vadd.f32 %v3077, %v3365
    %v3367 = vpop.f32.mrb[0].mxu0
    %v3368 = vpop.f32.mrb[0].mxu0
    %v3369 = vadd.f32 %v3080, %v3368
    %v3370 = vpop.f32.mrb[0].mxu0
    %3371 = vmatprep.mubr.bf16.mxu0 %v1637
    %3372 = vmatmul.mubr.bf16.gmra.mrb[0].mxu0 %v1636
    %v3373 = vpop.f32.mrb[0].mxu0
    %v3374 = vadd.f32 %v3085, %v3373
    %v3375 = vpop.f32.mrb[0].mxu0
    %v3376 = vpop.f32.mrb[0].mxu0
    %v3377 = vadd.f32 %v3088, %v3376
    %v3378 = vpop.f32.mrb[0].mxu0
    %3379 = vmatprep.mubr.bf16.mxu0 %v1646
    %3380 = vmatmul.mubr.bf16.gmra.mrb[0].mxu0 %v1645
    %v3381 = vpop.f32.mrb[0].mxu0
    %v3382 = vadd.f32 %v3093, %v3381
    %v3383 = vpop.f32.mrb[0].mxu0
    %v3384 = vpop.f32.mrb[0].mxu0
    %v3385 = vadd.f32 %v3096, %v3384
    %v3386 = vpop.f32.mrb[0].mxu0
    %3387 = vmatprep.mubr.bf16.mxu0 %v1655
    %3388 = vmatmul.mubr.bf16.gmra.mrb[0].mxu0 %v1654
    %v3389 = vpop.f32.mrb[0].mxu0
    %v3390 = vadd.f32 %v3101, %v3389
    %v3391 = vpop.f32.mrb[0].mxu0
    %v3392 = vpop.f32.mrb[0].mxu0
    %v3393 = vadd.f32 %v3104, %v3392
    %v3394 = vpop.f32.mrb[0].mxu0
    %3395 = vmatprep.mubr.bf16.mxu0 %v1664
    %3396 = vmatmul.mubr.bf16.gmra.mrb[0].mxu0 %v1663
    %v3397 = vpop.f32.mrb[0].mxu0
    %v3398 = vadd.f32 %v3109, %v3397
    %v3399 = vpop.f32.mrb[0].mxu0
    %v3400 = vpop.f32.mrb[0].mxu0
    %v3401 = vadd.f32 %v3112, %v3400
    %v3402 = vpop.f32.mrb[0].mxu0
    %3403 = vmatprep.mubr.bf16.mxu0 %v1673
    %3404 = vmatmul.mubr.bf16.gmra.mrb[0].mxu0 %v1672
    %v3405 = vpop.f32.mrb[0].mxu0
    %v3406 = vadd.f32 %v3117, %v3405
    %v3407 = vpop.f32.mrb[0].mxu0
    %v3408 = vpop.f32.mrb[0].mxu0
    %v3409 = vadd.f32 %v3120, %v3408
    %v3410 = vpop.f32.mrb[0].mxu0
    %3411 = vmatprep.mubr.bf16.mxu0 %v1682
    %3412 = vmatmul.mubr.bf16.gmra.mrb[0].mxu0 %v1681
    %v3413 = vpop.f32.mrb[0].mxu0
    %v3414 = vadd.f32 %v3125, %v3413
    %v3415 = vpop.f32.mrb[0].mxu0
    %v3416 = vpop.f32.mrb[0].mxu0
    %v3417 = vadd.f32 %v3128, %v3416
    %v3418 = vpop.f32.mrb[0].mxu0
    %3419 = vmatprep.mubr.bf16.mxu0 %v1691
    %3420 = vmatmul.mubr.bf16.gmra.mrb[0].mxu0 %v1690
    %v3421 = vpop.f32.mrb[0].mxu0
    %v3422 = vadd.f32 %v3133, %v3421
    %v3423 = vpop.f32.mrb[0].mxu0
    %v3424 = vpop.f32.mrb[0].mxu0
    %v3425 = vadd.f32 %v3136, %v3424
    %v3426 = vpop.f32.mrb[0].mxu0
    %3427 = vmatprep.mubr.bf16.mxu0 %v1700
    %3428 = vmatmul.mubr.bf16.gmra.mrb[0].mxu0 %v1699
    %v3429 = vpop.f32.mrb[0].mxu0
    %v3430 = vadd.f32 %v3141, %v3429
    %v3431 = vpop.f32.mrb[0].mxu0
    %v3432 = vpop.f32.mrb[0].mxu0
    %v3433 = vadd.f32 %v3144, %v3432
    %v3434 = vpop.f32.mrb[0].mxu0
    %3435 = vmatprep.mubr.bf16.mxu0 %v1709
    %3436 = vmatmul.mubr.bf16.gmra.mrb[0].mxu0 %v1708
    %v3437 = vpop.f32.mrb[0].mxu0
    %v3438 = vadd.f32 %v3149, %v3437
    %v3439 = vpop.f32.mrb[0].mxu0
    %v3440 = vpop.f32.mrb[0].mxu0
    %v3441 = vadd.f32 %v3152, %v3440
    %v3442 = vpop.f32.mrb[0].mxu0
    %3443 = vmatprep.mubr.bf16.mxu0 %v1718
    %3444 = vmatmul.mubr.bf16.gmra.mrb[0].mxu0 %v1717
    %v3445 = vpop.f32.mrb[0].mxu0
    %v3446 = vadd.f32 %v3157, %v3445
    %v3447 = vpop.f32.mrb[0].mxu0
    %v3448 = vpop.f32.mrb[0].mxu0
    %v3449 = vadd.f32 %v3160, %v3448
    %v3450 = vpop.f32.mrb[0].mxu0
    %3451 = vdwg.mxu0
    %3452 = vmatprep.subr.bf16.mxu0 0
    %3453 = vmatpush1.bf16.msra.mxu0 %v2216
    %3454 = vmatprep.subr.bf16.mxu0 0
    %3455 = vmatpush1.bf16.msra.mxu0 %v2217
    %3456 = vmatprep.subr.bf16.mxu0 0
    %3457 = vmatpush1.bf16.msra.mxu0 %v2218
    %3458 = vmatprep.subr.bf16.mxu0 0
    %3459 = vmatpush1.bf16.msra.mxu0 %v2219
    %3460 = vmatprep.subr.bf16.mxu0 0
    %3461 = vmatpush1.bf16.msra.mxu0 %v2220
    %3462 = vmatprep.subr.bf16.mxu0 0
    %3463 = vmatpush1.bf16.msra.mxu0 %v2221
    %3464 = vmatprep.subr.bf16.mxu0 0
    %3465 = vmatpush1.bf16.msra.mxu0 %v2222
    %3466 = vmatprep.subr.bf16.mxu0 0
    %3467 = vmatpush1.bf16.msra.mxu0 %v2223
    %3468 = vmatprep.subr.bf16.mxu0 0
    %3469 = vmatpush1.bf16.msra.mxu0 0
    %3470 = vmatprep.subr.bf16.mxu0 0
    %3471 = vmatpush1.bf16.msra.mxu0 0
    %3472 = vmatprep.subr.bf16.mxu0 0
    %3473 = vmatpush1.bf16.msra.mxu0 0
    %3474 = vmatprep.subr.bf16.mxu0 0
    %3475 = vmatpush1.bf16.msra.mxu0 0
    %3476 = vmatprep.subr.bf16.mxu0 0
    %3477 = vmatpush1.bf16.msra.mxu0 0
    %3478 = vmatprep.subr.bf16.mxu0 0
    %3479 = vmatpush1.bf16.msra.mxu0 0
    %3480 = vmatprep.subr.bf16.mxu0 0
    %3481 = vmatpush1.bf16.msra.mxu0 0
    %3482 = vmatprep.subr.bf16.mxu0 0
    %3483 = vmatpush1.bf16.msra.mxu0 0
    %3484 = vmatprep.mubr.bf16.mxu0 0
    %3485 = vmatmul.mubr.bf16.gmra.mrb[0].mxu0 %v1440
    %v3486 = vpop.f32.mrb[0].mxu0
    %v3487 = vadd.f32 %v3198, %v3486
    %v3488 = vpop.f32.mrb[0].mxu0
    %v3489 = vpop.f32.mrb[0].mxu0
    %v3490 = vadd.f32 %v3201, %v3489
    %v3491 = vpop.f32.mrb[0].mxu0
    %3492 = vmatprep.mubr.bf16.mxu0 0
    %3493 = vmatmul.mubr.bf16.gmra.mrb[0].mxu0 %v1449
    %v3494 = vpop.f32.mrb[0].mxu0
    %v3495 = vadd.f32 %v3206, %v3494
    %v3496 = vpop.f32.mrb[0].mxu0
    %v3497 = vpop.f32.mrb[0].mxu0
    %v3498 = vadd.f32 %v3209, %v3497
    %v3499 = vpop.f32.mrb[0].mxu0
    %3500 = vmatprep.mubr.bf16.mxu0 0
    %3501 = vmatmul.mubr.bf16.gmra.mrb[0].mxu0 %v1458
    %v3502 = vpop.f32.mrb[0].mxu0
    %v3503 = vadd.f32 %v3214, %v3502
    %v3504 = vpop.f32.mrb[0].mxu0
    %v3505 = vpop.f32.mrb[0].mxu0
    %v3506 = vadd.f32 %v3217, %v3505
    %v3507 = vpop.f32.mrb[0].mxu0
    %3508 = vmatprep.mubr.bf16.mxu0 0
    %3509 = vmatmul.mubr.bf16.gmra.mrb[0].mxu0 %v1467
    %v3510 = vpop.f32.mrb[0].mxu0
    %v3511 = vadd.f32 %v3222, %v3510
    %v3512 = vpop.f32.mrb[0].mxu0
    %v3513 = vpop.f32.mrb[0].mxu0
    %v3514 = vadd.f32 %v3225, %v3513
    %v3515 = vpop.f32.mrb[0].mxu0
    %3516 = vmatprep.mubr.bf16.mxu0 0
    %3517 = vmatmul.mubr.bf16.gmra.mrb[0].mxu0 %v1476
    %v3518 = vpop.f32.mrb[0].mxu0
    %v3519 = vadd.f32 %v3230, %v3518
    %v3520 = vpop.f32.mrb[0].mxu0
    %v3521 = vpop.f32.mrb[0].mxu0
    %v3522 = vadd.f32 %v3233, %v3521
    %v3523 = vpop.f32.mrb[0].mxu0
    %3524 = vmatprep.mubr.bf16.mxu0 0
    %3525 = vmatmul.mubr.bf16.gmra.mrb[0].mxu0 %v1485
    %v3526 = vpop.f32.mrb[0].mxu0
    %v3527 = vadd.f32 %v3238, %v3526
    %v3528 = vpop.f32.mrb[0].mxu0
    %v3529 = vpop.f32.mrb[0].mxu0
    %v3530 = vadd.f32 %v3241, %v3529
    %v3531 = vpop.f32.mrb[0].mxu0
    %3532 = vmatprep.mubr.bf16.mxu0 0
    %3533 = vmatmul.mubr.bf16.gmra.mrb[0].mxu0 %v1494
    %v3534 = vpop.f32.mrb[0].mxu0
    %v3535 = vadd.f32 %v3246, %v3534
    %v3536 = vpop.f32.mrb[0].mxu0
    %v3537 = vpop.f32.mrb[0].mxu0
    %v3538 = vadd.f32 %v3249, %v3537
    %v3539 = vpop.f32.mrb[0].mxu0
    %3540 = vmatprep.mubr.bf16.mxu0 0
    %3541 = vmatmul.mubr.bf16.gmra.mrb[0].mxu0 %v1503
    %v3542 = vpop.f32.mrb[0].mxu0
    %v3543 = vadd.f32 %v3254, %v3542
    %v3544 = vpop.f32.mrb[0].mxu0
    %v3545 = vpop.f32.mrb[0].mxu0
    %v3546 = vadd.f32 %v3257, %v3545
    %v3547 = vpop.f32.mrb[0].mxu0
    %3548 = vmatprep.mubr.bf16.mxu0 0
    %3549 = vmatmul.mubr.bf16.gmra.mrb[0].mxu0 %v1512
    %v3550 = vpop.f32.mrb[0].mxu0
    %v3551 = vadd.f32 %v3262, %v3550
    %v3552 = vpop.f32.mrb[0].mxu0
    %v3553 = vpop.f32.mrb[0].mxu0
    %v3554 = vadd.f32 %v3265, %v3553
    %v3555 = vpop.f32.mrb[0].mxu0
    %3556 = vmatprep.mubr.bf16.mxu0 0
    %3557 = vmatmul.mubr.bf16.gmra.mrb[0].mxu0 %v1521
    %v3558 = vpop.f32.mrb[0].mxu0
    %v3559 = vadd.f32 %v3270, %v3558
    %v3560 = vpop.f32.mrb[0].mxu0
    %v3561 = vpop.f32.mrb[0].mxu0
    %v3562 = vadd.f32 %v3273, %v3561
    %v3563 = vpop.f32.mrb[0].mxu0
    %3564 = vmatprep.mubr.bf16.mxu0 0
    %3565 = vmatmul.mubr.bf16.gmra.mrb[0].mxu0 %v1530
    %v3566 = vpop.f32.mrb[0].mxu0
    %v3567 = vadd.f32 %v3278, %v3566
    %v3568 = vpop.f32.mrb[0].mxu0
    %v3569 = vpop.f32.mrb[0].mxu0
    %v3570 = vadd.f32 %v3281, %v3569
    %v3571 = vpop.f32.mrb[0].mxu0
    %3572 = vmatprep.mubr.bf16.mxu0 0
    %3573 = vmatmul.mubr.bf16.gmra.mrb[0].mxu0 %v1539
    %v3574 = vpop.f32.mrb[0].mxu0
    %v3575 = vadd.f32 %v3286, %v3574
    %v3576 = vpop.f32.mrb[0].mxu0
    %v3577 = vpop.f32.mrb[0].mxu0
    %v3578 = vadd.f32 %v3289, %v3577
    %v3579 = vpop.f32.mrb[0].mxu0
    %3580 = vmatprep.mubr.bf16.mxu0 0
    %3581 = vmatmul.mubr.bf16.gmra.mrb[0].mxu0 %v1548
    %v3582 = vpop.f32.mrb[0].mxu0
    %v3583 = vadd.f32 %v3294, %v3582
    %v3584 = vpop.f32.mrb[0].mxu0
    %v3585 = vpop.f32.mrb[0].mxu0
    %v3586 = vadd.f32 %v3297, %v3585
    %v3587 = vpop.f32.mrb[0].mxu0
    %3588 = vmatprep.mubr.bf16.mxu0 0
    %3589 = vmatmul.mubr.bf16.gmra.mrb[0].mxu0 %v1557
    %v3590 = vpop.f32.mrb[0].mxu0
    %v3591 = vadd.f32 %v3302, %v3590
    %v3592 = vpop.f32.mrb[0].mxu0
    %v3593 = vpop.f32.mrb[0].mxu0
    %v3594 = vadd.f32 %v3305, %v3593
    %v3595 = vpop.f32.mrb[0].mxu0
    %3596 = vmatprep.mubr.bf16.mxu0 0
    %3597 = vmatmul.mubr.bf16.gmra.mrb[0].mxu0 %v1566
    %v3598 = vpop.f32.mrb[0].mxu0
    %v3599 = vadd.f32 %v3310, %v3598
    %v3600 = vpop.f32.mrb[0].mxu0
    %v3601 = vpop.f32.mrb[0].mxu0
    %v3602 = vadd.f32 %v3313, %v3601
    %v3603 = vpop.f32.mrb[0].mxu0
    %3604 = vmatprep.mubr.bf16.mxu0 0
    %3605 = vmatmul.mubr.bf16.gmra.mrb[0].mxu0 %v1575
    %v3606 = vpop.f32.mrb[0].mxu0
    %v3607 = vadd.f32 %v3318, %v3606
    %v3608 = vpop.f32.mrb[0].mxu0
    %v3609 = vpop.f32.mrb[0].mxu0
    %v3610 = vadd.f32 %v3321, %v3609
    %v3611 = vpop.f32.mrb[0].mxu0
    %3612 = vmatprep.mubr.bf16.mxu0 0
    %3613 = vmatmul.mubr.bf16.gmra.mrb[0].mxu0 %v1584
    %v3614 = vpop.f32.mrb[0].mxu0
    %v3615 = vadd.f32 %v3326, %v3614
    %v3616 = vpop.f32.mrb[0].mxu0
    %v3617 = vpop.f32.mrb[0].mxu0
    %v3618 = vadd.f32 %v3329, %v3617
    %v3619 = vpop.f32.mrb[0].mxu0
    %3620 = vmatprep.mubr.bf16.mxu0 0
    %3621 = vmatmul.mubr.bf16.gmra.mrb[0].mxu0 %v1593
    %v3622 = vpop.f32.mrb[0].mxu0
    %v3623 = vadd.f32 %v3334, %v3622
    %v3624 = vpop.f32.mrb[0].mxu0
    %v3625 = vpop.f32.mrb[0].mxu0
    %v3626 = vadd.f32 %v3337, %v3625
    %v3627 = vpop.f32.mrb[0].mxu0
    %3628 = vmatprep.mubr.bf16.mxu0 0
    %3629 = vmatmul.mubr.bf16.gmra.mrb[0].mxu0 %v1602
    %v3630 = vpop.f32.mrb[0].mxu0
    %v3631 = vadd.f32 %v3342, %v3630
    %v3632 = vpop.f32.mrb[0].mxu0
    %v3633 = vpop.f32.mrb[0].mxu0
    %v3634 = vadd.f32 %v3345, %v3633
    %v3635 = vpop.f32.mrb[0].mxu0
    %3636 = vmatprep.mubr.bf16.mxu0 0
    %3637 = vmatmul.mubr.bf16.gmra.mrb[0].mxu0 %v1611
    %v3638 = vpop.f32.mrb[0].mxu0
    %v3639 = vadd.f32 %v3350, %v3638
    %v3640 = vpop.f32.mrb[0].mxu0
    %v3641 = vpop.f32.mrb[0].mxu0
    %v3642 = vadd.f32 %v3353, %v3641
    %v3643 = vpop.f32.mrb[0].mxu0
    %3644 = vmatprep.mubr.bf16.mxu0 0
    %3645 = vmatmul.mubr.bf16.gmra.mrb[0].mxu0 %v1620
    %v3646 = vpop.f32.mrb[0].mxu0
    %v3647 = vadd.f32 %v3358, %v3646
    %v3648 = vpop.f32.mrb[0].mxu0
    %v3649 = vpop.f32.mrb[0].mxu0
    %v3650 = vadd.f32 %v3361, %v3649
    %v3651 = vpop.f32.mrb[0].mxu0
    %3652 = vmatprep.mubr.bf16.mxu0 0
    %3653 = vmatmul.mubr.bf16.gmra.mrb[0].mxu0 %v1629
    %v3654 = vpop.f32.mrb[0].mxu0
    %v3655 = vadd.f32 %v3366, %v3654
    %v3656 = vpop.f32.mrb[0].mxu0
    %v3657 = vpop.f32.mrb[0].mxu0
    %v3658 = vadd.f32 %v3369, %v3657
    %v3659 = vpop.f32.mrb[0].mxu0
    %3660 = vmatprep.mubr.bf16.mxu0 0
    %3661 = vmatmul.mubr.bf16.gmra.mrb[0].mxu0 %v1638
    %v3662 = vpop.f32.mrb[0].mxu0
    %v3663 = vadd.f32 %v3374, %v3662
    %v3664 = vpop.f32.mrb[0].mxu0
    %v3665 = vpop.f32.mrb[0].mxu0
    %v3666 = vadd.f32 %v3377, %v3665
    %v3667 = vpop.f32.mrb[0].mxu0
    %3668 = vmatprep.mubr.bf16.mxu0 0
    %3669 = vmatmul.mubr.bf16.gmra.mrb[0].mxu0 %v1647
    %v3670 = vpop.f32.mrb[0].mxu0
    %v3671 = vadd.f32 %v3382, %v3670
    %v3672 = vpop.f32.mrb[0].mxu0
    %v3673 = vpop.f32.mrb[0].mxu0
    %v3674 = vadd.f32 %v3385, %v3673
    %v3675 = vpop.f32.mrb[0].mxu0
    %3676 = vmatprep.mubr.bf16.mxu0 0
    %3677 = vmatmul.mubr.bf16.gmra.mrb[0].mxu0 %v1656
    %v3678 = vpop.f32.mrb[0].mxu0
    %v3679 = vadd.f32 %v3390, %v3678
    %v3680 = vpop.f32.mrb[0].mxu0
    %v3681 = vpop.f32.mrb[0].mxu0
    %v3682 = vadd.f32 %v3393, %v3681
    %v3683 = vpop.f32.mrb[0].mxu0
    %3684 = vmatprep.mubr.bf16.mxu0 0
    %3685 = vmatmul.mubr.bf16.gmra.mrb[0].mxu0 %v1665
    %v3686 = vpop.f32.mrb[0].mxu0
    %v3687 = vadd.f32 %v3398, %v3686
    %v3688 = vpop.f32.mrb[0].mxu0
    %v3689 = vpop.f32.mrb[0].mxu0
    %v3690 = vadd.f32 %v3401, %v3689
    %v3691 = vpop.f32.mrb[0].mxu0
    %3692 = vmatprep.mubr.bf16.mxu0 0
    %3693 = vmatmul.mubr.bf16.gmra.mrb[0].mxu0 %v1674
    %v3694 = vpop.f32.mrb[0].mxu0
    %v3695 = vadd.f32 %v3406, %v3694
    %v3696 = vpop.f32.mrb[0].mxu0
    %v3697 = vpop.f32.mrb[0].mxu0
    %v3698 = vadd.f32 %v3409, %v3697
    %v3699 = vpop.f32.mrb[0].mxu0
    %3700 = vmatprep.mubr.bf16.mxu0 0
    %3701 = vmatmul.mubr.bf16.gmra.mrb[0].mxu0 %v1683
    %v3702 = vpop.f32.mrb[0].mxu0
    %v3703 = vadd.f32 %v3414, %v3702
    %v3704 = vpop.f32.mrb[0].mxu0
    %v3705 = vpop.f32.mrb[0].mxu0
    %v3706 = vadd.f32 %v3417, %v3705
    %v3707 = vpop.f32.mrb[0].mxu0
    %3708 = vmatprep.mubr.bf16.mxu0 0
    %3709 = vmatmul.mubr.bf16.gmra.mrb[0].mxu0 %v1692
    %v3710 = vpop.f32.mrb[0].mxu0
    %v3711 = vadd.f32 %v3422, %v3710
    %v3712 = vpop.f32.mrb[0].mxu0
    %v3713 = vpop.f32.mrb[0].mxu0
    %v3714 = vadd.f32 %v3425, %v3713
    %v3715 = vpop.f32.mrb[0].mxu0
    %3716 = vmatprep.mubr.bf16.mxu0 0
    %3717 = vmatmul.mubr.bf16.gmra.mrb[0].mxu0 %v1701
    %v3718 = vpop.f32.mrb[0].mxu0
    %v3719 = vadd.f32 %v3430, %v3718
    %v3720 = vpop.f32.mrb[0].mxu0
    %v3721 = vpop.f32.mrb[0].mxu0
    %v3722 = vadd.f32 %v3433, %v3721
    %v3723 = vpop.f32.mrb[0].mxu0
    %3724 = vmatprep.mubr.bf16.mxu0 0
    %3725 = vmatmul.mubr.bf16.gmra.mrb[0].mxu0 %v1710
    %v3726 = vpop.f32.mrb[0].mxu0
    %v3727 = vadd.f32 %v3438, %v3726
    %v3728 = vpop.f32.mrb[0].mxu0
    %v3729 = vpop.f32.mrb[0].mxu0
    %v3730 = vadd.f32 %v3441, %v3729
    %v3731 = vpop.f32.mrb[0].mxu0
    %3732 = vmatprep.mubr.bf16.mxu0 0
    %3733 = vmatmul.mubr.bf16.gmra.mrb[0].mxu0 %v1719
    %v3734 = vpop.f32.mrb[0].mxu0
    %v3735 = vadd.f32 %v3446, %v3734
    %v3736 = vpop.f32.mrb[0].mxu0
    %v3737 = vpop.f32.mrb[0].mxu0
    %v3738 = vadd.f32 %v3449, %v3737
    %v3739 = vpop.f32.mrb[0].mxu0
    %3740 = vdwg.mxu0
    %3741 = vst [vmem:[#allocation4] sm:$0xff] %v3487
    %3742 = vst [vmem:[#allocation4 + $0x8] sm:$0xff] %v3490
    %3743 = vst [vmem:[#allocation4 + $0x10] sm:$0xff] %v3495
    %3744 = vst [vmem:[#allocation4 + $0x18] sm:$0xff] %v3498
    %3745 = vst [vmem:[#allocation4 + $0x20] sm:$0xff] %v3503
    %3746 = vst [vmem:[#allocation4 + $0x28] sm:$0xff] %v3506
    %3747 = vst [vmem:[#allocation4 + $0x30] sm:$0xff] %v3511
    %3748 = vst [vmem:[#allocation4 + $0x38] sm:$0xff] %v3514
    %3749 = vst [vmem:[#allocation4 + $0x40] sm:$0xff] %v3519
    %3750 = vst [vmem:[#allocation4 + $0x48] sm:$0xff] %v3522
    %3751 = vst [vmem:[#allocation4 + $0x50] sm:$0xff] %v3527
    %3752 = vst [vmem:[#allocation4 + $0x58] sm:$0xff] %v3530
    %3753 = vst [vmem:[#allocation4 + $0x60] sm:$0xff] %v3535
    %3754 = vst [vmem:[#allocation4 + $0x68] sm:$0xff] %v3538
    %3755 = vst [vmem:[#allocation4 + $0x70] sm:$0xff] %v3543
    %3756 = vst [vmem:[#allocation4 + $0x78] sm:$0xff] %v3546
    %3757 = vst [vmem:[#allocation4 + $0x80] sm:$0xff] %v3551
    %3758 = vst [vmem:[#allocation4 + $0x88] sm:$0xff] %v3554
    %3759 = vst [vmem:[#allocation4 + $0x90] sm:$0xff] %v3559
    %3760 = vst [vmem:[#allocation4 + $0x98] sm:$0xff] %v3562
    %3761 = vst [vmem:[#allocation4 + $0xa0] sm:$0xff] %v3567
    %3762 = vst [vmem:[#allocation4 + $0xa8] sm:$0xff] %v3570
    %3763 = vst [vmem:[#allocation4 + $0xb0] sm:$0xff] %v3575
    %3764 = vst [vmem:[#allocation4 + $0xb8] sm:$0xff] %v3578
    %3765 = vst [vmem:[#allocation4 + $0xc0] sm:$0xff] %v3583
    %3766 = vst [vmem:[#allocation4 + $0xc8] sm:$0xff] %v3586
    %3767 = vst [vmem:[#allocation4 + $0xd0] sm:$0xff] %v3591
    %3768 = vst [vmem:[#allocation4 + $0xd8] sm:$0xff] %v3594
    %3769 = vst [vmem:[#allocation4 + $0xe0] sm:$0xff] %v3599
    %3770 = vst [vmem:[#allocation4 + $0xe8] sm:$0xff] %v3602
    %3771 = vst [vmem:[#allocation4 + $0xf0] sm:$0xff] %v3607
    %3772 = vst [vmem:[#allocation4 + $0xf8] sm:$0xff] %v3610
    %3773 = vst [vmem:[#allocation4 + $0x100] sm:$0xff] %v3615
    %3774 = vst [vmem:[#allocation4 + $0x108] sm:$0xff] %v3618
    %3775 = vst [vmem:[#allocation4 + $0x110] sm:$0xff] %v3623
    %3776 = vst [vmem:[#allocation4 + $0x118] sm:$0xff] %v3626
    %3777 = vst [vmem:[#allocation4 + $0x120] sm:$0xff] %v3631
    %3778 = vst [vmem:[#allocation4 + $0x128] sm:$0xff] %v3634
    %3779 = vst [vmem:[#allocation4 + $0x130] sm:$0xff] %v3639
    %3780 = vst [vmem:[#allocation4 + $0x138] sm:$0xff] %v3642
    %3781 = vst [vmem:[#allocation4 + $0x140] sm:$0xff] %v3647
    %3782 = vst [vmem:[#allocation4 + $0x148] sm:$0xff] %v3650
    %3783 = vst [vmem:[#allocation4 + $0x150] sm:$0xff] %v3655
    %3784 = vst [vmem:[#allocation4 + $0x158] sm:$0xff] %v3658
    %3785 = vst [vmem:[#allocation4 + $0x160] sm:$0xff] %v3663
    %3786 = vst [vmem:[#allocation4 + $0x168] sm:$0xff] %v3666
    %3787 = vst [vmem:[#allocation4 + $0x170] sm:$0xff] %v3671
    %3788 = vst [vmem:[#allocation4 + $0x178] sm:$0xff] %v3674
    %3789 = vst [vmem:[#allocation4 + $0x180] sm:$0xff] %v3679
    %3790 = vst [vmem:[#allocation4 + $0x188] sm:$0xff] %v3682
    %3791 = vst [vmem:[#allocation4 + $0x190] sm:$0xff] %v3687
    %3792 = vst [vmem:[#allocation4 + $0x198] sm:$0xff] %v3690
    %3793 = vst [vmem:[#allocation4 + $0x1a0] sm:$0xff] %v3695
    %3794 = vst [vmem:[#allocation4 + $0x1a8] sm:$0xff] %v3698
    %3795 = vst [vmem:[#allocation4 + $0x1b0] sm:$0xff] %v3703
    %3796 = vst [vmem:[#allocation4 + $0x1b8] sm:$0xff] %v3706
    %3797 = vst [vmem:[#allocation4 + $0x1c0] sm:$0xff] %v3711
    %3798 = vst [vmem:[#allocation4 + $0x1c8] sm:$0xff] %v3714
    %3799 = vst [vmem:[#allocation4 + $0x1d0] sm:$0xff] %v3719
    %3800 = vst [vmem:[#allocation4 + $0x1d8] sm:$0xff] %v3722
    %3801 = vst [vmem:[#allocation4 + $0x1e0] sm:$0xff] %v3727
    %3802 = vst [vmem:[#allocation4 + $0x1e8] sm:$0xff] %v3730
    %3803 = vst [vmem:[#allocation4 + $0x1f0] sm:$0xff] %v3735
    %3804 = vst [vmem:[#allocation4 + $0x1f8] sm:$0xff] %v3738
    %v3805 = vld [vmem:[#allocation4] sm:$0xff]
    %v3806 = vld [vmem:[#allocation4 + $0x8] sm:$0xff]
    %v3807 = vld [vmem:[#allocation4 + $0x10] sm:$0xff]
    %v3808 = vld [vmem:[#allocation4 + $0x18] sm:$0xff]
    %v3809 = vld [vmem:[#allocation4 + $0x20] sm:$0xff]
    %v3810 = vld [vmem:[#allocation4 + $0x28] sm:$0xff]
    %v3811 = vld [vmem:[#allocation4 + $0x30] sm:$0xff]
    %v3812 = vld [vmem:[#allocation4 + $0x38] sm:$0xff]
    %v3813 = vld [vmem:[#allocation4 + $0x40] sm:$0xff]
    %v3814 = vld [vmem:[#allocation4 + $0x48] sm:$0xff]
    %v3815 = vld [vmem:[#allocation4 + $0x50] sm:$0xff]
    %v3816 = vld [vmem:[#allocation4 + $0x58] sm:$0xff]
    %v3817 = vld [vmem:[#allocation4 + $0x60] sm:$0xff]
    %v3818 = vld [vmem:[#allocation4 + $0x68] sm:$0xff]
    %v3819 = vld [vmem:[#allocation4 + $0x70] sm:$0xff]
    %v3820 = vld [vmem:[#allocation4 + $0x78] sm:$0xff]
    %v3821 = vld [vmem:[#allocation4 + $0x80] sm:$0xff]
    %v3822 = vld [vmem:[#allocation4 + $0x88] sm:$0xff]
    %v3823 = vld [vmem:[#allocation4 + $0x90] sm:$0xff]
    %v3824 = vld [vmem:[#allocation4 + $0x98] sm:$0xff]
    %v3825 = vld [vmem:[#allocation4 + $0xa0] sm:$0xff]
    %v3826 = vld [vmem:[#allocation4 + $0xa8] sm:$0xff]
    %v3827 = vld [vmem:[#allocation4 + $0xb0] sm:$0xff]
    %v3828 = vld [vmem:[#allocation4 + $0xb8] sm:$0xff]
    %v3829 = vld [vmem:[#allocation4 + $0xc0] sm:$0xff]
    %v3830 = vld [vmem:[#allocation4 + $0xc8] sm:$0xff]
    %v3831 = vld [vmem:[#allocation4 + $0xd0] sm:$0xff]
    %v3832 = vld [vmem:[#allocation4 + $0xd8] sm:$0xff]
    %v3833 = vld [vmem:[#allocation4 + $0xe0] sm:$0xff]
    %v3834 = vld [vmem:[#allocation4 + $0xe8] sm:$0xff]
    %v3835 = vld [vmem:[#allocation4 + $0xf0] sm:$0xff]
    %v3836 = vld [vmem:[#allocation4 + $0xf8] sm:$0xff]
    %v3837 = vld [vmem:[#allocation4 + $0x100] sm:$0xff]
    %v3838 = vld [vmem:[#allocation4 + $0x108] sm:$0xff]
    %v3839 = vld [vmem:[#allocation4 + $0x110] sm:$0xff]
    %v3840 = vld [vmem:[#allocation4 + $0x118] sm:$0xff]
    %v3841 = vld [vmem:[#allocation4 + $0x120] sm:$0xff]
    %v3842 = vld [vmem:[#allocation4 + $0x128] sm:$0xff]
    %v3843 = vld [vmem:[#allocation4 + $0x130] sm:$0xff]
    %v3844 = vld [vmem:[#allocation4 + $0x138] sm:$0xff]
    %v3845 = vld [vmem:[#allocation4 + $0x140] sm:$0xff]
    %v3846 = vld [vmem:[#allocation4 + $0x148] sm:$0xff]
    %v3847 = vld [vmem:[#allocation4 + $0x150] sm:$0xff]
    %v3848 = vld [vmem:[#allocation4 + $0x158] sm:$0xff]
    %v3849 = vld [vmem:[#allocation4 + $0x160] sm:$0xff]
    %v3850 = vld [vmem:[#allocation4 + $0x168] sm:$0xff]
    %v3851 = vld [vmem:[#allocation4 + $0x170] sm:$0xff]
    %v3852 = vld [vmem:[#allocation4 + $0x178] sm:$0xff]
    %v3853 = vld [vmem:[#allocation4 + $0x180] sm:$0xff]
    %v3854 = vld [vmem:[#allocation4 + $0x188] sm:$0xff]
    %v3855 = vld [vmem:[#allocation4 + $0x190] sm:$0xff]
    %v3856 = vld [vmem:[#allocation4 + $0x198] sm:$0xff]
    %v3857 = vld [vmem:[#allocation4 + $0x1a0] sm:$0xff]
    %v3858 = vld [vmem:[#allocation4 + $0x1a8] sm:$0xff]
    %v3859 = vld [vmem:[#allocation4 + $0x1b0] sm:$0xff]
    %v3860 = vld [vmem:[#allocation4 + $0x1b8] sm:$0xff]
    %v3861 = vld [vmem:[#allocation4 + $0x1c0] sm:$0xff]
    %v3862 = vld [vmem:[#allocation4 + $0x1c8] sm:$0xff]
    %v3863 = vld [vmem:[#allocation4 + $0x1d0] sm:$0xff]
    %v3864 = vld [vmem:[#allocation4 + $0x1d8] sm:$0xff]
    %v3865 = vld [vmem:[#allocation4 + $0x1e0] sm:$0xff]
    %v3866 = vld [vmem:[#allocation4 + $0x1e8] sm:$0xff]
    %v3867 = vld [vmem:[#allocation4 + $0x1f0] sm:$0xff]
    %v3868 = vld [vmem:[#allocation4 + $0x1f8] sm:$0xff]
    %v3869 = vadd.f32 %v3805, %v3806
    %v3870 = vadd.f32 %v3869, %v3807
    %v3871 = vadd.f32 %v3870, %v3808
    %v3872 = vadd.f32 %v3871, %v3809
    %v3873 = vadd.f32 %v3872, %v3810
    %v3874 = vadd.f32 %v3873, %v3811
    %v3875 = vadd.f32 %v3874, %v3812
    %v3876 = vadd.f32 %v3875, %v3813
    %v3877 = vadd.f32 %v3876, %v3814
    %v3878 = vadd.f32 %v3877, %v3815
    %v3879 = vadd.f32 %v3878, %v3816
    %v3880 = vadd.f32 %v3879, %v3817
    %v3881 = vadd.f32 %v3880, %v3818
    %v3882 = vadd.f32 %v3881, %v3819
    %v3883 = vadd.f32 %v3882, %v3820
    %v3884 = vadd.f32 %v3883, %v3821
    %v3885 = vadd.f32 %v3884, %v3822
    %v3886 = vadd.f32 %v3885, %v3823
    %v3887 = vadd.f32 %v3886, %v3824
    %v3888 = vadd.f32 %v3887, %v3825
    %v3889 = vadd.f32 %v3888, %v3826
    %v3890 = vadd.f32 %v3889, %v3827
    %v3891 = vadd.f32 %v3890, %v3828
    %v3892 = vadd.f32 %v3891, %v3829
    %v3893 = vadd.f32 %v3892, %v3830
    %v3894 = vadd.f32 %v3893, %v3831
    %v3895 = vadd.f32 %v3894, %v3832
    %v3896 = vadd.f32 %v3895, %v3833
    %v3897 = vadd.f32 %v3896, %v3834
    %v3898 = vadd.f32 %v3897, %v3835
    %v3899 = vadd.f32 %v3898, %v3836
    %v3900 = vadd.f32 %v3899, %v3837
    %v3901 = vadd.f32 %v3900, %v3838
    %v3902 = vadd.f32 %v3901, %v3839
    %v3903 = vadd.f32 %v3902, %v3840
    %v3904 = vadd.f32 %v3903, %v3841
    %v3905 = vadd.f32 %v3904, %v3842
    %v3906 = vadd.f32 %v3905, %v3843
    %v3907 = vadd.f32 %v3906, %v3844
    %v3908 = vadd.f32 %v3907, %v3845
    %v3909 = vadd.f32 %v3908, %v3846
    %v3910 = vadd.f32 %v3909, %v3847
    %v3911 = vadd.f32 %v3910, %v3848
    %v3912 = vadd.f32 %v3911, %v3849
    %v3913 = vadd.f32 %v3912, %v3850
    %v3914 = vadd.f32 %v3913, %v3851
    %v3915 = vadd.f32 %v3914, %v3852
    %v3916 = vadd.f32 %v3915, %v3853
    %v3917 = vadd.f32 %v3916, %v3854
    %v3918 = vadd.f32 %v3917, %v3855
    %v3919 = vadd.f32 %v3918, %v3856
    %v3920 = vadd.f32 %v3919, %v3857
    %v3921 = vadd.f32 %v3920, %v3858
    %v3922 = vadd.f32 %v3921, %v3859
    %v3923 = vadd.f32 %v3922, %v3860
    %v3924 = vadd.f32 %v3923, %v3861
    %v3925 = vadd.f32 %v3924, %v3862
    %v3926 = vadd.f32 %v3925, %v3863
    %v3927 = vadd.f32 %v3926, %v3864
    %v3928 = vadd.f32 %v3927, %v3865
    %v3929 = vadd.f32 %v3928, %v3866
    %v3930 = vadd.f32 %v3929, %v3867
    %v3931 = vadd.f32 %v3930, %v3868
    %v3932 = vrot.slane %v3931, 4
    %v3933 = vadd.f32 %v3931, %v3932
    %v3934 = vrot.slane %v3933, 2
    %v3935 = vadd.f32 %v3933, %v3934
    %v3936 = vrot.slane %v3935, 1
    %v3937 = vadd.f32 %v3935, %v3936
    %v3938 = vmul.f32 %v3805, %v3805
    %v3939 = vmul.f32 %v3806, %v3806
    %v3940 = vmul.f32 %v3807, %v3807
    %v3941 = vmul.f32 %v3808, %v3808
    %v3942 = vmul.f32 %v3809, %v3809
    %v3943 = vmul.f32 %v3810, %v3810
    %v3944 = vmul.f32 %v3811, %v3811
    %v3945 = vmul.f32 %v3812, %v3812
    %v3946 = vmul.f32 %v3813, %v3813
    %v3947 = vmul.f32 %v3814, %v3814
    %v3948 = vmul.f32 %v3815, %v3815
    %v3949 = vmul.f32 %v3816, %v3816
    %v3950 = vmul.f32 %v3817, %v3817
    %v3951 = vmul.f32 %v3818, %v3818
    %v3952 = vmul.f32 %v3819, %v3819
    %v3953 = vmul.f32 %v3820, %v3820
    %v3954 = vmul.f32 %v3821, %v3821
    %v3955 = vmul.f32 %v3822, %v3822
    %v3956 = vmul.f32 %v3823, %v3823
    %v3957 = vmul.f32 %v3824, %v3824
    %v3958 = vmul.f32 %v3825, %v3825
    %v3959 = vmul.f32 %v3826, %v3826
    %v3960 = vmul.f32 %v3827, %v3827
    %v3961 = vmul.f32 %v3828, %v3828
    %v3962 = vmul.f32 %v3829, %v3829
    %v3963 = vmul.f32 %v3830, %v3830
    %v3964 = vmul.f32 %v3831, %v3831
    %v3965 = vmul.f32 %v3832, %v3832
    %v3966 = vmul.f32 %v3833, %v3833
    %v3967 = vmul.f32 %v3834, %v3834
    %v3968 = vmul.f32 %v3835, %v3835
    %v3969 = vmul.f32 %v3836, %v3836
    %v3970 = vmul.f32 %v3837, %v3837
    %v3971 = vmul.f32 %v3838, %v3838
    %v3972 = vmul.f32 %v3839, %v3839
    %v3973 = vmul.f32 %v3840, %v3840
    %v3974 = vmul.f32 %v3841, %v3841
    %v3975 = vmul.f32 %v3842, %v3842
    %v3976 = vmul.f32 %v3843, %v3843
    %v3977 = vmul.f32 %v3844, %v3844
    %v3978 = vmul.f32 %v3845, %v3845
    %v3979 = vmul.f32 %v3846, %v3846
    %v3980 = vmul.f32 %v3847, %v3847
    %v3981 = vmul.f32 %v3848, %v3848
    %v3982 = vmul.f32 %v3849, %v3849
    %v3983 = vmul.f32 %v3850, %v3850
    %v3984 = vmul.f32 %v3851, %v3851
    %v3985 = vmul.f32 %v3852, %v3852
    %v3986 = vmul.f32 %v3853, %v3853
    %v3987 = vmul.f32 %v3854, %v3854
    %v3988 = vmul.f32 %v3855, %v3855
    %v3989 = vmul.f32 %v3856, %v3856
    %v3990 = vmul.f32 %v3857, %v3857
    %v3991 = vmul.f32 %v3858, %v3858
    %v3992 = vmul.f32 %v3859, %v3859
    %v3993 = vmul.f32 %v3860, %v3860
    %v3994 = vmul.f32 %v3861, %v3861
    %v3995 = vmul.f32 %v3862, %v3862
    %v3996 = vmul.f32 %v3863, %v3863
    %v3997 = vmul.f32 %v3864, %v3864
    %v3998 = vmul.f32 %v3865, %v3865
    %v3999 = vmul.f32 %v3866, %v3866
    %v4000 = vmul.f32 %v3867, %v3867
    %v4001 = vmul.f32 %v3868, %v3868
    %v4002 = vadd.f32 %v3938, %v3939
    %v4003 = vadd.f32 %v4002, %v3940
    %v4004 = vadd.f32 %v4003, %v3941
    %v4005 = vadd.f32 %v4004, %v3942
    %v4006 = vadd.f32 %v4005, %v3943
    %v4007 = vadd.f32 %v4006, %v3944
    %v4008 = vadd.f32 %v4007, %v3945
    %v4009 = vadd.f32 %v4008, %v3946
    %v4010 = vadd.f32 %v4009, %v3947
    %v4011 = vadd.f32 %v4010, %v3948
    %v4012 = vadd.f32 %v4011, %v3949
    %v4013 = vadd.f32 %v4012, %v3950
    %v4014 = vadd.f32 %v4013, %v3951
    %v4015 = vadd.f32 %v4014, %v3952
    %v4016 = vadd.f32 %v4015, %v3953
    %v4017 = vadd.f32 %v4016, %v3954
    %v4018 = vadd.f32 %v4017, %v3955
    %v4019 = vadd.f32 %v4018, %v3956
    %v4020 = vadd.f32 %v4019, %v3957
    %v4021 = vadd.f32 %v4020, %v3958
    %v4022 = vadd.f32 %v4021, %v3959
    %v4023 = vadd.f32 %v4022, %v3960
    %v4024 = vadd.f32 %v4023, %v3961
    %v4025 = vadd.f32 %v4024, %v3962
    %v4026 = vadd.f32 %v4025, %v3963
    %v4027 = vadd.f32 %v4026, %v3964
    %v4028 = vadd.f32 %v4027, %v3965
    %v4029 = vadd.f32 %v4028, %v3966
    %v4030 = vadd.f32 %v4029, %v3967
    %v4031 = vadd.f32 %v4030, %v3968
    %v4032 = vadd.f32 %v4031, %v3969
    %v4033 = vadd.f32 %v4032, %v3970
    %v4034 = vadd.f32 %v4033, %v3971
    %v4035 = vadd.f32 %v4034, %v3972
    %v4036 = vadd.f32 %v4035, %v3973
    %v4037 = vadd.f32 %v4036, %v3974
    %v4038 = vadd.f32 %v4037, %v3975
    %v4039 = vadd.f32 %v4038, %v3976
    %v4040 = vadd.f32 %v4039, %v3977
    %v4041 = vadd.f32 %v4040, %v3978
    %v4042 = vadd.f32 %v4041, %v3979
    %v4043 = vadd.f32 %v4042, %v3980
    %v4044 = vadd.f32 %v4043, %v3981
    %v4045 = vadd.f32 %v4044, %v3982
    %v4046 = vadd.f32 %v4045, %v3983
    %v4047 = vadd.f32 %v4046, %v3984
    %v4048 = vadd.f32 %v4047, %v3985
    %v4049 = vadd.f32 %v4048, %v3986
    %v4050 = vadd.f32 %v4049, %v3987
    %v4051 = vadd.f32 %v4050, %v3988
    %v4052 = vadd.f32 %v4051, %v3989
    %v4053 = vadd.f32 %v4052, %v3990
    %v4054 = vadd.f32 %v4053, %v3991
    %v4055 = vadd.f32 %v4054, %v3992
    %v4056 = vadd.f32 %v4055, %v3993
    %v4057 = vadd.f32 %v4056, %v3994
    %v4058 = vadd.f32 %v4057, %v3995
    %v4059 = vadd.f32 %v4058, %v3996
    %v4060 = vadd.f32 %v4059, %v3997
    %v4061 = vadd.f32 %v4060, %v3998
    %v4062 = vadd.f32 %v4061, %v3999
    %v4063 = vadd.f32 %v4062, %v4000
    %v4064 = vadd.f32 %v4063, %v4001
    %v4065 = vrot.slane %v4064, 4
    %v4066 = vadd.f32 %v4064, %v4065
    %v4067 = vrot.slane %v4066, 2
    %v4068 = vadd.f32 %v4066, %v4067
    %v4069 = vrot.slane %v4068, 1
    %v4070 = vadd.f32 %v4068, %v4069
    %v4071 = vmul.f32 %v3937, 0.001953125
    %v4072 = vmul.f32 %v4070, 0.001953125
    %v4073 = vmul.f32 %v4071, %v4071
    %v4074 = vsub.f32 %v4072, %v4073
    %v4075 = vmax.f32 %v4074, 0.0
    %v4076 = vadd.f32 %v4075, 1e-05
    %v4077 = vrsqrt.pop %v4076
    %v4078 = vmul.f32 %v63, %v4077
    %v4079 = vmul.f32 %v4071, %v4078
    %v4080 = vsub.f32 %v64, %v4079
    %v4082 = vlaneseq
    %v4083 = vshrl.u32 %v4082, 7
    %v4084 = vsub.s32 0, %v4083
    %v4085 = vrot.slane %v4078, %v4084
    %v4087 = vmul.f32 %v3805, %v4085
    %v4088 = vmul.f32 %v3806, %v4085
    %v4089 = vmul.f32 %v3807, %v4085
    %v4090 = vmul.f32 %v3808, %v4085
    %v4091 = vmul.f32 %v3809, %v4085
    %v4092 = vmul.f32 %v3810, %v4085
    %v4093 = vmul.f32 %v3811, %v4085
    %v4094 = vmul.f32 %v3812, %v4085
    %v4095 = vmul.f32 %v3813, %v4085
    %v4096 = vmul.f32 %v3814, %v4085
    %v4097 = vmul.f32 %v3815, %v4085
    %v4098 = vmul.f32 %v3816, %v4085
    %v4099 = vmul.f32 %v3817, %v4085
    %v4100 = vmul.f32 %v3818, %v4085
    %v4101 = vmul.f32 %v3819, %v4085
    %v4102 = vmul.f32 %v3820, %v4085
    %v4103 = vmul.f32 %v3821, %v4085
    %v4104 = vmul.f32 %v3822, %v4085
    %v4105 = vmul.f32 %v3823, %v4085
    %v4106 = vmul.f32 %v3824, %v4085
    %v4107 = vmul.f32 %v3825, %v4085
    %v4108 = vmul.f32 %v3826, %v4085
    %v4109 = vmul.f32 %v3827, %v4085
    %v4110 = vmul.f32 %v3828, %v4085
    %v4111 = vmul.f32 %v3829, %v4085
    %v4112 = vmul.f32 %v3830, %v4085
    %v4113 = vmul.f32 %v3831, %v4085
    %v4114 = vmul.f32 %v3832, %v4085
    %v4115 = vmul.f32 %v3833, %v4085
    %v4116 = vmul.f32 %v3834, %v4085
    %v4117 = vmul.f32 %v3835, %v4085
    %v4118 = vmul.f32 %v3836, %v4085
    %v4119 = vmul.f32 %v3837, %v4085
    %v4120 = vmul.f32 %v3838, %v4085
    %v4121 = vmul.f32 %v3839, %v4085
    %v4122 = vmul.f32 %v3840, %v4085
    %v4123 = vmul.f32 %v3841, %v4085
    %v4124 = vmul.f32 %v3842, %v4085
    %v4125 = vmul.f32 %v3843, %v4085
    %v4126 = vmul.f32 %v3844, %v4085
    %v4127 = vmul.f32 %v3845, %v4085
    %v4128 = vmul.f32 %v3846, %v4085
    %v4129 = vmul.f32 %v3847, %v4085
    %v4130 = vmul.f32 %v3848, %v4085
    %v4131 = vmul.f32 %v3849, %v4085
    %v4132 = vmul.f32 %v3850, %v4085
    %v4133 = vmul.f32 %v3851, %v4085
    %v4134 = vmul.f32 %v3852, %v4085
    %v4135 = vmul.f32 %v3853, %v4085
    %v4136 = vmul.f32 %v3854, %v4085
    %v4137 = vmul.f32 %v3855, %v4085
    %v4138 = vmul.f32 %v3856, %v4085
    %v4139 = vmul.f32 %v3857, %v4085
    %v4140 = vmul.f32 %v3858, %v4085
    %v4141 = vmul.f32 %v3859, %v4085
    %v4142 = vmul.f32 %v3860, %v4085
    %v4143 = vmul.f32 %v3861, %v4085
    %v4144 = vmul.f32 %v3862, %v4085
    %v4145 = vmul.f32 %v3863, %v4085
    %v4146 = vmul.f32 %v3864, %v4085
    %v4147 = vmul.f32 %v3865, %v4085
    %v4148 = vmul.f32 %v3866, %v4085
    %v4149 = vmul.f32 %v3867, %v4085
    %v4150 = vmul.f32 %v3868, %v4085
    %v4152 = vlaneseq
    %v4153 = vshrl.u32 %v4152, 7
    %v4154 = vsub.s32 0, %v4153
    %v4155 = vrot.slane %v4080, %v4154
    %v4157 = vadd.f32 %v4087, %v4155
    %v4158 = vadd.f32 %v4088, %v4155
    %v4159 = vadd.f32 %v4089, %v4155
    %v4160 = vadd.f32 %v4090, %v4155
    %v4161 = vadd.f32 %v4091, %v4155
    %v4162 = vadd.f32 %v4092, %v4155
    %v4163 = vadd.f32 %v4093, %v4155
    %v4164 = vadd.f32 %v4094, %v4155
    %v4165 = vadd.f32 %v4095, %v4155
    %v4166 = vadd.f32 %v4096, %v4155
    %v4167 = vadd.f32 %v4097, %v4155
    %v4168 = vadd.f32 %v4098, %v4155
    %v4169 = vadd.f32 %v4099, %v4155
    %v4170 = vadd.f32 %v4100, %v4155
    %v4171 = vadd.f32 %v4101, %v4155
    %v4172 = vadd.f32 %v4102, %v4155
    %v4173 = vadd.f32 %v4103, %v4155
    %v4174 = vadd.f32 %v4104, %v4155
    %v4175 = vadd.f32 %v4105, %v4155
    %v4176 = vadd.f32 %v4106, %v4155
    %v4177 = vadd.f32 %v4107, %v4155
    %v4178 = vadd.f32 %v4108, %v4155
    %v4179 = vadd.f32 %v4109, %v4155
    %v4180 = vadd.f32 %v4110, %v4155
    %v4181 = vadd.f32 %v4111, %v4155
    %v4182 = vadd.f32 %v4112, %v4155
    %v4183 = vadd.f32 %v4113, %v4155
    %v4184 = vadd.f32 %v4114, %v4155
    %v4185 = vadd.f32 %v4115, %v4155
    %v4186 = vadd.f32 %v4116, %v4155
    %v4187 = vadd.f32 %v4117, %v4155
    %v4188 = vadd.f32 %v4118, %v4155
    %v4189 = vadd.f32 %v4119, %v4155
    %v4190 = vadd.f32 %v4120, %v4155
    %v4191 = vadd.f32 %v4121, %v4155
    %v4192 = vadd.f32 %v4122, %v4155
    %v4193 = vadd.f32 %v4123, %v4155
    %v4194 = vadd.f32 %v4124, %v4155
    %v4195 = vadd.f32 %v4125, %v4155
    %v4196 = vadd.f32 %v4126, %v4155
    %v4197 = vadd.f32 %v4127, %v4155
    %v4198 = vadd.f32 %v4128, %v4155
    %v4199 = vadd.f32 %v4129, %v4155
    %v4200 = vadd.f32 %v4130, %v4155
    %v4201 = vadd.f32 %v4131, %v4155
    %v4202 = vadd.f32 %v4132, %v4155
    %v4203 = vadd.f32 %v4133, %v4155
    %v4204 = vadd.f32 %v4134, %v4155
    %v4205 = vadd.f32 %v4135, %v4155
    %v4206 = vadd.f32 %v4136, %v4155
    %v4207 = vadd.f32 %v4137, %v4155
    %v4208 = vadd.f32 %v4138, %v4155
    %v4209 = vadd.f32 %v4139, %v4155
    %v4210 = vadd.f32 %v4140, %v4155
    %v4211 = vadd.f32 %v4141, %v4155
    %v4212 = vadd.f32 %v4142, %v4155
    %v4213 = vadd.f32 %v4143, %v4155
    %v4214 = vadd.f32 %v4144, %v4155
    %v4215 = vadd.f32 %v4145, %v4155
    %v4216 = vadd.f32 %v4146, %v4155
    %v4217 = vadd.f32 %v4147, %v4155
    %v4218 = vadd.f32 %v4148, %v4155
    %v4219 = vadd.f32 %v4149, %v4155
    %v4220 = vadd.f32 %v4150, %v4155
    %v4221 = vmax.f32 %v4157, 0.0
    %v4222 = vmax.f32 %v4158, 0.0
    %v4223 = vmax.f32 %v4159, 0.0
    %v4224 = vmax.f32 %v4160, 0.0
    %v4225 = vmax.f32 %v4161, 0.0
    %v4226 = vmax.f32 %v4162, 0.0
    %v4227 = vmax.f32 %v4163, 0.0
    %v4228 = vmax.f32 %v4164, 0.0
    %v4229 = vmax.f32 %v4165, 0.0
    %v4230 = vmax.f32 %v4166, 0.0
    %v4231 = vmax.f32 %v4167, 0.0
    %v4232 = vmax.f32 %v4168, 0.0
    %v4233 = vmax.f32 %v4169, 0.0
    %v4234 = vmax.f32 %v4170, 0.0
    %v4235 = vmax.f32 %v4171, 0.0
    %v4236 = vmax.f32 %v4172, 0.0
    %v4237 = vmax.f32 %v4173, 0.0
    %v4238 = vmax.f32 %v4174, 0.0
    %v4239 = vmax.f32 %v4175, 0.0
    %v4240 = vmax.f32 %v4176, 0.0
    %v4241 = vmax.f32 %v4177, 0.0
    %v4242 = vmax.f32 %v4178, 0.0
    %v4243 = vmax.f32 %v4179, 0.0
    %v4244 = vmax.f32 %v4180, 0.0
    %v4245 = vmax.f32 %v4181, 0.0
    %v4246 = vmax.f32 %v4182, 0.0
    %v4247 = vmax.f32 %v4183, 0.0
    %v4248 = vmax.f32 %v4184, 0.0
    %v4249 = vmax.f32 %v4185, 0.0
    %v4250 = vmax.f32 %v4186, 0.0
    %v4251 = vmax.f32 %v4187, 0.0
    %v4252 = vmax.f32 %v4188, 0.0
    %v4253 = vmax.f32 %v4189, 0.0
    %v4254 = vmax.f32 %v4190, 0.0
    %v4255 = vmax.f32 %v4191, 0.0
    %v4256 = vmax.f32 %v4192, 0.0
    %v4257 = vmax.f32 %v4193, 0.0
    %v4258 = vmax.f32 %v4194, 0.0
    %v4259 = vmax.f32 %v4195, 0.0
    %v4260 = vmax.f32 %v4196, 0.0
    %v4261 = vmax.f32 %v4197, 0.0
    %v4262 = vmax.f32 %v4198, 0.0
    %v4263 = vmax.f32 %v4199, 0.0
    %v4264 = vmax.f32 %v4200, 0.0
    %v4265 = vmax.f32 %v4201, 0.0
    %v4266 = vmax.f32 %v4202, 0.0
    %v4267 = vmax.f32 %v4203, 0.0
    %v4268 = vmax.f32 %v4204, 0.0
    %v4269 = vmax.f32 %v4205, 0.0
    %v4270 = vmax.f32 %v4206, 0.0
    %v4271 = vmax.f32 %v4207, 0.0
    %v4272 = vmax.f32 %v4208, 0.0
    %v4273 = vmax.f32 %v4209, 0.0
    %v4274 = vmax.f32 %v4210, 0.0
    %v4275 = vmax.f32 %v4211, 0.0
    %v4276 = vmax.f32 %v4212, 0.0
    %v4277 = vmax.f32 %v4213, 0.0
    %v4278 = vmax.f32 %v4214, 0.0
    %v4279 = vmax.f32 %v4215, 0.0
    %v4280 = vmax.f32 %v4216, 0.0
    %v4281 = vmax.f32 %v4217, 0.0
    %v4282 = vmax.f32 %v4218, 0.0
    %v4283 = vmax.f32 %v4219, 0.0
    %v4284 = vmax.f32 %v4220, 0.0
    %4285 = vst [vmem:[%s214 + $0x1] sm:$0xff] %v4221
    %4286 = vst [vmem:[%s214 + $0x9] sm:$0xff] %v4222
    %4287 = vst [vmem:[%s214 + $0x19] sm:$0xff] %v4223
    %4288 = vst [vmem:[%s214 + $0x21] sm:$0xff] %v4224
    %4289 = vst [vmem:[%s214 + $0x31] sm:$0xff] %v4225
    %4290 = vst [vmem:[%s214 + $0x39] sm:$0xff] %v4226
    %4291 = vst [vmem:[%s214 + $0x49] sm:$0xff] %v4227
    %4292 = vst [vmem:[%s214 + $0x51] sm:$0xff] %v4228
    %4293 = vst [vmem:[%s214 + $0x61] sm:$0xff] %v4229
    %4294 = vst [vmem:[%s214 + $0x69] sm:$0xff] %v4230
    %4295 = vst [vmem:[%s214 + $0x79] sm:$0xff] %v4231
    %4296 = vst [vmem:[%s214 + $0x81] sm:$0xff] %v4232
    %4297 = vst [vmem:[%s214 + $0x91] sm:$0xff] %v4233
    %4298 = vst [vmem:[%s214 + $0x99] sm:$0xff] %v4234
    %4299 = vst [vmem:[%s214 + $0xa9] sm:$0xff] %v4235
    %4300 = vst [vmem:[%s214 + $0xb1] sm:$0xff] %v4236
    %4301 = vst [vmem:[%s214 + $0xc1] sm:$0xff] %v4237
    %4302 = vst [vmem:[%s214 + $0xc9] sm:$0xff] %v4238
    %4303 = vst [vmem:[%s214 + $0xd9] sm:$0xff] %v4239
    %4304 = vst [vmem:[%s214 + $0xe1] sm:$0xff] %v4240
    %4305 = vst [vmem:[%s214 + $0xf1] sm:$0xff] %v4241
    %4306 = vst [vmem:[%s214 + $0xf9] sm:$0xff] %v4242
    %4307 = vst [vmem:[%s214 + $0x109] sm:$0xff] %v4243
    %4308 = vst [vmem:[%s214 + $0x111] sm:$0xff] %v4244
    %4309 = vst [vmem:[%s214 + $0x121] sm:$0xff] %v4245
    %4310 = vst [vmem:[%s214 + $0x129] sm:$0xff] %v4246
    %4311 = vst [vmem:[%s214 + $0x139] sm:$0xff] %v4247
    %4312 = vst [vmem:[%s214 + $0x141] sm:$0xff] %v4248
    %4313 = vst [vmem:[%s214 + $0x151] sm:$0xff] %v4249
    %4314 = vst [vmem:[%s214 + $0x159] sm:$0xff] %v4250
    %4315 = vst [vmem:[%s214 + $0x169] sm:$0xff] %v4251
    %4316 = vst [vmem:[%s214 + $0x171] sm:$0xff] %v4252
    %4317 = vst [vmem:[%s214 + $0x1b1] sm:$0xff] %v4253
    %4318 = vst [vmem:[%s214 + $0x1b9] sm:$0xff] %v4254
    %4319 = vst [vmem:[%s214 + $0x1c9] sm:$0xff] %v4255
    %4320 = vst [vmem:[%s214 + $0x1d1] sm:$0xff] %v4256
    %4321 = vst [vmem:[%s214 + $0x1e1] sm:$0xff] %v4257
    %4322 = vst [vmem:[%s214 + $0x1e9] sm:$0xff] %v4258
    %4323 = vst [vmem:[%s214 + $0x1f9] sm:$0xff] %v4259
    %4324 = vst [vmem:[%s214 + $0x201] sm:$0xff] %v4260
    %4325 = vst [vmem:[%s214 + $0x211] sm:$0xff] %v4261
    %4326 = vst [vmem:[%s214 + $0x219] sm:$0xff] %v4262
    %4327 = vst [vmem:[%s214 + $0x229] sm:$0xff] %v4263
    %4328 = vst [vmem:[%s214 + $0x231] sm:$0xff] %v4264
    %4329 = vst [vmem:[%s214 + $0x241] sm:$0xff] %v4265
    %4330 = vst [vmem:[%s214 + $0x249] sm:$0xff] %v4266
    %4331 = vst [vmem:[%s214 + $0x259] sm:$0xff] %v4267
    %4332 = vst [vmem:[%s214 + $0x261] sm:$0xff] %v4268
    %4333 = vst [vmem:[%s214 + $0x271] sm:$0xff] %v4269
    %4334 = vst [vmem:[%s214 + $0x279] sm:$0xff] %v4270
    %4335 = vst [vmem:[%s214 + $0x289] sm:$0xff] %v4271
    %4336 = vst [vmem:[%s214 + $0x291] sm:$0xff] %v4272
    %4337 = vst [vmem:[%s214 + $0x2a1] sm:$0xff] %v4273
    %4338 = vst [vmem:[%s214 + $0x2a9] sm:$0xff] %v4274
    %4339 = vst [vmem:[%s214 + $0x2b9] sm:$0xff] %v4275
    %4340 = vst [vmem:[%s214 + $0x2c1] sm:$0xff] %v4276
    %4341 = vst [vmem:[%s214 + $0x2d1] sm:$0xff] %v4277
    %4342 = vst [vmem:[%s214 + $0x2d9] sm:$0xff] %v4278
    %4343 = vst [vmem:[%s214 + $0x2e9] sm:$0xff] %v4279
    %4344 = vst [vmem:[%s214 + $0x2f1] sm:$0xff] %v4280
    %4345 = vst [vmem:[%s214 + $0x301] sm:$0xff] %v4281
    %4346 = vst [vmem:[%s214 + $0x309] sm:$0xff] %v4282
    %4347 = vst [vmem:[%s214 + $0x319] sm:$0xff] %v4283
    %4348 = vst [vmem:[%s214 + $0x321] sm:$0xff] %v4284
    %v4349 = vld [vmem:[#allocation2] sm:$0xff]
    %v4350 = vld [vmem:[#allocation2 + $0x8] sm:$0xff]
    %v4351 = vld [vmem:[#allocation2 + $0x18] sm:$0xff]
    %v4352 = vld [vmem:[#allocation2 + $0x20] sm:$0xff]
    %v4353 = vld [vmem:[#allocation2 + $0x30] sm:$0xff]
    %v4354 = vld [vmem:[#allocation2 + $0x38] sm:$0xff]
    %v4355 = vld [vmem:[#allocation2 + $0x48] sm:$0xff]
    %v4356 = vld [vmem:[#allocation2 + $0x50] sm:$0xff]
    %v4357 = vld [vmem:[#allocation2 + $0x60] sm:$0xff]
    %v4358 = vld [vmem:[#allocation2 + $0x68] sm:$0xff]
    %v4359 = vld [vmem:[#allocation2 + $0x78] sm:$0xff]
    %v4360 = vld [vmem:[#allocation2 + $0x80] sm:$0xff]
    %v4361 = vld [vmem:[#allocation2 + $0x90] sm:$0xff]
    %v4362 = vld [vmem:[#allocation2 + $0x98] sm:$0xff]
    %v4363 = vld [vmem:[#allocation2 + $0xa8] sm:$0xff]
    %v4364 = vld [vmem:[#allocation2 + $0xb0] sm:$0xff]
    %v4365 = vld [vmem:[#allocation2 + $0xc0] sm:$0xff]
    %v4366 = vld [vmem:[#allocation2 + $0xc8] sm:$0xff]
    %v4367 = vld [vmem:[#allocation2 + $0xd8] sm:$0xff]
    %v4368 = vld [vmem:[#allocation2 + $0xe0] sm:$0xff]
    %v4369 = vld [vmem:[#allocation2 + $0xf0] sm:$0xff]
    %v4370 = vld [vmem:[#allocation2 + $0xf8] sm:$0xff]
    %v4371 = vld [vmem:[#allocation2 + $0x108] sm:$0xff]
    %v4372 = vld [vmem:[#allocation2 + $0x110] sm:$0xff]
    %v4373 = vld [vmem:[#allocation2 + $0x120] sm:$0xff]
    %v4374 = vld [vmem:[#allocation2 + $0x128] sm:$0xff]
    %v4375 = vld [vmem:[#allocation2 + $0x138] sm:$0xff]
    %v4376 = vld [vmem:[#allocation2 + $0x140] sm:$0xff]
    %v4377 = vld [vmem:[#allocation2 + $0x150] sm:$0xff]
    %v4378 = vld [vmem:[#allocation2 + $0x158] sm:$0xff]
    %v4379 = vld [vmem:[#allocation2 + $0x168] sm:$0xff]
    %v4380 = vld [vmem:[#allocation2 + $0x170] sm:$0xff]
    %v4381 = vld [vmem:[#allocation2 + $0x1b0] sm:$0xff]
    %v4382 = vld [vmem:[#allocation2 + $0x1b8] sm:$0xff]
    %v4383 = vld [vmem:[#allocation2 + $0x1c8] sm:$0xff]
    %v4384 = vld [vmem:[#allocation2 + $0x1d0] sm:$0xff]
    %v4385 = vld [vmem:[#allocation2 + $0x1e0] sm:$0xff]
    %v4386 = vld [vmem:[#allocation2 + $0x1e8] sm:$0xff]
    %v4387 = vld [vmem:[#allocation2 + $0x1f8] sm:$0xff]
    %v4388 = vld [vmem:[#allocation2 + $0x200] sm:$0xff]
    %v4389 = vld [vmem:[#allocation2 + $0x210] sm:$0xff]
    %v4390 = vld [vmem:[#allocation2 + $0x218] sm:$0xff]
    %v4391 = vld [vmem:[#allocation2 + $0x228] sm:$0xff]
    %v4392 = vld [vmem:[#allocation2 + $0x230] sm:$0xff]
    %v4393 = vld [vmem:[#allocation2 + $0x240] sm:$0xff]
    %v4394 = vld [vmem:[#allocation2 + $0x248] sm:$0xff]
    %v4395 = vld [vmem:[#allocation2 + $0x258] sm:$0xff]
    %v4396 = vld [vmem:[#allocation2 + $0x260] sm:$0xff]
    %v4397 = vld [vmem:[#allocation2 + $0x270] sm:$0xff]
    %v4398 = vld [vmem:[#allocation2 + $0x278] sm:$0xff]
    %v4399 = vld [vmem:[#allocation2 + $0x288] sm:$0xff]
    %v4400 = vld [vmem:[#allocation2 + $0x290] sm:$0xff]
    %v4401 = vld [vmem:[#allocation2 + $0x2a0] sm:$0xff]
    %v4402 = vld [vmem:[#allocation2 + $0x2a8] sm:$0xff]
    %v4403 = vld [vmem:[#allocation2 + $0x2b8] sm:$0xff]
    %v4404 = vld [vmem:[#allocation2 + $0x2c0] sm:$0xff]
    %v4405 = vld [vmem:[#allocation2 + $0x2d0] sm:$0xff]
    %v4406 = vld [vmem:[#allocation2 + $0x2d8] sm:$0xff]
    %v4407 = vld [vmem:[#allocation2 + $0x2e8] sm:$0xff]
    %v4408 = vld [vmem:[#allocation2 + $0x2f0] sm:$0xff]
    %v4409 = vld [vmem:[#allocation2 + $0x300] sm:$0xff]
    %v4410 = vld [vmem:[#allocation2 + $0x308] sm:$0xff]
    %v4411 = vld [vmem:[#allocation2 + $0x318] sm:$0xff]
    %v4412 = vld [vmem:[#allocation2 + $0x320] sm:$0xff]
    %v4413 = vpack.c.bf16 %v4350, %v4349
    %v4414 = vpack.c.bf16 %v4352, %v4351
    %v4415 = vpack.c.bf16 %v4354, %v4353
    %v4416 = vpack.c.bf16 %v4356, %v4355
    %v4417 = vpack.c.bf16 %v4358, %v4357
    %v4418 = vpack.c.bf16 %v4360, %v4359
    %v4419 = vpack.c.bf16 %v4362, %v4361
    %v4420 = vpack.c.bf16 %v4364, %v4363
    %v4421 = vpack.c.bf16 %v4366, %v4365
    %v4422 = vpack.c.bf16 %v4368, %v4367
    %v4423 = vpack.c.bf16 %v4370, %v4369
    %v4424 = vpack.c.bf16 %v4372, %v4371
    %v4425 = vpack.c.bf16 %v4374, %v4373
    %v4426 = vpack.c.bf16 %v4376, %v4375
    %v4427 = vpack.c.bf16 %v4378, %v4377
    %v4428 = vpack.c.bf16 %v4380, %v4379
    %v4429 = vpack.c.bf16 %v4382, %v4381
    %v4430 = vpack.c.bf16 %v4384, %v4383
    %v4431 = vpack.c.bf16 %v4386, %v4385
    %v4432 = vpack.c.bf16 %v4388, %v4387
    %v4433 = vpack.c.bf16 %v4390, %v4389
    %v4434 = vpack.c.bf16 %v4392, %v4391
    %v4435 = vpack.c.bf16 %v4394, %v4393
    %v4436 = vpack.c.bf16 %v4396, %v4395
    %v4437 = vpack.c.bf16 %v4398, %v4397
    %v4438 = vpack.c.bf16 %v4400, %v4399
    %v4439 = vpack.c.bf16 %v4402, %v4401
    %v4440 = vpack.c.bf16 %v4404, %v4403
    %v4441 = vpack.c.bf16 %v4406, %v4405
    %v4442 = vpack.c.bf16 %v4408, %v4407
    %v4443 = vpack.c.bf16 %v4410, %v4409
    %v4444 = vpack.c.bf16 %v4412, %v4411
    %4445 = vst [vmem:[#allocation3] sm:$0xff] %v4413
    %4446 = vst [vmem:[#allocation3 + $0x48] sm:$0xff] %v4414
    %4447 = vst [vmem:[#allocation3 + $0x90] sm:$0xff] %v4415
    %4448 = vst [vmem:[#allocation3 + $0xd8] sm:$0xff] %v4416
    %4449 = vst [vmem:[#allocation3 + $0x120] sm:$0xff] %v4417
    %4450 = vst [vmem:[#allocation3 + $0x168] sm:$0xff] %v4418
    %4451 = vst [vmem:[#allocation3 + $0x1b0] sm:$0xff] %v4419
    %4452 = vst [vmem:[#allocation3 + $0x1f8] sm:$0xff] %v4420
    %4453 = vst [vmem:[#allocation3 + $0x240] sm:$0xff] %v4421
    %4454 = vst [vmem:[#allocation3 + $0x288] sm:$0xff] %v4422
    %4455 = vst [vmem:[#allocation3 + $0x2d0] sm:$0xff] %v4423
    %4456 = vst [vmem:[#allocation3 + $0x318] sm:$0xff] %v4424
    %4457 = vst [vmem:[#allocation3 + $0x360] sm:$0xff] %v4425
    %4458 = vst [vmem:[#allocation3 + $0x3a8] sm:$0xff] %v4426
    %4459 = vst [vmem:[#allocation3 + $0x3f0] sm:$0xff] %v4427
    %4460 = vst [vmem:[#allocation3 + $0x438] sm:$0xff] %v4428
    %4461 = vst [vmem:[#allocation3 + $0x480] sm:$0xff] %v4429
    %4462 = vst [vmem:[#allocation3 + $0x4c8] sm:$0xff] %v4430
    %4463 = vst [vmem:[#allocation3 + $0x510] sm:$0xff] %v4431
    %4464 = vst [vmem:[#allocation3 + $0x558] sm:$0xff] %v4432
    %4465 = vst [vmem:[#allocation3 + $0x5a0] sm:$0xff] %v4433
    %4466 = vst [vmem:[#allocation3 + $0x5e8] sm:$0xff] %v4434
    %4467 = vst [vmem:[#allocation3 + $0x630] sm:$0xff] %v4435
    %4468 = vst [vmem:[#allocation3 + $0x678] sm:$0xff] %v4436
    %4469 = vst [vmem:[#allocation3 + $0x6c0] sm:$0xff] %v4437
    %4470 = vst [vmem:[#allocation3 + $0x708] sm:$0xff] %v4438
    %4471 = vst [vmem:[#allocation3 + $0x750] sm:$0xff] %v4439
    %4472 = vst [vmem:[#allocation3 + $0x798] sm:$0xff] %v4440
    %4473 = vst [vmem:[#allocation3 + $0x7e0] sm:$0xff] %v4441
    %4474 = vst [vmem:[#allocation3 + $0x828] sm:$0xff] %v4442
    %4475 = vst [vmem:[#allocation3 + $0x870] sm:$0xff] %v4443
    %4476 = vst [vmem:[#allocation3 + $0x8b8] sm:$0xff] %v4444
    %v4477 = vld [vmem:[#allocation2 + $0x1] sm:$0xff]
    %v4478 = vld [vmem:[#allocation2 + $0x9] sm:$0xff]
    %v4479 = vld [vmem:[#allocation2 + $0x19] sm:$0xff]
    %v4480 = vld [vmem:[#allocation2 + $0x21] sm:$0xff]
    %v4481 = vld [vmem:[#allocation2 + $0x31] sm:$0xff]
    %v4482 = vld [vmem:[#allocation2 + $0x39] sm:$0xff]
    %v4483 = vld [vmem:[#allocation2 + $0x49] sm:$0xff]
    %v4484 = vld [vmem:[#allocation2 + $0x51] sm:$0xff]
    %v4485 = vld [vmem:[#allocation2 + $0x61] sm:$0xff]
    %v4486 = vld [vmem:[#allocation2 + $0x69] sm:$0xff]
    %v4487 = vld [vmem:[#allocation2 + $0x79] sm:$0xff]
    %v4488 = vld [vmem:[#allocation2 + $0x81] sm:$0xff]
    %v4489 = vld [vmem:[#allocation2 + $0x91] sm:$0xff]
    %v4490 = vld [vmem:[#allocation2 + $0x99] sm:$0xff]
    %v4491 = vld [vmem:[#allocation2 + $0xa9] sm:$0xff]
    %v4492 = vld [vmem:[#allocation2 + $0xb1] sm:$0xff]
    %v4493 = vld [vmem:[#allocation2 + $0xc1] sm:$0xff]
    %v4494 = vld [vmem:[#allocation2 + $0xc9] sm:$0xff]
    %v4495 = vld [vmem:[#allocation2 + $0xd9] sm:$0xff]
    %v4496 = vld [vmem:[#allocation2 + $0xe1] sm:$0xff]
    %v4497 = vld [vmem:[#allocation2 + $0xf1] sm:$0xff]
    %v4498 = vld [vmem:[#allocation2 + $0xf9] sm:$0xff]
    %v4499 = vld [vmem:[#allocation2 + $0x109] sm:$0xff]
    %v4500 = vld [vmem:[#allocation2 + $0x111] sm:$0xff]
    %v4501 = vld [vmem:[#allocation2 + $0x121] sm:$0xff]
    %v4502 = vld [vmem:[#allocation2 + $0x129] sm:$0xff]
    %v4503 = vld [vmem:[#allocation2 + $0x139] sm:$0xff]
    %v4504 = vld [vmem:[#allocation2 + $0x141] sm:$0xff]
    %v4505 = vld [vmem:[#allocation2 + $0x151] sm:$0xff]
    %v4506 = vld [vmem:[#allocation2 + $0x159] sm:$0xff]
    %v4507 = vld [vmem:[#allocation2 + $0x169] sm:$0xff]
    %v4508 = vld [vmem:[#allocation2 + $0x171] sm:$0xff]
    %v4509 = vld [vmem:[#allocation2 + $0x1b1] sm:$0xff]
    %v4510 = vld [vmem:[#allocation2 + $0x1b9] sm:$0xff]
    %v4511 = vld [vmem:[#allocation2 + $0x1c9] sm:$0xff]
    %v4512 = vld [vmem:[#allocation2 + $0x1d1] sm:$0xff]
    %v4513 = vld [vmem:[#allocation2 + $0x1e1] sm:$0xff]
    %v4514 = vld [vmem:[#allocation2 + $0x1e9] sm:$0xff]
    %v4515 = vld [vmem:[#allocation2 + $0x1f9] sm:$0xff]
    %v4516 = vld [vmem:[#allocation2 + $0x201] sm:$0xff]
    %v4517 = vld [vmem:[#allocation2 + $0x211] sm:$0xff]
    %v4518 = vld [vmem:[#allocation2 + $0x219] sm:$0xff]
    %v4519 = vld [vmem:[#allocation2 + $0x229] sm:$0xff]
    %v4520 = vld [vmem:[#allocation2 + $0x231] sm:$0xff]
    %v4521 = vld [vmem:[#allocation2 + $0x241] sm:$0xff]
    %v4522 = vld [vmem:[#allocation2 + $0x249] sm:$0xff]
    %v4523 = vld [vmem:[#allocation2 + $0x259] sm:$0xff]
    %v4524 = vld [vmem:[#allocation2 + $0x261] sm:$0xff]
    %v4525 = vld [vmem:[#allocation2 + $0x271] sm:$0xff]
    %v4526 = vld [vmem:[#allocation2 + $0x279] sm:$0xff]
    %v4527 = vld [vmem:[#allocation2 + $0x289] sm:$0xff]
    %v4528 = vld [vmem:[#allocation2 + $0x291] sm:$0xff]
    %v4529 = vld [vmem:[#allocation2 + $0x2a1] sm:$0xff]
    %v4530 = vld [vmem:[#allocation2 + $0x2a9] sm:$0xff]
    %v4531 = vld [vmem:[#allocation2 + $0x2b9] sm:$0xff]
    %v4532 = vld [vmem:[#allocation2 + $0x2c1] sm:$0xff]
    %v4533 = vld [vmem:[#allocation2 + $0x2d1] sm:$0xff]
    %v4534 = vld [vmem:[#allocation2 + $0x2d9] sm:$0xff]
    %v4535 = vld [vmem:[#allocation2 + $0x2e9] sm:$0xff]
    %v4536 = vld [vmem:[#allocation2 + $0x2f1] sm:$0xff]
    %v4537 = vld [vmem:[#allocation2 + $0x301] sm:$0xff]
    %v4538 = vld [vmem:[#allocation2 + $0x309] sm:$0xff]
    %v4539 = vld [vmem:[#allocation2 + $0x319] sm:$0xff]
    %v4540 = vld [vmem:[#allocation2 + $0x321] sm:$0xff]
    %v4541 = vpack.c.bf16 %v4478, %v4477
    %v4542 = vpack.c.bf16 %v4480, %v4479
    %v4543 = vpack.c.bf16 %v4482, %v4481
    %v4544 = vpack.c.bf16 %v4484, %v4483
    %v4545 = vpack.c.bf16 %v4486, %v4485
    %v4546 = vpack.c.bf16 %v4488, %v4487
    %v4547 = vpack.c.bf16 %v4490, %v4489
    %v4548 = vpack.c.bf16 %v4492, %v4491
    %v4549 = vpack.c.bf16 %v4494, %v4493
    %v4550 = vpack.c.bf16 %v4496, %v4495
    %v4551 = vpack.c.bf16 %v4498, %v4497
    %v4552 = vpack.c.bf16 %v4500, %v4499
    %v4553 = vpack.c.bf16 %v4502, %v4501
    %v4554 = vpack.c.bf16 %v4504, %v4503
    %v4555 = vpack.c.bf16 %v4506, %v4505
    %v4556 = vpack.c.bf16 %v4508, %v4507
    %v4557 = vpack.c.bf16 %v4510, %v4509
    %v4558 = vpack.c.bf16 %v4512, %v4511
    %v4559 = vpack.c.bf16 %v4514, %v4513
    %v4560 = vpack.c.bf16 %v4516, %v4515
    %v4561 = vpack.c.bf16 %v4518, %v4517
    %v4562 = vpack.c.bf16 %v4520, %v4519
    %v4563 = vpack.c.bf16 %v4522, %v4521
    %v4564 = vpack.c.bf16 %v4524, %v4523
    %v4565 = vpack.c.bf16 %v4526, %v4525
    %v4566 = vpack.c.bf16 %v4528, %v4527
    %v4567 = vpack.c.bf16 %v4530, %v4529
    %v4568 = vpack.c.bf16 %v4532, %v4531
    %v4569 = vpack.c.bf16 %v4534, %v4533
    %v4570 = vpack.c.bf16 %v4536, %v4535
    %v4571 = vpack.c.bf16 %v4538, %v4537
    %v4572 = vpack.c.bf16 %v4540, %v4539
    %4573 = vst [vmem:[#allocation3 + $0x8] sm:$0xff] %v4541
    %4574 = vst [vmem:[#allocation3 + $0x50] sm:$0xff] %v4542
    %4575 = vst [vmem:[#allocation3 + $0x98] sm:$0xff] %v4543
    %4576 = vst [vmem:[#allocation3 + $0xe0] sm:$0xff] %v4544
    %4577 = vst [vmem:[#allocation3 + $0x128] sm:$0xff] %v4545
    %4578 = vst [vmem:[#allocation3 + $0x170] sm:$0xff] %v4546
    %4579 = vst [vmem:[#allocation3 + $0x1b8] sm:$0xff] %v4547
    %4580 = vst [vmem:[#allocation3 + $0x200] sm:$0xff] %v4548
    %4581 = vst [vmem:[#allocation3 + $0x248] sm:$0xff] %v4549
    %4582 = vst [vmem:[#allocation3 + $0x290] sm:$0xff] %v4550
    %4583 = vst [vmem:[#allocation3 + $0x2d8] sm:$0xff] %v4551
    %4584 = vst [vmem:[#allocation3 + $0x320] sm:$0xff] %v4552
    %4585 = vst [vmem:[#allocation3 + $0x368] sm:$0xff] %v4553
    %4586 = vst [vmem:[#allocation3 + $0x3b0] sm:$0xff] %v4554
    %4587 = vst [vmem:[#allocation3 + $0x3f8] sm:$0xff] %v4555
    %4588 = vst [vmem:[#allocation3 + $0x440] sm:$0xff] %v4556
    %4589 = vst [vmem:[#allocation3 + $0x488] sm:$0xff] %v4557
    %4590 = vst [vmem:[#allocation3 + $0x4d0] sm:$0xff] %v4558
    %4591 = vst [vmem:[#allocation3 + $0x518] sm:$0xff] %v4559
    %4592 = vst [vmem:[#allocation3 + $0x560] sm:$0xff] %v4560
    %4593 = vst [vmem:[#allocation3 + $0x5a8] sm:$0xff] %v4561
    %4594 = vst [vmem:[#allocation3 + $0x5f0] sm:$0xff] %v4562
    %4595 = vst [vmem:[#allocation3 + $0x638] sm:$0xff] %v4563
    %4596 = vst [vmem:[#allocation3 + $0x680] sm:$0xff] %v4564
    %4597 = vst [vmem:[#allocation3 + $0x6c8] sm:$0xff] %v4565
    %4598 = vst [vmem:[#allocation3 + $0x710] sm:$0xff] %v4566
    %4599 = vst [vmem:[#allocation3 + $0x758] sm:$0xff] %v4567
    %4600 = vst [vmem:[#allocation3 + $0x7a0] sm:$0xff] %v4568
    %4601 = vst [vmem:[#allocation3 + $0x7e8] sm:$0xff] %v4569
    %4602 = vst [vmem:[#allocation3 + $0x830] sm:$0xff] %v4570
    %4603 = vst [vmem:[#allocation3 + $0x878] sm:$0xff] %v4571
    %4604 = vst [vmem:[#allocation3 + $0x8c0] sm:$0xff] %v4572
    %v4605 = vld [vmem:[#allocation2 + $0x2] sm:$0xff]
    %v4606 = vld [vmem:[#allocation2 + $0xa] sm:$0xff]
    %v4607 = vld [vmem:[#allocation2 + $0x1a] sm:$0xff]
    %v4608 = vld [vmem:[#allocation2 + $0x22] sm:$0xff]
    %v4609 = vld [vmem:[#allocation2 + $0x32] sm:$0xff]
    %v4610 = vld [vmem:[#allocation2 + $0x3a] sm:$0xff]
    %v4611 = vld [vmem:[#allocation2 + $0x4a] sm:$0xff]
    %v4612 = vld [vmem:[#allocation2 + $0x52] sm:$0xff]
    %v4613 = vld [vmem:[#allocation2 + $0x62] sm:$0xff]
    %v4614 = vld [vmem:[#allocation2 + $0x6a] sm:$0xff]
    %v4615 = vld [vmem:[#allocation2 + $0x7a] sm:$0xff]
    %v4616 = vld [vmem:[#allocation2 + $0x82] sm:$0xff]
    %v4617 = vld [vmem:[#allocation2 + $0x92] sm:$0xff]
    %v4618 = vld [vmem:[#allocation2 + $0x9a] sm:$0xff]
    %v4619 = vld [vmem:[#allocation2 + $0xaa] sm:$0xff]
    %v4620 = vld [vmem:[#allocation2 + $0xb2] sm:$0xff]
    %v4621 = vld [vmem:[#allocation2 + $0xc2] sm:$0xff]
    %v4622 = vld [vmem:[#allocation2 + $0xca] sm:$0xff]
    %v4623 = vld [vmem:[#allocation2 + $0xda] sm:$0xff]
    %v4624 = vld [vmem:[#allocation2 + $0xe2] sm:$0xff]
    %v4625 = vld [vmem:[#allocation2 + $0xf2] sm:$0xff]
    %v4626 = vld [vmem:[#allocation2 + $0xfa] sm:$0xff]
    %v4627 = vld [vmem:[#allocation2 + $0x10a] sm:$0xff]
    %v4628 = vld [vmem:[#allocation2 + $0x112] sm:$0xff]
    %v4629 = vld [vmem:[#allocation2 + $0x122] sm:$0xff]
    %v4630 = vld [vmem:[#allocation2 + $0x12a] sm:$0xff]
    %v4631 = vld [vmem:[#allocation2 + $0x13a] sm:$0xff]
    %v4632 = vld [vmem:[#allocation2 + $0x142] sm:$0xff]
    %v4633 = vld [vmem:[#allocation2 + $0x152] sm:$0xff]
    %v4634 = vld [vmem:[#allocation2 + $0x15a] sm:$0xff]
    %v4635 = vld [vmem:[#allocation2 + $0x16a] sm:$0xff]
    %v4636 = vld [vmem:[#allocation2 + $0x172] sm:$0xff]
    %v4637 = vld [vmem:[#allocation2 + $0x1b2] sm:$0xff]
    %v4638 = vld [vmem:[#allocation2 + $0x1ba] sm:$0xff]
    %v4639 = vld [vmem:[#allocation2 + $0x1ca] sm:$0xff]
    %v4640 = vld [vmem:[#allocation2 + $0x1d2] sm:$0xff]
    %v4641 = vld [vmem:[#allocation2 + $0x1e2] sm:$0xff]
    %v4642 = vld [vmem:[#allocation2 + $0x1ea] sm:$0xff]
    %v4643 = vld [vmem:[#allocation2 + $0x1fa] sm:$0xff]
    %v4644 = vld [vmem:[#allocation2 + $0x202] sm:$0xff]
    %v4645 = vld [vmem:[#allocation2 + $0x212] sm:$0xff]
    %v4646 = vld [vmem:[#allocation2 + $0x21a] sm:$0xff]
    %v4647 = vld [vmem:[#allocation2 + $0x22a] sm:$0xff]
    %v4648 = vld [vmem:[#allocation2 + $0x232] sm:$0xff]
    %v4649 = vld [vmem:[#allocation2 + $0x242] sm:$0xff]
    %v4650 = vld [vmem:[#allocation2 + $0x24a] sm:$0xff]
    %v4651 = vld [vmem:[#allocation2 + $0x25a] sm:$0xff]
    %v4652 = vld [vmem:[#allocation2 + $0x262] sm:$0xff]
    %v4653 = vld [vmem:[#allocation2 + $0x272] sm:$0xff]
    %v4654 = vld [vmem:[#allocation2 + $0x27a] sm:$0xff]
    %v4655 = vld [vmem:[#allocation2 + $0x28a] sm:$0xff]
    %v4656 = vld [vmem:[#allocation2 + $0x292] sm:$0xff]
    %v4657 = vld [vmem:[#allocation2 + $0x2a2] sm:$0xff]
    %v4658 = vld [vmem:[#allocation2 + $0x2aa] sm:$0xff]
    %v4659 = vld [vmem:[#allocation2 + $0x2ba] sm:$0xff]
    %v4660 = vld [vmem:[#allocation2 + $0x2c2] sm:$0xff]
    %v4661 = vld [vmem:[#allocation2 + $0x2d2] sm:$0xff]
    %v4662 = vld [vmem:[#allocation2 + $0x2da] sm:$0xff]
    %v4663 = vld [vmem:[#allocation2 + $0x2ea] sm:$0xff]
    %v4664 = vld [vmem:[#allocation2 + $0x2f2] sm:$0xff]
    %v4665 = vld [vmem:[#allocation2 + $0x302] sm:$0xff]
    %v4666 = vld [vmem:[#allocation2 + $0x30a] sm:$0xff]
    %v4667 = vld [vmem:[#allocation2 + $0x31a] sm:$0xff]
    %v4668 = vld [vmem:[#allocation2 + $0x322] sm:$0xff]
    %v4669 = vpack.c.bf16 %v4606, %v4605
    %v4670 = vpack.c.bf16 %v4608, %v4607
    %v4671 = vpack.c.bf16 %v4610, %v4609
    %v4672 = vpack.c.bf16 %v4612, %v4611
    %v4673 = vpack.c.bf16 %v4614, %v4613
    %v4674 = vpack.c.bf16 %v4616, %v4615
    %v4675 = vpack.c.bf16 %v4618, %v4617
    %v4676 = vpack.c.bf16 %v4620, %v4619
    %v4677 = vpack.c.bf16 %v4622, %v4621
    %v4678 = vpack.c.bf16 %v4624, %v4623
    %v4679 = vpack.c.bf16 %v4626, %v4625
    %v4680 = vpack.c.bf16 %v4628, %v4627
    %v4681 = vpack.c.bf16 %v4630, %v4629
    %v4682 = vpack.c.bf16 %v4632, %v4631
    %v4683 = vpack.c.bf16 %v4634, %v4633
    %v4684 = vpack.c.bf16 %v4636, %v4635
    %v4685 = vpack.c.bf16 %v4638, %v4637
    %v4686 = vpack.c.bf16 %v4640, %v4639
    %v4687 = vpack.c.bf16 %v4642, %v4641
    %v4688 = vpack.c.bf16 %v4644, %v4643
    %v4689 = vpack.c.bf16 %v4646, %v4645
    %v4690 = vpack.c.bf16 %v4648, %v4647
    %v4691 = vpack.c.bf16 %v4650, %v4649
    %v4692 = vpack.c.bf16 %v4652, %v4651
    %v4693 = vpack.c.bf16 %v4654, %v4653
    %v4694 = vpack.c.bf16 %v4656, %v4655
    %v4695 = vpack.c.bf16 %v4658, %v4657
    %v4696 = vpack.c.bf16 %v4660, %v4659
    %v4697 = vpack.c.bf16 %v4662, %v4661
    %v4698 = vpack.c.bf16 %v4664, %v4663
    %v4699 = vpack.c.bf16 %v4666, %v4665
    %v4700 = vpack.c.bf16 %v4668, %v4667
    %4701 = vst [vmem:[#allocation3 + $0x10] sm:$0xff] %v4669
    %4702 = vst [vmem:[#allocation3 + $0x58] sm:$0xff] %v4670
    %4703 = vst [vmem:[#allocation3 + $0xa0] sm:$0xff] %v4671
    %4704 = vst [vmem:[#allocation3 + $0xe8] sm:$0xff] %v4672
    %4705 = vst [vmem:[#allocation3 + $0x130] sm:$0xff] %v4673
    %4706 = vst [vmem:[#allocation3 + $0x178] sm:$0xff] %v4674
    %4707 = vst [vmem:[#allocation3 + $0x1c0] sm:$0xff] %v4675
    %4708 = vst [vmem:[#allocation3 + $0x208] sm:$0xff] %v4676
    %4709 = vst [vmem:[#allocation3 + $0x250] sm:$0xff] %v4677
    %4710 = vst [vmem:[#allocation3 + $0x298] sm:$0xff] %v4678
    %4711 = vst [vmem:[#allocation3 + $0x2e0] sm:$0xff] %v4679
    %4712 = vst [vmem:[#allocation3 + $0x328] sm:$0xff] %v4680
    %4713 = vst [vmem:[#allocation3 + $0x370] sm:$0xff] %v4681
    %4714 = vst [vmem:[#allocation3 + $0x3b8] sm:$0xff] %v4682
    %4715 = vst [vmem:[#allocation3 + $0x400] sm:$0xff] %v4683
    %4716 = vst [vmem:[#allocation3 + $0x448] sm:$0xff] %v4684
    %4717 = vst [vmem:[#allocation3 + $0x490] sm:$0xff] %v4685
    %4718 = vst [vmem:[#allocation3 + $0x4d8] sm:$0xff] %v4686
    %4719 = vst [vmem:[#allocation3 + $0x520] sm:$0xff] %v4687
    %4720 = vst [vmem:[#allocation3 + $0x568] sm:$0xff] %v4688
    %4721 = vst [vmem:[#allocation3 + $0x5b0] sm:$0xff] %v4689
    %4722 = vst [vmem:[#allocation3 + $0x5f8] sm:$0xff] %v4690
    %4723 = vst [vmem:[#allocation3 + $0x640] sm:$0xff] %v4691
    %4724 = vst [vmem:[#allocation3 + $0x688] sm:$0xff] %v4692
    %4725 = vst [vmem:[#allocation3 + $0x6d0] sm:$0xff] %v4693
    %4726 = vst [vmem:[#allocation3 + $0x718] sm:$0xff] %v4694
    %4727 = vst [vmem:[#allocation3 + $0x760] sm:$0xff] %v4695
    %4728 = vst [vmem:[#allocation3 + $0x7a8] sm:$0xff] %v4696
    %4729 = vst [vmem:[#allocation3 + $0x7f0] sm:$0xff] %v4697
    %4730 = vst [vmem:[#allocation3 + $0x838] sm:$0xff] %v4698
    %4731 = vst [vmem:[#allocation3 + $0x880] sm:$0xff] %v4699
    %4732 = vst [vmem:[#allocation3 + $0x8c8] sm:$0xff] %v4700
    %v4733 = vld [vmem:[%s214] sm:$0xff]
    %v4734 = vld [vmem:[%s214 + $0x8] sm:$0xff]
    %v4735 = vld [vmem:[%s214 + $0x18] sm:$0xff]
    %v4736 = vld [vmem:[%s214 + $0x20] sm:$0xff]
    %v4737 = vld [vmem:[%s214 + $0x30] sm:$0xff]
    %v4738 = vld [vmem:[%s214 + $0x38] sm:$0xff]
    %v4739 = vld [vmem:[%s214 + $0x48] sm:$0xff]
    %v4740 = vld [vmem:[%s214 + $0x50] sm:$0xff]
    %v4741 = vld [vmem:[%s214 + $0x60] sm:$0xff]
    %v4742 = vld [vmem:[%s214 + $0x68] sm:$0xff]
    %v4743 = vld [vmem:[%s214 + $0x78] sm:$0xff]
    %v4744 = vld [vmem:[%s214 + $0x80] sm:$0xff]
    %v4745 = vld [vmem:[%s214 + $0x90] sm:$0xff]
    %v4746 = vld [vmem:[%s214 + $0x98] sm:$0xff]
    %v4747 = vld [vmem:[%s214 + $0xa8] sm:$0xff]
    %v4748 = vld [vmem:[%s214 + $0xb0] sm:$0xff]
    %v4749 = vld [vmem:[%s214 + $0xc0] sm:$0xff]
    %v4750 = vld [vmem:[%s214 + $0xc8] sm:$0xff]
    %v4751 = vld [vmem:[%s214 + $0xd8] sm:$0xff]
    %v4752 = vld [vmem:[%s214 + $0xe0] sm:$0xff]
    %v4753 = vld [vmem:[%s214 + $0xf0] sm:$0xff]
    %v4754 = vld [vmem:[%s214 + $0xf8] sm:$0xff]
    %v4755 = vld [vmem:[%s214 + $0x108] sm:$0xff]
    %v4756 = vld [vmem:[%s214 + $0x110] sm:$0xff]
    %v4757 = vld [vmem:[%s214 + $0x120] sm:$0xff]
    %v4758 = vld [vmem:[%s214 + $0x128] sm:$0xff]
    %v4759 = vld [vmem:[%s214 + $0x138] sm:$0xff]
    %v4760 = vld [vmem:[%s214 + $0x140] sm:$0xff]
    %v4761 = vld [vmem:[%s214 + $0x150] sm:$0xff]
    %v4762 = vld [vmem:[%s214 + $0x158] sm:$0xff]
    %v4763 = vld [vmem:[%s214 + $0x168] sm:$0xff]
    %v4764 = vld [vmem:[%s214 + $0x170] sm:$0xff]
    %v4765 = vld [vmem:[%s214 + $0x1b0] sm:$0xff]
    %v4766 = vld [vmem:[%s214 + $0x1b8] sm:$0xff]
    %v4767 = vld [vmem:[%s214 + $0x1c8] sm:$0xff]
    %v4768 = vld [vmem:[%s214 + $0x1d0] sm:$0xff]
    %v4769 = vld [vmem:[%s214 + $0x1e0] sm:$0xff]
    %v4770 = vld [vmem:[%s214 + $0x1e8] sm:$0xff]
    %v4771 = vld [vmem:[%s214 + $0x1f8] sm:$0xff]
    %v4772 = vld [vmem:[%s214 + $0x200] sm:$0xff]
    %v4773 = vld [vmem:[%s214 + $0x210] sm:$0xff]
    %v4774 = vld [vmem:[%s214 + $0x218] sm:$0xff]
    %v4775 = vld [vmem:[%s214 + $0x228] sm:$0xff]
    %v4776 = vld [vmem:[%s214 + $0x230] sm:$0xff]
    %v4777 = vld [vmem:[%s214 + $0x240] sm:$0xff]
    %v4778 = vld [vmem:[%s214 + $0x248] sm:$0xff]
    %v4779 = vld [vmem:[%s214 + $0x258] sm:$0xff]
    %v4780 = vld [vmem:[%s214 + $0x260] sm:$0xff]
    %v4781 = vld [vmem:[%s214 + $0x270] sm:$0xff]
    %v4782 = vld [vmem:[%s214 + $0x278] sm:$0xff]
    %v4783 = vld [vmem:[%s214 + $0x288] sm:$0xff]
    %v4784 = vld [vmem:[%s214 + $0x290] sm:$0xff]
    %v4785 = vld [vmem:[%s214 + $0x2a0] sm:$0xff]
    %v4786 = vld [vmem:[%s214 + $0x2a8] sm:$0xff]
    %v4787 = vld [vmem:[%s214 + $0x2b8] sm:$0xff]
    %v4788 = vld [vmem:[%s214 + $0x2c0] sm:$0xff]
    %v4789 = vld [vmem:[%s214 + $0x2d0] sm:$0xff]
    %v4790 = vld [vmem:[%s214 + $0x2d8] sm:$0xff]
    %v4791 = vld [vmem:[%s214 + $0x2e8] sm:$0xff]
    %v4792 = vld [vmem:[%s214 + $0x2f0] sm:$0xff]
    %v4793 = vld [vmem:[%s214 + $0x300] sm:$0xff]
    %v4794 = vld [vmem:[%s214 + $0x308] sm:$0xff]
    %v4795 = vld [vmem:[%s214 + $0x318] sm:$0xff]
    %v4796 = vld [vmem:[%s214 + $0x320] sm:$0xff]
    %v4797 = vpack.c.bf16 %v4734, %v4733
    %v4798 = vpack.c.bf16 %v4736, %v4735
    %v4799 = vpack.c.bf16 %v4738, %v4737
    %v4800 = vpack.c.bf16 %v4740, %v4739
    %v4801 = vpack.c.bf16 %v4742, %v4741
    %v4802 = vpack.c.bf16 %v4744, %v4743
    %v4803 = vpack.c.bf16 %v4746, %v4745
    %v4804 = vpack.c.bf16 %v4748, %v4747
    %v4805 = vpack.c.bf16 %v4750, %v4749
    %v4806 = vpack.c.bf16 %v4752, %v4751
    %v4807 = vpack.c.bf16 %v4754, %v4753
    %v4808 = vpack.c.bf16 %v4756, %v4755
    %v4809 = vpack.c.bf16 %v4758, %v4757
    %v4810 = vpack.c.bf16 %v4760, %v4759
    %v4811 = vpack.c.bf16 %v4762, %v4761
    %v4812 = vpack.c.bf16 %v4764, %v4763
    %v4813 = vpack.c.bf16 %v4766, %v4765
    %v4814 = vpack.c.bf16 %v4768, %v4767
    %v4815 = vpack.c.bf16 %v4770, %v4769
    %v4816 = vpack.c.bf16 %v4772, %v4771
    %v4817 = vpack.c.bf16 %v4774, %v4773
    %v4818 = vpack.c.bf16 %v4776, %v4775
    %v4819 = vpack.c.bf16 %v4778, %v4777
    %v4820 = vpack.c.bf16 %v4780, %v4779
    %v4821 = vpack.c.bf16 %v4782, %v4781
    %v4822 = vpack.c.bf16 %v4784, %v4783
    %v4823 = vpack.c.bf16 %v4786, %v4785
    %v4824 = vpack.c.bf16 %v4788, %v4787
    %v4825 = vpack.c.bf16 %v4790, %v4789
    %v4826 = vpack.c.bf16 %v4792, %v4791
    %v4827 = vpack.c.bf16 %v4794, %v4793
    %v4828 = vpack.c.bf16 %v4796, %v4795
    %4829 = vst [vmem:[#allocation3 + $0x18] sm:$0xff] %v4797
    %4830 = vst [vmem:[#allocation3 + $0x60] sm:$0xff] %v4798
    %4831 = vst [vmem:[#allocation3 + $0xa8] sm:$0xff] %v4799
    %4832 = vst [vmem:[#allocation3 + $0xf0] sm:$0xff] %v4800
    %4833 = vst [vmem:[#allocation3 + $0x138] sm:$0xff] %v4801
    %4834 = vst [vmem:[#allocation3 + $0x180] sm:$0xff] %v4802
    %4835 = vst [vmem:[#allocation3 + $0x1c8] sm:$0xff] %v4803
    %4836 = vst [vmem:[#allocation3 + $0x210] sm:$0xff] %v4804
    %4837 = vst [vmem:[#allocation3 + $0x258] sm:$0xff] %v4805
    %4838 = vst [vmem:[#allocation3 + $0x2a0] sm:$0xff] %v4806
    %4839 = vst [vmem:[#allocation3 + $0x2e8] sm:$0xff] %v4807
    %4840 = vst [vmem:[#allocation3 + $0x330] sm:$0xff] %v4808
    %4841 = vst [vmem:[#allocation3 + $0x378] sm:$0xff] %v4809
    %4842 = vst [vmem:[#allocation3 + $0x3c0] sm:$0xff] %v4810
    %4843 = vst [vmem:[#allocation3 + $0x408] sm:$0xff] %v4811
    %4844 = vst [vmem:[#allocation3 + $0x450] sm:$0xff] %v4812
    %4845 = vst [vmem:[#allocation3 + $0x498] sm:$0xff] %v4813
    %4846 = vst [vmem:[#allocation3 + $0x4e0] sm:$0xff] %v4814
    %4847 = vst [vmem:[#allocation3 + $0x528] sm:$0xff] %v4815
    %4848 = vst [vmem:[#allocation3 + $0x570] sm:$0xff] %v4816
    %4849 = vst [vmem:[#allocation3 + $0x5b8] sm:$0xff] %v4817
    %4850 = vst [vmem:[#allocation3 + $0x600] sm:$0xff] %v4818
    %4851 = vst [vmem:[#allocation3 + $0x648] sm:$0xff] %v4819
    %4852 = vst [vmem:[#allocation3 + $0x690] sm:$0xff] %v4820
    %4853 = vst [vmem:[#allocation3 + $0x6d8] sm:$0xff] %v4821
    %4854 = vst [vmem:[#allocation3 + $0x720] sm:$0xff] %v4822
    %4855 = vst [vmem:[#allocation3 + $0x768] sm:$0xff] %v4823
    %4856 = vst [vmem:[#allocation3 + $0x7b0] sm:$0xff] %v4824
    %4857 = vst [vmem:[#allocation3 + $0x7f8] sm:$0xff] %v4825
    %4858 = vst [vmem:[#allocation3 + $0x840] sm:$0xff] %v4826
    %4859 = vst [vmem:[#allocation3 + $0x888] sm:$0xff] %v4827
    %4860 = vst [vmem:[#allocation3 + $0x8d0] sm:$0xff] %v4828
    %v4861 = vld [vmem:[%s214 + $0x1] sm:$0xff]
    %v4862 = vld [vmem:[%s214 + $0x9] sm:$0xff]
    %v4863 = vld [vmem:[%s214 + $0x19] sm:$0xff]
    %v4864 = vld [vmem:[%s214 + $0x21] sm:$0xff]
    %v4865 = vld [vmem:[%s214 + $0x31] sm:$0xff]
    %v4866 = vld [vmem:[%s214 + $0x39] sm:$0xff]
    %v4867 = vld [vmem:[%s214 + $0x49] sm:$0xff]
    %v4868 = vld [vmem:[%s214 + $0x51] sm:$0xff]
    %v4869 = vld [vmem:[%s214 + $0x61] sm:$0xff]
    %v4870 = vld [vmem:[%s214 + $0x69] sm:$0xff]
    %v4871 = vld [vmem:[%s214 + $0x79] sm:$0xff]
    %v4872 = vld [vmem:[%s214 + $0x81] sm:$0xff]
    %v4873 = vld [vmem:[%s214 + $0x91] sm:$0xff]
    %v4874 = vld [vmem:[%s214 + $0x99] sm:$0xff]
    %v4875 = vld [vmem:[%s214 + $0xa9] sm:$0xff]
    %v4876 = vld [vmem:[%s214 + $0xb1] sm:$0xff]
    %v4877 = vld [vmem:[%s214 + $0xc1] sm:$0xff]
    %v4878 = vld [vmem:[%s214 + $0xc9] sm:$0xff]
    %v4879 = vld [vmem:[%s214 + $0xd9] sm:$0xff]
    %v4880 = vld [vmem:[%s214 + $0xe1] sm:$0xff]
    %v4881 = vld [vmem:[%s214 + $0xf1] sm:$0xff]
    %v4882 = vld [vmem:[%s214 + $0xf9] sm:$0xff]
    %v4883 = vld [vmem:[%s214 + $0x109] sm:$0xff]
    %v4884 = vld [vmem:[%s214 + $0x111] sm:$0xff]
    %v4885 = vld [vmem:[%s214 + $0x121] sm:$0xff]
    %v4886 = vld [vmem:[%s214 + $0x129] sm:$0xff]
    %v4887 = vld [vmem:[%s214 + $0x139] sm:$0xff]
    %v4888 = vld [vmem:[%s214 + $0x141] sm:$0xff]
    %v4889 = vld [vmem:[%s214 + $0x151] sm:$0xff]
    %v4890 = vld [vmem:[%s214 + $0x159] sm:$0xff]
    %v4891 = vld [vmem:[%s214 + $0x169] sm:$0xff]
    %v4892 = vld [vmem:[%s214 + $0x171] sm:$0xff]
    %v4893 = vld [vmem:[%s214 + $0x1b1] sm:$0xff]
    %v4894 = vld [vmem:[%s214 + $0x1b9] sm:$0xff]
    %v4895 = vld [vmem:[%s214 + $0x1c9] sm:$0xff]
    %v4896 = vld [vmem:[%s214 + $0x1d1] sm:$0xff]
    %v4897 = vld [vmem:[%s214 + $0x1e1] sm:$0xff]
    %v4898 = vld [vmem:[%s214 + $0x1e9] sm:$0xff]
    %v4899 = vld [vmem:[%s214 + $0x1f9] sm:$0xff]
    %v4900 = vld [vmem:[%s214 + $0x201] sm:$0xff]
    %v4901 = vld [vmem:[%s214 + $0x211] sm:$0xff]
    %v4902 = vld [vmem:[%s214 + $0x219] sm:$0xff]
    %v4903 = vld [vmem:[%s214 + $0x229] sm:$0xff]
    %v4904 = vld [vmem:[%s214 + $0x231] sm:$0xff]
    %v4905 = vld [vmem:[%s214 + $0x241] sm:$0xff]
    %v4906 = vld [vmem:[%s214 + $0x249] sm:$0xff]
    %v4907 = vld [vmem:[%s214 + $0x259] sm:$0xff]
    %v4908 = vld [vmem:[%s214 + $0x261] sm:$0xff]
    %v4909 = vld [vmem:[%s214 + $0x271] sm:$0xff]
    %v4910 = vld [vmem:[%s214 + $0x279] sm:$0xff]
    %v4911 = vld [vmem:[%s214 + $0x289] sm:$0xff]
    %v4912 = vld [vmem:[%s214 + $0x291] sm:$0xff]
    %v4913 = vld [vmem:[%s214 + $0x2a1] sm:$0xff]
    %v4914 = vld [vmem:[%s214 + $0x2a9] sm:$0xff]
    %v4915 = vld [vmem:[%s214 + $0x2b9] sm:$0xff]
    %v4916 = vld [vmem:[%s214 + $0x2c1] sm:$0xff]
    %v4917 = vld [vmem:[%s214 + $0x2d1] sm:$0xff]
    %v4918 = vld [vmem:[%s214 + $0x2d9] sm:$0xff]
    %v4919 = vld [vmem:[%s214 + $0x2e9] sm:$0xff]
    %v4920 = vld [vmem:[%s214 + $0x2f1] sm:$0xff]
    %v4921 = vld [vmem:[%s214 + $0x301] sm:$0xff]
    %v4922 = vld [vmem:[%s214 + $0x309] sm:$0xff]
    %v4923 = vld [vmem:[%s214 + $0x319] sm:$0xff]
    %v4924 = vld [vmem:[%s214 + $0x321] sm:$0xff]
    %v4925 = vpack.c.bf16 %v4862, %v4861
    %v4926 = vpack.c.bf16 %v4864, %v4863
    %v4927 = vpack.c.bf16 %v4866, %v4865
    %v4928 = vpack.c.bf16 %v4868, %v4867
    %v4929 = vpack.c.bf16 %v4870, %v4869
    %v4930 = vpack.c.bf16 %v4872, %v4871
    %v4931 = vpack.c.bf16 %v4874, %v4873
    %v4932 = vpack.c.bf16 %v4876, %v4875
    %v4933 = vpack.c.bf16 %v4878, %v4877
    %v4934 = vpack.c.bf16 %v4880, %v4879
    %v4935 = vpack.c.bf16 %v4882, %v4881
    %v4936 = vpack.c.bf16 %v4884, %v4883
    %v4937 = vpack.c.bf16 %v4886, %v4885
    %v4938 = vpack.c.bf16 %v4888, %v4887
    %v4939 = vpack.c.bf16 %v4890, %v4889
    %v4940 = vpack.c.bf16 %v4892, %v4891
    %v4941 = vpack.c.bf16 %v4894, %v4893
    %v4942 = vpack.c.bf16 %v4896, %v4895
    %v4943 = vpack.c.bf16 %v4898, %v4897
    %v4944 = vpack.c.bf16 %v4900, %v4899
    %v4945 = vpack.c.bf16 %v4902, %v4901
    %v4946 = vpack.c.bf16 %v4904, %v4903
    %v4947 = vpack.c.bf16 %v4906, %v4905
    %v4948 = vpack.c.bf16 %v4908, %v4907
    %v4949 = vpack.c.bf16 %v4910, %v4909
    %v4950 = vpack.c.bf16 %v4912, %v4911
    %v4951 = vpack.c.bf16 %v4914, %v4913
    %v4952 = vpack.c.bf16 %v4916, %v4915
    %v4953 = vpack.c.bf16 %v4918, %v4917
    %v4954 = vpack.c.bf16 %v4920, %v4919
    %v4955 = vpack.c.bf16 %v4922, %v4921
    %v4956 = vpack.c.bf16 %v4924, %v4923
    %4957 = vst [vmem:[#allocation3 + $0x20] sm:$0xff] %v4925
    %4958 = vst [vmem:[#allocation3 + $0x68] sm:$0xff] %v4926
    %4959 = vst [vmem:[#allocation3 + $0xb0] sm:$0xff] %v4927
    %4960 = vst [vmem:[#allocation3 + $0xf8] sm:$0xff] %v4928
    %4961 = vst [vmem:[#allocation3 + $0x140] sm:$0xff] %v4929
    %4962 = vst [vmem:[#allocation3 + $0x188] sm:$0xff] %v4930
    %4963 = vst [vmem:[#allocation3 + $0x1d0] sm:$0xff] %v4931
    %4964 = vst [vmem:[#allocation3 + $0x218] sm:$0xff] %v4932
    %4965 = vst [vmem:[#allocation3 + $0x260] sm:$0xff] %v4933
    %4966 = vst [vmem:[#allocation3 + $0x2a8] sm:$0xff] %v4934
    %4967 = vst [vmem:[#allocation3 + $0x2f0] sm:$0xff] %v4935
    %4968 = vst [vmem:[#allocation3 + $0x338] sm:$0xff] %v4936
    %4969 = vst [vmem:[#allocation3 + $0x380] sm:$0xff] %v4937
    %4970 = vst [vmem:[#allocation3 + $0x3c8] sm:$0xff] %v4938
    %4971 = vst [vmem:[#allocation3 + $0x410] sm:$0xff] %v4939
    %4972 = vst [vmem:[#allocation3 + $0x458] sm:$0xff] %v4940
    %4973 = vst [vmem:[#allocation3 + $0x4a0] sm:$0xff] %v4941
    %4974 = vst [vmem:[#allocation3 + $0x4e8] sm:$0xff] %v4942
    %4975 = vst [vmem:[#allocation3 + $0x530] sm:$0xff] %v4943
    %4976 = vst [vmem:[#allocation3 + $0x578] sm:$0xff] %v4944
    %4977 = vst [vmem:[#allocation3 + $0x5c0] sm:$0xff] %v4945
    %4978 = vst [vmem:[#allocation3 + $0x608] sm:$0xff] %v4946
    %4979 = vst [vmem:[#allocation3 + $0x650] sm:$0xff] %v4947
    %4980 = vst [vmem:[#allocation3 + $0x698] sm:$0xff] %v4948
    %4981 = vst [vmem:[#allocation3 + $0x6e0] sm:$0xff] %v4949
    %4982 = vst [vmem:[#allocation3 + $0x728] sm:$0xff] %v4950
    %4983 = vst [vmem:[#allocation3 + $0x770] sm:$0xff] %v4951
    %4984 = vst [vmem:[#allocation3 + $0x7b8] sm:$0xff] %v4952
    %4985 = vst [vmem:[#allocation3 + $0x800] sm:$0xff] %v4953
    %4986 = vst [vmem:[#allocation3 + $0x848] sm:$0xff] %v4954
    %4987 = vst [vmem:[#allocation3 + $0x890] sm:$0xff] %v4955
    %4988 = vst [vmem:[#allocation3 + $0x8d8] sm:$0xff] %v4956
    %v4989 = vld [vmem:[%s214 + $0x2] sm:$0xff]
    %v4990 = vld [vmem:[%s214 + $0xa] sm:$0xff]
    %v4991 = vld [vmem:[%s214 + $0x1a] sm:$0xff]
    %v4992 = vld [vmem:[%s214 + $0x22] sm:$0xff]
    %v4993 = vld [vmem:[%s214 + $0x32] sm:$0xff]
    %v4994 = vld [vmem:[%s214 + $0x3a] sm:$0xff]
    %v4995 = vld [vmem:[%s214 + $0x4a] sm:$0xff]
    %v4996 = vld [vmem:[%s214 + $0x52] sm:$0xff]
    %v4997 = vld [vmem:[%s214 + $0x62] sm:$0xff]
    %v4998 = vld [vmem:[%s214 + $0x6a] sm:$0xff]
    %v4999 = vld [vmem:[%s214 + $0x7a] sm:$0xff]
    %v5000 = vld [vmem:[%s214 + $0x82] sm:$0xff]
    %v5001 = vld [vmem:[%s214 + $0x92] sm:$0xff]
    %v5002 = vld [vmem:[%s214 + $0x9a] sm:$0xff]
    %v5003 = vld [vmem:[%s214 + $0xaa] sm:$0xff]
    %v5004 = vld [vmem:[%s214 + $0xb2] sm:$0xff]
    %v5005 = vld [vmem:[%s214 + $0xc2] sm:$0xff]
    %v5006 = vld [vmem:[%s214 + $0xca] sm:$0xff]
    %v5007 = vld [vmem:[%s214 + $0xda] sm:$0xff]
    %v5008 = vld [vmem:[%s214 + $0xe2] sm:$0xff]
    %v5009 = vld [vmem:[%s214 + $0xf2] sm:$0xff]
    %v5010 = vld [vmem:[%s214 + $0xfa] sm:$0xff]
    %v5011 = vld [vmem:[%s214 + $0x10a] sm:$0xff]
    %v5012 = vld [vmem:[%s214 + $0x112] sm:$0xff]
    %v5013 = vld [vmem:[%s214 + $0x122] sm:$0xff]
    %v5014 = vld [vmem:[%s214 + $0x12a] sm:$0xff]
    %v5015 = vld [vmem:[%s214 + $0x13a] sm:$0xff]
    %v5016 = vld [vmem:[%s214 + $0x142] sm:$0xff]
    %v5017 = vld [vmem:[%s214 + $0x152] sm:$0xff]
    %v5018 = vld [vmem:[%s214 + $0x15a] sm:$0xff]
    %v5019 = vld [vmem:[%s214 + $0x16a] sm:$0xff]
    %v5020 = vld [vmem:[%s214 + $0x172] sm:$0xff]
    %v5021 = vld [vmem:[%s214 + $0x1b2] sm:$0xff]
    %v5022 = vld [vmem:[%s214 + $0x1ba] sm:$0xff]
    %v5023 = vld [vmem:[%s214 + $0x1ca] sm:$0xff]
    %v5024 = vld [vmem:[%s214 + $0x1d2] sm:$0xff]
    %v5025 = vld [vmem:[%s214 + $0x1e2] sm:$0xff]
    %v5026 = vld [vmem:[%s214 + $0x1ea] sm:$0xff]
    %v5027 = vld [vmem:[%s214 + $0x1fa] sm:$0xff]
    %v5028 = vld [vmem:[%s214 + $0x202] sm:$0xff]
    %v5029 = vld [vmem:[%s214 + $0x212] sm:$0xff]
    %v5030 = vld [vmem:[%s214 + $0x21a] sm:$0xff]
    %v5031 = vld [vmem:[%s214 + $0x22a] sm:$0xff]
    %v5032 = vld [vmem:[%s214 + $0x232] sm:$0xff]
    %v5033 = vld [vmem:[%s214 + $0x242] sm:$0xff]
    %v5034 = vld [vmem:[%s214 + $0x24a] sm:$0xff]
    %v5035 = vld [vmem:[%s214 + $0x25a] sm:$0xff]
    %v5036 = vld [vmem:[%s214 + $0x262] sm:$0xff]
    %v5037 = vld [vmem:[%s214 + $0x272] sm:$0xff]
    %v5038 = vld [vmem:[%s214 + $0x27a] sm:$0xff]
    %v5039 = vld [vmem:[%s214 + $0x28a] sm:$0xff]
    %v5040 = vld [vmem:[%s214 + $0x292] sm:$0xff]
    %v5041 = vld [vmem:[%s214 + $0x2a2] sm:$0xff]
    %v5042 = vld [vmem:[%s214 + $0x2aa] sm:$0xff]
    %v5043 = vld [vmem:[%s214 + $0x2ba] sm:$0xff]
    %v5044 = vld [vmem:[%s214 + $0x2c2] sm:$0xff]
    %v5045 = vld [vmem:[%s214 + $0x2d2] sm:$0xff]
    %v5046 = vld [vmem:[%s214 + $0x2da] sm:$0xff]
    %v5047 = vld [vmem:[%s214 + $0x2ea] sm:$0xff]
    %v5048 = vld [vmem:[%s214 + $0x2f2] sm:$0xff]
    %v5049 = vld [vmem:[%s214 + $0x302] sm:$0xff]
    %v5050 = vld [vmem:[%s214 + $0x30a] sm:$0xff]
    %v5051 = vld [vmem:[%s214 + $0x31a] sm:$0xff]
    %v5052 = vld [vmem:[%s214 + $0x322] sm:$0xff]
    %v5053 = vpack.c.bf16 %v4990, %v4989
    %v5054 = vpack.c.bf16 %v4992, %v4991
    %v5055 = vpack.c.bf16 %v4994, %v4993
    %v5056 = vpack.c.bf16 %v4996, %v4995
    %v5057 = vpack.c.bf16 %v4998, %v4997
    %v5058 = vpack.c.bf16 %v5000, %v4999
    %v5059 = vpack.c.bf16 %v5002, %v5001
    %v5060 = vpack.c.bf16 %v5004, %v5003
    %v5061 = vpack.c.bf16 %v5006, %v5005
    %v5062 = vpack.c.bf16 %v5008, %v5007
    %v5063 = vpack.c.bf16 %v5010, %v5009
    %v5064 = vpack.c.bf16 %v5012, %v5011
    %v5065 = vpack.c.bf16 %v5014, %v5013
    %v5066 = vpack.c.bf16 %v5016, %v5015
    %v5067 = vpack.c.bf16 %v5018, %v5017
    %v5068 = vpack.c.bf16 %v5020, %v5019
    %v5069 = vpack.c.bf16 %v5022, %v5021
    %v5070 = vpack.c.bf16 %v5024, %v5023
    %v5071 = vpack.c.bf16 %v5026, %v5025
    %v5072 = vpack.c.bf16 %v5028, %v5027
    %v5073 = vpack.c.bf16 %v5030, %v5029
    %v5074 = vpack.c.bf16 %v5032, %v5031
    %v5075 = vpack.c.bf16 %v5034, %v5033
    %v5076 = vpack.c.bf16 %v5036, %v5035
    %v5077 = vpack.c.bf16 %v5038, %v5037
    %v5078 = vpack.c.bf16 %v5040, %v5039
    %v5079 = vpack.c.bf16 %v5042, %v5041
    %v5080 = vpack.c.bf16 %v5044, %v5043
    %v5081 = vpack.c.bf16 %v5046, %v5045
    %v5082 = vpack.c.bf16 %v5048, %v5047
    %v5083 = vpack.c.bf16 %v5050, %v5049
    %v5084 = vpack.c.bf16 %v5052, %v5051
    %5085 = vst [vmem:[#allocation3 + $0x28] sm:$0xff] %v5053
    %5086 = vst [vmem:[#allocation3 + $0x70] sm:$0xff] %v5054
    %5087 = vst [vmem:[#allocation3 + $0xb8] sm:$0xff] %v5055
    %5088 = vst [vmem:[#allocation3 + $0x100] sm:$0xff] %v5056
    %5089 = vst [vmem:[#allocation3 + $0x148] sm:$0xff] %v5057
    %5090 = vst [vmem:[#allocation3 + $0x190] sm:$0xff] %v5058
    %5091 = vst [vmem:[#allocation3 + $0x1d8] sm:$0xff] %v5059
    %5092 = vst [vmem:[#allocation3 + $0x220] sm:$0xff] %v5060
    %5093 = vst [vmem:[#allocation3 + $0x268] sm:$0xff] %v5061
    %5094 = vst [vmem:[#allocation3 + $0x2b0] sm:$0xff] %v5062
    %5095 = vst [vmem:[#allocation3 + $0x2f8] sm:$0xff] %v5063
    %5096 = vst [vmem:[#allocation3 + $0x340] sm:$0xff] %v5064
    %5097 = vst [vmem:[#allocation3 + $0x388] sm:$0xff] %v5065
    %5098 = vst [vmem:[#allocation3 + $0x3d0] sm:$0xff] %v5066
    %5099 = vst [vmem:[#allocation3 + $0x418] sm:$0xff] %v5067
    %5100 = vst [vmem:[#allocation3 + $0x460] sm:$0xff] %v5068
    %5101 = vst [vmem:[#allocation3 + $0x4a8] sm:$0xff] %v5069
    %5102 = vst [vmem:[#allocation3 + $0x4f0] sm:$0xff] %v5070
    %5103 = vst [vmem:[#allocation3 + $0x538] sm:$0xff] %v5071
    %5104 = vst [vmem:[#allocation3 + $0x580] sm:$0xff] %v5072
    %5105 = vst [vmem:[#allocation3 + $0x5c8] sm:$0xff] %v5073
    %5106 = vst [vmem:[#allocation3 + $0x610] sm:$0xff] %v5074
    %5107 = vst [vmem:[#allocation3 + $0x658] sm:$0xff] %v5075
    %5108 = vst [vmem:[#allocation3 + $0x6a0] sm:$0xff] %v5076
    %5109 = vst [vmem:[#allocation3 + $0x6e8] sm:$0xff] %v5077
    %5110 = vst [vmem:[#allocation3 + $0x730] sm:$0xff] %v5078
    %5111 = vst [vmem:[#allocation3 + $0x778] sm:$0xff] %v5079
    %5112 = vst [vmem:[#allocation3 + $0x7c0] sm:$0xff] %v5080
    %5113 = vst [vmem:[#allocation3 + $0x808] sm:$0xff] %v5081
    %5114 = vst [vmem:[#allocation3 + $0x850] sm:$0xff] %v5082
    %5115 = vst [vmem:[#allocation3 + $0x898] sm:$0xff] %v5083
    %5116 = vst [vmem:[#allocation3 + $0x8e0] sm:$0xff] %v5084
    %v5117 = vld [vmem:[%s1047] sm:$0xff]
    %v5118 = vld [vmem:[%s1047 + $0x8] sm:$0xff]
    %v5119 = vld [vmem:[%s1047 + $0x18] sm:$0xff]
    %v5120 = vld [vmem:[%s1047 + $0x20] sm:$0xff]
    %v5121 = vld [vmem:[%s1047 + $0x30] sm:$0xff]
    %v5122 = vld [vmem:[%s1047 + $0x38] sm:$0xff]
    %v5123 = vld [vmem:[%s1047 + $0x48] sm:$0xff]
    %v5124 = vld [vmem:[%s1047 + $0x50] sm:$0xff]
    %v5125 = vld [vmem:[%s1047 + $0x60] sm:$0xff]
    %v5126 = vld [vmem:[%s1047 + $0x68] sm:$0xff]
    %v5127 = vld [vmem:[%s1047 + $0x78] sm:$0xff]
    %v5128 = vld [vmem:[%s1047 + $0x80] sm:$0xff]
    %v5129 = vld [vmem:[%s1047 + $0x90] sm:$0xff]
    %v5130 = vld [vmem:[%s1047 + $0x98] sm:$0xff]
    %v5131 = vld [vmem:[%s1047 + $0xa8] sm:$0xff]
    %v5132 = vld [vmem:[%s1047 + $0xb0] sm:$0xff]
    %v5133 = vld [vmem:[%s1047 + $0xc0] sm:$0xff]
    %v5134 = vld [vmem:[%s1047 + $0xc8] sm:$0xff]
    %v5135 = vld [vmem:[%s1047 + $0xd8] sm:$0xff]
    %v5136 = vld [vmem:[%s1047 + $0xe0] sm:$0xff]
    %v5137 = vld [vmem:[%s1047 + $0xf0] sm:$0xff]
    %v5138 = vld [vmem:[%s1047 + $0xf8] sm:$0xff]
    %v5139 = vld [vmem:[%s1047 + $0x108] sm:$0xff]
    %v5140 = vld [vmem:[%s1047 + $0x110] sm:$0xff]
    %v5141 = vld [vmem:[%s1047 + $0x120] sm:$0xff]
    %v5142 = vld [vmem:[%s1047 + $0x128] sm:$0xff]
    %v5143 = vld [vmem:[%s1047 + $0x138] sm:$0xff]
    %v5144 = vld [vmem:[%s1047 + $0x140] sm:$0xff]
    %v5145 = vld [vmem:[%s1047 + $0x150] sm:$0xff]
    %v5146 = vld [vmem:[%s1047 + $0x158] sm:$0xff]
    %v5147 = vld [vmem:[%s1047 + $0x168] sm:$0xff]
    %v5148 = vld [vmem:[%s1047 + $0x170] sm:$0xff]
    %v5149 = vld [vmem:[%s1047 + $0x1b0] sm:$0xff]
    %v5150 = vld [vmem:[%s1047 + $0x1b8] sm:$0xff]
    %v5151 = vld [vmem:[%s1047 + $0x1c8] sm:$0xff]
    %v5152 = vld [vmem:[%s1047 + $0x1d0] sm:$0xff]
    %v5153 = vld [vmem:[%s1047 + $0x1e0] sm:$0xff]
    %v5154 = vld [vmem:[%s1047 + $0x1e8] sm:$0xff]
    %v5155 = vld [vmem:[%s1047 + $0x1f8] sm:$0xff]
    %v5156 = vld [vmem:[%s1047 + $0x200] sm:$0xff]
    %v5157 = vld [vmem:[%s1047 + $0x210] sm:$0xff]
    %v5158 = vld [vmem:[%s1047 + $0x218] sm:$0xff]
    %v5159 = vld [vmem:[%s1047 + $0x228] sm:$0xff]
    %v5160 = vld [vmem:[%s1047 + $0x230] sm:$0xff]
    %v5161 = vld [vmem:[%s1047 + $0x240] sm:$0xff]
    %v5162 = vld [vmem:[%s1047 + $0x248] sm:$0xff]
    %v5163 = vld [vmem:[%s1047 + $0x258] sm:$0xff]
    %v5164 = vld [vmem:[%s1047 + $0x260] sm:$0xff]
    %v5165 = vld [vmem:[%s1047 + $0x270] sm:$0xff]
    %v5166 = vld [vmem:[%s1047 + $0x278] sm:$0xff]
    %v5167 = vld [vmem:[%s1047 + $0x288] sm:$0xff]
    %v5168 = vld [vmem:[%s1047 + $0x290] sm:$0xff]
    %v5169 = vld [vmem:[%s1047 + $0x2a0] sm:$0xff]
    %v5170 = vld [vmem:[%s1047 + $0x2a8] sm:$0xff]
    %v5171 = vld [vmem:[%s1047 + $0x2b8] sm:$0xff]
    %v5172 = vld [vmem:[%s1047 + $0x2c0] sm:$0xff]
    %v5173 = vld [vmem:[%s1047 + $0x2d0] sm:$0xff]
    %v5174 = vld [vmem:[%s1047 + $0x2d8] sm:$0xff]
    %v5175 = vld [vmem:[%s1047 + $0x2e8] sm:$0xff]
    %v5176 = vld [vmem:[%s1047 + $0x2f0] sm:$0xff]
    %v5177 = vld [vmem:[%s1047 + $0x300] sm:$0xff]
    %v5178 = vld [vmem:[%s1047 + $0x308] sm:$0xff]
    %v5179 = vld [vmem:[%s1047 + $0x318] sm:$0xff]
    %v5180 = vld [vmem:[%s1047 + $0x320] sm:$0xff]
    %v5181 = vpack.c.bf16 %v5118, %v5117
    %v5182 = vpack.c.bf16 %v5120, %v5119
    %v5183 = vpack.c.bf16 %v5122, %v5121
    %v5184 = vpack.c.bf16 %v5124, %v5123
    %v5185 = vpack.c.bf16 %v5126, %v5125
    %v5186 = vpack.c.bf16 %v5128, %v5127
    %v5187 = vpack.c.bf16 %v5130, %v5129
    %v5188 = vpack.c.bf16 %v5132, %v5131
    %v5189 = vpack.c.bf16 %v5134, %v5133
    %v5190 = vpack.c.bf16 %v5136, %v5135
    %v5191 = vpack.c.bf16 %v5138, %v5137
    %v5192 = vpack.c.bf16 %v5140, %v5139
    %v5193 = vpack.c.bf16 %v5142, %v5141
    %v5194 = vpack.c.bf16 %v5144, %v5143
    %v5195 = vpack.c.bf16 %v5146, %v5145
    %v5196 = vpack.c.bf16 %v5148, %v5147
    %v5197 = vpack.c.bf16 %v5150, %v5149
    %v5198 = vpack.c.bf16 %v5152, %v5151
    %v5199 = vpack.c.bf16 %v5154, %v5153
    %v5200 = vpack.c.bf16 %v5156, %v5155
    %v5201 = vpack.c.bf16 %v5158, %v5157
    %v5202 = vpack.c.bf16 %v5160, %v5159
    %v5203 = vpack.c.bf16 %v5162, %v5161
    %v5204 = vpack.c.bf16 %v5164, %v5163
    %v5205 = vpack.c.bf16 %v5166, %v5165
    %v5206 = vpack.c.bf16 %v5168, %v5167
    %v5207 = vpack.c.bf16 %v5170, %v5169
    %v5208 = vpack.c.bf16 %v5172, %v5171
    %v5209 = vpack.c.bf16 %v5174, %v5173
    %v5210 = vpack.c.bf16 %v5176, %v5175
    %v5211 = vpack.c.bf16 %v5178, %v5177
    %v5212 = vpack.c.bf16 %v5180, %v5179
    %5213 = vst [vmem:[#allocation3 + $0x30] sm:$0xff] %v5181
    %5214 = vst [vmem:[#allocation3 + $0x78] sm:$0xff] %v5182
    %5215 = vst [vmem:[#allocation3 + $0xc0] sm:$0xff] %v5183
    %5216 = vst [vmem:[#allocation3 + $0x108] sm:$0xff] %v5184
    %5217 = vst [vmem:[#allocation3 + $0x150] sm:$0xff] %v5185
    %5218 = vst [vmem:[#allocation3 + $0x198] sm:$0xff] %v5186
    %5219 = vst [vmem:[#allocation3 + $0x1e0] sm:$0xff] %v5187
    %5220 = vst [vmem:[#allocation3 + $0x228] sm:$0xff] %v5188
    %5221 = vst [vmem:[#allocation3 + $0x270] sm:$0xff] %v5189
    %5222 = vst [vmem:[#allocation3 + $0x2b8] sm:$0xff] %v5190
    %5223 = vst [vmem:[#allocation3 + $0x300] sm:$0xff] %v5191
    %5224 = vst [vmem:[#allocation3 + $0x348] sm:$0xff] %v5192
    %5225 = vst [vmem:[#allocation3 + $0x390] sm:$0xff] %v5193
    %5226 = vst [vmem:[#allocation3 + $0x3d8] sm:$0xff] %v5194
    %5227 = vst [vmem:[#allocation3 + $0x420] sm:$0xff] %v5195
    %5228 = vst [vmem:[#allocation3 + $0x468] sm:$0xff] %v5196
    %5229 = vst [vmem:[#allocation3 + $0x4b0] sm:$0xff] %v5197
    %5230 = vst [vmem:[#allocation3 + $0x4f8] sm:$0xff] %v5198
    %5231 = vst [vmem:[#allocation3 + $0x540] sm:$0xff] %v5199
    %5232 = vst [vmem:[#allocation3 + $0x588] sm:$0xff] %v5200
    %5233 = vst [vmem:[#allocation3 + $0x5d0] sm:$0xff] %v5201
    %5234 = vst [vmem:[#allocation3 + $0x618] sm:$0xff] %v5202
    %5235 = vst [vmem:[#allocation3 + $0x660] sm:$0xff] %v5203
    %5236 = vst [vmem:[#allocation3 + $0x6a8] sm:$0xff] %v5204
    %5237 = vst [vmem:[#allocation3 + $0x6f0] sm:$0xff] %v5205
    %5238 = vst [vmem:[#allocation3 + $0x738] sm:$0xff] %v5206
    %5239 = vst [vmem:[#allocation3 + $0x780] sm:$0xff] %v5207
    %5240 = vst [vmem:[#allocation3 + $0x7c8] sm:$0xff] %v5208
    %5241 = vst [vmem:[#allocation3 + $0x810] sm:$0xff] %v5209
    %5242 = vst [vmem:[#allocation3 + $0x858] sm:$0xff] %v5210
    %5243 = vst [vmem:[#allocation3 + $0x8a0] sm:$0xff] %v5211
    %5244 = vst [vmem:[#allocation3 + $0x8e8] sm:$0xff] %v5212
    %v5245 = vld [vmem:[%s1047 + $0x1] sm:$0xff]
    %v5246 = vld [vmem:[%s1047 + $0x9] sm:$0xff]
    %v5247 = vld [vmem:[%s1047 + $0x19] sm:$0xff]
    %v5248 = vld [vmem:[%s1047 + $0x21] sm:$0xff]
    %v5249 = vld [vmem:[%s1047 + $0x31] sm:$0xff]
    %v5250 = vld [vmem:[%s1047 + $0x39] sm:$0xff]
    %v5251 = vld [vmem:[%s1047 + $0x49] sm:$0xff]
    %v5252 = vld [vmem:[%s1047 + $0x51] sm:$0xff]
    %v5253 = vld [vmem:[%s1047 + $0x61] sm:$0xff]
    %v5254 = vld [vmem:[%s1047 + $0x69] sm:$0xff]
    %v5255 = vld [vmem:[%s1047 + $0x79] sm:$0xff]
    %v5256 = vld [vmem:[%s1047 + $0x81] sm:$0xff]
    %v5257 = vld [vmem:[%s1047 + $0x91] sm:$0xff]
    %v5258 = vld [vmem:[%s1047 + $0x99] sm:$0xff]
    %v5259 = vld [vmem:[%s1047 + $0xa9] sm:$0xff]
    %v5260 = vld [vmem:[%s1047 + $0xb1] sm:$0xff]
    %v5261 = vld [vmem:[%s1047 + $0xc1] sm:$0xff]
    %v5262 = vld [vmem:[%s1047 + $0xc9] sm:$0xff]
    %v5263 = vld [vmem:[%s1047 + $0xd9] sm:$0xff]
    %v5264 = vld [vmem:[%s1047 + $0xe1] sm:$0xff]
    %v5265 = vld [vmem:[%s1047 + $0xf1] sm:$0xff]
    %v5266 = vld [vmem:[%s1047 + $0xf9] sm:$0xff]
    %v5267 = vld [vmem:[%s1047 + $0x109] sm:$0xff]
    %v5268 = vld [vmem:[%s1047 + $0x111] sm:$0xff]
    %v5269 = vld [vmem:[%s1047 + $0x121] sm:$0xff]
    %v5270 = vld [vmem:[%s1047 + $0x129] sm:$0xff]
    %v5271 = vld [vmem:[%s1047 + $0x139] sm:$0xff]
    %v5272 = vld [vmem:[%s1047 + $0x141] sm:$0xff]
    %v5273 = vld [vmem:[%s1047 + $0x151] sm:$0xff]
    %v5274 = vld [vmem:[%s1047 + $0x159] sm:$0xff]
    %v5275 = vld [vmem:[%s1047 + $0x169] sm:$0xff]
    %v5276 = vld [vmem:[%s1047 + $0x171] sm:$0xff]
    %v5277 = vld [vmem:[%s1047 + $0x1b1] sm:$0xff]
    %v5278 = vld [vmem:[%s1047 + $0x1b9] sm:$0xff]
    %v5279 = vld [vmem:[%s1047 + $0x1c9] sm:$0xff]
    %v5280 = vld [vmem:[%s1047 + $0x1d1] sm:$0xff]
    %v5281 = vld [vmem:[%s1047 + $0x1e1] sm:$0xff]
    %v5282 = vld [vmem:[%s1047 + $0x1e9] sm:$0xff]
    %v5283 = vld [vmem:[%s1047 + $0x1f9] sm:$0xff]
    %v5284 = vld [vmem:[%s1047 + $0x201] sm:$0xff]
    %v5285 = vld [vmem:[%s1047 + $0x211] sm:$0xff]
    %v5286 = vld [vmem:[%s1047 + $0x219] sm:$0xff]
    %v5287 = vld [vmem:[%s1047 + $0x229] sm:$0xff]
    %v5288 = vld [vmem:[%s1047 + $0x231] sm:$0xff]
    %v5289 = vld [vmem:[%s1047 + $0x241] sm:$0xff]
    %v5290 = vld [vmem:[%s1047 + $0x249] sm:$0xff]
    %v5291 = vld [vmem:[%s1047 + $0x259] sm:$0xff]
    %v5292 = vld [vmem:[%s1047 + $0x261] sm:$0xff]
    %v5293 = vld [vmem:[%s1047 + $0x271] sm:$0xff]
    %v5294 = vld [vmem:[%s1047 + $0x279] sm:$0xff]
    %v5295 = vld [vmem:[%s1047 + $0x289] sm:$0xff]
    %v5296 = vld [vmem:[%s1047 + $0x291] sm:$0xff]
    %v5297 = vld [vmem:[%s1047 + $0x2a1] sm:$0xff]
    %v5298 = vld [vmem:[%s1047 + $0x2a9] sm:$0xff]
    %v5299 = vld [vmem:[%s1047 + $0x2b9] sm:$0xff]
    %v5300 = vld [vmem:[%s1047 + $0x2c1] sm:$0xff]
    %v5301 = vld [vmem:[%s1047 + $0x2d1] sm:$0xff]
    %v5302 = vld [vmem:[%s1047 + $0x2d9] sm:$0xff]
    %v5303 = vld [vmem:[%s1047 + $0x2e9] sm:$0xff]
    %v5304 = vld [vmem:[%s1047 + $0x2f1] sm:$0xff]
    %v5305 = vld [vmem:[%s1047 + $0x301] sm:$0xff]
    %v5306 = vld [vmem:[%s1047 + $0x309] sm:$0xff]
    %v5307 = vld [vmem:[%s1047 + $0x319] sm:$0xff]
    %v5308 = vld [vmem:[%s1047 + $0x321] sm:$0xff]
    %v5309 = vpack.c.bf16 %v5246, %v5245
    %v5310 = vpack.c.bf16 %v5248, %v5247
    %v5311 = vpack.c.bf16 %v5250, %v5249
    %v5312 = vpack.c.bf16 %v5252, %v5251
    %v5313 = vpack.c.bf16 %v5254, %v5253
    %v5314 = vpack.c.bf16 %v5256, %v5255
    %v5315 = vpack.c.bf16 %v5258, %v5257
    %v5316 = vpack.c.bf16 %v5260, %v5259
    %v5317 = vpack.c.bf16 %v5262, %v5261
    %v5318 = vpack.c.bf16 %v5264, %v5263
    %v5319 = vpack.c.bf16 %v5266, %v5265
    %v5320 = vpack.c.bf16 %v5268, %v5267
    %v5321 = vpack.c.bf16 %v5270, %v5269
    %v5322 = vpack.c.bf16 %v5272, %v5271
    %v5323 = vpack.c.bf16 %v5274, %v5273
    %v5324 = vpack.c.bf16 %v5276, %v5275
    %v5325 = vpack.c.bf16 %v5278, %v5277
    %v5326 = vpack.c.bf16 %v5280, %v5279
    %v5327 = vpack.c.bf16 %v5282, %v5281
    %v5328 = vpack.c.bf16 %v5284, %v5283
    %v5329 = vpack.c.bf16 %v5286, %v5285
    %v5330 = vpack.c.bf16 %v5288, %v5287
    %v5331 = vpack.c.bf16 %v5290, %v5289
    %v5332 = vpack.c.bf16 %v5292, %v5291
    %v5333 = vpack.c.bf16 %v5294, %v5293
    %v5334 = vpack.c.bf16 %v5296, %v5295
    %v5335 = vpack.c.bf16 %v5298, %v5297
    %v5336 = vpack.c.bf16 %v5300, %v5299
    %v5337 = vpack.c.bf16 %v5302, %v5301
    %v5338 = vpack.c.bf16 %v5304, %v5303
    %v5339 = vpack.c.bf16 %v5306, %v5305
    %v5340 = vpack.c.bf16 %v5308, %v5307
    %5341 = vst [vmem:[#allocation3 + $0x38] sm:$0xff] %v5309
    %5342 = vst [vmem:[#allocation3 + $0x80] sm:$0xff] %v5310
    %5343 = vst [vmem:[#allocation3 + $0xc8] sm:$0xff] %v5311
    %5344 = vst [vmem:[#allocation3 + $0x110] sm:$0xff] %v5312
    %5345 = vst [vmem:[#allocation3 + $0x158] sm:$0xff] %v5313
    %5346 = vst [vmem:[#allocation3 + $0x1a0] sm:$0xff] %v5314
    %5347 = vst [vmem:[#allocation3 + $0x1e8] sm:$0xff] %v5315
    %5348 = vst [vmem:[#allocation3 + $0x230] sm:$0xff] %v5316
    %5349 = vst [vmem:[#allocation3 + $0x278] sm:$0xff] %v5317
    %5350 = vst [vmem:[#allocation3 + $0x2c0] sm:$0xff] %v5318
    %5351 = vst [vmem:[#allocation3 + $0x308] sm:$0xff] %v5319
    %5352 = vst [vmem:[#allocation3 + $0x350] sm:$0xff] %v5320
    %5353 = vst [vmem:[#allocation3 + $0x398] sm:$0xff] %v5321
    %5354 = vst [vmem:[#allocation3 + $0x3e0] sm:$0xff] %v5322
    %5355 = vst [vmem:[#allocation3 + $0x428] sm:$0xff] %v5323
    %5356 = vst [vmem:[#allocation3 + $0x470] sm:$0xff] %v5324
    %5357 = vst [vmem:[#allocation3 + $0x4b8] sm:$0xff] %v5325
    %5358 = vst [vmem:[#allocation3 + $0x500] sm:$0xff] %v5326
    %5359 = vst [vmem:[#allocation3 + $0x548] sm:$0xff] %v5327
    %5360 = vst [vmem:[#allocation3 + $0x590] sm:$0xff] %v5328
    %5361 = vst [vmem:[#allocation3 + $0x5d8] sm:$0xff] %v5329
    %5362 = vst [vmem:[#allocation3 + $0x620] sm:$0xff] %v5330
    %5363 = vst [vmem:[#allocation3 + $0x668] sm:$0xff] %v5331
    %5364 = vst [vmem:[#allocation3 + $0x6b0] sm:$0xff] %v5332
    %5365 = vst [vmem:[#allocation3 + $0x6f8] sm:$0xff] %v5333
    %5366 = vst [vmem:[#allocation3 + $0x740] sm:$0xff] %v5334
    %5367 = vst [vmem:[#allocation3 + $0x788] sm:$0xff] %v5335
    %5368 = vst [vmem:[#allocation3 + $0x7d0] sm:$0xff] %v5336
    %5369 = vst [vmem:[#allocation3 + $0x818] sm:$0xff] %v5337
    %5370 = vst [vmem:[#allocation3 + $0x860] sm:$0xff] %v5338
    %5371 = vst [vmem:[#allocation3 + $0x8a8] sm:$0xff] %v5339
    %5372 = vst [vmem:[#allocation3 + $0x8f0] sm:$0xff] %v5340
    %v5373 = vld [vmem:[%s1047 + $0x2] sm:$0xff]
    %v5374 = vld [vmem:[%s1047 + $0xa] sm:$0xff]
    %v5375 = vld [vmem:[%s1047 + $0x1a] sm:$0xff]
    %v5376 = vld [vmem:[%s1047 + $0x22] sm:$0xff]
    %v5377 = vld [vmem:[%s1047 + $0x32] sm:$0xff]
    %v5378 = vld [vmem:[%s1047 + $0x3a] sm:$0xff]
    %v5379 = vld [vmem:[%s1047 + $0x4a] sm:$0xff]
    %v5380 = vld [vmem:[%s1047 + $0x52] sm:$0xff]
    %v5381 = vld [vmem:[%s1047 + $0x62] sm:$0xff]
    %v5382 = vld [vmem:[%s1047 + $0x6a] sm:$0xff]
    %v5383 = vld [vmem:[%s1047 + $0x7a] sm:$0xff]
    %v5384 = vld [vmem:[%s1047 + $0x82] sm:$0xff]
    %v5385 = vld [vmem:[%s1047 + $0x92] sm:$0xff]
    %v5386 = vld [vmem:[%s1047 + $0x9a] sm:$0xff]
    %v5387 = vld [vmem:[%s1047 + $0xaa] sm:$0xff]
    %v5388 = vld [vmem:[%s1047 + $0xb2] sm:$0xff]
    %v5389 = vld [vmem:[%s1047 + $0xc2] sm:$0xff]
    %v5390 = vld [vmem:[%s1047 + $0xca] sm:$0xff]
    %v5391 = vld [vmem:[%s1047 + $0xda] sm:$0xff]
    %v5392 = vld [vmem:[%s1047 + $0xe2] sm:$0xff]
    %v5393 = vld [vmem:[%s1047 + $0xf2] sm:$0xff]
    %v5394 = vld [vmem:[%s1047 + $0xfa] sm:$0xff]
    %v5395 = vld [vmem:[%s1047 + $0x10a] sm:$0xff]
    %v5396 = vld [vmem:[%s1047 + $0x112] sm:$0xff]
    %v5397 = vld [vmem:[%s1047 + $0x122] sm:$0xff]
    %v5398 = vld [vmem:[%s1047 + $0x12a] sm:$0xff]
    %v5399 = vld [vmem:[%s1047 + $0x13a] sm:$0xff]
    %v5400 = vld [vmem:[%s1047 + $0x142] sm:$0xff]
    %v5401 = vld [vmem:[%s1047 + $0x152] sm:$0xff]
    %v5402 = vld [vmem:[%s1047 + $0x15a] sm:$0xff]
    %v5403 = vld [vmem:[%s1047 + $0x16a] sm:$0xff]
    %v5404 = vld [vmem:[%s1047 + $0x172] sm:$0xff]
    %v5405 = vld [vmem:[%s1047 + $0x1b2] sm:$0xff]
    %v5406 = vld [vmem:[%s1047 + $0x1ba] sm:$0xff]
    %v5407 = vld [vmem:[%s1047 + $0x1ca] sm:$0xff]
    %v5408 = vld [vmem:[%s1047 + $0x1d2] sm:$0xff]
    %v5409 = vld [vmem:[%s1047 + $0x1e2] sm:$0xff]
    %v5410 = vld [vmem:[%s1047 + $0x1ea] sm:$0xff]
    %v5411 = vld [vmem:[%s1047 + $0x1fa] sm:$0xff]
    %v5412 = vld [vmem:[%s1047 + $0x202] sm:$0xff]
    %v5413 = vld [vmem:[%s1047 + $0x212] sm:$0xff]
    %v5414 = vld [vmem:[%s1047 + $0x21a] sm:$0xff]
    %v5415 = vld [vmem:[%s1047 + $0x22a] sm:$0xff]
    %v5416 = vld [vmem:[%s1047 + $0x232] sm:$0xff]
    %v5417 = vld [vmem:[%s1047 + $0x242] sm:$0xff]
    %v5418 = vld [vmem:[%s1047 + $0x24a] sm:$0xff]
    %v5419 = vld [vmem:[%s1047 + $0x25a] sm:$0xff]
    %v5420 = vld [vmem:[%s1047 + $0x262] sm:$0xff]
    %v5421 = vld [vmem:[%s1047 + $0x272] sm:$0xff]
    %v5422 = vld [vmem:[%s1047 + $0x27a] sm:$0xff]
    %v5423 = vld [vmem:[%s1047 + $0x28a] sm:$0xff]
    %v5424 = vld [vmem:[%s1047 + $0x292] sm:$0xff]
    %v5425 = vld [vmem:[%s1047 + $0x2a2] sm:$0xff]
    %v5426 = vld [vmem:[%s1047 + $0x2aa] sm:$0xff]
    %v5427 = vld [vmem:[%s1047 + $0x2ba] sm:$0xff]
    %v5428 = vld [vmem:[%s1047 + $0x2c2] sm:$0xff]
    %v5429 = vld [vmem:[%s1047 + $0x2d2] sm:$0xff]
    %v5430 = vld [vmem:[%s1047 + $0x2da] sm:$0xff]
    %v5431 = vld [vmem:[%s1047 + $0x2ea] sm:$0xff]
    %v5432 = vld [vmem:[%s1047 + $0x2f2] sm:$0xff]
    %v5433 = vld [vmem:[%s1047 + $0x302] sm:$0xff]
    %v5434 = vld [vmem:[%s1047 + $0x30a] sm:$0xff]
    %v5435 = vld [vmem:[%s1047 + $0x31a] sm:$0xff]
    %v5436 = vld [vmem:[%s1047 + $0x322] sm:$0xff]
    %v5437 = vpack.c.bf16 %v5374, %v5373
    %v5438 = vpack.c.bf16 %v5376, %v5375
    %v5439 = vpack.c.bf16 %v5378, %v5377
    %v5440 = vpack.c.bf16 %v5380, %v5379
    %v5441 = vpack.c.bf16 %v5382, %v5381
    %v5442 = vpack.c.bf16 %v5384, %v5383
    %v5443 = vpack.c.bf16 %v5386, %v5385
    %v5444 = vpack.c.bf16 %v5388, %v5387
    %v5445 = vpack.c.bf16 %v5390, %v5389
    %v5446 = vpack.c.bf16 %v5392, %v5391
    %v5447 = vpack.c.bf16 %v5394, %v5393
    %v5448 = vpack.c.bf16 %v5396, %v5395
    %v5449 = vpack.c.bf16 %v5398, %v5397
    %v5450 = vpack.c.bf16 %v5400, %v5399
    %v5451 = vpack.c.bf16 %v5402, %v5401
    %v5452 = vpack.c.bf16 %v5404, %v5403
    %v5453 = vpack.c.bf16 %v5406, %v5405
    %v5454 = vpack.c.bf16 %v5408, %v5407
    %v5455 = vpack.c.bf16 %v5410, %v5409
    %v5456 = vpack.c.bf16 %v5412, %v5411
    %v5457 = vpack.c.bf16 %v5414, %v5413
    %v5458 = vpack.c.bf16 %v5416, %v5415
    %v5459 = vpack.c.bf16 %v5418, %v5417
    %v5460 = vpack.c.bf16 %v5420, %v5419
    %v5461 = vpack.c.bf16 %v5422, %v5421
    %v5462 = vpack.c.bf16 %v5424, %v5423
    %v5463 = vpack.c.bf16 %v5426, %v5425
    %v5464 = vpack.c.bf16 %v5428, %v5427
    %v5465 = vpack.c.bf16 %v5430, %v5429
    %v5466 = vpack.c.bf16 %v5432, %v5431
    %v5467 = vpack.c.bf16 %v5434, %v5433
    %v5468 = vpack.c.bf16 %v5436, %v5435
    %5469 = vst [vmem:[#allocation3 + $0x40] sm:$0xff] %v5437
    %5470 = vst [vmem:[#allocation3 + $0x88] sm:$0xff] %v5438
    %5471 = vst [vmem:[#allocation3 + $0xd0] sm:$0xff] %v5439
    %5472 = vst [vmem:[#allocation3 + $0x118] sm:$0xff] %v5440
    %5473 = vst [vmem:[#allocation3 + $0x160] sm:$0xff] %v5441
    %5474 = vst [vmem:[#allocation3 + $0x1a8] sm:$0xff] %v5442
    %5475 = vst [vmem:[#allocation3 + $0x1f0] sm:$0xff] %v5443
    %5476 = vst [vmem:[#allocation3 + $0x238] sm:$0xff] %v5444
    %5477 = vst [vmem:[#allocation3 + $0x280] sm:$0xff] %v5445
    %5478 = vst [vmem:[#allocation3 + $0x2c8] sm:$0xff] %v5446
    %5479 = vst [vmem:[#allocation3 + $0x310] sm:$0xff] %v5447
    %5480 = vst [vmem:[#allocation3 + $0x358] sm:$0xff] %v5448
    %5481 = vst [vmem:[#allocation3 + $0x3a0] sm:$0xff] %v5449
    %5482 = vst [vmem:[#allocation3 + $0x3e8] sm:$0xff] %v5450
    %5483 = vst [vmem:[#allocation3 + $0x430] sm:$0xff] %v5451
    %5484 = vst [vmem:[#allocation3 + $0x478] sm:$0xff] %v5452
    %5485 = vst [vmem:[#allocation3 + $0x4c0] sm:$0xff] %v5453
    %5486 = vst [vmem:[#allocation3 + $0x508] sm:$0xff] %v5454
    %5487 = vst [vmem:[#allocation3 + $0x550] sm:$0xff] %v5455
    %5488 = vst [vmem:[#allocation3 + $0x598] sm:$0xff] %v5456
    %5489 = vst [vmem:[#allocation3 + $0x5e0] sm:$0xff] %v5457
    %5490 = vst [vmem:[#allocation3 + $0x628] sm:$0xff] %v5458
    %5491 = vst [vmem:[#allocation3 + $0x670] sm:$0xff] %v5459
    %5492 = vst [vmem:[#allocation3 + $0x6b8] sm:$0xff] %v5460
    %5493 = vst [vmem:[#allocation3 + $0x700] sm:$0xff] %v5461
    %5494 = vst [vmem:[#allocation3 + $0x748] sm:$0xff] %v5462
    %5495 = vst [vmem:[#allocation3 + $0x790] sm:$0xff] %v5463
    %5496 = vst [vmem:[#allocation3 + $0x7d8] sm:$0xff] %v5464
    %5497 = vst [vmem:[#allocation3 + $0x820] sm:$0xff] %v5465
    %5498 = vst [vmem:[#allocation3 + $0x868] sm:$0xff] %v5466
    %5499 = vst [vmem:[#allocation3 + $0x8b0] sm:$0xff] %v5467
    %5500 = vst [vmem:[#allocation3 + $0x8f8] sm:$0xff] %v5468
    %v5501 = vld [vmem:[#allocation3] sm:$0xff]
    %v5502 = vld [vmem:[#allocation3 + $0x8] sm:$0xff]
    %v5503 = vld [vmem:[#allocation3 + $0x10] sm:$0xff]
    %v5504 = vld [vmem:[#allocation3 + $0x18] sm:$0xff]
    %v5505 = vld [vmem:[#allocation3 + $0x20] sm:$0xff]
    %v5506 = vld [vmem:[#allocation3 + $0x28] sm:$0xff]
    %v5507 = vld [vmem:[#allocation3 + $0x30] sm:$0xff]
    %v5508 = vld [vmem:[#allocation3 + $0x38] sm:$0xff]
    %v5509 = vld [vmem:[#allocation3 + $0x40] sm:$0xff]
    %v5510 = vld [vmem:[#allocation3 + $0x48] sm:$0xff]
    %v5511 = vld [vmem:[#allocation3 + $0x50] sm:$0xff]
    %v5512 = vld [vmem:[#allocation3 + $0x58] sm:$0xff]
    %v5513 = vld [vmem:[#allocation3 + $0x60] sm:$0xff]
    %v5514 = vld [vmem:[#allocation3 + $0x68] sm:$0xff]
    %v5515 = vld [vmem:[#allocation3 + $0x70] sm:$0xff]
    %v5516 = vld [vmem:[#allocation3 + $0x78] sm:$0xff]
    %v5517 = vld [vmem:[#allocation3 + $0x80] sm:$0xff]
    %v5518 = vld [vmem:[#allocation3 + $0x88] sm:$0xff]
    %v5519 = vld [vmem:[#allocation3 + $0x90] sm:$0xff]
    %v5520 = vld [vmem:[#allocation3 + $0x98] sm:$0xff]
    %v5521 = vld [vmem:[#allocation3 + $0xa0] sm:$0xff]
    %v5522 = vld [vmem:[#allocation3 + $0xa8] sm:$0xff]
    %v5523 = vld [vmem:[#allocation3 + $0xb0] sm:$0xff]
    %v5524 = vld [vmem:[#allocation3 + $0xb8] sm:$0xff]
    %v5525 = vld [vmem:[#allocation3 + $0xc0] sm:$0xff]
    %v5526 = vld [vmem:[#allocation3 + $0xc8] sm:$0xff]
    %v5527 = vld [vmem:[#allocation3 + $0xd0] sm:$0xff]
    %v5528 = vld [vmem:[#allocation3 + $0xd8] sm:$0xff]
    %v5529 = vld [vmem:[#allocation3 + $0xe0] sm:$0xff]
    %v5530 = vld [vmem:[#allocation3 + $0xe8] sm:$0xff]
    %v5531 = vld [vmem:[#allocation3 + $0xf0] sm:$0xff]
    %v5532 = vld [vmem:[#allocation3 + $0xf8] sm:$0xff]
    %v5533 = vld [vmem:[#allocation3 + $0x100] sm:$0xff]
    %v5534 = vld [vmem:[#allocation3 + $0x108] sm:$0xff]
    %v5535 = vld [vmem:[#allocation3 + $0x110] sm:$0xff]
    %v5536 = vld [vmem:[#allocation3 + $0x118] sm:$0xff]
    %v5537 = vld [vmem:[#allocation3 + $0x120] sm:$0xff]
    %v5538 = vld [vmem:[#allocation3 + $0x128] sm:$0xff]
    %v5539 = vld [vmem:[#allocation3 + $0x130] sm:$0xff]
    %v5540 = vld [vmem:[#allocation3 + $0x138] sm:$0xff]
    %v5541 = vld [vmem:[#allocation3 + $0x140] sm:$0xff]
    %v5542 = vld [vmem:[#allocation3 + $0x148] sm:$0xff]
    %v5543 = vld [vmem:[#allocation3 + $0x150] sm:$0xff]
    %v5544 = vld [vmem:[#allocation3 + $0x158] sm:$0xff]
    %v5545 = vld [vmem:[#allocation3 + $0x160] sm:$0xff]
    %v5546 = vld [vmem:[#allocation3 + $0x168] sm:$0xff]
    %v5547 = vld [vmem:[#allocation3 + $0x170] sm:$0xff]
    %v5548 = vld [vmem:[#allocation3 + $0x178] sm:$0xff]
    %v5549 = vld [vmem:[#allocation3 + $0x180] sm:$0xff]
    %v5550 = vld [vmem:[#allocation3 + $0x188] sm:$0xff]
    %v5551 = vld [vmem:[#allocation3 + $0x190] sm:$0xff]
    %v5552 = vld [vmem:[#allocation3 + $0x198] sm:$0xff]
    %v5553 = vld [vmem:[#allocation3 + $0x1a0] sm:$0xff]
    %v5554 = vld [vmem:[#allocation3 + $0x1a8] sm:$0xff]
    %v5555 = vld [vmem:[#allocation3 + $0x1b0] sm:$0xff]
    %v5556 = vld [vmem:[#allocation3 + $0x1b8] sm:$0xff]
    %v5557 = vld [vmem:[#allocation3 + $0x1c0] sm:$0xff]
    %v5558 = vld [vmem:[#allocation3 + $0x1c8] sm:$0xff]
    %v5559 = vld [vmem:[#allocation3 + $0x1d0] sm:$0xff]
    %v5560 = vld [vmem:[#allocation3 + $0x1d8] sm:$0xff]
    %v5561 = vld [vmem:[#allocation3 + $0x1e0] sm:$0xff]
    %v5562 = vld [vmem:[#allocation3 + $0x1e8] sm:$0xff]
    %v5563 = vld [vmem:[#allocation3 + $0x1f0] sm:$0xff]
    %v5564 = vld [vmem:[#allocation3 + $0x1f8] sm:$0xff]
    %v5565 = vld [vmem:[#allocation3 + $0x200] sm:$0xff]
    %v5566 = vld [vmem:[#allocation3 + $0x208] sm:$0xff]
    %v5567 = vld [vmem:[#allocation3 + $0x210] sm:$0xff]
    %v5568 = vld [vmem:[#allocation3 + $0x218] sm:$0xff]
    %v5569 = vld [vmem:[#allocation3 + $0x220] sm:$0xff]
    %v5570 = vld [vmem:[#allocation3 + $0x228] sm:$0xff]
    %v5571 = vld [vmem:[#allocation3 + $0x230] sm:$0xff]
    %v5572 = vld [vmem:[#allocation3 + $0x238] sm:$0xff]
    %v5573 = vld [vmem:[#allocation3 + $0x240] sm:$0xff]
    %v5574 = vld [vmem:[#allocation3 + $0x248] sm:$0xff]
    %v5575 = vld [vmem:[#allocation3 + $0x250] sm:$0xff]
    %v5576 = vld [vmem:[#allocation3 + $0x258] sm:$0xff]
    %v5577 = vld [vmem:[#allocation3 + $0x260] sm:$0xff]
    %v5578 = vld [vmem:[#allocation3 + $0x268] sm:$0xff]
    %v5579 = vld [vmem:[#allocation3 + $0x270] sm:$0xff]
    %v5580 = vld [vmem:[#allocation3 + $0x278] sm:$0xff]
    %v5581 = vld [vmem:[#allocation3 + $0x280] sm:$0xff]
    %v5582 = vld [vmem:[#allocation3 + $0x288] sm:$0xff]
    %v5583 = vld [vmem:[#allocation3 + $0x290] sm:$0xff]
    %v5584 = vld [vmem:[#allocation3 + $0x298] sm:$0xff]
    %v5585 = vld [vmem:[#allocation3 + $0x2a0] sm:$0xff]
    %v5586 = vld [vmem:[#allocation3 + $0x2a8] sm:$0xff]
    %v5587 = vld [vmem:[#allocation3 + $0x2b0] sm:$0xff]
    %v5588 = vld [vmem:[#allocation3 + $0x2b8] sm:$0xff]
    %v5589 = vld [vmem:[#allocation3 + $0x2c0] sm:$0xff]
    %v5590 = vld [vmem:[#allocation3 + $0x2c8] sm:$0xff]
    %v5591 = vld [vmem:[#allocation3 + $0x2d0] sm:$0xff]
    %v5592 = vld [vmem:[#allocation3 + $0x2d8] sm:$0xff]
    %v5593 = vld [vmem:[#allocation3 + $0x2e0] sm:$0xff]
    %v5594 = vld [vmem:[#allocation3 + $0x2e8] sm:$0xff]
    %v5595 = vld [vmem:[#allocation3 + $0x2f0] sm:$0xff]
    %v5596 = vld [vmem:[#allocation3 + $0x2f8] sm:$0xff]
    %v5597 = vld [vmem:[#allocation3 + $0x300] sm:$0xff]
    %v5598 = vld [vmem:[#allocation3 + $0x308] sm:$0xff]
    %v5599 = vld [vmem:[#allocation3 + $0x310] sm:$0xff]
    %v5600 = vld [vmem:[#allocation3 + $0x318] sm:$0xff]
    %v5601 = vld [vmem:[#allocation3 + $0x320] sm:$0xff]
    %v5602 = vld [vmem:[#allocation3 + $0x328] sm:$0xff]
    %v5603 = vld [vmem:[#allocation3 + $0x330] sm:$0xff]
    %v5604 = vld [vmem:[#allocation3 + $0x338] sm:$0xff]
    %v5605 = vld [vmem:[#allocation3 + $0x340] sm:$0xff]
    %v5606 = vld [vmem:[#allocation3 + $0x348] sm:$0xff]
    %v5607 = vld [vmem:[#allocation3 + $0x350] sm:$0xff]
    %v5608 = vld [vmem:[#allocation3 + $0x358] sm:$0xff]
    %v5609 = vld [vmem:[#allocation3 + $0x360] sm:$0xff]
    %v5610 = vld [vmem:[#allocation3 + $0x368] sm:$0xff]
    %v5611 = vld [vmem:[#allocation3 + $0x370] sm:$0xff]
    %v5612 = vld [vmem:[#allocation3 + $0x378] sm:$0xff]
    %v5613 = vld [vmem:[#allocation3 + $0x380] sm:$0xff]
    %v5614 = vld [vmem:[#allocation3 + $0x388] sm:$0xff]
    %v5615 = vld [vmem:[#allocation3 + $0x390] sm:$0xff]
    %v5616 = vld [vmem:[#allocation3 + $0x398] sm:$0xff]
    %v5617 = vld [vmem:[#allocation3 + $0x3a0] sm:$0xff]
    %v5618 = vld [vmem:[#allocation3 + $0x3a8] sm:$0xff]
    %v5619 = vld [vmem:[#allocation3 + $0x3b0] sm:$0xff]
    %v5620 = vld [vmem:[#allocation3 + $0x3b8] sm:$0xff]
    %v5621 = vld [vmem:[#allocation3 + $0x3c0] sm:$0xff]
    %v5622 = vld [vmem:[#allocation3 + $0x3c8] sm:$0xff]
    %v5623 = vld [vmem:[#allocation3 + $0x3d0] sm:$0xff]
    %v5624 = vld [vmem:[#allocation3 + $0x3d8] sm:$0xff]
    %v5625 = vld [vmem:[#allocation3 + $0x3e0] sm:$0xff]
    %v5626 = vld [vmem:[#allocation3 + $0x3e8] sm:$0xff]
    %v5627 = vld [vmem:[#allocation3 + $0x3f0] sm:$0xff]
    %v5628 = vld [vmem:[#allocation3 + $0x3f8] sm:$0xff]
    %v5629 = vld [vmem:[#allocation3 + $0x400] sm:$0xff]
    %v5630 = vld [vmem:[#allocation3 + $0x408] sm:$0xff]
    %v5631 = vld [vmem:[#allocation3 + $0x410] sm:$0xff]
    %v5632 = vld [vmem:[#allocation3 + $0x418] sm:$0xff]
    %v5633 = vld [vmem:[#allocation3 + $0x420] sm:$0xff]
    %v5634 = vld [vmem:[#allocation3 + $0x428] sm:$0xff]
    %v5635 = vld [vmem:[#allocation3 + $0x430] sm:$0xff]
    %v5636 = vld [vmem:[#allocation3 + $0x438] sm:$0xff]
    %v5637 = vld [vmem:[#allocation3 + $0x440] sm:$0xff]
    %v5638 = vld [vmem:[#allocation3 + $0x448] sm:$0xff]
    %v5639 = vld [vmem:[#allocation3 + $0x450] sm:$0xff]
    %v5640 = vld [vmem:[#allocation3 + $0x458] sm:$0xff]
    %v5641 = vld [vmem:[#allocation3 + $0x460] sm:$0xff]
    %v5642 = vld [vmem:[#allocation3 + $0x468] sm:$0xff]
    %v5643 = vld [vmem:[#allocation3 + $0x470] sm:$0xff]
    %v5644 = vld [vmem:[#allocation3 + $0x478] sm:$0xff]
    %v5645 = vld [vmem:[#allocation3 + $0x480] sm:$0xff]
    %v5646 = vld [vmem:[#allocation3 + $0x488] sm:$0xff]
    %v5647 = vld [vmem:[#allocation3 + $0x490] sm:$0xff]
    %v5648 = vld [vmem:[#allocation3 + $0x498] sm:$0xff]
    %v5649 = vld [vmem:[#allocation3 + $0x4a0] sm:$0xff]
    %v5650 = vld [vmem:[#allocation3 + $0x4a8] sm:$0xff]
    %v5651 = vld [vmem:[#allocation3 + $0x4b0] sm:$0xff]
    %v5652 = vld [vmem:[#allocation3 + $0x4b8] sm:$0xff]
    %v5653 = vld [vmem:[#allocation3 + $0x4c0] sm:$0xff]
    %v5654 = vld [vmem:[#allocation3 + $0x4c8] sm:$0xff]
    %v5655 = vld [vmem:[#allocation3 + $0x4d0] sm:$0xff]
    %v5656 = vld [vmem:[#allocation3 + $0x4d8] sm:$0xff]
    %v5657 = vld [vmem:[#allocation3 + $0x4e0] sm:$0xff]
    %v5658 = vld [vmem:[#allocation3 + $0x4e8] sm:$0xff]
    %v5659 = vld [vmem:[#allocation3 + $0x4f0] sm:$0xff]
    %v5660 = vld [vmem:[#allocation3 + $0x4f8] sm:$0xff]
    %v5661 = vld [vmem:[#allocation3 + $0x500] sm:$0xff]
    %v5662 = vld [vmem:[#allocation3 + $0x508] sm:$0xff]
    %v5663 = vld [vmem:[#allocation3 + $0x510] sm:$0xff]
    %v5664 = vld [vmem:[#allocation3 + $0x518] sm:$0xff]
    %v5665 = vld [vmem:[#allocation3 + $0x520] sm:$0xff]
    %v5666 = vld [vmem:[#allocation3 + $0x528] sm:$0xff]
    %v5667 = vld [vmem:[#allocation3 + $0x530] sm:$0xff]
    %v5668 = vld [vmem:[#allocation3 + $0x538] sm:$0xff]
    %v5669 = vld [vmem:[#allocation3 + $0x540] sm:$0xff]
    %v5670 = vld [vmem:[#allocation3 + $0x548] sm:$0xff]
    %v5671 = vld [vmem:[#allocation3 + $0x550] sm:$0xff]
    %v5672 = vld [vmem:[#allocation3 + $0x558] sm:$0xff]
    %v5673 = vld [vmem:[#allocation3 + $0x560] sm:$0xff]
    %v5674 = vld [vmem:[#allocation3 + $0x568] sm:$0xff]
    %v5675 = vld [vmem:[#allocation3 + $0x570] sm:$0xff]
    %v5676 = vld [vmem:[#allocation3 + $0x578] sm:$0xff]
    %v5677 = vld [vmem:[#allocation3 + $0x580] sm:$0xff]
    %v5678 = vld [vmem:[#allocation3 + $0x588] sm:$0xff]
    %v5679 = vld [vmem:[#allocation3 + $0x590] sm:$0xff]
    %v5680 = vld [vmem:[#allocation3 + $0x598] sm:$0xff]
    %v5681 = vld [vmem:[#allocation3 + $0x5a0] sm:$0xff]
    %v5682 = vld [vmem:[#allocation3 + $0x5a8] sm:$0xff]
    %v5683 = vld [vmem:[#allocation3 + $0x5b0] sm:$0xff]
    %v5684 = vld [vmem:[#allocation3 + $0x5b8] sm:$0xff]
    %v5685 = vld [vmem:[#allocation3 + $0x5c0] sm:$0xff]
    %v5686 = vld [vmem:[#allocation3 + $0x5c8] sm:$0xff]
    %v5687 = vld [vmem:[#allocation3 + $0x5d0] sm:$0xff]
    %v5688 = vld [vmem:[#allocation3 + $0x5d8] sm:$0xff]
    %v5689 = vld [vmem:[#allocation3 + $0x5e0] sm:$0xff]
    %v5690 = vld [vmem:[#allocation3 + $0x5e8] sm:$0xff]
    %v5691 = vld [vmem:[#allocation3 + $0x5f0] sm:$0xff]
    %v5692 = vld [vmem:[#allocation3 + $0x5f8] sm:$0xff]
    %v5693 = vld [vmem:[#allocation3 + $0x600] sm:$0xff]
    %v5694 = vld [vmem:[#allocation3 + $0x608] sm:$0xff]
    %v5695 = vld [vmem:[#allocation3 + $0x610] sm:$0xff]
    %v5696 = vld [vmem:[#allocation3 + $0x618] sm:$0xff]
    %v5697 = vld [vmem:[#allocation3 + $0x620] sm:$0xff]
    %v5698 = vld [vmem:[#allocation3 + $0x628] sm:$0xff]
    %v5699 = vld [vmem:[#allocation3 + $0x630] sm:$0xff]
    %v5700 = vld [vmem:[#allocation3 + $0x638] sm:$0xff]
    %v5701 = vld [vmem:[#allocation3 + $0x640] sm:$0xff]
    %v5702 = vld [vmem:[#allocation3 + $0x648] sm:$0xff]
    %v5703 = vld [vmem:[#allocation3 + $0x650] sm:$0xff]
    %v5704 = vld [vmem:[#allocation3 + $0x658] sm:$0xff]
    %v5705 = vld [vmem:[#allocation3 + $0x660] sm:$0xff]
    %v5706 = vld [vmem:[#allocation3 + $0x668] sm:$0xff]
    %v5707 = vld [vmem:[#allocation3 + $0x670] sm:$0xff]
    %v5708 = vld [vmem:[#allocation3 + $0x678] sm:$0xff]
    %v5709 = vld [vmem:[#allocation3 + $0x680] sm:$0xff]
    %v5710 = vld [vmem:[#allocation3 + $0x688] sm:$0xff]
    %v5711 = vld [vmem:[#allocation3 + $0x690] sm:$0xff]
    %v5712 = vld [vmem:[#allocation3 + $0x698] sm:$0xff]
    %v5713 = vld [vmem:[#allocation3 + $0x6a0] sm:$0xff]
    %v5714 = vld [vmem:[#allocation3 + $0x6a8] sm:$0xff]
    %v5715 = vld [vmem:[#allocation3 + $0x6b0] sm:$0xff]
    %v5716 = vld [vmem:[#allocation3 + $0x6b8] sm:$0xff]
    %v5717 = vld [vmem:[#allocation3 + $0x6c0] sm:$0xff]
    %v5718 = vld [vmem:[#allocation3 + $0x6c8] sm:$0xff]
    %v5719 = vld [vmem:[#allocation3 + $0x6d0] sm:$0xff]
    %v5720 = vld [vmem:[#allocation3 + $0x6d8] sm:$0xff]
    %v5721 = vld [vmem:[#allocation3 + $0x6e0] sm:$0xff]
    %v5722 = vld [vmem:[#allocation3 + $0x6e8] sm:$0xff]
    %v5723 = vld [vmem:[#allocation3 + $0x6f0] sm:$0xff]
    %v5724 = vld [vmem:[#allocation3 + $0x6f8] sm:$0xff]
    %v5725 = vld [vmem:[#allocation3 + $0x700] sm:$0xff]
    %v5726 = vld [vmem:[#allocation3 + $0x708] sm:$0xff]
    %v5727 = vld [vmem:[#allocation3 + $0x710] sm:$0xff]
    %v5728 = vld [vmem:[#allocation3 + $0x718] sm:$0xff]
    %v5729 = vld [vmem:[#allocation3 + $0x720] sm:$0xff]
    %v5730 = vld [vmem:[#allocation3 + $0x728] sm:$0xff]
    %v5731 = vld [vmem:[#allocation3 + $0x730] sm:$0xff]
    %v5732 = vld [vmem:[#allocation3 + $0x738] sm:$0xff]
    %v5733 = vld [vmem:[#allocation3 + $0x740] sm:$0xff]
    %v5734 = vld [vmem:[#allocation3 + $0x748] sm:$0xff]
    %v5735 = vld [vmem:[#allocation3 + $0x750] sm:$0xff]
    %v5736 = vld [vmem:[#allocation3 + $0x758] sm:$0xff]
    %v5737 = vld [vmem:[#allocation3 + $0x760] sm:$0xff]
    %v5738 = vld [vmem:[#allocation3 + $0x768] sm:$0xff]
    %v5739 = vld [vmem:[#allocation3 + $0x770] sm:$0xff]
    %v5740 = vld [vmem:[#allocation3 + $0x778] sm:$0xff]
    %v5741 = vld [vmem:[#allocation3 + $0x780] sm:$0xff]
    %v5742 = vld [vmem:[#allocation3 + $0x788] sm:$0xff]
    %v5743 = vld [vmem:[#allocation3 + $0x790] sm:$0xff]
    %v5744 = vld [vmem:[#allocation3 + $0x798] sm:$0xff]
    %v5745 = vld [vmem:[#allocation3 + $0x7a0] sm:$0xff]
    %v5746 = vld [vmem:[#allocation3 + $0x7a8] sm:$0xff]
    %v5747 = vld [vmem:[#allocation3 + $0x7b0] sm:$0xff]
    %v5748 = vld [vmem:[#allocation3 + $0x7b8] sm:$0xff]
    %v5749 = vld [vmem:[#allocation3 + $0x7c0] sm:$0xff]
    %v5750 = vld [vmem:[#allocation3 + $0x7c8] sm:$0xff]
    %v5751 = vld [vmem:[#allocation3 + $0x7d0] sm:$0xff]
    %v5752 = vld [vmem:[#allocation3 + $0x7d8] sm:$0xff]
    %v5753 = vld [vmem:[#allocation3 + $0x7e0] sm:$0xff]
    %v5754 = vld [vmem:[#allocation3 + $0x7e8] sm:$0xff]
    %v5755 = vld [vmem:[#allocation3 + $0x7f0] sm:$0xff]
    %v5756 = vld [vmem:[#allocation3 + $0x7f8] sm:$0xff]
    %v5757 = vld [vmem:[#allocation3 + $0x800] sm:$0xff]
    %v5758 = vld [vmem:[#allocation3 + $0x808] sm:$0xff]
    %v5759 = vld [vmem:[#allocation3 + $0x810] sm:$0xff]
    %v5760 = vld [vmem:[#allocation3 + $0x818] sm:$0xff]
    %v5761 = vld [vmem:[#allocation3 + $0x820] sm:$0xff]
    %v5762 = vld [vmem:[#allocation3 + $0x828] sm:$0xff]
    %v5763 = vld [vmem:[#allocation3 + $0x830] sm:$0xff]
    %v5764 = vld [vmem:[#allocation3 + $0x838] sm:$0xff]
    %v5765 = vld [vmem:[#allocation3 + $0x840] sm:$0xff]
    %v5766 = vld [vmem:[#allocation3 + $0x848] sm:$0xff]
    %v5767 = vld [vmem:[#allocation3 + $0x850] sm:$0xff]
    %v5768 = vld [vmem:[#allocation3 + $0x858] sm:$0xff]
    %v5769 = vld [vmem:[#allocation3 + $0x860] sm:$0xff]
    %v5770 = vld [vmem:[#allocation3 + $0x868] sm:$0xff]
    %v5771 = vld [vmem:[#allocation3 + $0x870] sm:$0xff]
    %v5772 = vld [vmem:[#allocation3 + $0x878] sm:$0xff]
    %v5773 = vld [vmem:[#allocation3 + $0x880] sm:$0xff]
    %v5774 = vld [vmem:[#allocation3 + $0x888] sm:$0xff]
    %v5775 = vld [vmem:[#allocation3 + $0x890] sm:$0xff]
    %v5776 = vld [vmem:[#allocation3 + $0x898] sm:$0xff]
    %v5777 = vld [vmem:[#allocation3 + $0x8a0] sm:$0xff]
    %v5778 = vld [vmem:[#allocation3 + $0x8a8] sm:$0xff]
    %v5779 = vld [vmem:[#allocation3 + $0x8b0] sm:$0xff]
    %v5780 = vld [vmem:[#allocation3 + $0x8b8] sm:$0xff]
    %v5781 = vld [vmem:[#allocation3 + $0x8c0] sm:$0xff]
    %v5782 = vld [vmem:[#allocation3 + $0x8c8] sm:$0xff]
    %v5783 = vld [vmem:[#allocation3 + $0x8d0] sm:$0xff]
    %v5784 = vld [vmem:[#allocation3 + $0x8d8] sm:$0xff]
    %v5785 = vld [vmem:[#allocation3 + $0x8e0] sm:$0xff]
    %v5786 = vld [vmem:[#allocation3 + $0x8e8] sm:$0xff]
    %v5787 = vld [vmem:[#allocation3 + $0x8f0] sm:$0xff]
    %v5788 = vld [vmem:[#allocation3 + $0x8f8] sm:$0xff]
    %v5789 = vld [vmem:[#allocation10] sm:$0xf]
    %v5790 = vld [vmem:[#allocation10 + $0x4] sm:$0xf]
    %v5791 = vld [vmem:[#allocation10 + $0x8] sm:$0xf]
    %v5792 = vld [vmem:[#allocation10 + $0xc] sm:$0xf]
    %v5793 = vld [vmem:[#allocation10 + $0x10] sm:$0xf]
    %v5794 = vld [vmem:[#allocation10 + $0x14] sm:$0xf]
    %v5795 = vld [vmem:[#allocation10 + $0x18] sm:$0xf]
    %v5796 = vld [vmem:[#allocation10 + $0x1c] sm:$0xf]
    %v5797 = vld [vmem:[#allocation10 + $0x20] sm:$0xf]
    %v5798 = vld [vmem:[#allocation10 + $0x24] sm:$0xf]
    %v5799 = vld [vmem:[#allocation10 + $0x28] sm:$0xf]
    %v5800 = vld [vmem:[#allocation10 + $0x2c] sm:$0xf]
    %v5801 = vld [vmem:[#allocation10 + $0x30] sm:$0xf]
    %v5802 = vld [vmem:[#allocation10 + $0x34] sm:$0xf]
    %v5803 = vld [vmem:[#allocation10 + $0x38] sm:$0xf]
    %v5804 = vld [vmem:[#allocation10 + $0x3c] sm:$0xf]
    %v5805 = vld [vmem:[#allocation10 + $0x40] sm:$0xf]
    %v5806 = vld [vmem:[#allocation10 + $0x44] sm:$0xf]
    %v5807 = vld [vmem:[#allocation10 + $0x48] sm:$0xf]
    %v5808 = vld [vmem:[#allocation10 + $0x4c] sm:$0xf]
    %v5809 = vld [vmem:[#allocation10 + $0x50] sm:$0xf]
    %v5810 = vld [vmem:[#allocation10 + $0x54] sm:$0xf]
    %v5811 = vld [vmem:[#allocation10 + $0x58] sm:$0xf]
    %v5812 = vld [vmem:[#allocation10 + $0x5c] sm:$0xf]
    %v5813 = vld [vmem:[#allocation10 + $0x60] sm:$0xf]
    %v5814 = vld [vmem:[#allocation10 + $0x64] sm:$0xf]
    %v5815 = vld [vmem:[#allocation10 + $0x68] sm:$0xf]
    %v5816 = vld [vmem:[#allocation10 + $0x6c] sm:$0xf]
    %v5817 = vld [vmem:[#allocation10 + $0x70] sm:$0xf]
    %v5818 = vld [vmem:[#allocation10 + $0x74] sm:$0xf]
    %v5819 = vld [vmem:[#allocation10 + $0x78] sm:$0xf]
    %v5820 = vld [vmem:[#allocation10 + $0x7c] sm:$0xf]
    %v5821 = vld [vmem:[#allocation10 + $0x80] sm:$0xf]
    %v5822 = vld [vmem:[#allocation10 + $0x84] sm:$0xf]
    %v5823 = vld [vmem:[#allocation10 + $0x88] sm:$0xf]
    %v5824 = vld [vmem:[#allocation10 + $0x8c] sm:$0xf]
    %v5825 = vld [vmem:[#allocation10 + $0x90] sm:$0xf]
    %v5826 = vld [vmem:[#allocation10 + $0x94] sm:$0xf]
    %v5827 = vld [vmem:[#allocation10 + $0x98] sm:$0xf]
    %v5828 = vld [vmem:[#allocation10 + $0x9c] sm:$0xf]
    %v5829 = vld [vmem:[#allocation10 + $0xa0] sm:$0xf]
    %v5830 = vld [vmem:[#allocation10 + $0xa4] sm:$0xf]
    %v5831 = vld [vmem:[#allocation10 + $0xa8] sm:$0xf]
    %v5832 = vld [vmem:[#allocation10 + $0xac] sm:$0xf]
    %v5833 = vld [vmem:[#allocation10 + $0xb0] sm:$0xf]
    %v5834 = vld [vmem:[#allocation10 + $0xb4] sm:$0xf]
    %v5835 = vld [vmem:[#allocation10 + $0xb8] sm:$0xf]
    %v5836 = vld [vmem:[#allocation10 + $0xbc] sm:$0xf]
    %v5837 = vld [vmem:[#allocation10 + $0xc0] sm:$0xf]
    %v5838 = vld [vmem:[#allocation10 + $0xc4] sm:$0xf]
    %v5839 = vld [vmem:[#allocation10 + $0xc8] sm:$0xf]
    %v5840 = vld [vmem:[#allocation10 + $0xcc] sm:$0xf]
    %v5841 = vld [vmem:[#allocation10 + $0xd0] sm:$0xf]
    %v5842 = vld [vmem:[#allocation10 + $0xd4] sm:$0xf]
    %v5843 = vld [vmem:[#allocation10 + $0xd8] sm:$0xf]
    %v5844 = vld [vmem:[#allocation10 + $0xdc] sm:$0xf]
    %v5845 = vld [vmem:[#allocation10 + $0xe0] sm:$0xf]
    %v5846 = vld [vmem:[#allocation10 + $0xe4] sm:$0xf]
    %v5847 = vld [vmem:[#allocation10 + $0xe8] sm:$0xf]
    %v5848 = vld [vmem:[#allocation10 + $0xec] sm:$0xf]
    %v5849 = vld [vmem:[#allocation10 + $0xf0] sm:$0xf]
    %v5850 = vld [vmem:[#allocation10 + $0xf4] sm:$0xf]
    %v5851 = vld [vmem:[#allocation10 + $0xf8] sm:$0xf]
    %v5852 = vld [vmem:[#allocation10 + $0xfc] sm:$0xf]
    %v5853 = vld [vmem:[#allocation10 + $0x100] sm:$0xf]
    %v5854 = vld [vmem:[#allocation10 + $0x104] sm:$0xf]
    %v5855 = vld [vmem:[#allocation10 + $0x108] sm:$0xf]
    %v5856 = vld [vmem:[#allocation10 + $0x10c] sm:$0xf]
    %v5857 = vld [vmem:[#allocation10 + $0x110] sm:$0xf]
    %v5858 = vld [vmem:[#allocation10 + $0x114] sm:$0xf]
    %v5859 = vld [vmem:[#allocation10 + $0x118] sm:$0xf]
    %v5860 = vld [vmem:[#allocation10 + $0x11c] sm:$0xf]
    %v5861 = vld [vmem:[#allocation10 + $0x120] sm:$0xf]
    %v5862 = vld [vmem:[#allocation10 + $0x124] sm:$0xf]
    %v5863 = vld [vmem:[#allocation10 + $0x128] sm:$0xf]
    %v5864 = vld [vmem:[#allocation10 + $0x12c] sm:$0xf]
    %v5865 = vld [vmem:[#allocation10 + $0x130] sm:$0xf]
    %v5866 = vld [vmem:[#allocation10 + $0x134] sm:$0xf]
    %v5867 = vld [vmem:[#allocation10 + $0x138] sm:$0xf]
    %v5868 = vld [vmem:[#allocation10 + $0x13c] sm:$0xf]
    %v5869 = vld [vmem:[#allocation10 + $0x140] sm:$0xf]
    %v5870 = vld [vmem:[#allocation10 + $0x144] sm:$0xf]
    %v5871 = vld [vmem:[#allocation10 + $0x148] sm:$0xf]
    %v5872 = vld [vmem:[#allocation10 + $0x14c] sm:$0xf]
    %v5873 = vld [vmem:[#allocation10 + $0x150] sm:$0xf]
    %v5874 = vld [vmem:[#allocation10 + $0x154] sm:$0xf]
    %v5875 = vld [vmem:[#allocation10 + $0x158] sm:$0xf]
    %v5876 = vld [vmem:[#allocation10 + $0x15c] sm:$0xf]
    %v5877 = vld [vmem:[#allocation10 + $0x160] sm:$0xf]
    %v5878 = vld [vmem:[#allocation10 + $0x164] sm:$0xf]
    %v5879 = vld [vmem:[#allocation10 + $0x168] sm:$0xf]
    %v5880 = vld [vmem:[#allocation10 + $0x16c] sm:$0xf]
    %v5881 = vld [vmem:[#allocation10 + $0x170] sm:$0xf]
    %v5882 = vld [vmem:[#allocation10 + $0x174] sm:$0xf]
    %v5883 = vld [vmem:[#allocation10 + $0x178] sm:$0xf]
    %v5884 = vld [vmem:[#allocation10 + $0x17c] sm:$0xf]
    %v5885 = vld [vmem:[#allocation10 + $0x180] sm:$0xf]
    %v5886 = vld [vmem:[#allocation10 + $0x184] sm:$0xf]
    %v5887 = vld [vmem:[#allocation10 + $0x188] sm:$0xf]
    %v5888 = vld [vmem:[#allocation10 + $0x18c] sm:$0xf]
    %v5889 = vld [vmem:[#allocation10 + $0x190] sm:$0xf]
    %v5890 = vld [vmem:[#allocation10 + $0x194] sm:$0xf]
    %v5891 = vld [vmem:[#allocation10 + $0x198] sm:$0xf]
    %v5892 = vld [vmem:[#allocation10 + $0x19c] sm:$0xf]
    %v5893 = vld [vmem:[#allocation10 + $0x1a0] sm:$0xf]
    %v5894 = vld [vmem:[#allocation10 + $0x1a4] sm:$0xf]
    %v5895 = vld [vmem:[#allocation10 + $0x1a8] sm:$0xf]
    %v5896 = vld [vmem:[#allocation10 + $0x1ac] sm:$0xf]
    %v5897 = vld [vmem:[#allocation10 + $0x1b0] sm:$0xf]
    %v5898 = vld [vmem:[#allocation10 + $0x1b4] sm:$0xf]
    %v5899 = vld [vmem:[#allocation10 + $0x1b8] sm:$0xf]
    %v5900 = vld [vmem:[#allocation10 + $0x1bc] sm:$0xf]
    %v5901 = vld [vmem:[#allocation10 + $0x1c0] sm:$0xf]
    %v5902 = vld [vmem:[#allocation10 + $0x1c4] sm:$0xf]
    %v5903 = vld [vmem:[#allocation10 + $0x1c8] sm:$0xf]
    %v5904 = vld [vmem:[#allocation10 + $0x1cc] sm:$0xf]
    %v5905 = vld [vmem:[#allocation10 + $0x1d0] sm:$0xf]
    %v5906 = vld [vmem:[#allocation10 + $0x1d4] sm:$0xf]
    %v5907 = vld [vmem:[#allocation10 + $0x1d8] sm:$0xf]
    %v5908 = vld [vmem:[#allocation10 + $0x1dc] sm:$0xf]
    %v5909 = vld [vmem:[#allocation10 + $0x1e0] sm:$0xf]
    %v5910 = vld [vmem:[#allocation10 + $0x1e4] sm:$0xf]
    %v5911 = vld [vmem:[#allocation10 + $0x1e8] sm:$0xf]
    %v5912 = vld [vmem:[#allocation10 + $0x1ec] sm:$0xf]
    %v5913 = vld [vmem:[#allocation10 + $0x1f0] sm:$0xf]
    %v5914 = vld [vmem:[#allocation10 + $0x1f4] sm:$0xf]
    %v5915 = vld [vmem:[#allocation10 + $0x1f8] sm:$0xf]
    %v5916 = vld [vmem:[#allocation10 + $0x1fc] sm:$0xf]
    %v5917 = vld [vmem:[#allocation10 + $0x200] sm:$0xf]
    %v5918 = vld [vmem:[#allocation10 + $0x204] sm:$0xf]
    %v5919 = vld [vmem:[#allocation10 + $0x208] sm:$0xf]
    %v5920 = vld [vmem:[#allocation10 + $0x20c] sm:$0xf]
    %v5921 = vld [vmem:[#allocation10 + $0x210] sm:$0xf]
    %v5922 = vld [vmem:[#allocation10 + $0x214] sm:$0xf]
    %v5923 = vld [vmem:[#allocation10 + $0x218] sm:$0xf]
    %v5924 = vld [vmem:[#allocation10 + $0x21c] sm:$0xf]
    %v5925 = vld [vmem:[#allocation10 + $0x220] sm:$0xf]
    %v5926 = vld [vmem:[#allocation10 + $0x224] sm:$0xf]
    %v5927 = vld [vmem:[#allocation10 + $0x228] sm:$0xf]
    %v5928 = vld [vmem:[#allocation10 + $0x22c] sm:$0xf]
    %v5929 = vld [vmem:[#allocation10 + $0x230] sm:$0xf]
    %v5930 = vld [vmem:[#allocation10 + $0x234] sm:$0xf]
    %v5931 = vld [vmem:[#allocation10 + $0x238] sm:$0xf]
    %v5932 = vld [vmem:[#allocation10 + $0x23c] sm:$0xf]
    %v6077 = vunpack.c.l.b16 %v5789
    %v6078 = vunpack.c.l.b16 %v5790
    %v6079 = vunpack.c.l.b16 %v5791
    %v6080 = vunpack.c.l.b16 %v5792
    %v6081 = vunpack.c.l.b16 %v5793
    %v6082 = vunpack.c.l.b16 %v5794
    %v6083 = vunpack.c.l.b16 %v5795
    %v6084 = vunpack.c.l.b16 %v5796
    %v6085 = vunpack.c.l.b16 %v5797
    %v6086 = vunpack.c.l.b16 %v5798
    %v6087 = vunpack.c.l.b16 %v5799
    %v6088 = vunpack.c.l.b16 %v5800
    %v6089 = vunpack.c.l.b16 %v5801
    %v6090 = vunpack.c.l.b16 %v5802
    %v6091 = vunpack.c.l.b16 %v5803
    %v6092 = vunpack.c.l.b16 %v5804
    %v6093 = vunpack.c.l.b16 %v5805
    %v6094 = vunpack.c.l.b16 %v5806
    %v6095 = vunpack.c.l.b16 %v5807
    %v6096 = vunpack.c.l.b16 %v5808
    %v6097 = vunpack.c.l.b16 %v5809
    %v6098 = vunpack.c.l.b16 %v5810
    %v6099 = vunpack.c.l.b16 %v5811
    %v6100 = vunpack.c.l.b16 %v5812
    %v6101 = vunpack.c.l.b16 %v5813
    %v6102 = vunpack.c.l.b16 %v5814
    %v6103 = vunpack.c.l.b16 %v5815
    %v6104 = vunpack.c.l.b16 %v5816
    %v6105 = vunpack.c.l.b16 %v5817
    %v6106 = vunpack.c.l.b16 %v5818
    %v6107 = vunpack.c.l.b16 %v5819
    %v6108 = vunpack.c.l.b16 %v5820
    %v6109 = vunpack.c.l.b16 %v5821
    %v6110 = vunpack.c.l.b16 %v5822
    %v6111 = vunpack.c.l.b16 %v5823
    %v6112 = vunpack.c.l.b16 %v5824
    %v6113 = vunpack.c.l.b16 %v5825
    %v6114 = vunpack.c.l.b16 %v5826
    %v6115 = vunpack.c.l.b16 %v5827
    %v6116 = vunpack.c.l.b16 %v5828
    %v6117 = vunpack.c.l.b16 %v5829
    %v6118 = vunpack.c.l.b16 %v5830
    %v6119 = vunpack.c.l.b16 %v5831
    %v6120 = vunpack.c.l.b16 %v5832
    %v6121 = vunpack.c.l.b16 %v5833
    %v6122 = vunpack.c.l.b16 %v5834
    %v6123 = vunpack.c.l.b16 %v5835
    %v6124 = vunpack.c.l.b16 %v5836
    %v6125 = vunpack.c.l.b16 %v5837
    %v6126 = vunpack.c.l.b16 %v5838
    %v6127 = vunpack.c.l.b16 %v5839
    %v6128 = vunpack.c.l.b16 %v5840
    %v6129 = vunpack.c.l.b16 %v5841
    %v6130 = vunpack.c.l.b16 %v5842
    %v6131 = vunpack.c.l.b16 %v5843
    %v6132 = vunpack.c.l.b16 %v5844
    %v6133 = vunpack.c.l.b16 %v5845
    %v6134 = vunpack.c.l.b16 %v5846
    %v6135 = vunpack.c.l.b16 %v5847
    %v6136 = vunpack.c.l.b16 %v5848
    %v6137 = vunpack.c.l.b16 %v5849
    %v6138 = vunpack.c.l.b16 %v5850
    %v6139 = vunpack.c.l.b16 %v5851
    %v6140 = vunpack.c.l.b16 %v5852
    %v6141 = vunpack.c.l.b16 %v5853
    %v6142 = vunpack.c.l.b16 %v5854
    %v6143 = vunpack.c.l.b16 %v5855
    %v6144 = vunpack.c.l.b16 %v5856
    %v6145 = vunpack.c.l.b16 %v5857
    %v6146 = vunpack.c.l.b16 %v5858
    %v6147 = vunpack.c.l.b16 %v5859
    %v6148 = vunpack.c.l.b16 %v5860
    %v6149 = vunpack.c.l.b16 %v5861
    %v6150 = vunpack.c.l.b16 %v5862
    %v6151 = vunpack.c.l.b16 %v5863
    %v6152 = vunpack.c.l.b16 %v5864
    %v6153 = vunpack.c.l.b16 %v5865
    %v6154 = vunpack.c.l.b16 %v5866
    %v6155 = vunpack.c.l.b16 %v5867
    %v6156 = vunpack.c.l.b16 %v5868
    %v6157 = vunpack.c.l.b16 %v5869
    %v6158 = vunpack.c.l.b16 %v5870
    %v6159 = vunpack.c.l.b16 %v5871
    %v6160 = vunpack.c.l.b16 %v5872
    %v6161 = vunpack.c.l.b16 %v5873
    %v6162 = vunpack.c.l.b16 %v5874
    %v6163 = vunpack.c.l.b16 %v5875
    %v6164 = vunpack.c.l.b16 %v5876
    %v6165 = vunpack.c.l.b16 %v5877
    %v6166 = vunpack.c.l.b16 %v5878
    %v6167 = vunpack.c.l.b16 %v5879
    %v6168 = vunpack.c.l.b16 %v5880
    %v6169 = vunpack.c.l.b16 %v5881
    %v6170 = vunpack.c.l.b16 %v5882
    %v6171 = vunpack.c.l.b16 %v5883
    %v6172 = vunpack.c.l.b16 %v5884
    %v6173 = vunpack.c.l.b16 %v5885
    %v6174 = vunpack.c.l.b16 %v5886
    %v6175 = vunpack.c.l.b16 %v5887
    %v6176 = vunpack.c.l.b16 %v5888
    %v6177 = vunpack.c.l.b16 %v5889
    %v6178 = vunpack.c.l.b16 %v5890
    %v6179 = vunpack.c.l.b16 %v5891
    %v6180 = vunpack.c.l.b16 %v5892
    %v6181 = vunpack.c.l.b16 %v5893
    %v6182 = vunpack.c.l.b16 %v5894
    %v6183 = vunpack.c.l.b16 %v5895
    %v6184 = vunpack.c.l.b16 %v5896
    %v6185 = vunpack.c.l.b16 %v5897
    %v6186 = vunpack.c.l.b16 %v5898
    %v6187 = vunpack.c.l.b16 %v5899
    %v6188 = vunpack.c.l.b16 %v5900
    %v6189 = vunpack.c.l.b16 %v5901
    %v6190 = vunpack.c.l.b16 %v5902
    %v6191 = vunpack.c.l.b16 %v5903
    %v6192 = vunpack.c.l.b16 %v5904
    %v6193 = vunpack.c.l.b16 %v5905
    %v6194 = vunpack.c.l.b16 %v5906
    %v6195 = vunpack.c.l.b16 %v5907
    %v6196 = vunpack.c.l.b16 %v5908
    %v6197 = vunpack.c.l.b16 %v5909
    %v6198 = vunpack.c.l.b16 %v5910
    %v6199 = vunpack.c.l.b16 %v5911
    %v6200 = vunpack.c.l.b16 %v5912
    %v6201 = vunpack.c.l.b16 %v5913
    %v6202 = vunpack.c.l.b16 %v5914
    %v6203 = vunpack.c.l.b16 %v5915
    %v6204 = vunpack.c.l.b16 %v5916
    %v6205 = vunpack.c.l.b16 %v5917
    %v6206 = vunpack.c.l.b16 %v5918
    %v6207 = vunpack.c.l.b16 %v5919
    %v6208 = vunpack.c.l.b16 %v5920
    %v6209 = vunpack.c.l.b16 %v5921
    %v6210 = vunpack.c.l.b16 %v5922
    %v6211 = vunpack.c.l.b16 %v5923
    %v6212 = vunpack.c.l.b16 %v5924
    %v6213 = vunpack.c.l.b16 %v5925
    %v6214 = vunpack.c.l.b16 %v5926
    %v6215 = vunpack.c.l.b16 %v5927
    %v6216 = vunpack.c.l.b16 %v5928
    %v6217 = vunpack.c.l.b16 %v5929
    %v6218 = vunpack.c.l.b16 %v5930
    %v6219 = vunpack.c.l.b16 %v5931
    %v6220 = vunpack.c.l.b16 %v5932
    %v6221 = vpack.c.b16 %v6078, %v6077
    %v6222 = vpack.c.b16 %v6080, %v6079
    %v6223 = vpack.c.b16 %v6082, %v6081
    %v6224 = vpack.c.b16 %v6084, %v6083
    %v6225 = vpack.c.b16 %v6086, %v6085
    %v6226 = vpack.c.b16 %v6088, %v6087
    %v6227 = vpack.c.b16 %v6090, %v6089
    %v6228 = vpack.c.b16 %v6092, %v6091
    %v6229 = vpack.c.b16 %v6094, %v6093
    %v6230 = vpack.c.b16 %v6096, %v6095
    %v6231 = vpack.c.b16 %v6098, %v6097
    %v6232 = vpack.c.b16 %v6100, %v6099
    %v6233 = vpack.c.b16 %v6102, %v6101
    %v6234 = vpack.c.b16 %v6104, %v6103
    %v6235 = vpack.c.b16 %v6106, %v6105
    %v6236 = vpack.c.b16 %v6108, %v6107
    %v6237 = vpack.c.b16 %v6110, %v6109
    %v6238 = vpack.c.b16 %v6112, %v6111
    %v6239 = vpack.c.b16 %v6114, %v6113
    %v6240 = vpack.c.b16 %v6116, %v6115
    %v6241 = vpack.c.b16 %v6118, %v6117
    %v6242 = vpack.c.b16 %v6120, %v6119
    %v6243 = vpack.c.b16 %v6122, %v6121
    %v6244 = vpack.c.b16 %v6124, %v6123
    %v6245 = vpack.c.b16 %v6126, %v6125
    %v6246 = vpack.c.b16 %v6128, %v6127
    %v6247 = vpack.c.b16 %v6130, %v6129
    %v6248 = vpack.c.b16 %v6132, %v6131
    %v6249 = vpack.c.b16 %v6134, %v6133
    %v6250 = vpack.c.b16 %v6136, %v6135
    %v6251 = vpack.c.b16 %v6138, %v6137
    %v6252 = vpack.c.b16 %v6140, %v6139
    %v6253 = vpack.c.b16 %v6142, %v6141
    %v6254 = vpack.c.b16 %v6144, %v6143
    %v6255 = vpack.c.b16 %v6146, %v6145
    %v6256 = vpack.c.b16 %v6148, %v6147
    %v6257 = vpack.c.b16 %v6150, %v6149
    %v6258 = vpack.c.b16 %v6152, %v6151
    %v6259 = vpack.c.b16 %v6154, %v6153
    %v6260 = vpack.c.b16 %v6156, %v6155
    %v6261 = vpack.c.b16 %v6158, %v6157
    %v6262 = vpack.c.b16 %v6160, %v6159
    %v6263 = vpack.c.b16 %v6162, %v6161
    %v6264 = vpack.c.b16 %v6164, %v6163
    %v6265 = vpack.c.b16 %v6166, %v6165
    %v6266 = vpack.c.b16 %v6168, %v6167
    %v6267 = vpack.c.b16 %v6170, %v6169
    %v6268 = vpack.c.b16 %v6172, %v6171
    %v6269 = vpack.c.b16 %v6174, %v6173
    %v6270 = vpack.c.b16 %v6176, %v6175
    %v6271 = vpack.c.b16 %v6178, %v6177
    %v6272 = vpack.c.b16 %v6180, %v6179
    %v6273 = vpack.c.b16 %v6182, %v6181
    %v6274 = vpack.c.b16 %v6184, %v6183
    %v6275 = vpack.c.b16 %v6186, %v6185
    %v6276 = vpack.c.b16 %v6188, %v6187
    %v6277 = vpack.c.b16 %v6190, %v6189
    %v6278 = vpack.c.b16 %v6192, %v6191
    %v6279 = vpack.c.b16 %v6194, %v6193
    %v6280 = vpack.c.b16 %v6196, %v6195
    %v6281 = vpack.c.b16 %v6198, %v6197
    %v6282 = vpack.c.b16 %v6200, %v6199
    %v6283 = vpack.c.b16 %v6202, %v6201
    %v6284 = vpack.c.b16 %v6204, %v6203
    %v6285 = vpack.c.b16 %v6206, %v6205
    %v6286 = vpack.c.b16 %v6208, %v6207
    %v6287 = vpack.c.b16 %v6210, %v6209
    %v6288 = vpack.c.b16 %v6212, %v6211
    %v6289 = vpack.c.b16 %v6214, %v6213
    %v6290 = vpack.c.b16 %v6216, %v6215
    %v6291 = vpack.c.b16 %v6218, %v6217
    %v6292 = vpack.c.b16 %v6220, %v6219
    %6365 = vmatprep.subr.bf16.mxu0 0
    %6366 = vmatpush1.bf16.msra.mxu0 %v6221
    %6367 = vmatprep.subr.bf16.mxu0 0
    %6368 = vmatpush1.bf16.msra.mxu0 %v6222
    %6369 = vmatprep.subr.bf16.mxu0 0
    %6370 = vmatpush1.bf16.msra.mxu0 %v6223
    %6371 = vmatprep.subr.bf16.mxu0 0
    %6372 = vmatpush1.bf16.msra.mxu0 %v6224
    %6373 = vmatprep.subr.bf16.mxu0 0
    %6374 = vmatpush1.bf16.msra.mxu0 %v6225
    %6375 = vmatprep.subr.bf16.mxu0 0
    %6376 = vmatpush1.bf16.msra.mxu0 %v6226
    %6377 = vmatprep.subr.bf16.mxu0 0
    %6378 = vmatpush1.bf16.msra.mxu0 %v6227
    %6379 = vmatprep.subr.bf16.mxu0 0
    %6380 = vmatpush1.bf16.msra.mxu0 %v6228
    %6381 = vmatprep.subr.bf16.mxu0 0
    %6382 = vmatpush1.bf16.msra.mxu0 %v6229
    %6383 = vmatprep.subr.bf16.mxu0 0
    %6384 = vmatpush1.bf16.msra.mxu0 %v6230
    %6385 = vmatprep.subr.bf16.mxu0 0
    %6386 = vmatpush1.bf16.msra.mxu0 %v6231
    %6387 = vmatprep.subr.bf16.mxu0 0
    %6388 = vmatpush1.bf16.msra.mxu0 %v6232
    %6389 = vmatprep.subr.bf16.mxu0 0
    %6390 = vmatpush1.bf16.msra.mxu0 %v6233
    %6391 = vmatprep.subr.bf16.mxu0 0
    %6392 = vmatpush1.bf16.msra.mxu0 %v6234
    %6393 = vmatprep.subr.bf16.mxu0 0
    %6394 = vmatpush1.bf16.msra.mxu0 %v6235
    %6395 = vmatprep.subr.bf16.mxu0 0
    %6396 = vmatpush1.bf16.msra.mxu0 %v6236
    %6397 = vmatprep.mubr.bf16.mxu0 %v5502
    %6398 = vmatmul.mubr.bf16.gmra.mrb[0].mxu0 %v5501
    %v6399 = vpop.f32.mrb[0].mxu0
    %v6400 = vadd.f32 0.0, %v6399
    %v6401 = vpop.f32.mrb[0].mxu0
    %v6402 = vpop.f32.mrb[0].mxu0
    %v6403 = vadd.f32 0.0, %v6402
    %v6404 = vpop.f32.mrb[0].mxu0
    %6405 = vmatprep.mubr.bf16.mxu0 %v5511
    %6406 = vmatmul.mubr.bf16.gmra.mrb[0].mxu0 %v5510
    %v6407 = vpop.f32.mrb[0].mxu0
    %v6408 = vadd.f32 0.0, %v6407
    %v6409 = vpop.f32.mrb[0].mxu0
    %v6410 = vpop.f32.mrb[0].mxu0
    %v6411 = vadd.f32 0.0, %v6410
    %v6412 = vpop.f32.mrb[0].mxu0
    %6413 = vmatprep.mubr.bf16.mxu0 %v5520
    %6414 = vmatmul.mubr.bf16.gmra.mrb[0].mxu0 %v5519
    %v6415 = vpop.f32.mrb[0].mxu0
    %v6416 = vadd.f32 0.0, %v6415
    %v6417 = vpop.f32.mrb[0].mxu0
    %v6418 = vpop.f32.mrb[0].mxu0
    %v6419 = vadd.f32 0.0, %v6418
    %v6420 = vpop.f32.mrb[0].mxu0
    %6421 = vmatprep.mubr.bf16.mxu0 %v5529
    %6422 = vmatmul.mubr.bf16.gmra.mrb[0].mxu0 %v5528
    %v6423 = vpop.f32.mrb[0].mxu0
    %v6424 = vadd.f32 0.0, %v6423
    %v6425 = vpop.f32.mrb[0].mxu0
    %v6426 = vpop.f32.mrb[0].mxu0
    %v6427 = vadd.f32 0.0, %v6426
    %v6428 = vpop.f32.mrb[0].mxu0
    %6429 = vmatprep.mubr.bf16.mxu0 %v5538
    %6430 = vmatmul.mubr.bf16.gmra.mrb[0].mxu0 %v5537
    %v6431 = vpop.f32.mrb[0].mxu0
    %v6432 = vadd.f32 0.0, %v6431
    %v6433 = vpop.f32.mrb[0].mxu0
    %v6434 = vpop.f32.mrb[0].mxu0
    %v6435 = vadd.f32 0.0, %v6434
    %v6436 = vpop.f32.mrb[0].mxu0
    %6437 = vmatprep.mubr.bf16.mxu0 %v5547
    %6438 = vmatmul.mubr.bf16.gmra.mrb[0].mxu0 %v5546
    %v6439 = vpop.f32.mrb[0].mxu0
    %v6440 = vadd.f32 0.0, %v6439
    %v6441 = vpop.f32.mrb[0].mxu0
    %v6442 = vpop.f32.mrb[0].mxu0
    %v6443 = vadd.f32 0.0, %v6442
    %v6444 = vpop.f32.mrb[0].mxu0
    %6445 = vmatprep.mubr.bf16.mxu0 %v5556
    %6446 = vmatmul.mubr.bf16.gmra.mrb[0].mxu0 %v5555
    %v6447 = vpop.f32.mrb[0].mxu0
    %v6448 = vadd.f32 0.0, %v6447
    %v6449 = vpop.f32.mrb[0].mxu0
    %v6450 = vpop.f32.mrb[0].mxu0
    %v6451 = vadd.f32 0.0, %v6450
    %v6452 = vpop.f32.mrb[0].mxu0
    %6453 = vmatprep.mubr.bf16.mxu0 %v5565
    %6454 = vmatmul.mubr.bf16.gmra.mrb[0].mxu0 %v5564
    %v6455 = vpop.f32.mrb[0].mxu0
    %v6456 = vadd.f32 0.0, %v6455
    %v6457 = vpop.f32.mrb[0].mxu0
    %v6458 = vpop.f32.mrb[0].mxu0
    %v6459 = vadd.f32 0.0, %v6458
    %v6460 = vpop.f32.mrb[0].mxu0
    %6461 = vmatprep.mubr.bf16.mxu0 %v5574
    %6462 = vmatmul.mubr.bf16.gmra.mrb[0].mxu0 %v5573
    %v6463 = vpop.f32.mrb[0].mxu0
    %v6464 = vadd.f32 0.0, %v6463
    %v6465 = vpop.f32.mrb[0].mxu0
    %v6466 = vpop.f32.mrb[0].mxu0
    %v6467 = vadd.f32 0.0, %v6466
    %v6468 = vpop.f32.mrb[0].mxu0
    %6469 = vmatprep.mubr.bf16.mxu0 %v5583
    %6470 = vmatmul.mubr.bf16.gmra.mrb[0].mxu0 %v5582
    %v6471 = vpop.f32.mrb[0].mxu0
    %v6472 = vadd.f32 0.0, %v6471
    %v6473 = vpop.f32.mrb[0].mxu0
    %v6474 = vpop.f32.mrb[0].mxu0
    %v6475 = vadd.f32 0.0, %v6474
    %v6476 = vpop.f32.mrb[0].mxu0
    %6477 = vmatprep.mubr.bf16.mxu0 %v5592
    %6478 = vmatmul.mubr.bf16.gmra.mrb[0].mxu0 %v5591
    %v6479 = vpop.f32.mrb[0].mxu0
    %v6480 = vadd.f32 0.0, %v6479
    %v6481 = vpop.f32.mrb[0].mxu0
    %v6482 = vpop.f32.mrb[0].mxu0
    %v6483 = vadd.f32 0.0, %v6482
    %v6484 = vpop.f32.mrb[0].mxu0
    %6485 = vmatprep.mubr.bf16.mxu0 %v5601
    %6486 = vmatmul.mubr.bf16.gmra.mrb[0].mxu0 %v5600
    %v6487 = vpop.f32.mrb[0].mxu0
    %v6488 = vadd.f32 0.0, %v6487
    %v6489 = vpop.f32.mrb[0].mxu0
    %v6490 = vpop.f32.mrb[0].mxu0
    %v6491 = vadd.f32 0.0, %v6490
    %v6492 = vpop.f32.mrb[0].mxu0
    %6493 = vmatprep.mubr.bf16.mxu0 %v5610
    %6494 = vmatmul.mubr.bf16.gmra.mrb[0].mxu0 %v5609
    %v6495 = vpop.f32.mrb[0].mxu0
    %v6496 = vadd.f32 0.0, %v6495
    %v6497 = vpop.f32.mrb[0].mxu0
    %v6498 = vpop.f32.mrb[0].mxu0
    %v6499 = vadd.f32 0.0, %v6498
    %v6500 = vpop.f32.mrb[0].mxu0
    %6501 = vmatprep.mubr.bf16.mxu0 %v5619
    %6502 = vmatmul.mubr.bf16.gmra.mrb[0].mxu0 %v5618
    %v6503 = vpop.f32.mrb[0].mxu0
    %v6504 = vadd.f32 0.0, %v6503
    %v6505 = vpop.f32.mrb[0].mxu0
    %v6506 = vpop.f32.mrb[0].mxu0
    %v6507 = vadd.f32 0.0, %v6506
    %v6508 = vpop.f32.mrb[0].mxu0
    %6509 = vmatprep.mubr.bf16.mxu0 %v5628
    %6510 = vmatmul.mubr.bf16.gmra.mrb[0].mxu0 %v5627
    %v6511 = vpop.f32.mrb[0].mxu0
    %v6512 = vadd.f32 0.0, %v6511
    %v6513 = vpop.f32.mrb[0].mxu0
    %v6514 = vpop.f32.mrb[0].mxu0
    %v6515 = vadd.f32 0.0, %v6514
    %v6516 = vpop.f32.mrb[0].mxu0
    %6517 = vmatprep.mubr.bf16.mxu0 %v5637
    %6518 = vmatmul.mubr.bf16.gmra.mrb[0].mxu0 %v5636
    %v6519 = vpop.f32.mrb[0].mxu0
    %v6520 = vadd.f32 0.0, %v6519
    %v6521 = vpop.f32.mrb[0].mxu0
    %v6522 = vpop.f32.mrb[0].mxu0
    %v6523 = vadd.f32 0.0, %v6522
    %v6524 = vpop.f32.mrb[0].mxu0
    %6525 = vmatprep.mubr.bf16.mxu0 %v5646
    %6526 = vmatmul.mubr.bf16.gmra.mrb[0].mxu0 %v5645
    %v6527 = vpop.f32.mrb[0].mxu0
    %v6528 = vadd.f32 0.0, %v6527
    %v6529 = vpop.f32.mrb[0].mxu0
    %v6530 = vpop.f32.mrb[0].mxu0
    %v6531 = vadd.f32 0.0, %v6530
    %v6532 = vpop.f32.mrb[0].mxu0
    %6533 = vmatprep.mubr.bf16.mxu0 %v5655
    %6534 = vmatmul.mubr.bf16.gmra.mrb[0].mxu0 %v5654
    %v6535 = vpop.f32.mrb[0].mxu0
    %v6536 = vadd.f32 0.0, %v6535
    %v6537 = vpop.f32.mrb[0].mxu0
    %v6538 = vpop.f32.mrb[0].mxu0
    %v6539 = vadd.f32 0.0, %v6538
    %v6540 = vpop.f32.mrb[0].mxu0
    %6541 = vmatprep.mubr.bf16.mxu0 %v5664
    %6542 = vmatmul.mubr.bf16.gmra.mrb[0].mxu0 %v5663
    %v6543 = vpop.f32.mrb[0].mxu0
    %v6544 = vadd.f32 0.0, %v6543
    %v6545 = vpop.f32.mrb[0].mxu0
    %v6546 = vpop.f32.mrb[0].mxu0
    %v6547 = vadd.f32 0.0, %v6546
    %v6548 = vpop.f32.mrb[0].mxu0
    %6549 = vmatprep.mubr.bf16.mxu0 %v5673
    %6550 = vmatmul.mubr.bf16.gmra.mrb[0].mxu0 %v5672
    %v6551 = vpop.f32.mrb[0].mxu0
    %v6552 = vadd.f32 0.0, %v6551
    %v6553 = vpop.f32.mrb[0].mxu0
    %v6554 = vpop.f32.mrb[0].mxu0
    %v6555 = vadd.f32 0.0, %v6554
    %v6556 = vpop.f32.mrb[0].mxu0
    %6557 = vmatprep.mubr.bf16.mxu0 %v5682
    %6558 = vmatmul.mubr.bf16.gmra.mrb[0].mxu0 %v5681
    %v6559 = vpop.f32.mrb[0].mxu0
    %v6560 = vadd.f32 0.0, %v6559
    %v6561 = vpop.f32.mrb[0].mxu0
    %v6562 = vpop.f32.mrb[0].mxu0
    %v6563 = vadd.f32 0.0, %v6562
    %v6564 = vpop.f32.mrb[0].mxu0
    %6565 = vmatprep.mubr.bf16.mxu0 %v5691
    %6566 = vmatmul.mubr.bf16.gmra.mrb[0].mxu0 %v5690
    %v6567 = vpop.f32.mrb[0].mxu0
    %v6568 = vadd.f32 0.0, %v6567
    %v6569 = vpop.f32.mrb[0].mxu0
    %v6570 = vpop.f32.mrb[0].mxu0
    %v6571 = vadd.f32 0.0, %v6570
    %v6572 = vpop.f32.mrb[0].mxu0
    %6573 = vmatprep.mubr.bf16.mxu0 %v5700
    %6574 = vmatmul.mubr.bf16.gmra.mrb[0].mxu0 %v5699
    %v6575 = vpop.f32.mrb[0].mxu0
    %v6576 = vadd.f32 0.0, %v6575
    %v6577 = vpop.f32.mrb[0].mxu0
    %v6578 = vpop.f32.mrb[0].mxu0
    %v6579 = vadd.f32 0.0, %v6578
    %v6580 = vpop.f32.mrb[0].mxu0
    %6581 = vmatprep.mubr.bf16.mxu0 %v5709
    %6582 = vmatmul.mubr.bf16.gmra.mrb[0].mxu0 %v5708
    %v6583 = vpop.f32.mrb[0].mxu0
    %v6584 = vadd.f32 0.0, %v6583
    %v6585 = vpop.f32.mrb[0].mxu0
    %v6586 = vpop.f32.mrb[0].mxu0
    %v6587 = vadd.f32 0.0, %v6586
    %v6588 = vpop.f32.mrb[0].mxu0
    %6589 = vmatprep.mubr.bf16.mxu0 %v5718
    %6590 = vmatmul.mubr.bf16.gmra.mrb[0].mxu0 %v5717
    %v6591 = vpop.f32.mrb[0].mxu0
    %v6592 = vadd.f32 0.0, %v6591
    %v6593 = vpop.f32.mrb[0].mxu0
    %v6594 = vpop.f32.mrb[0].mxu0
    %v6595 = vadd.f32 0.0, %v6594
    %v6596 = vpop.f32.mrb[0].mxu0
    %6597 = vmatprep.mubr.bf16.mxu0 %v5727
    %6598 = vmatmul.mubr.bf16.gmra.mrb[0].mxu0 %v5726
    %v6599 = vpop.f32.mrb[0].mxu0
    %v6600 = vadd.f32 0.0, %v6599
    %v6601 = vpop.f32.mrb[0].mxu0
    %v6602 = vpop.f32.mrb[0].mxu0
    %v6603 = vadd.f32 0.0, %v6602
    %v6604 = vpop.f32.mrb[0].mxu0
    %6605 = vmatprep.mubr.bf16.mxu0 %v5736
    %6606 = vmatmul.mubr.bf16.gmra.mrb[0].mxu0 %v5735
    %v6607 = vpop.f32.mrb[0].mxu0
    %v6608 = vadd.f32 0.0, %v6607
    %v6609 = vpop.f32.mrb[0].mxu0
    %v6610 = vpop.f32.mrb[0].mxu0
    %v6611 = vadd.f32 0.0, %v6610
    %v6612 = vpop.f32.mrb[0].mxu0
    %6613 = vmatprep.mubr.bf16.mxu0 %v5745
    %6614 = vmatmul.mubr.bf16.gmra.mrb[0].mxu0 %v5744
    %v6615 = vpop.f32.mrb[0].mxu0
    %v6616 = vadd.f32 0.0, %v6615
    %v6617 = vpop.f32.mrb[0].mxu0
    %v6618 = vpop.f32.mrb[0].mxu0
    %v6619 = vadd.f32 0.0, %v6618
    %v6620 = vpop.f32.mrb[0].mxu0
    %6621 = vmatprep.mubr.bf16.mxu0 %v5754
    %6622 = vmatmul.mubr.bf16.gmra.mrb[0].mxu0 %v5753
    %v6623 = vpop.f32.mrb[0].mxu0
    %v6624 = vadd.f32 0.0, %v6623
    %v6625 = vpop.f32.mrb[0].mxu0
    %v6626 = vpop.f32.mrb[0].mxu0
    %v6627 = vadd.f32 0.0, %v6626
    %v6628 = vpop.f32.mrb[0].mxu0
    %6629 = vmatprep.mubr.bf16.mxu0 %v5763
    %6630 = vmatmul.mubr.bf16.gmra.mrb[0].mxu0 %v5762
    %v6631 = vpop.f32.mrb[0].mxu0
    %v6632 = vadd.f32 0.0, %v6631
    %v6633 = vpop.f32.mrb[0].mxu0
    %v6634 = vpop.f32.mrb[0].mxu0
    %v6635 = vadd.f32 0.0, %v6634
    %v6636 = vpop.f32.mrb[0].mxu0
    %6637 = vmatprep.mubr.bf16.mxu0 %v5772
    %6638 = vmatmul.mubr.bf16.gmra.mrb[0].mxu0 %v5771
    %v6639 = vpop.f32.mrb[0].mxu0
    %v6640 = vadd.f32 0.0, %v6639
    %v6641 = vpop.f32.mrb[0].mxu0
    %v6642 = vpop.f32.mrb[0].mxu0
    %v6643 = vadd.f32 0.0, %v6642
    %v6644 = vpop.f32.mrb[0].mxu0
    %6645 = vmatprep.mubr.bf16.mxu0 %v5781
    %6646 = vmatmul.mubr.bf16.gmra.mrb[0].mxu0 %v5780
    %v6647 = vpop.f32.mrb[0].mxu0
    %v6648 = vadd.f32 0.0, %v6647
    %v6649 = vpop.f32.mrb[0].mxu0
    %v6650 = vpop.f32.mrb[0].mxu0
    %v6651 = vadd.f32 0.0, %v6650
    %v6652 = vpop.f32.mrb[0].mxu0
    %6653 = vdwg.mxu0
    %6654 = vmatprep.subr.bf16.mxu0 0
    %6655 = vmatpush1.bf16.msra.mxu0 %v6237
    %6656 = vmatprep.subr.bf16.mxu0 0
    %6657 = vmatpush1.bf16.msra.mxu0 %v6238
    %6658 = vmatprep.subr.bf16.mxu0 0
    %6659 = vmatpush1.bf16.msra.mxu0 %v6239
    %6660 = vmatprep.subr.bf16.mxu0 0
    %6661 = vmatpush1.bf16.msra.mxu0 %v6240
    %6662 = vmatprep.subr.bf16.mxu0 0
    %6663 = vmatpush1.bf16.msra.mxu0 %v6241
    %6664 = vmatprep.subr.bf16.mxu0 0
    %6665 = vmatpush1.bf16.msra.mxu0 %v6242
    %6666 = vmatprep.subr.bf16.mxu0 0
    %6667 = vmatpush1.bf16.msra.mxu0 %v6243
    %6668 = vmatprep.subr.bf16.mxu0 0
    %6669 = vmatpush1.bf16.msra.mxu0 %v6244
    %6670 = vmatprep.subr.bf16.mxu0 0
    %6671 = vmatpush1.bf16.msra.mxu0 %v6245
    %6672 = vmatprep.subr.bf16.mxu0 0
    %6673 = vmatpush1.bf16.msra.mxu0 %v6246
    %6674 = vmatprep.subr.bf16.mxu0 0
    %6675 = vmatpush1.bf16.msra.mxu0 %v6247
    %6676 = vmatprep.subr.bf16.mxu0 0
    %6677 = vmatpush1.bf16.msra.mxu0 %v6248
    %6678 = vmatprep.subr.bf16.mxu0 0
    %6679 = vmatpush1.bf16.msra.mxu0 %v6249
    %6680 = vmatprep.subr.bf16.mxu0 0
    %6681 = vmatpush1.bf16.msra.mxu0 %v6250
    %6682 = vmatprep.subr.bf16.mxu0 0
    %6683 = vmatpush1.bf16.msra.mxu0 %v6251
    %6684 = vmatprep.subr.bf16.mxu0 0
    %6685 = vmatpush1.bf16.msra.mxu0 %v6252
    %6686 = vmatprep.mubr.bf16.mxu0 %v5504
    %6687 = vmatmul.mubr.bf16.gmra.mrb[0].mxu0 %v5503
    %v6688 = vpop.f32.mrb[0].mxu0
    %v6689 = vadd.f32 %v6400, %v6688
    %v6690 = vpop.f32.mrb[0].mxu0
    %v6691 = vpop.f32.mrb[0].mxu0
    %v6692 = vadd.f32 %v6403, %v6691
    %v6693 = vpop.f32.mrb[0].mxu0
    %6694 = vmatprep.mubr.bf16.mxu0 %v5513
    %6695 = vmatmul.mubr.bf16.gmra.mrb[0].mxu0 %v5512
    %v6696 = vpop.f32.mrb[0].mxu0
    %v6697 = vadd.f32 %v6408, %v6696
    %v6698 = vpop.f32.mrb[0].mxu0
    %v6699 = vpop.f32.mrb[0].mxu0
    %v6700 = vadd.f32 %v6411, %v6699
    %v6701 = vpop.f32.mrb[0].mxu0
    %6702 = vmatprep.mubr.bf16.mxu0 %v5522
    %6703 = vmatmul.mubr.bf16.gmra.mrb[0].mxu0 %v5521
    %v6704 = vpop.f32.mrb[0].mxu0
    %v6705 = vadd.f32 %v6416, %v6704
    %v6706 = vpop.f32.mrb[0].mxu0
    %v6707 = vpop.f32.mrb[0].mxu0
    %v6708 = vadd.f32 %v6419, %v6707
    %v6709 = vpop.f32.mrb[0].mxu0
    %6710 = vmatprep.mubr.bf16.mxu0 %v5531
    %6711 = vmatmul.mubr.bf16.gmra.mrb[0].mxu0 %v5530
    %v6712 = vpop.f32.mrb[0].mxu0
    %v6713 = vadd.f32 %v6424, %v6712
    %v6714 = vpop.f32.mrb[0].mxu0
    %v6715 = vpop.f32.mrb[0].mxu0
    %v6716 = vadd.f32 %v6427, %v6715
    %v6717 = vpop.f32.mrb[0].mxu0
    %6718 = vmatprep.mubr.bf16.mxu0 %v5540
    %6719 = vmatmul.mubr.bf16.gmra.mrb[0].mxu0 %v5539
    %v6720 = vpop.f32.mrb[0].mxu0
    %v6721 = vadd.f32 %v6432, %v6720
    %v6722 = vpop.f32.mrb[0].mxu0
    %v6723 = vpop.f32.mrb[0].mxu0
    %v6724 = vadd.f32 %v6435, %v6723
    %v6725 = vpop.f32.mrb[0].mxu0
    %6726 = vmatprep.mubr.bf16.mxu0 %v5549
    %6727 = vmatmul.mubr.bf16.gmra.mrb[0].mxu0 %v5548
    %v6728 = vpop.f32.mrb[0].mxu0
    %v6729 = vadd.f32 %v6440, %v6728
    %v6730 = vpop.f32.mrb[0].mxu0
    %v6731 = vpop.f32.mrb[0].mxu0
    %v6732 = vadd.f32 %v6443, %v6731
    %v6733 = vpop.f32.mrb[0].mxu0
    %6734 = vmatprep.mubr.bf16.mxu0 %v5558
    %6735 = vmatmul.mubr.bf16.gmra.mrb[0].mxu0 %v5557
    %v6736 = vpop.f32.mrb[0].mxu0
    %v6737 = vadd.f32 %v6448, %v6736
    %v6738 = vpop.f32.mrb[0].mxu0
    %v6739 = vpop.f32.mrb[0].mxu0
    %v6740 = vadd.f32 %v6451, %v6739
    %v6741 = vpop.f32.mrb[0].mxu0
    %6742 = vmatprep.mubr.bf16.mxu0 %v5567
    %6743 = vmatmul.mubr.bf16.gmra.mrb[0].mxu0 %v5566
    %v6744 = vpop.f32.mrb[0].mxu0
    %v6745 = vadd.f32 %v6456, %v6744
    %v6746 = vpop.f32.mrb[0].mxu0
    %v6747 = vpop.f32.mrb[0].mxu0
    %v6748 = vadd.f32 %v6459, %v6747
    %v6749 = vpop.f32.mrb[0].mxu0
    %6750 = vmatprep.mubr.bf16.mxu0 %v5576
    %6751 = vmatmul.mubr.bf16.gmra.mrb[0].mxu0 %v5575
    %v6752 = vpop.f32.mrb[0].mxu0
    %v6753 = vadd.f32 %v6464, %v6752
    %v6754 = vpop.f32.mrb[0].mxu0
    %v6755 = vpop.f32.mrb[0].mxu0
    %v6756 = vadd.f32 %v6467, %v6755
    %v6757 = vpop.f32.mrb[0].mxu0
    %6758 = vmatprep.mubr.bf16.mxu0 %v5585
    %6759 = vmatmul.mubr.bf16.gmra.mrb[0].mxu0 %v5584
    %v6760 = vpop.f32.mrb[0].mxu0
    %v6761 = vadd.f32 %v6472, %v6760
    %v6762 = vpop.f32.mrb[0].mxu0
    %v6763 = vpop.f32.mrb[0].mxu0
    %v6764 = vadd.f32 %v6475, %v6763
    %v6765 = vpop.f32.mrb[0].mxu0
    %6766 = vmatprep.mubr.bf16.mxu0 %v5594
    %6767 = vmatmul.mubr.bf16.gmra.mrb[0].mxu0 %v5593
    %v6768 = vpop.f32.mrb[0].mxu0
    %v6769 = vadd.f32 %v6480, %v6768
    %v6770 = vpop.f32.mrb[0].mxu0
    %v6771 = vpop.f32.mrb[0].mxu0
    %v6772 = vadd.f32 %v6483, %v6771
    %v6773 = vpop.f32.mrb[0].mxu0
    %6774 = vmatprep.mubr.bf16.mxu0 %v5603
    %6775 = vmatmul.mubr.bf16.gmra.mrb[0].mxu0 %v5602
    %v6776 = vpop.f32.mrb[0].mxu0
    %v6777 = vadd.f32 %v6488, %v6776
    %v6778 = vpop.f32.mrb[0].mxu0
    %v6779 = vpop.f32.mrb[0].mxu0
    %v6780 = vadd.f32 %v6491, %v6779
    %v6781 = vpop.f32.mrb[0].mxu0
    %6782 = vmatprep.mubr.bf16.mxu0 %v5612
    %6783 = vmatmul.mubr.bf16.gmra.mrb[0].mxu0 %v5611
    %v6784 = vpop.f32.mrb[0].mxu0
    %v6785 = vadd.f32 %v6496, %v6784
    %v6786 = vpop.f32.mrb[0].mxu0
    %v6787 = vpop.f32.mrb[0].mxu0
    %v6788 = vadd.f32 %v6499, %v6787
    %v6789 = vpop.f32.mrb[0].mxu0
    %6790 = vmatprep.mubr.bf16.mxu0 %v5621
    %6791 = vmatmul.mubr.bf16.gmra.mrb[0].mxu0 %v5620
    %v6792 = vpop.f32.mrb[0].mxu0
    %v6793 = vadd.f32 %v6504, %v6792
    %v6794 = vpop.f32.mrb[0].mxu0
    %v6795 = vpop.f32.mrb[0].mxu0
    %v6796 = vadd.f32 %v6507, %v6795
    %v6797 = vpop.f32.mrb[0].mxu0
    %6798 = vmatprep.mubr.bf16.mxu0 %v5630
    %6799 = vmatmul.mubr.bf16.gmra.mrb[0].mxu0 %v5629
    %v6800 = vpop.f32.mrb[0].mxu0
    %v6801 = vadd.f32 %v6512, %v6800
    %v6802 = vpop.f32.mrb[0].mxu0
    %v6803 = vpop.f32.mrb[0].mxu0
    %v6804 = vadd.f32 %v6515, %v6803
    %v6805 = vpop.f32.mrb[0].mxu0
    %6806 = vmatprep.mubr.bf16.mxu0 %v5639
    %6807 = vmatmul.mubr.bf16.gmra.mrb[0].mxu0 %v5638
    %v6808 = vpop.f32.mrb[0].mxu0
    %v6809 = vadd.f32 %v6520, %v6808
    %v6810 = vpop.f32.mrb[0].mxu0
    %v6811 = vpop.f32.mrb[0].mxu0
    %v6812 = vadd.f32 %v6523, %v6811
    %v6813 = vpop.f32.mrb[0].mxu0
    %6814 = vmatprep.mubr.bf16.mxu0 %v5648
    %6815 = vmatmul.mubr.bf16.gmra.mrb[0].mxu0 %v5647
    %v6816 = vpop.f32.mrb[0].mxu0
    %v6817 = vadd.f32 %v6528, %v6816
    %v6818 = vpop.f32.mrb[0].mxu0
    %v6819 = vpop.f32.mrb[0].mxu0
    %v6820 = vadd.f32 %v6531, %v6819
    %v6821 = vpop.f32.mrb[0].mxu0
    %6822 = vmatprep.mubr.bf16.mxu0 %v5657
    %6823 = vmatmul.mubr.bf16.gmra.mrb[0].mxu0 %v5656
    %v6824 = vpop.f32.mrb[0].mxu0
    %v6825 = vadd.f32 %v6536, %v6824
    %v6826 = vpop.f32.mrb[0].mxu0
    %v6827 = vpop.f32.mrb[0].mxu0
    %v6828 = vadd.f32 %v6539, %v6827
    %v6829 = vpop.f32.mrb[0].mxu0
    %6830 = vmatprep.mubr.bf16.mxu0 %v5666
    %6831 = vmatmul.mubr.bf16.gmra.mrb[0].mxu0 %v5665
    %v6832 = vpop.f32.mrb[0].mxu0
    %v6833 = vadd.f32 %v6544, %v6832
    %v6834 = vpop.f32.mrb[0].mxu0
    %v6835 = vpop.f32.mrb[0].mxu0
    %v6836 = vadd.f32 %v6547, %v6835
    %v6837 = vpop.f32.mrb[0].mxu0
    %6838 = vmatprep.mubr.bf16.mxu0 %v5675
    %6839 = vmatmul.mubr.bf16.gmra.mrb[0].mxu0 %v5674
    %v6840 = vpop.f32.mrb[0].mxu0
    %v6841 = vadd.f32 %v6552, %v6840
    %v6842 = vpop.f32.mrb[0].mxu0
    %v6843 = vpop.f32.mrb[0].mxu0
    %v6844 = vadd.f32 %v6555, %v6843
    %v6845 = vpop.f32.mrb[0].mxu0
    %6846 = vmatprep.mubr.bf16.mxu0 %v5684
    %6847 = vmatmul.mubr.bf16.gmra.mrb[0].mxu0 %v5683
    %v6848 = vpop.f32.mrb[0].mxu0
    %v6849 = vadd.f32 %v6560, %v6848
    %v6850 = vpop.f32.mrb[0].mxu0
    %v6851 = vpop.f32.mrb[0].mxu0
    %v6852 = vadd.f32 %v6563, %v6851
    %v6853 = vpop.f32.mrb[0].mxu0
    %6854 = vmatprep.mubr.bf16.mxu0 %v5693
    %6855 = vmatmul.mubr.bf16.gmra.mrb[0].mxu0 %v5692
    %v6856 = vpop.f32.mrb[0].mxu0
    %v6857 = vadd.f32 %v6568, %v6856
    %v6858 = vpop.f32.mrb[0].mxu0
    %v6859 = vpop.f32.mrb[0].mxu0
    %v6860 = vadd.f32 %v6571, %v6859
    %v6861 = vpop.f32.mrb[0].mxu0
    %6862 = vmatprep.mubr.bf16.mxu0 %v5702
    %6863 = vmatmul.mubr.bf16.gmra.mrb[0].mxu0 %v5701
    %v6864 = vpop.f32.mrb[0].mxu0
    %v6865 = vadd.f32 %v6576, %v6864
    %v6866 = vpop.f32.mrb[0].mxu0
    %v6867 = vpop.f32.mrb[0].mxu0
    %v6868 = vadd.f32 %v6579, %v6867
    %v6869 = vpop.f32.mrb[0].mxu0
    %6870 = vmatprep.mubr.bf16.mxu0 %v5711
    %6871 = vmatmul.mubr.bf16.gmra.mrb[0].mxu0 %v5710
    %v6872 = vpop.f32.mrb[0].mxu0
    %v6873 = vadd.f32 %v6584, %v6872
    %v6874 = vpop.f32.mrb[0].mxu0
    %v6875 = vpop.f32.mrb[0].mxu0
    %v6876 = vadd.f32 %v6587, %v6875
    %v6877 = vpop.f32.mrb[0].mxu0
    %6878 = vmatprep.mubr.bf16.mxu0 %v5720
    %6879 = vmatmul.mubr.bf16.gmra.mrb[0].mxu0 %v5719
    %v6880 = vpop.f32.mrb[0].mxu0
    %v6881 = vadd.f32 %v6592, %v6880
    %v6882 = vpop.f32.mrb[0].mxu0
    %v6883 = vpop.f32.mrb[0].mxu0
    %v6884 = vadd.f32 %v6595, %v6883
    %v6885 = vpop.f32.mrb[0].mxu0
    %6886 = vmatprep.mubr.bf16.mxu0 %v5729
    %6887 = vmatmul.mubr.bf16.gmra.mrb[0].mxu0 %v5728
    %v6888 = vpop.f32.mrb[0].mxu0
    %v6889 = vadd.f32 %v6600, %v6888
    %v6890 = vpop.f32.mrb[0].mxu0
    %v6891 = vpop.f32.mrb[0].mxu0
    %v6892 = vadd.f32 %v6603, %v6891
    %v6893 = vpop.f32.mrb[0].mxu0
    %6894 = vmatprep.mubr.bf16.mxu0 %v5738
    %6895 = vmatmul.mubr.bf16.gmra.mrb[0].mxu0 %v5737
    %v6896 = vpop.f32.mrb[0].mxu0
    %v6897 = vadd.f32 %v6608, %v6896
    %v6898 = vpop.f32.mrb[0].mxu0
    %v6899 = vpop.f32.mrb[0].mxu0
    %v6900 = vadd.f32 %v6611, %v6899
    %v6901 = vpop.f32.mrb[0].mxu0
    %6902 = vmatprep.mubr.bf16.mxu0 %v5747
    %6903 = vmatmul.mubr.bf16.gmra.mrb[0].mxu0 %v5746
    %v6904 = vpop.f32.mrb[0].mxu0
    %v6905 = vadd.f32 %v6616, %v6904
    %v6906 = vpop.f32.mrb[0].mxu0
    %v6907 = vpop.f32.mrb[0].mxu0
    %v6908 = vadd.f32 %v6619, %v6907
    %v6909 = vpop.f32.mrb[0].mxu0
    %6910 = vmatprep.mubr.bf16.mxu0 %v5756
    %6911 = vmatmul.mubr.bf16.gmra.mrb[0].mxu0 %v5755
    %v6912 = vpop.f32.mrb[0].mxu0
    %v6913 = vadd.f32 %v6624, %v6912
    %v6914 = vpop.f32.mrb[0].mxu0
    %v6915 = vpop.f32.mrb[0].mxu0
    %v6916 = vadd.f32 %v6627, %v6915
    %v6917 = vpop.f32.mrb[0].mxu0
    %6918 = vmatprep.mubr.bf16.mxu0 %v5765
    %6919 = vmatmul.mubr.bf16.gmra.mrb[0].mxu0 %v5764
    %v6920 = vpop.f32.mrb[0].mxu0
    %v6921 = vadd.f32 %v6632, %v6920
    %v6922 = vpop.f32.mrb[0].mxu0
    %v6923 = vpop.f32.mrb[0].mxu0
    %v6924 = vadd.f32 %v6635, %v6923
    %v6925 = vpop.f32.mrb[0].mxu0
    %6926 = vmatprep.mubr.bf16.mxu0 %v5774
    %6927 = vmatmul.mubr.bf16.gmra.mrb[0].mxu0 %v5773
    %v6928 = vpop.f32.mrb[0].mxu0
    %v6929 = vadd.f32 %v6640, %v6928
    %v6930 = vpop.f32.mrb[0].mxu0
    %v6931 = vpop.f32.mrb[0].mxu0
    %v6932 = vadd.f32 %v6643, %v6931
    %v6933 = vpop.f32.mrb[0].mxu0
    %6934 = vmatprep.mubr.bf16.mxu0 %v5783
    %6935 = vmatmul.mubr.bf16.gmra.mrb[0].mxu0 %v5782
    %v6936 = vpop.f32.mrb[0].mxu0
    %v6937 = vadd.f32 %v6648, %v6936
    %v6938 = vpop.f32.mrb[0].mxu0
    %v6939 = vpop.f32.mrb[0].mxu0
    %v6940 = vadd.f32 %v6651, %v6939
    %v6941 = vpop.f32.mrb[0].mxu0
    %6942 = vdwg.mxu0
    %6943 = vmatprep.subr.bf16.mxu0 0
    %6944 = vmatpush1.bf16.msra.mxu0 %v6253
    %6945 = vmatprep.subr.bf16.mxu0 0
    %6946 = vmatpush1.bf16.msra.mxu0 %v6254
    %6947 = vmatprep.subr.bf16.mxu0 0
    %6948 = vmatpush1.bf16.msra.mxu0 %v6255
    %6949 = vmatprep.subr.bf16.mxu0 0
    %6950 = vmatpush1.bf16.msra.mxu0 %v6256
    %6951 = vmatprep.subr.bf16.mxu0 0
    %6952 = vmatpush1.bf16.msra.mxu0 %v6257
    %6953 = vmatprep.subr.bf16.mxu0 0
    %6954 = vmatpush1.bf16.msra.mxu0 %v6258
    %6955 = vmatprep.subr.bf16.mxu0 0
    %6956 = vmatpush1.bf16.msra.mxu0 %v6259
    %6957 = vmatprep.subr.bf16.mxu0 0
    %6958 = vmatpush1.bf16.msra.mxu0 %v6260
    %6959 = vmatprep.subr.bf16.mxu0 0
    %6960 = vmatpush1.bf16.msra.mxu0 %v6261
    %6961 = vmatprep.subr.bf16.mxu0 0
    %6962 = vmatpush1.bf16.msra.mxu0 %v6262
    %6963 = vmatprep.subr.bf16.mxu0 0
    %6964 = vmatpush1.bf16.msra.mxu0 %v6263
    %6965 = vmatprep.subr.bf16.mxu0 0
    %6966 = vmatpush1.bf16.msra.mxu0 %v6264
    %6967 = vmatprep.subr.bf16.mxu0 0
    %6968 = vmatpush1.bf16.msra.mxu0 %v6265
    %6969 = vmatprep.subr.bf16.mxu0 0
    %6970 = vmatpush1.bf16.msra.mxu0 %v6266
    %6971 = vmatprep.subr.bf16.mxu0 0
    %6972 = vmatpush1.bf16.msra.mxu0 %v6267
    %6973 = vmatprep.subr.bf16.mxu0 0
    %6974 = vmatpush1.bf16.msra.mxu0 %v6268
    %6975 = vmatprep.mubr.bf16.mxu0 %v5506
    %6976 = vmatmul.mubr.bf16.gmra.mrb[0].mxu0 %v5505
    %v6977 = vpop.f32.mrb[0].mxu0
    %v6978 = vadd.f32 %v6689, %v6977
    %v6979 = vpop.f32.mrb[0].mxu0
    %v6980 = vpop.f32.mrb[0].mxu0
    %v6981 = vadd.f32 %v6692, %v6980
    %v6982 = vpop.f32.mrb[0].mxu0
    %6983 = vmatprep.mubr.bf16.mxu0 %v5515
    %6984 = vmatmul.mubr.bf16.gmra.mrb[0].mxu0 %v5514
    %v6985 = vpop.f32.mrb[0].mxu0
    %v6986 = vadd.f32 %v6697, %v6985
    %v6987 = vpop.f32.mrb[0].mxu0
    %v6988 = vpop.f32.mrb[0].mxu0
    %v6989 = vadd.f32 %v6700, %v6988
    %v6990 = vpop.f32.mrb[0].mxu0
    %6991 = vmatprep.mubr.bf16.mxu0 %v5524
    %6992 = vmatmul.mubr.bf16.gmra.mrb[0].mxu0 %v5523
    %v6993 = vpop.f32.mrb[0].mxu0
    %v6994 = vadd.f32 %v6705, %v6993
    %v6995 = vpop.f32.mrb[0].mxu0
    %v6996 = vpop.f32.mrb[0].mxu0
    %v6997 = vadd.f32 %v6708, %v6996
    %v6998 = vpop.f32.mrb[0].mxu0
    %6999 = vmatprep.mubr.bf16.mxu0 %v5533
    %7000 = vmatmul.mubr.bf16.gmra.mrb[0].mxu0 %v5532
    %v7001 = vpop.f32.mrb[0].mxu0
    %v7002 = vadd.f32 %v6713, %v7001
    %v7003 = vpop.f32.mrb[0].mxu0
    %v7004 = vpop.f32.mrb[0].mxu0
    %v7005 = vadd.f32 %v6716, %v7004
    %v7006 = vpop.f32.mrb[0].mxu0
    %7007 = vmatprep.mubr.bf16.mxu0 %v5542
    %7008 = vmatmul.mubr.bf16.gmra.mrb[0].mxu0 %v5541
    %v7009 = vpop.f32.mrb[0].mxu0
    %v7010 = vadd.f32 %v6721, %v7009
    %v7011 = vpop.f32.mrb[0].mxu0
    %v7012 = vpop.f32.mrb[0].mxu0
    %v7013 = vadd.f32 %v6724, %v7012
    %v7014 = vpop.f32.mrb[0].mxu0
    %7015 = vmatprep.mubr.bf16.mxu0 %v5551
    %7016 = vmatmul.mubr.bf16.gmra.mrb[0].mxu0 %v5550
    %v7017 = vpop.f32.mrb[0].mxu0
    %v7018 = vadd.f32 %v6729, %v7017
    %v7019 = vpop.f32.mrb[0].mxu0
    %v7020 = vpop.f32.mrb[0].mxu0
    %v7021 = vadd.f32 %v6732, %v7020
    %v7022 = vpop.f32.mrb[0].mxu0
    %7023 = vmatprep.mubr.bf16.mxu0 %v5560
    %7024 = vmatmul.mubr.bf16.gmra.mrb[0].mxu0 %v5559
    %v7025 = vpop.f32.mrb[0].mxu0
    %v7026 = vadd.f32 %v6737, %v7025
    %v7027 = vpop.f32.mrb[0].mxu0
    %v7028 = vpop.f32.mrb[0].mxu0
    %v7029 = vadd.f32 %v6740, %v7028
    %v7030 = vpop.f32.mrb[0].mxu0
    %7031 = vmatprep.mubr.bf16.mxu0 %v5569
    %7032 = vmatmul.mubr.bf16.gmra.mrb[0].mxu0 %v5568
    %v7033 = vpop.f32.mrb[0].mxu0
    %v7034 = vadd.f32 %v6745, %v7033
    %v7035 = vpop.f32.mrb[0].mxu0
    %v7036 = vpop.f32.mrb[0].mxu0
    %v7037 = vadd.f32 %v6748, %v7036
    %v7038 = vpop.f32.mrb[0].mxu0
    %7039 = vmatprep.mubr.bf16.mxu0 %v5578
    %7040 = vmatmul.mubr.bf16.gmra.mrb[0].mxu0 %v5577
    %v7041 = vpop.f32.mrb[0].mxu0
    %v7042 = vadd.f32 %v6753, %v7041
    %v7043 = vpop.f32.mrb[0].mxu0
    %v7044 = vpop.f32.mrb[0].mxu0
    %v7045 = vadd.f32 %v6756, %v7044
    %v7046 = vpop.f32.mrb[0].mxu0
    %7047 = vmatprep.mubr.bf16.mxu0 %v5587
    %7048 = vmatmul.mubr.bf16.gmra.mrb[0].mxu0 %v5586
    %v7049 = vpop.f32.mrb[0].mxu0
    %v7050 = vadd.f32 %v6761, %v7049
    %v7051 = vpop.f32.mrb[0].mxu0
    %v7052 = vpop.f32.mrb[0].mxu0
    %v7053 = vadd.f32 %v6764, %v7052
    %v7054 = vpop.f32.mrb[0].mxu0
    %7055 = vmatprep.mubr.bf16.mxu0 %v5596
    %7056 = vmatmul.mubr.bf16.gmra.mrb[0].mxu0 %v5595
    %v7057 = vpop.f32.mrb[0].mxu0
    %v7058 = vadd.f32 %v6769, %v7057
    %v7059 = vpop.f32.mrb[0].mxu0
    %v7060 = vpop.f32.mrb[0].mxu0
    %v7061 = vadd.f32 %v6772, %v7060
    %v7062 = vpop.f32.mrb[0].mxu0
    %7063 = vmatprep.mubr.bf16.mxu0 %v5605
    %7064 = vmatmul.mubr.bf16.gmra.mrb[0].mxu0 %v5604
    %v7065 = vpop.f32.mrb[0].mxu0
    %v7066 = vadd.f32 %v6777, %v7065
    %v7067 = vpop.f32.mrb[0].mxu0
    %v7068 = vpop.f32.mrb[0].mxu0
    %v7069 = vadd.f32 %v6780, %v7068
    %v7070 = vpop.f32.mrb[0].mxu0
    %7071 = vmatprep.mubr.bf16.mxu0 %v5614
    %7072 = vmatmul.mubr.bf16.gmra.mrb[0].mxu0 %v5613
    %v7073 = vpop.f32.mrb[0].mxu0
    %v7074 = vadd.f32 %v6785, %v7073
    %v7075 = vpop.f32.mrb[0].mxu0
    %v7076 = vpop.f32.mrb[0].mxu0
    %v7077 = vadd.f32 %v6788, %v7076
    %v7078 = vpop.f32.mrb[0].mxu0
    %7079 = vmatprep.mubr.bf16.mxu0 %v5623
    %7080 = vmatmul.mubr.bf16.gmra.mrb[0].mxu0 %v5622
    %v7081 = vpop.f32.mrb[0].mxu0
    %v7082 = vadd.f32 %v6793, %v7081
    %v7083 = vpop.f32.mrb[0].mxu0
    %v7084 = vpop.f32.mrb[0].mxu0
    %v7085 = vadd.f32 %v6796, %v7084
    %v7086 = vpop.f32.mrb[0].mxu0
    %7087 = vmatprep.mubr.bf16.mxu0 %v5632
    %7088 = vmatmul.mubr.bf16.gmra.mrb[0].mxu0 %v5631
    %v7089 = vpop.f32.mrb[0].mxu0
    %v7090 = vadd.f32 %v6801, %v7089
    %v7091 = vpop.f32.mrb[0].mxu0
    %v7092 = vpop.f32.mrb[0].mxu0
    %v7093 = vadd.f32 %v6804, %v7092
    %v7094 = vpop.f32.mrb[0].mxu0
    %7095 = vmatprep.mubr.bf16.mxu0 %v5641
    %7096 = vmatmul.mubr.bf16.gmra.mrb[0].mxu0 %v5640
    %v7097 = vpop.f32.mrb[0].mxu0
    %v7098 = vadd.f32 %v6809, %v7097
    %v7099 = vpop.f32.mrb[0].mxu0
    %v7100 = vpop.f32.mrb[0].mxu0
    %v7101 = vadd.f32 %v6812, %v7100
    %v7102 = vpop.f32.mrb[0].mxu0
    %7103 = vmatprep.mubr.bf16.mxu0 %v5650
    %7104 = vmatmul.mubr.bf16.gmra.mrb[0].mxu0 %v5649
    %v7105 = vpop.f32.mrb[0].mxu0
    %v7106 = vadd.f32 %v6817, %v7105
    %v7107 = vpop.f32.mrb[0].mxu0
    %v7108 = vpop.f32.mrb[0].mxu0
    %v7109 = vadd.f32 %v6820, %v7108
    %v7110 = vpop.f32.mrb[0].mxu0
    %7111 = vmatprep.mubr.bf16.mxu0 %v5659
    %7112 = vmatmul.mubr.bf16.gmra.mrb[0].mxu0 %v5658
    %v7113 = vpop.f32.mrb[0].mxu0
    %v7114 = vadd.f32 %v6825, %v7113
    %v7115 = vpop.f32.mrb[0].mxu0
    %v7116 = vpop.f32.mrb[0].mxu0
    %v7117 = vadd.f32 %v6828, %v7116
    %v7118 = vpop.f32.mrb[0].mxu0
    %7119 = vmatprep.mubr.bf16.mxu0 %v5668
    %7120 = vmatmul.mubr.bf16.gmra.mrb[0].mxu0 %v5667
    %v7121 = vpop.f32.mrb[0].mxu0
    %v7122 = vadd.f32 %v6833, %v7121
    %v7123 = vpop.f32.mrb[0].mxu0
    %v7124 = vpop.f32.mrb[0].mxu0
    %v7125 = vadd.f32 %v6836, %v7124
    %v7126 = vpop.f32.mrb[0].mxu0
    %7127 = vmatprep.mubr.bf16.mxu0 %v5677
    %7128 = vmatmul.mubr.bf16.gmra.mrb[0].mxu0 %v5676
    %v7129 = vpop.f32.mrb[0].mxu0
    %v7130 = vadd.f32 %v6841, %v7129
    %v7131 = vpop.f32.mrb[0].mxu0
    %v7132 = vpop.f32.mrb[0].mxu0
    %v7133 = vadd.f32 %v6844, %v7132
    %v7134 = vpop.f32.mrb[0].mxu0
    %7135 = vmatprep.mubr.bf16.mxu0 %v5686
    %7136 = vmatmul.mubr.bf16.gmra.mrb[0].mxu0 %v5685
    %v7137 = vpop.f32.mrb[0].mxu0
    %v7138 = vadd.f32 %v6849, %v7137
    %v7139 = vpop.f32.mrb[0].mxu0
    %v7140 = vpop.f32.mrb[0].mxu0
    %v7141 = vadd.f32 %v6852, %v7140
    %v7142 = vpop.f32.mrb[0].mxu0
    %7143 = vmatprep.mubr.bf16.mxu0 %v5695
    %7144 = vmatmul.mubr.bf16.gmra.mrb[0].mxu0 %v5694
    %v7145 = vpop.f32.mrb[0].mxu0
    %v7146 = vadd.f32 %v6857, %v7145
    %v7147 = vpop.f32.mrb[0].mxu0
    %v7148 = vpop.f32.mrb[0].mxu0
    %v7149 = vadd.f32 %v6860, %v7148
    %v7150 = vpop.f32.mrb[0].mxu0
    %7151 = vmatprep.mubr.bf16.mxu0 %v5704
    %7152 = vmatmul.mubr.bf16.gmra.mrb[0].mxu0 %v5703
    %v7153 = vpop.f32.mrb[0].mxu0
    %v7154 = vadd.f32 %v6865, %v7153
    %v7155 = vpop.f32.mrb[0].mxu0
    %v7156 = vpop.f32.mrb[0].mxu0
    %v7157 = vadd.f32 %v6868, %v7156
    %v7158 = vpop.f32.mrb[0].mxu0
    %7159 = vmatprep.mubr.bf16.mxu0 %v5713
    %7160 = vmatmul.mubr.bf16.gmra.mrb[0].mxu0 %v5712
    %v7161 = vpop.f32.mrb[0].mxu0
    %v7162 = vadd.f32 %v6873, %v7161
    %v7163 = vpop.f32.mrb[0].mxu0
    %v7164 = vpop.f32.mrb[0].mxu0
    %v7165 = vadd.f32 %v6876, %v7164
    %v7166 = vpop.f32.mrb[0].mxu0
    %7167 = vmatprep.mubr.bf16.mxu0 %v5722
    %7168 = vmatmul.mubr.bf16.gmra.mrb[0].mxu0 %v5721
    %v7169 = vpop.f32.mrb[0].mxu0
    %v7170 = vadd.f32 %v6881, %v7169
    %v7171 = vpop.f32.mrb[0].mxu0
    %v7172 = vpop.f32.mrb[0].mxu0
    %v7173 = vadd.f32 %v6884, %v7172
    %v7174 = vpop.f32.mrb[0].mxu0
    %7175 = vmatprep.mubr.bf16.mxu0 %v5731
    %7176 = vmatmul.mubr.bf16.gmra.mrb[0].mxu0 %v5730
    %v7177 = vpop.f32.mrb[0].mxu0
    %v7178 = vadd.f32 %v6889, %v7177
    %v7179 = vpop.f32.mrb[0].mxu0
    %v7180 = vpop.f32.mrb[0].mxu0
    %v7181 = vadd.f32 %v6892, %v7180
    %v7182 = vpop.f32.mrb[0].mxu0
    %7183 = vmatprep.mubr.bf16.mxu0 %v5740
    %7184 = vmatmul.mubr.bf16.gmra.mrb[0].mxu0 %v5739
    %v7185 = vpop.f32.mrb[0].mxu0
    %v7186 = vadd.f32 %v6897, %v7185
    %v7187 = vpop.f32.mrb[0].mxu0
    %v7188 = vpop.f32.mrb[0].mxu0
    %v7189 = vadd.f32 %v6900, %v7188
    %v7190 = vpop.f32.mrb[0].mxu0
    %7191 = vmatprep.mubr.bf16.mxu0 %v5749
    %7192 = vmatmul.mubr.bf16.gmra.mrb[0].mxu0 %v5748
    %v7193 = vpop.f32.mrb[0].mxu0
    %v7194 = vadd.f32 %v6905, %v7193
    %v7195 = vpop.f32.mrb[0].mxu0
    %v7196 = vpop.f32.mrb[0].mxu0
    %v7197 = vadd.f32 %v6908, %v7196
    %v7198 = vpop.f32.mrb[0].mxu0
    %7199 = vmatprep.mubr.bf16.mxu0 %v5758
    %7200 = vmatmul.mubr.bf16.gmra.mrb[0].mxu0 %v5757
    %v7201 = vpop.f32.mrb[0].mxu0
    %v7202 = vadd.f32 %v6913, %v7201
    %v7203 = vpop.f32.mrb[0].mxu0
    %v7204 = vpop.f32.mrb[0].mxu0
    %v7205 = vadd.f32 %v6916, %v7204
    %v7206 = vpop.f32.mrb[0].mxu0
    %7207 = vmatprep.mubr.bf16.mxu0 %v5767
    %7208 = vmatmul.mubr.bf16.gmra.mrb[0].mxu0 %v5766
    %v7209 = vpop.f32.mrb[0].mxu0
    %v7210 = vadd.f32 %v6921, %v7209
    %v7211 = vpop.f32.mrb[0].mxu0
    %v7212 = vpop.f32.mrb[0].mxu0
    %v7213 = vadd.f32 %v6924, %v7212
    %v7214 = vpop.f32.mrb[0].mxu0
    %7215 = vmatprep.mubr.bf16.mxu0 %v5776
    %7216 = vmatmul.mubr.bf16.gmra.mrb[0].mxu0 %v5775
    %v7217 = vpop.f32.mrb[0].mxu0
    %v7218 = vadd.f32 %v6929, %v7217
    %v7219 = vpop.f32.mrb[0].mxu0
    %v7220 = vpop.f32.mrb[0].mxu0
    %v7221 = vadd.f32 %v6932, %v7220
    %v7222 = vpop.f32.mrb[0].mxu0
    %7223 = vmatprep.mubr.bf16.mxu0 %v5785
    %7224 = vmatmul.mubr.bf16.gmra.mrb[0].mxu0 %v5784
    %v7225 = vpop.f32.mrb[0].mxu0
    %v7226 = vadd.f32 %v6937, %v7225
    %v7227 = vpop.f32.mrb[0].mxu0
    %v7228 = vpop.f32.mrb[0].mxu0
    %v7229 = vadd.f32 %v6940, %v7228
    %v7230 = vpop.f32.mrb[0].mxu0
    %7231 = vdwg.mxu0
    %7232 = vmatprep.subr.bf16.mxu0 0
    %7233 = vmatpush1.bf16.msra.mxu0 %v6269
    %7234 = vmatprep.subr.bf16.mxu0 0
    %7235 = vmatpush1.bf16.msra.mxu0 %v6270
    %7236 = vmatprep.subr.bf16.mxu0 0
    %7237 = vmatpush1.bf16.msra.mxu0 %v6271
    %7238 = vmatprep.subr.bf16.mxu0 0
    %7239 = vmatpush1.bf16.msra.mxu0 %v6272
    %7240 = vmatprep.subr.bf16.mxu0 0
    %7241 = vmatpush1.bf16.msra.mxu0 %v6273
    %7242 = vmatprep.subr.bf16.mxu0 0
    %7243 = vmatpush1.bf16.msra.mxu0 %v6274
    %7244 = vmatprep.subr.bf16.mxu0 0
    %7245 = vmatpush1.bf16.msra.mxu0 %v6275
    %7246 = vmatprep.subr.bf16.mxu0 0
    %7247 = vmatpush1.bf16.msra.mxu0 %v6276
    %7248 = vmatprep.subr.bf16.mxu0 0
    %7249 = vmatpush1.bf16.msra.mxu0 %v6277
    %7250 = vmatprep.subr.bf16.mxu0 0
    %7251 = vmatpush1.bf16.msra.mxu0 %v6278
    %7252 = vmatprep.subr.bf16.mxu0 0
    %7253 = vmatpush1.bf16.msra.mxu0 %v6279
    %7254 = vmatprep.subr.bf16.mxu0 0
    %7255 = vmatpush1.bf16.msra.mxu0 %v6280
    %7256 = vmatprep.subr.bf16.mxu0 0
    %7257 = vmatpush1.bf16.msra.mxu0 %v6281
    %7258 = vmatprep.subr.bf16.mxu0 0
    %7259 = vmatpush1.bf16.msra.mxu0 %v6282
    %7260 = vmatprep.subr.bf16.mxu0 0
    %7261 = vmatpush1.bf16.msra.mxu0 %v6283
    %7262 = vmatprep.subr.bf16.mxu0 0
    %7263 = vmatpush1.bf16.msra.mxu0 %v6284
    %7264 = vmatprep.mubr.bf16.mxu0 %v5508
    %7265 = vmatmul.mubr.bf16.gmra.mrb[0].mxu0 %v5507
    %v7266 = vpop.f32.mrb[0].mxu0
    %v7267 = vadd.f32 %v6978, %v7266
    %v7268 = vpop.f32.mrb[0].mxu0
    %v7269 = vpop.f32.mrb[0].mxu0
    %v7270 = vadd.f32 %v6981, %v7269
    %v7271 = vpop.f32.mrb[0].mxu0
    %7272 = vmatprep.mubr.bf16.mxu0 %v5517
    %7273 = vmatmul.mubr.bf16.gmra.mrb[0].mxu0 %v5516
    %v7274 = vpop.f32.mrb[0].mxu0
    %v7275 = vadd.f32 %v6986, %v7274
    %v7276 = vpop.f32.mrb[0].mxu0
    %v7277 = vpop.f32.mrb[0].mxu0
    %v7278 = vadd.f32 %v6989, %v7277
    %v7279 = vpop.f32.mrb[0].mxu0
    %7280 = vmatprep.mubr.bf16.mxu0 %v5526
    %7281 = vmatmul.mubr.bf16.gmra.mrb[0].mxu0 %v5525
    %v7282 = vpop.f32.mrb[0].mxu0
    %v7283 = vadd.f32 %v6994, %v7282
    %v7284 = vpop.f32.mrb[0].mxu0
    %v7285 = vpop.f32.mrb[0].mxu0
    %v7286 = vadd.f32 %v6997, %v7285
    %v7287 = vpop.f32.mrb[0].mxu0
    %7288 = vmatprep.mubr.bf16.mxu0 %v5535
    %7289 = vmatmul.mubr.bf16.gmra.mrb[0].mxu0 %v5534
    %v7290 = vpop.f32.mrb[0].mxu0
    %v7291 = vadd.f32 %v7002, %v7290
    %v7292 = vpop.f32.mrb[0].mxu0
    %v7293 = vpop.f32.mrb[0].mxu0
    %v7294 = vadd.f32 %v7005, %v7293
    %v7295 = vpop.f32.mrb[0].mxu0
    %7296 = vmatprep.mubr.bf16.mxu0 %v5544
    %7297 = vmatmul.mubr.bf16.gmra.mrb[0].mxu0 %v5543
    %v7298 = vpop.f32.mrb[0].mxu0
    %v7299 = vadd.f32 %v7010, %v7298
    %v7300 = vpop.f32.mrb[0].mxu0
    %v7301 = vpop.f32.mrb[0].mxu0
    %v7302 = vadd.f32 %v7013, %v7301
    %v7303 = vpop.f32.mrb[0].mxu0
    %7304 = vmatprep.mubr.bf16.mxu0 %v5553
    %7305 = vmatmul.mubr.bf16.gmra.mrb[0].mxu0 %v5552
    %v7306 = vpop.f32.mrb[0].mxu0
    %v7307 = vadd.f32 %v7018, %v7306
    %v7308 = vpop.f32.mrb[0].mxu0
    %v7309 = vpop.f32.mrb[0].mxu0
    %v7310 = vadd.f32 %v7021, %v7309
    %v7311 = vpop.f32.mrb[0].mxu0
    %7312 = vmatprep.mubr.bf16.mxu0 %v5562
    %7313 = vmatmul.mubr.bf16.gmra.mrb[0].mxu0 %v5561
    %v7314 = vpop.f32.mrb[0].mxu0
    %v7315 = vadd.f32 %v7026, %v7314
    %v7316 = vpop.f32.mrb[0].mxu0
    %v7317 = vpop.f32.mrb[0].mxu0
    %v7318 = vadd.f32 %v7029, %v7317
    %v7319 = vpop.f32.mrb[0].mxu0
    %7320 = vmatprep.mubr.bf16.mxu0 %v5571
    %7321 = vmatmul.mubr.bf16.gmra.mrb[0].mxu0 %v5570
    %v7322 = vpop.f32.mrb[0].mxu0
    %v7323 = vadd.f32 %v7034, %v7322
    %v7324 = vpop.f32.mrb[0].mxu0
    %v7325 = vpop.f32.mrb[0].mxu0
    %v7326 = vadd.f32 %v7037, %v7325
    %v7327 = vpop.f32.mrb[0].mxu0
    %7328 = vmatprep.mubr.bf16.mxu0 %v5580
    %7329 = vmatmul.mubr.bf16.gmra.mrb[0].mxu0 %v5579
    %v7330 = vpop.f32.mrb[0].mxu0
    %v7331 = vadd.f32 %v7042, %v7330
    %v7332 = vpop.f32.mrb[0].mxu0
    %v7333 = vpop.f32.mrb[0].mxu0
    %v7334 = vadd.f32 %v7045, %v7333
    %v7335 = vpop.f32.mrb[0].mxu0
    %7336 = vmatprep.mubr.bf16.mxu0 %v5589
    %7337 = vmatmul.mubr.bf16.gmra.mrb[0].mxu0 %v5588
    %v7338 = vpop.f32.mrb[0].mxu0
    %v7339 = vadd.f32 %v7050, %v7338
    %v7340 = vpop.f32.mrb[0].mxu0
    %v7341 = vpop.f32.mrb[0].mxu0
    %v7342 = vadd.f32 %v7053, %v7341
    %v7343 = vpop.f32.mrb[0].mxu0
    %7344 = vmatprep.mubr.bf16.mxu0 %v5598
    %7345 = vmatmul.mubr.bf16.gmra.mrb[0].mxu0 %v5597
    %v7346 = vpop.f32.mrb[0].mxu0
    %v7347 = vadd.f32 %v7058, %v7346
    %v7348 = vpop.f32.mrb[0].mxu0
    %v7349 = vpop.f32.mrb[0].mxu0
    %v7350 = vadd.f32 %v7061, %v7349
    %v7351 = vpop.f32.mrb[0].mxu0
    %7352 = vmatprep.mubr.bf16.mxu0 %v5607
    %7353 = vmatmul.mubr.bf16.gmra.mrb[0].mxu0 %v5606
    %v7354 = vpop.f32.mrb[0].mxu0
    %v7355 = vadd.f32 %v7066, %v7354
    %v7356 = vpop.f32.mrb[0].mxu0
    %v7357 = vpop.f32.mrb[0].mxu0
    %v7358 = vadd.f32 %v7069, %v7357
    %v7359 = vpop.f32.mrb[0].mxu0
    %7360 = vmatprep.mubr.bf16.mxu0 %v5616
    %7361 = vmatmul.mubr.bf16.gmra.mrb[0].mxu0 %v5615
    %v7362 = vpop.f32.mrb[0].mxu0
    %v7363 = vadd.f32 %v7074, %v7362
    %v7364 = vpop.f32.mrb[0].mxu0
    %v7365 = vpop.f32.mrb[0].mxu0
    %v7366 = vadd.f32 %v7077, %v7365
    %v7367 = vpop.f32.mrb[0].mxu0
    %7368 = vmatprep.mubr.bf16.mxu0 %v5625
    %7369 = vmatmul.mubr.bf16.gmra.mrb[0].mxu0 %v5624
    %v7370 = vpop.f32.mrb[0].mxu0
    %v7371 = vadd.f32 %v7082, %v7370
    %v7372 = vpop.f32.mrb[0].mxu0
    %v7373 = vpop.f32.mrb[0].mxu0
    %v7374 = vadd.f32 %v7085, %v7373
    %v7375 = vpop.f32.mrb[0].mxu0
    %7376 = vmatprep.mubr.bf16.mxu0 %v5634
    %7377 = vmatmul.mubr.bf16.gmra.mrb[0].mxu0 %v5633
    %v7378 = vpop.f32.mrb[0].mxu0
    %v7379 = vadd.f32 %v7090, %v7378
    %v7380 = vpop.f32.mrb[0].mxu0
    %v7381 = vpop.f32.mrb[0].mxu0
    %v7382 = vadd.f32 %v7093, %v7381
    %v7383 = vpop.f32.mrb[0].mxu0
    %7384 = vmatprep.mubr.bf16.mxu0 %v5643
    %7385 = vmatmul.mubr.bf16.gmra.mrb[0].mxu0 %v5642
    %v7386 = vpop.f32.mrb[0].mxu0
    %v7387 = vadd.f32 %v7098, %v7386
    %v7388 = vpop.f32.mrb[0].mxu0
    %v7389 = vpop.f32.mrb[0].mxu0
    %v7390 = vadd.f32 %v7101, %v7389
    %v7391 = vpop.f32.mrb[0].mxu0
    %7392 = vmatprep.mubr.bf16.mxu0 %v5652
    %7393 = vmatmul.mubr.bf16.gmra.mrb[0].mxu0 %v5651
    %v7394 = vpop.f32.mrb[0].mxu0
    %v7395 = vadd.f32 %v7106, %v7394
    %v7396 = vpop.f32.mrb[0].mxu0
    %v7397 = vpop.f32.mrb[0].mxu0
    %v7398 = vadd.f32 %v7109, %v7397
    %v7399 = vpop.f32.mrb[0].mxu0
    %7400 = vmatprep.mubr.bf16.mxu0 %v5661
    %7401 = vmatmul.mubr.bf16.gmra.mrb[0].mxu0 %v5660
    %v7402 = vpop.f32.mrb[0].mxu0
    %v7403 = vadd.f32 %v7114, %v7402
    %v7404 = vpop.f32.mrb[0].mxu0
    %v7405 = vpop.f32.mrb[0].mxu0
    %v7406 = vadd.f32 %v7117, %v7405
    %v7407 = vpop.f32.mrb[0].mxu0
    %7408 = vmatprep.mubr.bf16.mxu0 %v5670
    %7409 = vmatmul.mubr.bf16.gmra.mrb[0].mxu0 %v5669
    %v7410 = vpop.f32.mrb[0].mxu0
    %v7411 = vadd.f32 %v7122, %v7410
    %v7412 = vpop.f32.mrb[0].mxu0
    %v7413 = vpop.f32.mrb[0].mxu0
    %v7414 = vadd.f32 %v7125, %v7413
    %v7415 = vpop.f32.mrb[0].mxu0
    %7416 = vmatprep.mubr.bf16.mxu0 %v5679
    %7417 = vmatmul.mubr.bf16.gmra.mrb[0].mxu0 %v5678
    %v7418 = vpop.f32.mrb[0].mxu0
    %v7419 = vadd.f32 %v7130, %v7418
    %v7420 = vpop.f32.mrb[0].mxu0
    %v7421 = vpop.f32.mrb[0].mxu0
    %v7422 = vadd.f32 %v7133, %v7421
    %v7423 = vpop.f32.mrb[0].mxu0
    %7424 = vmatprep.mubr.bf16.mxu0 %v5688
    %7425 = vmatmul.mubr.bf16.gmra.mrb[0].mxu0 %v5687
    %v7426 = vpop.f32.mrb[0].mxu0
    %v7427 = vadd.f32 %v7138, %v7426
    %v7428 = vpop.f32.mrb[0].mxu0
    %v7429 = vpop.f32.mrb[0].mxu0
    %v7430 = vadd.f32 %v7141, %v7429
    %v7431 = vpop.f32.mrb[0].mxu0
    %7432 = vmatprep.mubr.bf16.mxu0 %v5697
    %7433 = vmatmul.mubr.bf16.gmra.mrb[0].mxu0 %v5696
    %v7434 = vpop.f32.mrb[0].mxu0
    %v7435 = vadd.f32 %v7146, %v7434
    %v7436 = vpop.f32.mrb[0].mxu0
    %v7437 = vpop.f32.mrb[0].mxu0
    %v7438 = vadd.f32 %v7149, %v7437
    %v7439 = vpop.f32.mrb[0].mxu0
    %7440 = vmatprep.mubr.bf16.mxu0 %v5706
    %7441 = vmatmul.mubr.bf16.gmra.mrb[0].mxu0 %v5705
    %v7442 = vpop.f32.mrb[0].mxu0
    %v7443 = vadd.f32 %v7154, %v7442
    %v7444 = vpop.f32.mrb[0].mxu0
    %v7445 = vpop.f32.mrb[0].mxu0
    %v7446 = vadd.f32 %v7157, %v7445
    %v7447 = vpop.f32.mrb[0].mxu0
    %7448 = vmatprep.mubr.bf16.mxu0 %v5715
    %7449 = vmatmul.mubr.bf16.gmra.mrb[0].mxu0 %v5714
    %v7450 = vpop.f32.mrb[0].mxu0
    %v7451 = vadd.f32 %v7162, %v7450
    %v7452 = vpop.f32.mrb[0].mxu0
    %v7453 = vpop.f32.mrb[0].mxu0
    %v7454 = vadd.f32 %v7165, %v7453
    %v7455 = vpop.f32.mrb[0].mxu0
    %7456 = vmatprep.mubr.bf16.mxu0 %v5724
    %7457 = vmatmul.mubr.bf16.gmra.mrb[0].mxu0 %v5723
    %v7458 = vpop.f32.mrb[0].mxu0
    %v7459 = vadd.f32 %v7170, %v7458
    %v7460 = vpop.f32.mrb[0].mxu0
    %v7461 = vpop.f32.mrb[0].mxu0
    %v7462 = vadd.f32 %v7173, %v7461
    %v7463 = vpop.f32.mrb[0].mxu0
    %7464 = vmatprep.mubr.bf16.mxu0 %v5733
    %7465 = vmatmul.mubr.bf16.gmra.mrb[0].mxu0 %v5732
    %v7466 = vpop.f32.mrb[0].mxu0
    %v7467 = vadd.f32 %v7178, %v7466
    %v7468 = vpop.f32.mrb[0].mxu0
    %v7469 = vpop.f32.mrb[0].mxu0
    %v7470 = vadd.f32 %v7181, %v7469
    %v7471 = vpop.f32.mrb[0].mxu0
    %7472 = vmatprep.mubr.bf16.mxu0 %v5742
    %7473 = vmatmul.mubr.bf16.gmra.mrb[0].mxu0 %v5741
    %v7474 = vpop.f32.mrb[0].mxu0
    %v7475 = vadd.f32 %v7186, %v7474
    %v7476 = vpop.f32.mrb[0].mxu0
    %v7477 = vpop.f32.mrb[0].mxu0
    %v7478 = vadd.f32 %v7189, %v7477
    %v7479 = vpop.f32.mrb[0].mxu0
    %7480 = vmatprep.mubr.bf16.mxu0 %v5751
    %7481 = vmatmul.mubr.bf16.gmra.mrb[0].mxu0 %v5750
    %v7482 = vpop.f32.mrb[0].mxu0
    %v7483 = vadd.f32 %v7194, %v7482
    %v7484 = vpop.f32.mrb[0].mxu0
    %v7485 = vpop.f32.mrb[0].mxu0
    %v7486 = vadd.f32 %v7197, %v7485
    %v7487 = vpop.f32.mrb[0].mxu0
    %7488 = vmatprep.mubr.bf16.mxu0 %v5760
    %7489 = vmatmul.mubr.bf16.gmra.mrb[0].mxu0 %v5759
    %v7490 = vpop.f32.mrb[0].mxu0
    %v7491 = vadd.f32 %v7202, %v7490
    %v7492 = vpop.f32.mrb[0].mxu0
    %v7493 = vpop.f32.mrb[0].mxu0
    %v7494 = vadd.f32 %v7205, %v7493
    %v7495 = vpop.f32.mrb[0].mxu0
    %7496 = vmatprep.mubr.bf16.mxu0 %v5769
    %7497 = vmatmul.mubr.bf16.gmra.mrb[0].mxu0 %v5768
    %v7498 = vpop.f32.mrb[0].mxu0
    %v7499 = vadd.f32 %v7210, %v7498
    %v7500 = vpop.f32.mrb[0].mxu0
    %v7501 = vpop.f32.mrb[0].mxu0
    %v7502 = vadd.f32 %v7213, %v7501
    %v7503 = vpop.f32.mrb[0].mxu0
    %7504 = vmatprep.mubr.bf16.mxu0 %v5778
    %7505 = vmatmul.mubr.bf16.gmra.mrb[0].mxu0 %v5777
    %v7506 = vpop.f32.mrb[0].mxu0
    %v7507 = vadd.f32 %v7218, %v7506
    %v7508 = vpop.f32.mrb[0].mxu0
    %v7509 = vpop.f32.mrb[0].mxu0
    %v7510 = vadd.f32 %v7221, %v7509
    %v7511 = vpop.f32.mrb[0].mxu0
    %7512 = vmatprep.mubr.bf16.mxu0 %v5787
    %7513 = vmatmul.mubr.bf16.gmra.mrb[0].mxu0 %v5786
    %v7514 = vpop.f32.mrb[0].mxu0
    %v7515 = vadd.f32 %v7226, %v7514
    %v7516 = vpop.f32.mrb[0].mxu0
    %v7517 = vpop.f32.mrb[0].mxu0
    %v7518 = vadd.f32 %v7229, %v7517
    %v7519 = vpop.f32.mrb[0].mxu0
    %7520 = vdwg.mxu0
    %7521 = vmatprep.subr.bf16.mxu0 0
    %7522 = vmatpush1.bf16.msra.mxu0 %v6285
    %7523 = vmatprep.subr.bf16.mxu0 0
    %7524 = vmatpush1.bf16.msra.mxu0 %v6286
    %7525 = vmatprep.subr.bf16.mxu0 0
    %7526 = vmatpush1.bf16.msra.mxu0 %v6287
    %7527 = vmatprep.subr.bf16.mxu0 0
    %7528 = vmatpush1.bf16.msra.mxu0 %v6288
    %7529 = vmatprep.subr.bf16.mxu0 0
    %7530 = vmatpush1.bf16.msra.mxu0 %v6289
    %7531 = vmatprep.subr.bf16.mxu0 0
    %7532 = vmatpush1.bf16.msra.mxu0 %v6290
    %7533 = vmatprep.subr.bf16.mxu0 0
    %7534 = vmatpush1.bf16.msra.mxu0 %v6291
    %7535 = vmatprep.subr.bf16.mxu0 0
    %7536 = vmatpush1.bf16.msra.mxu0 %v6292
    %7537 = vmatprep.subr.bf16.mxu0 0
    %7538 = vmatpush1.bf16.msra.mxu0 0
    %7539 = vmatprep.subr.bf16.mxu0 0
    %7540 = vmatpush1.bf16.msra.mxu0 0
    %7541 = vmatprep.subr.bf16.mxu0 0
    %7542 = vmatpush1.bf16.msra.mxu0 0
    %7543 = vmatprep.subr.bf16.mxu0 0
    %7544 = vmatpush1.bf16.msra.mxu0 0
    %7545 = vmatprep.subr.bf16.mxu0 0
    %7546 = vmatpush1.bf16.msra.mxu0 0
    %7547 = vmatprep.subr.bf16.mxu0 0
    %7548 = vmatpush1.bf16.msra.mxu0 0
    %7549 = vmatprep.subr.bf16.mxu0 0
    %7550 = vmatpush1.bf16.msra.mxu0 0
    %7551 = vmatprep.subr.bf16.mxu0 0
    %7552 = vmatpush1.bf16.msra.mxu0 0
    %7553 = vmatprep.mubr.bf16.mxu0 0
    %7554 = vmatmul.mubr.bf16.gmra.mrb[0].mxu0 %v5509
    %v7555 = vpop.f32.mrb[0].mxu0
    %v7556 = vadd.f32 %v7267, %v7555
    %v7557 = vpop.f32.mrb[0].mxu0
    %v7558 = vpop.f32.mrb[0].mxu0
    %v7559 = vadd.f32 %v7270, %v7558
    %v7560 = vpop.f32.mrb[0].mxu0
    %7561 = vmatprep.mubr.bf16.mxu0 0
    %7562 = vmatmul.mubr.bf16.gmra.mrb[0].mxu0 %v5518
    %v7563 = vpop.f32.mrb[0].mxu0
    %v7564 = vadd.f32 %v7275, %v7563
    %v7565 = vpop.f32.mrb[0].mxu0
    %v7566 = vpop.f32.mrb[0].mxu0
    %v7567 = vadd.f32 %v7278, %v7566
    %v7568 = vpop.f32.mrb[0].mxu0
    %7569 = vmatprep.mubr.bf16.mxu0 0
    %7570 = vmatmul.mubr.bf16.gmra.mrb[0].mxu0 %v5527
    %v7571 = vpop.f32.mrb[0].mxu0
    %v7572 = vadd.f32 %v7283, %v7571
    %v7573 = vpop.f32.mrb[0].mxu0
    %v7574 = vpop.f32.mrb[0].mxu0
    %v7575 = vadd.f32 %v7286, %v7574
    %v7576 = vpop.f32.mrb[0].mxu0
    %7577 = vmatprep.mubr.bf16.mxu0 0
    %7578 = vmatmul.mubr.bf16.gmra.mrb[0].mxu0 %v5536
    %v7579 = vpop.f32.mrb[0].mxu0
    %v7580 = vadd.f32 %v7291, %v7579
    %v7581 = vpop.f32.mrb[0].mxu0
    %v7582 = vpop.f32.mrb[0].mxu0
    %v7583 = vadd.f32 %v7294, %v7582
    %v7584 = vpop.f32.mrb[0].mxu0
    %7585 = vmatprep.mubr.bf16.mxu0 0
    %7586 = vmatmul.mubr.bf16.gmra.mrb[0].mxu0 %v5545
    %v7587 = vpop.f32.mrb[0].mxu0
    %v7588 = vadd.f32 %v7299, %v7587
    %v7589 = vpop.f32.mrb[0].mxu0
    %v7590 = vpop.f32.mrb[0].mxu0
    %v7591 = vadd.f32 %v7302, %v7590
    %v7592 = vpop.f32.mrb[0].mxu0
    %7593 = vmatprep.mubr.bf16.mxu0 0
    %7594 = vmatmul.mubr.bf16.gmra.mrb[0].mxu0 %v5554
    %v7595 = vpop.f32.mrb[0].mxu0
    %v7596 = vadd.f32 %v7307, %v7595
    %v7597 = vpop.f32.mrb[0].mxu0
    %v7598 = vpop.f32.mrb[0].mxu0
    %v7599 = vadd.f32 %v7310, %v7598
    %v7600 = vpop.f32.mrb[0].mxu0
    %7601 = vmatprep.mubr.bf16.mxu0 0
    %7602 = vmatmul.mubr.bf16.gmra.mrb[0].mxu0 %v5563
    %v7603 = vpop.f32.mrb[0].mxu0
    %v7604 = vadd.f32 %v7315, %v7603
    %v7605 = vpop.f32.mrb[0].mxu0
    %v7606 = vpop.f32.mrb[0].mxu0
    %v7607 = vadd.f32 %v7318, %v7606
    %v7608 = vpop.f32.mrb[0].mxu0
    %7609 = vmatprep.mubr.bf16.mxu0 0
    %7610 = vmatmul.mubr.bf16.gmra.mrb[0].mxu0 %v5572
    %v7611 = vpop.f32.mrb[0].mxu0
    %v7612 = vadd.f32 %v7323, %v7611
    %v7613 = vpop.f32.mrb[0].mxu0
    %v7614 = vpop.f32.mrb[0].mxu0
    %v7615 = vadd.f32 %v7326, %v7614
    %v7616 = vpop.f32.mrb[0].mxu0
    %7617 = vmatprep.mubr.bf16.mxu0 0
    %7618 = vmatmul.mubr.bf16.gmra.mrb[0].mxu0 %v5581
    %v7619 = vpop.f32.mrb[0].mxu0
    %v7620 = vadd.f32 %v7331, %v7619
    %v7621 = vpop.f32.mrb[0].mxu0
    %v7622 = vpop.f32.mrb[0].mxu0
    %v7623 = vadd.f32 %v7334, %v7622
    %v7624 = vpop.f32.mrb[0].mxu0
    %7625 = vmatprep.mubr.bf16.mxu0 0
    %7626 = vmatmul.mubr.bf16.gmra.mrb[0].mxu0 %v5590
    %v7627 = vpop.f32.mrb[0].mxu0
    %v7628 = vadd.f32 %v7339, %v7627
    %v7629 = vpop.f32.mrb[0].mxu0
    %v7630 = vpop.f32.mrb[0].mxu0
    %v7631 = vadd.f32 %v7342, %v7630
    %v7632 = vpop.f32.mrb[0].mxu0
    %7633 = vmatprep.mubr.bf16.mxu0 0
    %7634 = vmatmul.mubr.bf16.gmra.mrb[0].mxu0 %v5599
    %v7635 = vpop.f32.mrb[0].mxu0
    %v7636 = vadd.f32 %v7347, %v7635
    %v7637 = vpop.f32.mrb[0].mxu0
    %v7638 = vpop.f32.mrb[0].mxu0
    %v7639 = vadd.f32 %v7350, %v7638
    %v7640 = vpop.f32.mrb[0].mxu0
    %7641 = vmatprep.mubr.bf16.mxu0 0
    %7642 = vmatmul.mubr.bf16.gmra.mrb[0].mxu0 %v5608
    %v7643 = vpop.f32.mrb[0].mxu0
    %v7644 = vadd.f32 %v7355, %v7643
    %v7645 = vpop.f32.mrb[0].mxu0
    %v7646 = vpop.f32.mrb[0].mxu0
    %v7647 = vadd.f32 %v7358, %v7646
    %v7648 = vpop.f32.mrb[0].mxu0
    %7649 = vmatprep.mubr.bf16.mxu0 0
    %7650 = vmatmul.mubr.bf16.gmra.mrb[0].mxu0 %v5617
    %v7651 = vpop.f32.mrb[0].mxu0
    %v7652 = vadd.f32 %v7363, %v7651
    %v7653 = vpop.f32.mrb[0].mxu0
    %v7654 = vpop.f32.mrb[0].mxu0
    %v7655 = vadd.f32 %v7366, %v7654
    %v7656 = vpop.f32.mrb[0].mxu0
    %7657 = vmatprep.mubr.bf16.mxu0 0
    %7658 = vmatmul.mubr.bf16.gmra.mrb[0].mxu0 %v5626
    %v7659 = vpop.f32.mrb[0].mxu0
    %v7660 = vadd.f32 %v7371, %v7659
    %v7661 = vpop.f32.mrb[0].mxu0
    %v7662 = vpop.f32.mrb[0].mxu0
    %v7663 = vadd.f32 %v7374, %v7662
    %v7664 = vpop.f32.mrb[0].mxu0
    %7665 = vmatprep.mubr.bf16.mxu0 0
    %7666 = vmatmul.mubr.bf16.gmra.mrb[0].mxu0 %v5635
    %v7667 = vpop.f32.mrb[0].mxu0
    %v7668 = vadd.f32 %v7379, %v7667
    %v7669 = vpop.f32.mrb[0].mxu0
    %v7670 = vpop.f32.mrb[0].mxu0
    %v7671 = vadd.f32 %v7382, %v7670
    %v7672 = vpop.f32.mrb[0].mxu0
    %7673 = vmatprep.mubr.bf16.mxu0 0
    %7674 = vmatmul.mubr.bf16.gmra.mrb[0].mxu0 %v5644
    %v7675 = vpop.f32.mrb[0].mxu0
    %v7676 = vadd.f32 %v7387, %v7675
    %v7677 = vpop.f32.mrb[0].mxu0
    %v7678 = vpop.f32.mrb[0].mxu0
    %v7679 = vadd.f32 %v7390, %v7678
    %v7680 = vpop.f32.mrb[0].mxu0
    %7681 = vmatprep.mubr.bf16.mxu0 0
    %7682 = vmatmul.mubr.bf16.gmra.mrb[0].mxu0 %v5653
    %v7683 = vpop.f32.mrb[0].mxu0
    %v7684 = vadd.f32 %v7395, %v7683
    %v7685 = vpop.f32.mrb[0].mxu0
    %v7686 = vpop.f32.mrb[0].mxu0
    %v7687 = vadd.f32 %v7398, %v7686
    %v7688 = vpop.f32.mrb[0].mxu0
    %7689 = vmatprep.mubr.bf16.mxu0 0
    %7690 = vmatmul.mubr.bf16.gmra.mrb[0].mxu0 %v5662
    %v7691 = vpop.f32.mrb[0].mxu0
    %v7692 = vadd.f32 %v7403, %v7691
    %v7693 = vpop.f32.mrb[0].mxu0
    %v7694 = vpop.f32.mrb[0].mxu0
    %v7695 = vadd.f32 %v7406, %v7694
    %v7696 = vpop.f32.mrb[0].mxu0
    %7697 = vmatprep.mubr.bf16.mxu0 0
    %7698 = vmatmul.mubr.bf16.gmra.mrb[0].mxu0 %v5671
    %v7699 = vpop.f32.mrb[0].mxu0
    %v7700 = vadd.f32 %v7411, %v7699
    %v7701 = vpop.f32.mrb[0].mxu0
    %v7702 = vpop.f32.mrb[0].mxu0
    %v7703 = vadd.f32 %v7414, %v7702
    %v7704 = vpop.f32.mrb[0].mxu0
    %7705 = vmatprep.mubr.bf16.mxu0 0
    %7706 = vmatmul.mubr.bf16.gmra.mrb[0].mxu0 %v5680
    %v7707 = vpop.f32.mrb[0].mxu0
    %v7708 = vadd.f32 %v7419, %v7707
    %v7709 = vpop.f32.mrb[0].mxu0
    %v7710 = vpop.f32.mrb[0].mxu0
    %v7711 = vadd.f32 %v7422, %v7710
    %v7712 = vpop.f32.mrb[0].mxu0
    %7713 = vmatprep.mubr.bf16.mxu0 0
    %7714 = vmatmul.mubr.bf16.gmra.mrb[0].mxu0 %v5689
    %v7715 = vpop.f32.mrb[0].mxu0
    %v7716 = vadd.f32 %v7427, %v7715
    %v7717 = vpop.f32.mrb[0].mxu0
    %v7718 = vpop.f32.mrb[0].mxu0
    %v7719 = vadd.f32 %v7430, %v7718
    %v7720 = vpop.f32.mrb[0].mxu0
    %7721 = vmatprep.mubr.bf16.mxu0 0
    %7722 = vmatmul.mubr.bf16.gmra.mrb[0].mxu0 %v5698
    %v7723 = vpop.f32.mrb[0].mxu0
    %v7724 = vadd.f32 %v7435, %v7723
    %v7725 = vpop.f32.mrb[0].mxu0
    %v7726 = vpop.f32.mrb[0].mxu0
    %v7727 = vadd.f32 %v7438, %v7726
    %v7728 = vpop.f32.mrb[0].mxu0
    %7729 = vmatprep.mubr.bf16.mxu0 0
    %7730 = vmatmul.mubr.bf16.gmra.mrb[0].mxu0 %v5707
    %v7731 = vpop.f32.mrb[0].mxu0
    %v7732 = vadd.f32 %v7443, %v7731
    %v7733 = vpop.f32.mrb[0].mxu0
    %v7734 = vpop.f32.mrb[0].mxu0
    %v7735 = vadd.f32 %v7446, %v7734
    %v7736 = vpop.f32.mrb[0].mxu0
    %7737 = vmatprep.mubr.bf16.mxu0 0
    %7738 = vmatmul.mubr.bf16.gmra.mrb[0].mxu0 %v5716
    %v7739 = vpop.f32.mrb[0].mxu0
    %v7740 = vadd.f32 %v7451, %v7739
    %v7741 = vpop.f32.mrb[0].mxu0
    %v7742 = vpop.f32.mrb[0].mxu0
    %v7743 = vadd.f32 %v7454, %v7742
    %v7744 = vpop.f32.mrb[0].mxu0
    %7745 = vmatprep.mubr.bf16.mxu0 0
    %7746 = vmatmul.mubr.bf16.gmra.mrb[0].mxu0 %v5725
    %v7747 = vpop.f32.mrb[0].mxu0
    %v7748 = vadd.f32 %v7459, %v7747
    %v7749 = vpop.f32.mrb[0].mxu0
    %v7750 = vpop.f32.mrb[0].mxu0
    %v7751 = vadd.f32 %v7462, %v7750
    %v7752 = vpop.f32.mrb[0].mxu0
    %7753 = vmatprep.mubr.bf16.mxu0 0
    %7754 = vmatmul.mubr.bf16.gmra.mrb[0].mxu0 %v5734
    %v7755 = vpop.f32.mrb[0].mxu0
    %v7756 = vadd.f32 %v7467, %v7755
    %v7757 = vpop.f32.mrb[0].mxu0
    %v7758 = vpop.f32.mrb[0].mxu0
    %v7759 = vadd.f32 %v7470, %v7758
    %v7760 = vpop.f32.mrb[0].mxu0
    %7761 = vmatprep.mubr.bf16.mxu0 0
    %7762 = vmatmul.mubr.bf16.gmra.mrb[0].mxu0 %v5743
    %v7763 = vpop.f32.mrb[0].mxu0
    %v7764 = vadd.f32 %v7475, %v7763
    %v7765 = vpop.f32.mrb[0].mxu0
    %v7766 = vpop.f32.mrb[0].mxu0
    %v7767 = vadd.f32 %v7478, %v7766
    %v7768 = vpop.f32.mrb[0].mxu0
    %7769 = vmatprep.mubr.bf16.mxu0 0
    %7770 = vmatmul.mubr.bf16.gmra.mrb[0].mxu0 %v5752
    %v7771 = vpop.f32.mrb[0].mxu0
    %v7772 = vadd.f32 %v7483, %v7771
    %v7773 = vpop.f32.mrb[0].mxu0
    %v7774 = vpop.f32.mrb[0].mxu0
    %v7775 = vadd.f32 %v7486, %v7774
    %v7776 = vpop.f32.mrb[0].mxu0
    %7777 = vmatprep.mubr.bf16.mxu0 0
    %7778 = vmatmul.mubr.bf16.gmra.mrb[0].mxu0 %v5761
    %v7779 = vpop.f32.mrb[0].mxu0
    %v7780 = vadd.f32 %v7491, %v7779
    %v7781 = vpop.f32.mrb[0].mxu0
    %v7782 = vpop.f32.mrb[0].mxu0
    %v7783 = vadd.f32 %v7494, %v7782
    %v7784 = vpop.f32.mrb[0].mxu0
    %7785 = vmatprep.mubr.bf16.mxu0 0
    %7786 = vmatmul.mubr.bf16.gmra.mrb[0].mxu0 %v5770
    %v7787 = vpop.f32.mrb[0].mxu0
    %v7788 = vadd.f32 %v7499, %v7787
    %v7789 = vpop.f32.mrb[0].mxu0
    %v7790 = vpop.f32.mrb[0].mxu0
    %v7791 = vadd.f32 %v7502, %v7790
    %v7792 = vpop.f32.mrb[0].mxu0
    %7793 = vmatprep.mubr.bf16.mxu0 0
    %7794 = vmatmul.mubr.bf16.gmra.mrb[0].mxu0 %v5779
    %v7795 = vpop.f32.mrb[0].mxu0
    %v7796 = vadd.f32 %v7507, %v7795
    %v7797 = vpop.f32.mrb[0].mxu0
    %v7798 = vpop.f32.mrb[0].mxu0
    %v7799 = vadd.f32 %v7510, %v7798
    %v7800 = vpop.f32.mrb[0].mxu0
    %7801 = vmatprep.mubr.bf16.mxu0 0
    %7802 = vmatmul.mubr.bf16.gmra.mrb[0].mxu0 %v5788
    %v7803 = vpop.f32.mrb[0].mxu0
    %v7804 = vadd.f32 %v7515, %v7803
    %v7805 = vpop.f32.mrb[0].mxu0
    %v7806 = vpop.f32.mrb[0].mxu0
    %v7807 = vadd.f32 %v7518, %v7806
    %v7808 = vpop.f32.mrb[0].mxu0
    %7809 = vdwg.mxu0
    %7810 = vst [vmem:[#allocation4] sm:$0xff] %v7556
    %7811 = vst [vmem:[#allocation4 + $0x8] sm:$0xff] %v7559
    %7812 = vst [vmem:[#allocation4 + $0x10] sm:$0xff] %v7564
    %7813 = vst [vmem:[#allocation4 + $0x18] sm:$0xff] %v7567
    %7814 = vst [vmem:[#allocation4 + $0x20] sm:$0xff] %v7572
    %7815 = vst [vmem:[#allocation4 + $0x28] sm:$0xff] %v7575
    %7816 = vst [vmem:[#allocation4 + $0x30] sm:$0xff] %v7580
    %7817 = vst [vmem:[#allocation4 + $0x38] sm:$0xff] %v7583
    %7818 = vst [vmem:[#allocation4 + $0x40] sm:$0xff] %v7588
    %7819 = vst [vmem:[#allocation4 + $0x48] sm:$0xff] %v7591
    %7820 = vst [vmem:[#allocation4 + $0x50] sm:$0xff] %v7596
    %7821 = vst [vmem:[#allocation4 + $0x58] sm:$0xff] %v7599
    %7822 = vst [vmem:[#allocation4 + $0x60] sm:$0xff] %v7604
    %7823 = vst [vmem:[#allocation4 + $0x68] sm:$0xff] %v7607
    %7824 = vst [vmem:[#allocation4 + $0x70] sm:$0xff] %v7612
    %7825 = vst [vmem:[#allocation4 + $0x78] sm:$0xff] %v7615
    %7826 = vst [vmem:[#allocation4 + $0x80] sm:$0xff] %v7620
    %7827 = vst [vmem:[#allocation4 + $0x88] sm:$0xff] %v7623
    %7828 = vst [vmem:[#allocation4 + $0x90] sm:$0xff] %v7628
    %7829 = vst [vmem:[#allocation4 + $0x98] sm:$0xff] %v7631
    %7830 = vst [vmem:[#allocation4 + $0xa0] sm:$0xff] %v7636
    %7831 = vst [vmem:[#allocation4 + $0xa8] sm:$0xff] %v7639
    %7832 = vst [vmem:[#allocation4 + $0xb0] sm:$0xff] %v7644
    %7833 = vst [vmem:[#allocation4 + $0xb8] sm:$0xff] %v7647
    %7834 = vst [vmem:[#allocation4 + $0xc0] sm:$0xff] %v7652
    %7835 = vst [vmem:[#allocation4 + $0xc8] sm:$0xff] %v7655
    %7836 = vst [vmem:[#allocation4 + $0xd0] sm:$0xff] %v7660
    %7837 = vst [vmem:[#allocation4 + $0xd8] sm:$0xff] %v7663
    %7838 = vst [vmem:[#allocation4 + $0xe0] sm:$0xff] %v7668
    %7839 = vst [vmem:[#allocation4 + $0xe8] sm:$0xff] %v7671
    %7840 = vst [vmem:[#allocation4 + $0xf0] sm:$0xff] %v7676
    %7841 = vst [vmem:[#allocation4 + $0xf8] sm:$0xff] %v7679
    %7842 = vst [vmem:[#allocation4 + $0x100] sm:$0xff] %v7684
    %7843 = vst [vmem:[#allocation4 + $0x108] sm:$0xff] %v7687
    %7844 = vst [vmem:[#allocation4 + $0x110] sm:$0xff] %v7692
    %7845 = vst [vmem:[#allocation4 + $0x118] sm:$0xff] %v7695
    %7846 = vst [vmem:[#allocation4 + $0x120] sm:$0xff] %v7700
    %7847 = vst [vmem:[#allocation4 + $0x128] sm:$0xff] %v7703
    %7848 = vst [vmem:[#allocation4 + $0x130] sm:$0xff] %v7708
    %7849 = vst [vmem:[#allocation4 + $0x138] sm:$0xff] %v7711
    %7850 = vst [vmem:[#allocation4 + $0x140] sm:$0xff] %v7716
    %7851 = vst [vmem:[#allocation4 + $0x148] sm:$0xff] %v7719
    %7852 = vst [vmem:[#allocation4 + $0x150] sm:$0xff] %v7724
    %7853 = vst [vmem:[#allocation4 + $0x158] sm:$0xff] %v7727
    %7854 = vst [vmem:[#allocation4 + $0x160] sm:$0xff] %v7732
    %7855 = vst [vmem:[#allocation4 + $0x168] sm:$0xff] %v7735
    %7856 = vst [vmem:[#allocation4 + $0x170] sm:$0xff] %v7740
    %7857 = vst [vmem:[#allocation4 + $0x178] sm:$0xff] %v7743
    %7858 = vst [vmem:[#allocation4 + $0x180] sm:$0xff] %v7748
    %7859 = vst [vmem:[#allocation4 + $0x188] sm:$0xff] %v7751
    %7860 = vst [vmem:[#allocation4 + $0x190] sm:$0xff] %v7756
    %7861 = vst [vmem:[#allocation4 + $0x198] sm:$0xff] %v7759
    %7862 = vst [vmem:[#allocation4 + $0x1a0] sm:$0xff] %v7764
    %7863 = vst [vmem:[#allocation4 + $0x1a8] sm:$0xff] %v7767
    %7864 = vst [vmem:[#allocation4 + $0x1b0] sm:$0xff] %v7772
    %7865 = vst [vmem:[#allocation4 + $0x1b8] sm:$0xff] %v7775
    %7866 = vst [vmem:[#allocation4 + $0x1c0] sm:$0xff] %v7780
    %7867 = vst [vmem:[#allocation4 + $0x1c8] sm:$0xff] %v7783
    %7868 = vst [vmem:[#allocation4 + $0x1d0] sm:$0xff] %v7788
    %7869 = vst [vmem:[#allocation4 + $0x1d8] sm:$0xff] %v7791
    %7870 = vst [vmem:[#allocation4 + $0x1e0] sm:$0xff] %v7796
    %7871 = vst [vmem:[#allocation4 + $0x1e8] sm:$0xff] %v7799
    %7872 = vst [vmem:[#allocation4 + $0x1f0] sm:$0xff] %v7804
    %7873 = vst [vmem:[#allocation4 + $0x1f8] sm:$0xff] %v7807
    %v7874 = vld [vmem:[#allocation4] sm:$0xff]
    %v7875 = vld [vmem:[#allocation4 + $0x8] sm:$0xff]
    %v7876 = vld [vmem:[#allocation4 + $0x10] sm:$0xff]
    %v7877 = vld [vmem:[#allocation4 + $0x18] sm:$0xff]
    %v7878 = vld [vmem:[#allocation4 + $0x20] sm:$0xff]
    %v7879 = vld [vmem:[#allocation4 + $0x28] sm:$0xff]
    %v7880 = vld [vmem:[#allocation4 + $0x30] sm:$0xff]
    %v7881 = vld [vmem:[#allocation4 + $0x38] sm:$0xff]
    %v7882 = vld [vmem:[#allocation4 + $0x40] sm:$0xff]
    %v7883 = vld [vmem:[#allocation4 + $0x48] sm:$0xff]
    %v7884 = vld [vmem:[#allocation4 + $0x50] sm:$0xff]
    %v7885 = vld [vmem:[#allocation4 + $0x58] sm:$0xff]
    %v7886 = vld [vmem:[#allocation4 + $0x60] sm:$0xff]
    %v7887 = vld [vmem:[#allocation4 + $0x68] sm:$0xff]
    %v7888 = vld [vmem:[#allocation4 + $0x70] sm:$0xff]
    %v7889 = vld [vmem:[#allocation4 + $0x78] sm:$0xff]
    %v7890 = vld [vmem:[#allocation4 + $0x80] sm:$0xff]
    %v7891 = vld [vmem:[#allocation4 + $0x88] sm:$0xff]
    %v7892 = vld [vmem:[#allocation4 + $0x90] sm:$0xff]
    %v7893 = vld [vmem:[#allocation4 + $0x98] sm:$0xff]
    %v7894 = vld [vmem:[#allocation4 + $0xa0] sm:$0xff]
    %v7895 = vld [vmem:[#allocation4 + $0xa8] sm:$0xff]
    %v7896 = vld [vmem:[#allocation4 + $0xb0] sm:$0xff]
    %v7897 = vld [vmem:[#allocation4 + $0xb8] sm:$0xff]
    %v7898 = vld [vmem:[#allocation4 + $0xc0] sm:$0xff]
    %v7899 = vld [vmem:[#allocation4 + $0xc8] sm:$0xff]
    %v7900 = vld [vmem:[#allocation4 + $0xd0] sm:$0xff]
    %v7901 = vld [vmem:[#allocation4 + $0xd8] sm:$0xff]
    %v7902 = vld [vmem:[#allocation4 + $0xe0] sm:$0xff]
    %v7903 = vld [vmem:[#allocation4 + $0xe8] sm:$0xff]
    %v7904 = vld [vmem:[#allocation4 + $0xf0] sm:$0xff]
    %v7905 = vld [vmem:[#allocation4 + $0xf8] sm:$0xff]
    %v7906 = vld [vmem:[#allocation4 + $0x100] sm:$0xff]
    %v7907 = vld [vmem:[#allocation4 + $0x108] sm:$0xff]
    %v7908 = vld [vmem:[#allocation4 + $0x110] sm:$0xff]
    %v7909 = vld [vmem:[#allocation4 + $0x118] sm:$0xff]
    %v7910 = vld [vmem:[#allocation4 + $0x120] sm:$0xff]
    %v7911 = vld [vmem:[#allocation4 + $0x128] sm:$0xff]
    %v7912 = vld [vmem:[#allocation4 + $0x130] sm:$0xff]
    %v7913 = vld [vmem:[#allocation4 + $0x138] sm:$0xff]
    %v7914 = vld [vmem:[#allocation4 + $0x140] sm:$0xff]
    %v7915 = vld [vmem:[#allocation4 + $0x148] sm:$0xff]
    %v7916 = vld [vmem:[#allocation4 + $0x150] sm:$0xff]
    %v7917 = vld [vmem:[#allocation4 + $0x158] sm:$0xff]
    %v7918 = vld [vmem:[#allocation4 + $0x160] sm:$0xff]
    %v7919 = vld [vmem:[#allocation4 + $0x168] sm:$0xff]
    %v7920 = vld [vmem:[#allocation4 + $0x170] sm:$0xff]
    %v7921 = vld [vmem:[#allocation4 + $0x178] sm:$0xff]
    %v7922 = vld [vmem:[#allocation4 + $0x180] sm:$0xff]
    %v7923 = vld [vmem:[#allocation4 + $0x188] sm:$0xff]
    %v7924 = vld [vmem:[#allocation4 + $0x190] sm:$0xff]
    %v7925 = vld [vmem:[#allocation4 + $0x198] sm:$0xff]
    %v7926 = vld [vmem:[#allocation4 + $0x1a0] sm:$0xff]
    %v7927 = vld [vmem:[#allocation4 + $0x1a8] sm:$0xff]
    %v7928 = vld [vmem:[#allocation4 + $0x1b0] sm:$0xff]
    %v7929 = vld [vmem:[#allocation4 + $0x1b8] sm:$0xff]
    %v7930 = vld [vmem:[#allocation4 + $0x1c0] sm:$0xff]
    %v7931 = vld [vmem:[#allocation4 + $0x1c8] sm:$0xff]
    %v7932 = vld [vmem:[#allocation4 + $0x1d0] sm:$0xff]
    %v7933 = vld [vmem:[#allocation4 + $0x1d8] sm:$0xff]
    %v7934 = vld [vmem:[#allocation4 + $0x1e0] sm:$0xff]
    %v7935 = vld [vmem:[#allocation4 + $0x1e8] sm:$0xff]
    %v7936 = vld [vmem:[#allocation4 + $0x1f0] sm:$0xff]
    %v7937 = vld [vmem:[#allocation4 + $0x1f8] sm:$0xff]
    %v7938 = vadd.f32 %v7874, %v7875
    %v7939 = vadd.f32 %v7938, %v7876
    %v7940 = vadd.f32 %v7939, %v7877
    %v7941 = vadd.f32 %v7940, %v7878
    %v7942 = vadd.f32 %v7941, %v7879
    %v7943 = vadd.f32 %v7942, %v7880
    %v7944 = vadd.f32 %v7943, %v7881
    %v7945 = vadd.f32 %v7944, %v7882
    %v7946 = vadd.f32 %v7945, %v7883
    %v7947 = vadd.f32 %v7946, %v7884
    %v7948 = vadd.f32 %v7947, %v7885
    %v7949 = vadd.f32 %v7948, %v7886
    %v7950 = vadd.f32 %v7949, %v7887
    %v7951 = vadd.f32 %v7950, %v7888
    %v7952 = vadd.f32 %v7951, %v7889
    %v7953 = vadd.f32 %v7952, %v7890
    %v7954 = vadd.f32 %v7953, %v7891
    %v7955 = vadd.f32 %v7954, %v7892
    %v7956 = vadd.f32 %v7955, %v7893
    %v7957 = vadd.f32 %v7956, %v7894
    %v7958 = vadd.f32 %v7957, %v7895
    %v7959 = vadd.f32 %v7958, %v7896
    %v7960 = vadd.f32 %v7959, %v7897
    %v7961 = vadd.f32 %v7960, %v7898
    %v7962 = vadd.f32 %v7961, %v7899
    %v7963 = vadd.f32 %v7962, %v7900
    %v7964 = vadd.f32 %v7963, %v7901
    %v7965 = vadd.f32 %v7964, %v7902
    %v7966 = vadd.f32 %v7965, %v7903
    %v7967 = vadd.f32 %v7966, %v7904
    %v7968 = vadd.f32 %v7967, %v7905
    %v7969 = vadd.f32 %v7968, %v7906
    %v7970 = vadd.f32 %v7969, %v7907
    %v7971 = vadd.f32 %v7970, %v7908
    %v7972 = vadd.f32 %v7971, %v7909
    %v7973 = vadd.f32 %v7972, %v7910
    %v7974 = vadd.f32 %v7973, %v7911
    %v7975 = vadd.f32 %v7974, %v7912
    %v7976 = vadd.f32 %v7975, %v7913
    %v7977 = vadd.f32 %v7976, %v7914
    %v7978 = vadd.f32 %v7977, %v7915
    %v7979 = vadd.f32 %v7978, %v7916
    %v7980 = vadd.f32 %v7979, %v7917
    %v7981 = vadd.f32 %v7980, %v7918
    %v7982 = vadd.f32 %v7981, %v7919
    %v7983 = vadd.f32 %v7982, %v7920
    %v7984 = vadd.f32 %v7983, %v7921
    %v7985 = vadd.f32 %v7984, %v7922
    %v7986 = vadd.f32 %v7985, %v7923
    %v7987 = vadd.f32 %v7986, %v7924
    %v7988 = vadd.f32 %v7987, %v7925
    %v7989 = vadd.f32 %v7988, %v7926
    %v7990 = vadd.f32 %v7989, %v7927
    %v7991 = vadd.f32 %v7990, %v7928
    %v7992 = vadd.f32 %v7991, %v7929
    %v7993 = vadd.f32 %v7992, %v7930
    %v7994 = vadd.f32 %v7993, %v7931
    %v7995 = vadd.f32 %v7994, %v7932
    %v7996 = vadd.f32 %v7995, %v7933
    %v7997 = vadd.f32 %v7996, %v7934
    %v7998 = vadd.f32 %v7997, %v7935
    %v7999 = vadd.f32 %v7998, %v7936
    %v8000 = vadd.f32 %v7999, %v7937
    %v8001 = vrot.slane %v8000, 4
    %v8002 = vadd.f32 %v8000, %v8001
    %v8003 = vrot.slane %v8002, 2
    %v8004 = vadd.f32 %v8002, %v8003
    %v8005 = vrot.slane %v8004, 1
    %v8006 = vadd.f32 %v8004, %v8005
    %v8007 = vmul.f32 %v7874, %v7874
    %v8008 = vmul.f32 %v7875, %v7875
    %v8009 = vmul.f32 %v7876, %v7876
    %v8010 = vmul.f32 %v7877, %v7877
    %v8011 = vmul.f32 %v7878, %v7878
    %v8012 = vmul.f32 %v7879, %v7879
    %v8013 = vmul.f32 %v7880, %v7880
    %v8014 = vmul.f32 %v7881, %v7881
    %v8015 = vmul.f32 %v7882, %v7882
    %v8016 = vmul.f32 %v7883, %v7883
    %v8017 = vmul.f32 %v7884, %v7884
    %v8018 = vmul.f32 %v7885, %v7885
    %v8019 = vmul.f32 %v7886, %v7886
    %v8020 = vmul.f32 %v7887, %v7887
    %v8021 = vmul.f32 %v7888, %v7888
    %v8022 = vmul.f32 %v7889, %v7889
    %v8023 = vmul.f32 %v7890, %v7890
    %v8024 = vmul.f32 %v7891, %v7891
    %v8025 = vmul.f32 %v7892, %v7892
    %v8026 = vmul.f32 %v7893, %v7893
    %v8027 = vmul.f32 %v7894, %v7894
    %v8028 = vmul.f32 %v7895, %v7895
    %v8029 = vmul.f32 %v7896, %v7896
    %v8030 = vmul.f32 %v7897, %v7897
    %v8031 = vmul.f32 %v7898, %v7898
    %v8032 = vmul.f32 %v7899, %v7899
    %v8033 = vmul.f32 %v7900, %v7900
    %v8034 = vmul.f32 %v7901, %v7901
    %v8035 = vmul.f32 %v7902, %v7902
    %v8036 = vmul.f32 %v7903, %v7903
    %v8037 = vmul.f32 %v7904, %v7904
    %v8038 = vmul.f32 %v7905, %v7905
    %v8039 = vmul.f32 %v7906, %v7906
    %v8040 = vmul.f32 %v7907, %v7907
    %v8041 = vmul.f32 %v7908, %v7908
    %v8042 = vmul.f32 %v7909, %v7909
    %v8043 = vmul.f32 %v7910, %v7910
    %v8044 = vmul.f32 %v7911, %v7911
    %v8045 = vmul.f32 %v7912, %v7912
    %v8046 = vmul.f32 %v7913, %v7913
    %v8047 = vmul.f32 %v7914, %v7914
    %v8048 = vmul.f32 %v7915, %v7915
    %v8049 = vmul.f32 %v7916, %v7916
    %v8050 = vmul.f32 %v7917, %v7917
    %v8051 = vmul.f32 %v7918, %v7918
    %v8052 = vmul.f32 %v7919, %v7919
    %v8053 = vmul.f32 %v7920, %v7920
    %v8054 = vmul.f32 %v7921, %v7921
    %v8055 = vmul.f32 %v7922, %v7922
    %v8056 = vmul.f32 %v7923, %v7923
    %v8057 = vmul.f32 %v7924, %v7924
    %v8058 = vmul.f32 %v7925, %v7925
    %v8059 = vmul.f32 %v7926, %v7926
    %v8060 = vmul.f32 %v7927, %v7927
    %v8061 = vmul.f32 %v7928, %v7928
    %v8062 = vmul.f32 %v7929, %v7929
    %v8063 = vmul.f32 %v7930, %v7930
    %v8064 = vmul.f32 %v7931, %v7931
    %v8065 = vmul.f32 %v7932, %v7932
    %v8066 = vmul.f32 %v7933, %v7933
    %v8067 = vmul.f32 %v7934, %v7934
    %v8068 = vmul.f32 %v7935, %v7935
    %v8069 = vmul.f32 %v7936, %v7936
    %v8070 = vmul.f32 %v7937, %v7937
    %v8071 = vadd.f32 %v8007, %v8008
    %v8072 = vadd.f32 %v8071, %v8009
    %v8073 = vadd.f32 %v8072, %v8010
    %v8074 = vadd.f32 %v8073, %v8011
    %v8075 = vadd.f32 %v8074, %v8012
    %v8076 = vadd.f32 %v8075, %v8013
    %v8077 = vadd.f32 %v8076, %v8014
    %v8078 = vadd.f32 %v8077, %v8015
    %v8079 = vadd.f32 %v8078, %v8016
    %v8080 = vadd.f32 %v8079, %v8017
    %v8081 = vadd.f32 %v8080, %v8018
    %v8082 = vadd.f32 %v8081, %v8019
    %v8083 = vadd.f32 %v8082, %v8020
    %v8084 = vadd.f32 %v8083, %v8021
    %v8085 = vadd.f32 %v8084, %v8022
    %v8086 = vadd.f32 %v8085, %v8023
    %v8087 = vadd.f32 %v8086, %v8024
    %v8088 = vadd.f32 %v8087, %v8025
    %v8089 = vadd.f32 %v8088, %v8026
    %v8090 = vadd.f32 %v8089, %v8027
    %v8091 = vadd.f32 %v8090, %v8028
    %v8092 = vadd.f32 %v8091, %v8029
    %v8093 = vadd.f32 %v8092, %v8030
    %v8094 = vadd.f32 %v8093, %v8031
    %v8095 = vadd.f32 %v8094, %v8032
    %v8096 = vadd.f32 %v8095, %v8033
    %v8097 = vadd.f32 %v8096, %v8034
    %v8098 = vadd.f32 %v8097, %v8035
    %v8099 = vadd.f32 %v8098, %v8036
    %v8100 = vadd.f32 %v8099, %v8037
    %v8101 = vadd.f32 %v8100, %v8038
    %v8102 = vadd.f32 %v8101, %v8039
    %v8103 = vadd.f32 %v8102, %v8040
    %v8104 = vadd.f32 %v8103, %v8041
    %v8105 = vadd.f32 %v8104, %v8042
    %v8106 = vadd.f32 %v8105, %v8043
    %v8107 = vadd.f32 %v8106, %v8044
    %v8108 = vadd.f32 %v8107, %v8045
    %v8109 = vadd.f32 %v8108, %v8046
    %v8110 = vadd.f32 %v8109, %v8047
    %v8111 = vadd.f32 %v8110, %v8048
    %v8112 = vadd.f32 %v8111, %v8049
    %v8113 = vadd.f32 %v8112, %v8050
    %v8114 = vadd.f32 %v8113, %v8051
    %v8115 = vadd.f32 %v8114, %v8052
    %v8116 = vadd.f32 %v8115, %v8053
    %v8117 = vadd.f32 %v8116, %v8054
    %v8118 = vadd.f32 %v8117, %v8055
    %v8119 = vadd.f32 %v8118, %v8056
    %v8120 = vadd.f32 %v8119, %v8057
    %v8121 = vadd.f32 %v8120, %v8058
    %v8122 = vadd.f32 %v8121, %v8059
    %v8123 = vadd.f32 %v8122, %v8060
    %v8124 = vadd.f32 %v8123, %v8061
    %v8125 = vadd.f32 %v8124, %v8062
    %v8126 = vadd.f32 %v8125, %v8063
    %v8127 = vadd.f32 %v8126, %v8064
    %v8128 = vadd.f32 %v8127, %v8065
    %v8129 = vadd.f32 %v8128, %v8066
    %v8130 = vadd.f32 %v8129, %v8067
    %v8131 = vadd.f32 %v8130, %v8068
    %v8132 = vadd.f32 %v8131, %v8069
    %v8133 = vadd.f32 %v8132, %v8070
    %v8134 = vrot.slane %v8133, 4
    %v8135 = vadd.f32 %v8133, %v8134
    %v8136 = vrot.slane %v8135, 2
    %v8137 = vadd.f32 %v8135, %v8136
    %v8138 = vrot.slane %v8137, 1
    %v8139 = vadd.f32 %v8137, %v8138
    %v8140 = vmul.f32 %v8006, 0.001953125
    %v8141 = vmul.f32 %v8139, 0.001953125
    %v8142 = vmul.f32 %v8140, %v8140
    %v8143 = vsub.f32 %v8141, %v8142
    %v8144 = vmax.f32 %v8143, 0.0
    %v8145 = vadd.f32 %v8144, 1e-05
    %v8146 = vrsqrt.pop %v8145
    %v8147 = vmul.f32 %v63, %v8146
    %v8148 = vmul.f32 %v8140, %v8147
    %v8149 = vsub.f32 %v64, %v8148
    %v8151 = vlaneseq
    %v8152 = vshrl.u32 %v8151, 7
    %v8153 = vsub.s32 0, %v8152
    %v8154 = vrot.slane %v8147, %v8153
    %v8156 = vmul.f32 %v7874, %v8154
    %v8157 = vmul.f32 %v7875, %v8154
    %v8158 = vmul.f32 %v7876, %v8154
    %v8159 = vmul.f32 %v7877, %v8154
    %v8160 = vmul.f32 %v7878, %v8154
    %v8161 = vmul.f32 %v7879, %v8154
    %v8162 = vmul.f32 %v7880, %v8154
    %v8163 = vmul.f32 %v7881, %v8154
    %v8164 = vmul.f32 %v7882, %v8154
    %v8165 = vmul.f32 %v7883, %v8154
    %v8166 = vmul.f32 %v7884, %v8154
    %v8167 = vmul.f32 %v7885, %v8154
    %v8168 = vmul.f32 %v7886, %v8154
    %v8169 = vmul.f32 %v7887, %v8154
    %v8170 = vmul.f32 %v7888, %v8154
    %v8171 = vmul.f32 %v7889, %v8154
    %v8172 = vmul.f32 %v7890, %v8154
    %v8173 = vmul.f32 %v7891, %v8154
    %v8174 = vmul.f32 %v7892, %v8154
    %v8175 = vmul.f32 %v7893, %v8154
    %v8176 = vmul.f32 %v7894, %v8154
    %v8177 = vmul.f32 %v7895, %v8154
    %v8178 = vmul.f32 %v7896, %v8154
    %v8179 = vmul.f32 %v7897, %v8154
    %v8180 = vmul.f32 %v7898, %v8154
    %v8181 = vmul.f32 %v7899, %v8154
    %v8182 = vmul.f32 %v7900, %v8154
    %v8183 = vmul.f32 %v7901, %v8154
    %v8184 = vmul.f32 %v7902, %v8154
    %v8185 = vmul.f32 %v7903, %v8154
    %v8186 = vmul.f32 %v7904, %v8154
    %v8187 = vmul.f32 %v7905, %v8154
    %v8188 = vmul.f32 %v7906, %v8154
    %v8189 = vmul.f32 %v7907, %v8154
    %v8190 = vmul.f32 %v7908, %v8154
    %v8191 = vmul.f32 %v7909, %v8154
    %v8192 = vmul.f32 %v7910, %v8154
    %v8193 = vmul.f32 %v7911, %v8154
    %v8194 = vmul.f32 %v7912, %v8154
    %v8195 = vmul.f32 %v7913, %v8154
    %v8196 = vmul.f32 %v7914, %v8154
    %v8197 = vmul.f32 %v7915, %v8154
    %v8198 = vmul.f32 %v7916, %v8154
    %v8199 = vmul.f32 %v7917, %v8154
    %v8200 = vmul.f32 %v7918, %v8154
    %v8201 = vmul.f32 %v7919, %v8154
    %v8202 = vmul.f32 %v7920, %v8154
    %v8203 = vmul.f32 %v7921, %v8154
    %v8204 = vmul.f32 %v7922, %v8154
    %v8205 = vmul.f32 %v7923, %v8154
    %v8206 = vmul.f32 %v7924, %v8154
    %v8207 = vmul.f32 %v7925, %v8154
    %v8208 = vmul.f32 %v7926, %v8154
    %v8209 = vmul.f32 %v7927, %v8154
    %v8210 = vmul.f32 %v7928, %v8154
    %v8211 = vmul.f32 %v7929, %v8154
    %v8212 = vmul.f32 %v7930, %v8154
    %v8213 = vmul.f32 %v7931, %v8154
    %v8214 = vmul.f32 %v7932, %v8154
    %v8215 = vmul.f32 %v7933, %v8154
    %v8216 = vmul.f32 %v7934, %v8154
    %v8217 = vmul.f32 %v7935, %v8154
    %v8218 = vmul.f32 %v7936, %v8154
    %v8219 = vmul.f32 %v7937, %v8154
    %v8221 = vlaneseq
    %v8222 = vshrl.u32 %v8221, 7
    %v8223 = vsub.s32 0, %v8222
    %v8224 = vrot.slane %v8149, %v8223
    %v8226 = vadd.f32 %v8156, %v8224
    %v8227 = vadd.f32 %v8157, %v8224
    %v8228 = vadd.f32 %v8158, %v8224
    %v8229 = vadd.f32 %v8159, %v8224
    %v8230 = vadd.f32 %v8160, %v8224
    %v8231 = vadd.f32 %v8161, %v8224
    %v8232 = vadd.f32 %v8162, %v8224
    %v8233 = vadd.f32 %v8163, %v8224
    %v8234 = vadd.f32 %v8164, %v8224
    %v8235 = vadd.f32 %v8165, %v8224
    %v8236 = vadd.f32 %v8166, %v8224
    %v8237 = vadd.f32 %v8167, %v8224
    %v8238 = vadd.f32 %v8168, %v8224
    %v8239 = vadd.f32 %v8169, %v8224
    %v8240 = vadd.f32 %v8170, %v8224
    %v8241 = vadd.f32 %v8171, %v8224
    %v8242 = vadd.f32 %v8172, %v8224
    %v8243 = vadd.f32 %v8173, %v8224
    %v8244 = vadd.f32 %v8174, %v8224
    %v8245 = vadd.f32 %v8175, %v8224
    %v8246 = vadd.f32 %v8176, %v8224
    %v8247 = vadd.f32 %v8177, %v8224
    %v8248 = vadd.f32 %v8178, %v8224
    %v8249 = vadd.f32 %v8179, %v8224
    %v8250 = vadd.f32 %v8180, %v8224
    %v8251 = vadd.f32 %v8181, %v8224
    %v8252 = vadd.f32 %v8182, %v8224
    %v8253 = vadd.f32 %v8183, %v8224
    %v8254 = vadd.f32 %v8184, %v8224
    %v8255 = vadd.f32 %v8185, %v8224
    %v8256 = vadd.f32 %v8186, %v8224
    %v8257 = vadd.f32 %v8187, %v8224
    %v8258 = vadd.f32 %v8188, %v8224
    %v8259 = vadd.f32 %v8189, %v8224
    %v8260 = vadd.f32 %v8190, %v8224
    %v8261 = vadd.f32 %v8191, %v8224
    %v8262 = vadd.f32 %v8192, %v8224
    %v8263 = vadd.f32 %v8193, %v8224
    %v8264 = vadd.f32 %v8194, %v8224
    %v8265 = vadd.f32 %v8195, %v8224
    %v8266 = vadd.f32 %v8196, %v8224
    %v8267 = vadd.f32 %v8197, %v8224
    %v8268 = vadd.f32 %v8198, %v8224
    %v8269 = vadd.f32 %v8199, %v8224
    %v8270 = vadd.f32 %v8200, %v8224
    %v8271 = vadd.f32 %v8201, %v8224
    %v8272 = vadd.f32 %v8202, %v8224
    %v8273 = vadd.f32 %v8203, %v8224
    %v8274 = vadd.f32 %v8204, %v8224
    %v8275 = vadd.f32 %v8205, %v8224
    %v8276 = vadd.f32 %v8206, %v8224
    %v8277 = vadd.f32 %v8207, %v8224
    %v8278 = vadd.f32 %v8208, %v8224
    %v8279 = vadd.f32 %v8209, %v8224
    %v8280 = vadd.f32 %v8210, %v8224
    %v8281 = vadd.f32 %v8211, %v8224
    %v8282 = vadd.f32 %v8212, %v8224
    %v8283 = vadd.f32 %v8213, %v8224
    %v8284 = vadd.f32 %v8214, %v8224
    %v8285 = vadd.f32 %v8215, %v8224
    %v8286 = vadd.f32 %v8216, %v8224
    %v8287 = vadd.f32 %v8217, %v8224
    %v8288 = vadd.f32 %v8218, %v8224
    %v8289 = vadd.f32 %v8219, %v8224
    %v8290 = vld [vmem:[#allocation5] sm:$0xff]
    %v8291 = vld [vmem:[#allocation5 + $0x8] sm:$0xff]
    %v8292 = vld [vmem:[#allocation5 + $0x10] sm:$0xff]
    %v8293 = vld [vmem:[#allocation5 + $0x18] sm:$0xff]
    %v8294 = vld [vmem:[#allocation5 + $0x20] sm:$0xff]
    %v8295 = vld [vmem:[#allocation5 + $0x28] sm:$0xff]
    %v8296 = vld [vmem:[#allocation5 + $0x30] sm:$0xff]
    %v8297 = vld [vmem:[#allocation5 + $0x38] sm:$0xff]
    %v8298 = vld [vmem:[#allocation5 + $0x40] sm:$0xff]
    %v8299 = vld [vmem:[#allocation5 + $0x48] sm:$0xff]
    %v8300 = vld [vmem:[#allocation5 + $0x50] sm:$0xff]
    %v8301 = vld [vmem:[#allocation5 + $0x58] sm:$0xff]
    %v8302 = vld [vmem:[#allocation5 + $0x60] sm:$0xff]
    %v8303 = vld [vmem:[#allocation5 + $0x68] sm:$0xff]
    %v8304 = vld [vmem:[#allocation5 + $0x70] sm:$0xff]
    %v8305 = vld [vmem:[#allocation5 + $0x78] sm:$0xff]
    %v8306 = vld [vmem:[#allocation5 + $0x80] sm:$0xff]
    %v8307 = vld [vmem:[#allocation5 + $0x88] sm:$0xff]
    %v8308 = vld [vmem:[#allocation5 + $0x90] sm:$0xff]
    %v8309 = vld [vmem:[#allocation5 + $0x98] sm:$0xff]
    %v8310 = vld [vmem:[#allocation5 + $0xa0] sm:$0xff]
    %v8311 = vld [vmem:[#allocation5 + $0xa8] sm:$0xff]
    %v8312 = vld [vmem:[#allocation5 + $0xb0] sm:$0xff]
    %v8313 = vld [vmem:[#allocation5 + $0xb8] sm:$0xff]
    %v8314 = vld [vmem:[#allocation5 + $0xc0] sm:$0xff]
    %v8315 = vld [vmem:[#allocation5 + $0xc8] sm:$0xff]
    %v8316 = vld [vmem:[#allocation5 + $0xd0] sm:$0xff]
    %v8317 = vld [vmem:[#allocation5 + $0xd8] sm:$0xff]
    %v8318 = vld [vmem:[#allocation5 + $0xe0] sm:$0xff]
    %v8319 = vld [vmem:[#allocation5 + $0xe8] sm:$0xff]
    %v8320 = vld [vmem:[#allocation5 + $0xf0] sm:$0xff]
    %v8321 = vld [vmem:[#allocation5 + $0xf8] sm:$0xff]
    %v8322 = vld [vmem:[#allocation5 + $0x100] sm:$0xff]
    %v8323 = vld [vmem:[#allocation5 + $0x108] sm:$0xff]
    %v8324 = vld [vmem:[#allocation5 + $0x110] sm:$0xff]
    %v8325 = vld [vmem:[#allocation5 + $0x118] sm:$0xff]
    %v8326 = vld [vmem:[#allocation5 + $0x120] sm:$0xff]
    %v8327 = vld [vmem:[#allocation5 + $0x128] sm:$0xff]
    %v8328 = vld [vmem:[#allocation5 + $0x130] sm:$0xff]
    %v8329 = vld [vmem:[#allocation5 + $0x138] sm:$0xff]
    %v8330 = vld [vmem:[#allocation5 + $0x140] sm:$0xff]
    %v8331 = vld [vmem:[#allocation5 + $0x148] sm:$0xff]
    %v8332 = vld [vmem:[#allocation5 + $0x150] sm:$0xff]
    %v8333 = vld [vmem:[#allocation5 + $0x158] sm:$0xff]
    %v8334 = vld [vmem:[#allocation5 + $0x160] sm:$0xff]
    %v8335 = vld [vmem:[#allocation5 + $0x168] sm:$0xff]
    %v8336 = vld [vmem:[#allocation5 + $0x170] sm:$0xff]
    %v8337 = vld [vmem:[#allocation5 + $0x178] sm:$0xff]
    %v8338 = vld [vmem:[#allocation5 + $0x180] sm:$0xff]
    %v8339 = vld [vmem:[#allocation5 + $0x188] sm:$0xff]
    %v8340 = vld [vmem:[#allocation5 + $0x190] sm:$0xff]
    %v8341 = vld [vmem:[#allocation5 + $0x198] sm:$0xff]
    %v8342 = vld [vmem:[#allocation5 + $0x1a0] sm:$0xff]
    %v8343 = vld [vmem:[#allocation5 + $0x1a8] sm:$0xff]
    %v8344 = vld [vmem:[#allocation5 + $0x1b0] sm:$0xff]
    %v8345 = vld [vmem:[#allocation5 + $0x1b8] sm:$0xff]
    %v8346 = vld [vmem:[#allocation5 + $0x1c0] sm:$0xff]
    %v8347 = vld [vmem:[#allocation5 + $0x1c8] sm:$0xff]
    %v8348 = vld [vmem:[#allocation5 + $0x1d0] sm:$0xff]
    %v8349 = vld [vmem:[#allocation5 + $0x1d8] sm:$0xff]
    %v8350 = vld [vmem:[#allocation5 + $0x1e0] sm:$0xff]
    %v8351 = vld [vmem:[#allocation5 + $0x1e8] sm:$0xff]
    %v8352 = vld [vmem:[#allocation5 + $0x1f0] sm:$0xff]
    %v8353 = vld [vmem:[#allocation5 + $0x1f8] sm:$0xff]
    %v8354 = vadd.f32 %v8226, %v8290
    %v8355 = vadd.f32 %v8227, %v8291
    %v8356 = vadd.f32 %v8228, %v8292
    %v8357 = vadd.f32 %v8229, %v8293
    %v8358 = vadd.f32 %v8230, %v8294
    %v8359 = vadd.f32 %v8231, %v8295
    %v8360 = vadd.f32 %v8232, %v8296
    %v8361 = vadd.f32 %v8233, %v8297
    %v8362 = vadd.f32 %v8234, %v8298
    %v8363 = vadd.f32 %v8235, %v8299
    %v8364 = vadd.f32 %v8236, %v8300
    %v8365 = vadd.f32 %v8237, %v8301
    %v8366 = vadd.f32 %v8238, %v8302
    %v8367 = vadd.f32 %v8239, %v8303
    %v8368 = vadd.f32 %v8240, %v8304
    %v8369 = vadd.f32 %v8241, %v8305
    %v8370 = vadd.f32 %v8242, %v8306
    %v8371 = vadd.f32 %v8243, %v8307
    %v8372 = vadd.f32 %v8244, %v8308
    %v8373 = vadd.f32 %v8245, %v8309
    %v8374 = vadd.f32 %v8246, %v8310
    %v8375 = vadd.f32 %v8247, %v8311
    %v8376 = vadd.f32 %v8248, %v8312
    %v8377 = vadd.f32 %v8249, %v8313
    %v8378 = vadd.f32 %v8250, %v8314
    %v8379 = vadd.f32 %v8251, %v8315
    %v8380 = vadd.f32 %v8252, %v8316
    %v8381 = vadd.f32 %v8253, %v8317
    %v8382 = vadd.f32 %v8254, %v8318
    %v8383 = vadd.f32 %v8255, %v8319
    %v8384 = vadd.f32 %v8256, %v8320
    %v8385 = vadd.f32 %v8257, %v8321
    %v8386 = vadd.f32 %v8258, %v8322
    %v8387 = vadd.f32 %v8259, %v8323
    %v8388 = vadd.f32 %v8260, %v8324
    %v8389 = vadd.f32 %v8261, %v8325
    %v8390 = vadd.f32 %v8262, %v8326
    %v8391 = vadd.f32 %v8263, %v8327
    %v8392 = vadd.f32 %v8264, %v8328
    %v8393 = vadd.f32 %v8265, %v8329
    %v8394 = vadd.f32 %v8266, %v8330
    %v8395 = vadd.f32 %v8267, %v8331
    %v8396 = vadd.f32 %v8268, %v8332
    %v8397 = vadd.f32 %v8269, %v8333
    %v8398 = vadd.f32 %v8270, %v8334
    %v8399 = vadd.f32 %v8271, %v8335
    %v8400 = vadd.f32 %v8272, %v8336
    %v8401 = vadd.f32 %v8273, %v8337
    %v8402 = vadd.f32 %v8274, %v8338
    %v8403 = vadd.f32 %v8275, %v8339
    %v8404 = vadd.f32 %v8276, %v8340
    %v8405 = vadd.f32 %v8277, %v8341
    %v8406 = vadd.f32 %v8278, %v8342
    %v8407 = vadd.f32 %v8279, %v8343
    %v8408 = vadd.f32 %v8280, %v8344
    %v8409 = vadd.f32 %v8281, %v8345
    %v8410 = vadd.f32 %v8282, %v8346
    %v8411 = vadd.f32 %v8283, %v8347
    %v8412 = vadd.f32 %v8284, %v8348
    %v8413 = vadd.f32 %v8285, %v8349
    %v8414 = vadd.f32 %v8286, %v8350
    %v8415 = vadd.f32 %v8287, %v8351
    %v8416 = vadd.f32 %v8288, %v8352
    %v8417 = vadd.f32 %v8289, %v8353
    %v8418 = vmax.f32 %v8354, 0.0
    %v8419 = vmax.f32 %v8355, 0.0
    %v8420 = vmax.f32 %v8356, 0.0
    %v8421 = vmax.f32 %v8357, 0.0
    %v8422 = vmax.f32 %v8358, 0.0
    %v8423 = vmax.f32 %v8359, 0.0
    %v8424 = vmax.f32 %v8360, 0.0
    %v8425 = vmax.f32 %v8361, 0.0
    %v8426 = vmax.f32 %v8362, 0.0
    %v8427 = vmax.f32 %v8363, 0.0
    %v8428 = vmax.f32 %v8364, 0.0
    %v8429 = vmax.f32 %v8365, 0.0
    %v8430 = vmax.f32 %v8366, 0.0
    %v8431 = vmax.f32 %v8367, 0.0
    %v8432 = vmax.f32 %v8368, 0.0
    %v8433 = vmax.f32 %v8369, 0.0
    %v8434 = vmax.f32 %v8370, 0.0
    %v8435 = vmax.f32 %v8371, 0.0
    %v8436 = vmax.f32 %v8372, 0.0
    %v8437 = vmax.f32 %v8373, 0.0
    %v8438 = vmax.f32 %v8374, 0.0
    %v8439 = vmax.f32 %v8375, 0.0
    %v8440 = vmax.f32 %v8376, 0.0
    %v8441 = vmax.f32 %v8377, 0.0
    %v8442 = vmax.f32 %v8378, 0.0
    %v8443 = vmax.f32 %v8379, 0.0
    %v8444 = vmax.f32 %v8380, 0.0
    %v8445 = vmax.f32 %v8381, 0.0
    %v8446 = vmax.f32 %v8382, 0.0
    %v8447 = vmax.f32 %v8383, 0.0
    %v8448 = vmax.f32 %v8384, 0.0
    %v8449 = vmax.f32 %v8385, 0.0
    %v8450 = vmax.f32 %v8386, 0.0
    %v8451 = vmax.f32 %v8387, 0.0
    %v8452 = vmax.f32 %v8388, 0.0
    %v8453 = vmax.f32 %v8389, 0.0
    %v8454 = vmax.f32 %v8390, 0.0
    %v8455 = vmax.f32 %v8391, 0.0
    %v8456 = vmax.f32 %v8392, 0.0
    %v8457 = vmax.f32 %v8393, 0.0
    %v8458 = vmax.f32 %v8394, 0.0
    %v8459 = vmax.f32 %v8395, 0.0
    %v8460 = vmax.f32 %v8396, 0.0
    %v8461 = vmax.f32 %v8397, 0.0
    %v8462 = vmax.f32 %v8398, 0.0
    %v8463 = vmax.f32 %v8399, 0.0
    %v8464 = vmax.f32 %v8400, 0.0
    %v8465 = vmax.f32 %v8401, 0.0
    %v8466 = vmax.f32 %v8402, 0.0
    %v8467 = vmax.f32 %v8403, 0.0
    %v8468 = vmax.f32 %v8404, 0.0
    %v8469 = vmax.f32 %v8405, 0.0
    %v8470 = vmax.f32 %v8406, 0.0
    %v8471 = vmax.f32 %v8407, 0.0
    %v8472 = vmax.f32 %v8408, 0.0
    %v8473 = vmax.f32 %v8409, 0.0
    %v8474 = vmax.f32 %v8410, 0.0
    %v8475 = vmax.f32 %v8411, 0.0
    %v8476 = vmax.f32 %v8412, 0.0
    %v8477 = vmax.f32 %v8413, 0.0
    %v8478 = vmax.f32 %v8414, 0.0
    %v8479 = vmax.f32 %v8415, 0.0
    %v8480 = vmax.f32 %v8416, 0.0
    %v8481 = vmax.f32 %v8417, 0.0
    %8482 = vst [vmem:[#allocation11] sm:$0xff] %v8418
    %8483 = vst [vmem:[#allocation11 + $0x8] sm:$0xff] %v8419
    %8484 = vst [vmem:[#allocation11 + $0x10] sm:$0xff] %v8420
    %8485 = vst [vmem:[#allocation11 + $0x18] sm:$0xff] %v8421
    %8486 = vst [vmem:[#allocation11 + $0x20] sm:$0xff] %v8422
    %8487 = vst [vmem:[#allocation11 + $0x28] sm:$0xff] %v8423
    %8488 = vst [vmem:[#allocation11 + $0x30] sm:$0xff] %v8424
    %8489 = vst [vmem:[#allocation11 + $0x38] sm:$0xff] %v8425
    %8490 = vst [vmem:[#allocation11 + $0x40] sm:$0xff] %v8426
    %8491 = vst [vmem:[#allocation11 + $0x48] sm:$0xff] %v8427
    %8492 = vst [vmem:[#allocation11 + $0x50] sm:$0xff] %v8428
    %8493 = vst [vmem:[#allocation11 + $0x58] sm:$0xff] %v8429
    %8494 = vst [vmem:[#allocation11 + $0x60] sm:$0xff] %v8430
    %8495 = vst [vmem:[#allocation11 + $0x68] sm:$0xff] %v8431
    %8496 = vst [vmem:[#allocation11 + $0x70] sm:$0xff] %v8432
    %8497 = vst [vmem:[#allocation11 + $0x78] sm:$0xff] %v8433
    %8498 = vst [vmem:[#allocation11 + $0x80] sm:$0xff] %v8434
    %8499 = vst [vmem:[#allocation11 + $0x88] sm:$0xff] %v8435
    %8500 = vst [vmem:[#allocation11 + $0x90] sm:$0xff] %v8436
    %8501 = vst [vmem:[#allocation11 + $0x98] sm:$0xff] %v8437
    %8502 = vst [vmem:[#allocation11 + $0xa0] sm:$0xff] %v8438
    %8503 = vst [vmem:[#allocation11 + $0xa8] sm:$0xff] %v8439
    %8504 = vst [vmem:[#allocation11 + $0xb0] sm:$0xff] %v8440
    %8505 = vst [vmem:[#allocation11 + $0xb8] sm:$0xff] %v8441
    %8506 = vst [vmem:[#allocation11 + $0xc0] sm:$0xff] %v8442
    %8507 = vst [vmem:[#allocation11 + $0xc8] sm:$0xff] %v8443
    %8508 = vst [vmem:[#allocation11 + $0xd0] sm:$0xff] %v8444
    %8509 = vst [vmem:[#allocation11 + $0xd8] sm:$0xff] %v8445
    %8510 = vst [vmem:[#allocation11 + $0xe0] sm:$0xff] %v8446
    %8511 = vst [vmem:[#allocation11 + $0xe8] sm:$0xff] %v8447
    %8512 = vst [vmem:[#allocation11 + $0xf0] sm:$0xff] %v8448
    %8513 = vst [vmem:[#allocation11 + $0xf8] sm:$0xff] %v8449
    %8514 = vst [vmem:[#allocation11 + $0x100] sm:$0xff] %v8450
    %8515 = vst [vmem:[#allocation11 + $0x108] sm:$0xff] %v8451
    %8516 = vst [vmem:[#allocation11 + $0x110] sm:$0xff] %v8452
    %8517 = vst [vmem:[#allocation11 + $0x118] sm:$0xff] %v8453
    %8518 = vst [vmem:[#allocation11 + $0x120] sm:$0xff] %v8454
    %8519 = vst [vmem:[#allocation11 + $0x128] sm:$0xff] %v8455
    %8520 = vst [vmem:[#allocation11 + $0x130] sm:$0xff] %v8456
    %8521 = vst [vmem:[#allocation11 + $0x138] sm:$0xff] %v8457
    %8522 = vst [vmem:[#allocation11 + $0x140] sm:$0xff] %v8458
    %8523 = vst [vmem:[#allocation11 + $0x148] sm:$0xff] %v8459
    %8524 = vst [vmem:[#allocation11 + $0x150] sm:$0xff] %v8460
    %8525 = vst [vmem:[#allocation11 + $0x158] sm:$0xff] %v8461
    %8526 = vst [vmem:[#allocation11 + $0x160] sm:$0xff] %v8462
    %8527 = vst [vmem:[#allocation11 + $0x168] sm:$0xff] %v8463
    %8528 = vst [vmem:[#allocation11 + $0x170] sm:$0xff] %v8464
    %8529 = vst [vmem:[#allocation11 + $0x178] sm:$0xff] %v8465
    %8530 = vst [vmem:[#allocation11 + $0x180] sm:$0xff] %v8466
    %8531 = vst [vmem:[#allocation11 + $0x188] sm:$0xff] %v8467
    %8532 = vst [vmem:[#allocation11 + $0x190] sm:$0xff] %v8468
    %8533 = vst [vmem:[#allocation11 + $0x198] sm:$0xff] %v8469
    %8534 = vst [vmem:[#allocation11 + $0x1a0] sm:$0xff] %v8470
    %8535 = vst [vmem:[#allocation11 + $0x1a8] sm:$0xff] %v8471
    %8536 = vst [vmem:[#allocation11 + $0x1b0] sm:$0xff] %v8472
    %8537 = vst [vmem:[#allocation11 + $0x1b8] sm:$0xff] %v8473
    %8538 = vst [vmem:[#allocation11 + $0x1c0] sm:$0xff] %v8474
    %8539 = vst [vmem:[#allocation11 + $0x1c8] sm:$0xff] %v8475
    %8540 = vst [vmem:[#allocation11 + $0x1d0] sm:$0xff] %v8476
    %8541 = vst [vmem:[#allocation11 + $0x1d8] sm:$0xff] %v8477
    %8542 = vst [vmem:[#allocation11 + $0x1e0] sm:$0xff] %v8478
    %8543 = vst [vmem:[#allocation11 + $0x1e8] sm:$0xff] %v8479
    %8544 = vst [vmem:[#allocation11 + $0x1f0] sm:$0xff] %v8480
    %8545 = vst [vmem:[#allocation11 + $0x1f8] sm:$0xff] %v8481
    // Predicated region
    $region34: #{tpu_custom_call.1} parent=1 // pred_check
      _
    $region35: #{tpu_custom_call.1} parent=1 // pred_check_branch
      %8547 = sbr.rel (0) target = $region37
    $region36: #{tpu_custom_call.1} parent=1 // pred_region
      %s8549 = ssub.s32 8192, 8192
      %8550 = vsyncadd [#allocation7], %s8549
      %s8551 = sshll.u32 [#allocation11], 4
      %s8552 = int_to_ptr.vmem [resolvable:$true] %s8551
      %8557 = dma.vmem_to_hbm [thread:$0]  %s8552, 8192, %s5, [#allocation7], 128, 128, 8
    $region37: #{tpu_custom_call.1} parent=1 // pred_fallthru
      _
    // Predicated region
    $region38: #{tpu_custom_call.1} parent=1 // pred_check
      _
    $region39: #{tpu_custom_call.1} parent=1 // pred_check_branch
      %8559 = sbr.rel (0) target = $region41
    $region40: #{tpu_custom_call.1} parent=1 // pred_region
      %8560 = dma.done [#allocation7], 8192
    $region41: #{tpu_custom_call.1} parent=1 // pred_fallthru
      _
    %8561 = vsyncpa [#allocation6], 1
    %8562 = vsyncpa [#allocation9], 1
    %8563 = vsyncpa [#allocation7], 1

</llo_original>
